<compile_context>
chip_gen: v7x
topology: tpu7x:2x2x1
jax: 0.10.0
libtpu: 0.0.40
codegen_flags: <defaults>
</compile_context>

<pallas_src>
import functools

import jax
import jax.numpy as jnp
from jax.experimental import pallas as pl
from jax.experimental.pallas import tpu as pltpu


# ----------------------------------------------------------------------------
# Pallas kernels
# ----------------------------------------------------------------------------
def _matmul_bias_single_k_kernel(a_ref, w_ref, b_ref, o_ref, *, relu):
    """out = relu?(A @ W + b), full reduction in one block; grid over M only."""
    r = jnp.dot(a_ref[...], w_ref[...], preferred_element_type=jnp.float32)
    r = r + b_ref[...]
    if relu:
        r = jnp.maximum(r, 0.0)
    o_ref[...] = r.astype(o_ref.dtype)


def _matmul_bias_acc_kernel(a_ref, w_ref, b_ref, o_ref, acc_ref, *, relu):
    """out = relu?(A @ W + b); grid = (M tiles, K tiles), reduction axis last."""
    k = pl.program_id(1)

    @pl.when(k == 0)
    def _():
        acc_ref[...] = jnp.zeros_like(acc_ref)

    acc_ref[...] += jnp.dot(a_ref[...], w_ref[...],
                            preferred_element_type=jnp.float32)

    @pl.when(k == pl.num_programs(1) - 1)
    def _():
        r = acc_ref[...] + b_ref[...]
        if relu:
            r = jnp.maximum(r, 0.0)
        o_ref[...] = r.astype(o_ref.dtype)


def matmul_bias(a, w, b, *, relu=False, tm=512, tk_max=2048):
    """a: (M, K) f32, w: (K, N) f32, b: (N,) f32 -> (M, N) f32.

    bf16 MXU inputs, f32 accumulation.  N is padded to a multiple of 128 for
    lane-dense stores; M is tiled (parallel axis); K is a single block when it
    fits, otherwise tiled with tk_max (reduction axis last in the grid).
    """
    M, K = a.shape
    Kw, N = w.shape
    assert K == Kw

    # Lane-dense output: pad N up to a multiple of 128.
    Np = pl.cdiv(N, 128) * 128
    if Np != N:
        w = jnp.pad(w, ((0, 0), (0, Np - N)))
        b = jnp.pad(b, ((0, Np - N),))

    # Reduction tiling: full K when it fits (all convs, FC2), big tiles for FC1.
    tk = K if K <= tk_max else tk_max
    Kp = pl.cdiv(K, tk) * tk
    if Kp != K:  # zero-pad reduction axis (contributes nothing)
        a = jnp.pad(a, ((0, 0), (0, Kp - K)))
        w = jnp.pad(w, ((0, Kp - K), (0, 0)))
    nk = Kp // tk

    # M (rows) tiling: keeps VMEM bounded at real batch sizes.
    tm = min(tm, M)
    Mp = pl.cdiv(M, tm) * tm
    if Mp != M:
        a = jnp.pad(a, ((0, Mp - M), (0, 0)))
    nm = Mp // tm

    a16 = a.astype(jnp.bfloat16)
    w16 = w.astype(jnp.bfloat16)
    b2 = b.reshape(1, Np).astype(jnp.float32)

    cp = pltpu.CompilerParams(
        dimension_semantics=("parallel",) if nk == 1 else ("parallel", "arbitrary"),
        vmem_limit_bytes=32 * 1024 * 1024,
    )

    if nk == 1:
        out = pl.pallas_call(
            functools.partial(_matmul_bias_single_k_kernel, relu=relu),
            out_shape=jax.ShapeDtypeStruct((Mp, Np), jnp.float32),
            grid_spec=pltpu.PrefetchScalarGridSpec(
                num_scalar_prefetch=0,
                grid=(nm,),
                in_specs=[
                    pl.BlockSpec((tm, Kp), lambda i: (i, 0)),
                    pl.BlockSpec((Kp, Np), lambda i: (0, 0)),
                    pl.BlockSpec((1, Np), lambda i: (0, 0)),
                ],
                out_specs=pl.BlockSpec((tm, Np), lambda i: (i, 0)),
            ),
            compiler_params=cp,
        )(a16, w16, b2)
    else:
        out = pl.pallas_call(
            functools.partial(_matmul_bias_acc_kernel, relu=relu),
            out_shape=jax.ShapeDtypeStruct((Mp, Np), jnp.float32),
            grid_spec=pltpu.PrefetchScalarGridSpec(
                num_scalar_prefetch=0,
                grid=(nm, nk),
                in_specs=[
                    pl.BlockSpec((tm, tk), lambda i, k: (i, k)),
                    pl.BlockSpec((tk, Np), lambda i, k: (k, 0)),
                    pl.BlockSpec((1, Np), lambda i, k: (0, 0)),
                ],
                out_specs=pl.BlockSpec((tm, Np), lambda i, k: (i, 0)),
                scratch_shapes=[pltpu.VMEM((tm, Np), jnp.float32)],
            ),
            compiler_params=cp,
        )(a16, w16, b2)

    if Mp != M or Np != N:
        out = out[:M, :N]
    return out


def _max4_kernel(a_ref, b_ref, c_ref, d_ref, o_ref):
    o_ref[...] = jnp.maximum(jnp.maximum(a_ref[...], b_ref[...]),
                             jnp.maximum(c_ref[...], d_ref[...]))


def maxpool2x2(x):
    """x: (N, H, W, C) NHWC -> (N, H//2, W//2, C), 2x2 / stride-2 max pool."""
    n, h, w, c = x.shape
    assert h % 2 == 0 and w % 2 == 0, (h, w)
    hh, ww = h // 2, w // 2
    # Strided window slices are glue; the max itself runs in the kernel.
    quads = [
        x[:, 0::2, 0::2, :], x[:, 0::2, 1::2, :],
        x[:, 1::2, 0::2, :], x[:, 1::2, 1::2, :],
    ]
    rows, lanes = n * hh, ww * c  # lane-dense: (ww*c) is a multiple of 128 here
    flat = [q.reshape(rows, lanes) for q in quads]

    block_rows = rows
    for cand in (512, 256, 128, 64, 32, 16, 8):
        if rows % cand == 0:
            block_rows = cand
            break

    out = pl.pallas_call(
        _max4_kernel,
        out_shape=jax.ShapeDtypeStruct((rows, lanes), x.dtype),
        grid=(rows // block_rows,),
        in_specs=[pl.BlockSpec((block_rows, lanes), lambda i: (i, 0))] * 4,
        out_specs=pl.BlockSpec((block_rows, lanes), lambda i: (i, 0)),
        compiler_params=pltpu.CompilerParams(dimension_semantics=("parallel",)),
    )(*flat)
    return out.reshape(n, hh, ww, c)


# ----------------------------------------------------------------------------
# Conv via im2col + Pallas matmul
# ----------------------------------------------------------------------------
def conv3x3_relu(x_nhwc, weight, bias):
    """3x3 conv, stride 1, pad 1, + ReLU.

    x_nhwc: (N, H, W, Cin); weight: (Cout, Cin, 3, 3) (torch layout); bias: (Cout,)
    returns (N, H, W, Cout).
    """
    n, h, w, cin = x_nhwc.shape
    cout = weight.shape[0]
    xp = jnp.pad(x_nhwc, ((0, 0), (1, 1), (1, 1), (0, 0)))
    # Patch K ordering (Cin, kh, kw) matches torch weight.reshape(Cout, Cin*9).
    shifted = jnp.stack(
        [xp[:, dy:dy + h, dx:dx + w, :] for dy in range(3) for dx in range(3)],
        axis=-1)                                   # (N, H, W, Cin, 9)
    patches = shifted.reshape(n * h * w, cin * 9)  # (M, K)
    w2 = weight.reshape(cout, cin * 9).T           # (K, Cout)
    out = matmul_bias(patches, w2, bias, relu=True)
    return out.reshape(n, h, w, cout)


# ----------------------------------------------------------------------------
# Full model
# ----------------------------------------------------------------------------
def init_params(key):
    ks = jax.random.split(key, 10)

    def u(k, shape, fan_in):
        bound = 1.0 / jnp.sqrt(fan_in)
        return jax.random.uniform(k, shape, jnp.float32, -bound, bound)

    return {
        "conv1_w": u(ks[0], (32, 3, 3, 3), 3 * 9),
        "conv1_b": u(ks[1], (32,), 3 * 9),
        "conv2_w": u(ks[2], (64, 32, 3, 3), 32 * 9),
        "conv2_b": u(ks[3], (64,), 32 * 9),
        "conv3_w": u(ks[4], (128, 64, 3, 3), 64 * 9),
        "conv3_b": u(ks[5], (128,), 64 * 9),
        "fc1_w": u(ks[6], (128 * 8 * 8, 512), 128 * 8 * 8),  # (in, out)
        "fc1_b": u(ks[7], (512,), 128 * 8 * 8),
        "fc2_w": u(ks[8], (512, 10), 512),
        "fc2_b": u(ks[9], (10,), 512),
    }


def cnn_cifar_forward(params, x_nchw):
    """x_nchw: (N, 3, 32, 32) float32 -> logits (N, 10)."""
    x = jnp.transpose(x_nchw, (0, 2, 3, 1))                     # NCHW -> NHWC
    x = conv3x3_relu(x, params["conv1_w"], params["conv1_b"])   # (N,32,32,32)
    x = conv3x3_relu(x, params["conv2_w"], params["conv2_b"])   # (N,32,32,64)
    x = maxpool2x2(x)                                           # (N,16,16,64)
    x = conv3x3_relu(x, params["conv3_w"], params["conv3_b"])   # (N,16,16,128)
    x = maxpool2x2(x)                                           # (N,8,8,128)
    n = x.shape[0]
    # torch flattens NCHW: (N, C, H, W) -> (N, C*H*W)
    x = jnp.transpose(x, (0, 3, 1, 2)).reshape(n, -1)           # (N, 8192)
    x = matmul_bias(x, params["fc1_w"], params["fc1_b"], relu=True)        # (N,512)
    logits = matmul_bias(x, params["fc2_w"], params["fc2_b"], relu=False)  # (N,10)
    return logits


if __name__ == "__main__":
    key = jax.random.PRNGKey(0)
    pkey, xkey = jax.random.split(key)
    params = init_params(pkey)
    # Spatial must be 32x32 to satisfy the 128*8*8 classifier.
    x = jax.random.normal(xkey, (2, 3, 32, 32), dtype=jnp.float32)

    logits = jax.jit(cnn_cifar_forward)(params, x)
    logits = jax.block_until_ready(logits)

    assert logits.shape == (2, 10), logits.shape
    assert bool(jnp.all(jnp.isfinite(logits)))
    print("KERNEL_OK")
</pallas_src>

<mosaic_0001>
module attributes {stable_mosaic.version = 11 : i64} {
  func.func @_matmul_bias_single_k_kernel(%arg0: i32, %arg1: memref<512x27xbf16, #tpu.memory_space<vmem>>, %arg2: memref<27x128xbf16, #tpu.memory_space<vmem>>, %arg3: memref<1x128xf32, #tpu.memory_space<vmem>>, %arg4: memref<512x128xf32, #tpu.memory_space<vmem>>) attributes {dimension_semantics = [#tpu.dimension_semantics<parallel>], iteration_bounds = array<i64: 4>, scalar_prefetch = 0 : i64, scratch_operands = 0 : i64, tpu.core_type = #tpu.core_type<tc>, window_params = [{transform_indices = @transform_0, window_bounds = array<i64: 512, 27>}, {pipeline_mode = #tpu.pipeline_mode<synchronous>, transform_indices = @transform_1, window_bounds = array<i64: 27, 128>}, {pipeline_mode = #tpu.pipeline_mode<synchronous>, transform_indices = @transform_2, window_bounds = array<i64: 1, 128>}, {transform_indices = @transform_3, window_bounds = array<i64: 512, 128>}]} {
    %c0 = arith.constant 0 : index
    %c0_0 = arith.constant 0 : index
    %0 = vector.load %arg1[%c0, %c0_0] : memref<512x27xbf16, #tpu.memory_space<vmem>>, vector<512x27xbf16>
    %c0_1 = arith.constant 0 : index
    %c0_2 = arith.constant 0 : index
    %1 = vector.load %arg2[%c0_1, %c0_2] : memref<27x128xbf16, #tpu.memory_space<vmem>>, vector<27x128xbf16>
    %cst = arith.constant dense<0.000000e+00> : vector<512x128xf32>
    %2 = tpu.matmul %0, %1, %cst {dimension_numbers = #tpu.dot_dimension_numbers<[1], [0], [0], [1], [0, 0, 1, 1], [], []>} : vector<512x27xbf16>, vector<27x128xbf16>, vector<512x128xf32> -> vector<512x128xf32>
    %c0_3 = arith.constant 0 : index
    %c0_4 = arith.constant 0 : index
    %3 = vector.load %arg3[%c0_3, %c0_4] : memref<1x128xf32, #tpu.memory_space<vmem>>, vector<1x128xf32>
    %4 = vector.broadcast %3 : vector<1x128xf32> to vector<512x128xf32>
    %5 = arith.addf %2, %4 : vector<512x128xf32>
    %cst_5 = arith.constant 0.000000e+00 : f32
    %6 = vector.broadcast %cst_5 : f32 to vector<512x128xf32>
    %7 = arith.maximumf %5, %6 : vector<512x128xf32>
    %c0_6 = arith.constant 0 : index
    %c0_7 = arith.constant 0 : index
    %8 = vector.load %arg4[%c0_6, %c0_7] : memref<512x128xf32, #tpu.memory_space<vmem>>, vector<512x128xf32>
    tpu.vector_store %arg4[%c0_6, %c0_7], %7 {strides = array<i32>} : memref<512x128xf32, #tpu.memory_space<vmem>>, vector<512x128xf32>,
    return
  }
  func.func @transform_0(%arg0: i32) -> (i32, i32) {
    %c0_i32 = arith.constant 0 : i32
    %c0_i32_0 = arith.constant 0 : i32
    return %arg0, %c0_i32 : i32, i32
  }
  func.func @transform_1(%arg0: i32) -> (i32, i32) {
    %c0_i32 = arith.constant 0 : i32
    %c0_i32_0 = arith.constant 0 : i32
    %c0_i32_1 = arith.constant 0 : i32
    return %c0_i32, %c0_i32_0 : i32, i32
  }
  func.func @transform_2(%arg0: i32) -> (i32, i32) {
    %c0_i32 = arith.constant 0 : i32
    %c0_i32_0 = arith.constant 0 : i32
    %c0_i32_1 = arith.constant 0 : i32
    return %c0_i32, %c0_i32_0 : i32, i32
  }
  func.func @transform_3(%arg0: i32) -> (i32, i32) {
    %c0_i32 = arith.constant 0 : i32
    %c0_i32_0 = arith.constant 0 : i32
    return %arg0, %c0_i32 : i32, i32
  }
}

module attributes {stable_mosaic.version = 11 : i64} {
  func.func @_matmul_bias_single_k_kernel(%arg0: i32, %arg1: memref<512x288xbf16, #tpu.memory_space<vmem>>, %arg2: memref<288x128xbf16, #tpu.memory_space<vmem>>, %arg3: memref<1x128xf32, #tpu.memory_space<vmem>>, %arg4: memref<512x128xf32, #tpu.memory_space<vmem>>) attributes {dimension_semantics = [#tpu.dimension_semantics<parallel>], iteration_bounds = array<i64: 4>, scalar_prefetch = 0 : i64, scratch_operands = 0 : i64, tpu.core_type = #tpu.core_type<tc>, window_params = [{transform_indices = @transform_0, window_bounds = array<i64: 512, 288>}, {pipeline_mode = #tpu.pipeline_mode<synchronous>, transform_indices = @transform_1, window_bounds = array<i64: 288, 128>}, {pipeline_mode = #tpu.pipeline_mode<synchronous>, transform_indices = @transform_2, window_bounds = array<i64: 1, 128>}, {transform_indices = @transform_3, window_bounds = array<i64: 512, 128>}]} {
    %c0 = arith.constant 0 : index
    %c0_0 = arith.constant 0 : index
    %0 = vector.load %arg1[%c0, %c0_0] : memref<512x288xbf16, #tpu.memory_space<vmem>>, vector<512x288xbf16>
    %c0_1 = arith.constant 0 : index
    %c0_2 = arith.constant 0 : index
    %1 = vector.load %arg2[%c0_1, %c0_2] : memref<288x128xbf16, #tpu.memory_space<vmem>>, vector<288x128xbf16>
    %cst = arith.constant dense<0.000000e+00> : vector<512x128xf32>
    %2 = tpu.matmul %0, %1, %cst {dimension_numbers = #tpu.dot_dimension_numbers<[1], [0], [0], [1], [0, 0, 1, 1], [], []>} : vector<512x288xbf16>, vector<288x128xbf16>, vector<512x128xf32> -> vector<512x128xf32>
    %c0_3 = arith.constant 0 : index
    %c0_4 = arith.constant 0 : index
    %3 = vector.load %arg3[%c0_3, %c0_4] : memref<1x128xf32, #tpu.memory_space<vmem>>, vector<1x128xf32>
    %4 = vector.broadcast %3 : vector<1x128xf32> to vector<512x128xf32>
    %5 = arith.addf %2, %4 : vector<512x128xf32>
    %cst_5 = arith.constant 0.000000e+00 : f32
    %6 = vector.broadcast %cst_5 : f32 to vector<512x128xf32>
    %7 = arith.maximumf %5, %6 : vector<512x128xf32>
    %c0_6 = arith.constant 0 : index
    %c0_7 = arith.constant 0 : index
    %8 = vector.load %arg4[%c0_6, %c0_7] : memref<512x128xf32, #tpu.memory_space<vmem>>, vector<512x128xf32>
    tpu.vector_store %arg4[%c0_6, %c0_7], %7 {strides = array<i32>} : memref<512x128xf32, #tpu.memory_space<vmem>>, vector<512x128xf32>,
    return
  }
  func.func @transform_0(%arg0: i32) -> (i32, i32) {
    %c0_i32 = arith.constant 0 : i32
    %c0_i32_0 = arith.constant 0 : i32
    return %arg0, %c0_i32 : i32, i32
  }
  func.func @transform_1(%arg0: i32) -> (i32, i32) {
    %c0_i32 = arith.constant 0 : i32
    %c0_i32_0 = arith.constant 0 : i32
    %c0_i32_1 = arith.constant 0 : i32
    return %c0_i32, %c0_i32_0 : i32, i32
  }
  func.func @transform_2(%arg0: i32) -> (i32, i32) {
    %c0_i32 = arith.constant 0 : i32
    %c0_i32_0 = arith.constant 0 : i32
    %c0_i32_1 = arith.constant 0 : i32
    return %c0_i32, %c0_i32_0 : i32, i32
  }
  func.func @transform_3(%arg0: i32) -> (i32, i32) {
    %c0_i32 = arith.constant 0 : i32
    %c0_i32_0 = arith.constant 0 : i32
    return %arg0, %c0_i32 : i32, i32
  }
}

module attributes {stable_mosaic.version = 11 : i64} {
  func.func @_max4_kernel(%arg0: i32, %arg1: memref<32x1024xf32, #tpu.memory_space<vmem>>, %arg2: memref<32x1024xf32, #tpu.memory_space<vmem>>, %arg3: memref<32x1024xf32, #tpu.memory_space<vmem>>, %arg4: memref<32x1024xf32, #tpu.memory_space<vmem>>, %arg5: memref<32x1024xf32, #tpu.memory_space<vmem>>) attributes {dimension_semantics = [#tpu.dimension_semantics<parallel>], iteration_bounds = array<i64: 1>, scalar_prefetch = 0 : i64, scratch_operands = 0 : i64, tpu.core_type = #tpu.core_type<tc>, window_params = [{transform_indices = @transform_0, window_bounds = array<i64: 32, 1024>}, {transform_indices = @transform_1, window_bounds = array<i64: 32, 1024>}, {transform_indices = @transform_2, window_bounds = array<i64: 32, 1024>}, {transform_indices = @transform_3, window_bounds = array<i64: 32, 1024>}, {transform_indices = @transform_4, window_bounds = array<i64: 32, 1024>}]} {
    %c0 = arith.constant 0 : index
    %c0_0 = arith.constant 0 : index
    %0 = vector.load %arg1[%c0, %c0_0] : memref<32x1024xf32, #tpu.memory_space<vmem>>, vector<32x1024xf32>
    %c0_1 = arith.constant 0 : index
    %c0_2 = arith.constant 0 : index
    %1 = vector.load %arg2[%c0_1, %c0_2] : memref<32x1024xf32, #tpu.memory_space<vmem>>, vector<32x1024xf32>
    %2 = arith.maximumf %0, %1 : vector<32x1024xf32>
    %c0_3 = arith.constant 0 : index
    %c0_4 = arith.constant 0 : index
    %3 = vector.load %arg3[%c0_3, %c0_4] : memref<32x1024xf32, #tpu.memory_space<vmem>>, vector<32x1024xf32>
    %c0_5 = arith.constant 0 : index
    %c0_6 = arith.constant 0 : index
    %4 = vector.load %arg4[%c0_5, %c0_6] : memref<32x1024xf32, #tpu.memory_space<vmem>>, vector<32x1024xf32>
    %5 = arith.maximumf %3, %4 : vector<32x1024xf32>
    %6 = arith.maximumf %2, %5 : vector<32x1024xf32>
    %c0_7 = arith.constant 0 : index
    %c0_8 = arith.constant 0 : index
    %7 = vector.load %arg5[%c0_7, %c0_8] : memref<32x1024xf32, #tpu.memory_space<vmem>>, vector<32x1024xf32>
    tpu.vector_store %arg5[%c0_7, %c0_8], %6 {strides = array<i32>} : memref<32x1024xf32, #tpu.memory_space<vmem>>, vector<32x1024xf32>,
    return
  }
  func.func @transform_0(%arg0: i32) -> (i32, i32) {
    %c0_i32 = arith.constant 0 : i32
    %c0_i32_0 = arith.constant 0 : i32
    return %arg0, %c0_i32 : i32, i32
  }
  func.func @transform_1(%arg0: i32) -> (i32, i32) {
    %c0_i32 = arith.constant 0 : i32
    %c0_i32_0 = arith.constant 0 : i32
    return %arg0, %c0_i32 : i32, i32
  }
  func.func @transform_2(%arg0: i32) -> (i32, i32) {
    %c0_i32 = arith.constant 0 : i32
    %c0_i32_0 = arith.constant 0 : i32
    return %arg0, %c0_i32 : i32, i32
  }
  func.func @transform_3(%arg0: i32) -> (i32, i32) {
    %c0_i32 = arith.constant 0 : i32
    %c0_i32_0 = arith.constant 0 : i32
    return %arg0, %c0_i32 : i32, i32
  }
  func.func @transform_4(%arg0: i32) -> (i32, i32) {
    %c0_i32 = arith.constant 0 : i32
    %c0_i32_0 = arith.constant 0 : i32
    return %arg0, %c0_i32 : i32, i32
  }
}

module attributes {stable_mosaic.version = 11 : i64} {
  func.func @_matmul_bias_single_k_kernel(%arg0: i32, %arg1: memref<512x576xbf16, #tpu.memory_space<vmem>>, %arg2: memref<576x128xbf16, #tpu.memory_space<vmem>>, %arg3: memref<1x128xf32, #tpu.memory_space<vmem>>, %arg4: memref<512x128xf32, #tpu.memory_space<vmem>>) attributes {dimension_semantics = [#tpu.dimension_semantics<parallel>], iteration_bounds = array<i64: 1>, scalar_prefetch = 0 : i64, scratch_operands = 0 : i64, tpu.core_type = #tpu.core_type<tc>, window_params = [{transform_indices = @transform_0, window_bounds = array<i64: 512, 576>}, {pipeline_mode = #tpu.pipeline_mode<synchronous>, transform_indices = @transform_1, window_bounds = array<i64: 576, 128>}, {pipeline_mode = #tpu.pipeline_mode<synchronous>, transform_indices = @transform_2, window_bounds = array<i64: 1, 128>}, {transform_indices = @transform_3, window_bounds = array<i64: 512, 128>}]} {
    %c0 = arith.constant 0 : index
    %c0_0 = arith.constant 0 : index
    %0 = vector.load %arg1[%c0, %c0_0] : memref<512x576xbf16, #tpu.memory_space<vmem>>, vector<512x576xbf16>
    %c0_1 = arith.constant 0 : index
    %c0_2 = arith.constant 0 : index
    %1 = vector.load %arg2[%c0_1, %c0_2] : memref<576x128xbf16, #tpu.memory_space<vmem>>, vector<576x128xbf16>
    %cst = arith.constant dense<0.000000e+00> : vector<512x128xf32>
    %2 = tpu.matmul %0, %1, %cst {dimension_numbers = #tpu.dot_dimension_numbers<[1], [0], [0], [1], [0, 0, 1, 1], [], []>} : vector<512x576xbf16>, vector<576x128xbf16>, vector<512x128xf32> -> vector<512x128xf32>
    %c0_3 = arith.constant 0 : index
    %c0_4 = arith.constant 0 : index
    %3 = vector.load %arg3[%c0_3, %c0_4] : memref<1x128xf32, #tpu.memory_space<vmem>>, vector<1x128xf32>
    %4 = vector.broadcast %3 : vector<1x128xf32> to vector<512x128xf32>
    %5 = arith.addf %2, %4 : vector<512x128xf32>
    %cst_5 = arith.constant 0.000000e+00 : f32
    %6 = vector.broadcast %cst_5 : f32 to vector<512x128xf32>
    %7 = arith.maximumf %5, %6 : vector<512x128xf32>
    %c0_6 = arith.constant 0 : index
    %c0_7 = arith.constant 0 : index
    %8 = vector.load %arg4[%c0_6, %c0_7] : memref<512x128xf32, #tpu.memory_space<vmem>>, vector<512x128xf32>
    tpu.vector_store %arg4[%c0_6, %c0_7], %7 {strides = array<i32>} : memref<512x128xf32, #tpu.memory_space<vmem>>, vector<512x128xf32>,
    return
  }
  func.func @transform_0(%arg0: i32) -> (i32, i32) {
    %c0_i32 = arith.constant 0 : i32
    %c0_i32_0 = arith.constant 0 : i32
    return %arg0, %c0_i32 : i32, i32
  }
  func.func @transform_1(%arg0: i32) -> (i32, i32) {
    %c0_i32 = arith.constant 0 : i32
    %c0_i32_0 = arith.constant 0 : i32
    %c0_i32_1 = arith.constant 0 : i32
    return %c0_i32, %c0_i32_0 : i32, i32
  }
  func.func @transform_2(%arg0: i32) -> (i32, i32) {
    %c0_i32 = arith.constant 0 : i32
    %c0_i32_0 = arith.constant 0 : i32
    %c0_i32_1 = arith.constant 0 : i32
    return %c0_i32, %c0_i32_0 : i32, i32
  }
  func.func @transform_3(%arg0: i32) -> (i32, i32) {
    %c0_i32 = arith.constant 0 : i32
    %c0_i32_0 = arith.constant 0 : i32
    return %arg0, %c0_i32 : i32, i32
  }
}

module attributes {stable_mosaic.version = 11 : i64} {
  func.func @_max4_kernel(%arg0: i32, %arg1: memref<16x1024xf32, #tpu.memory_space<vmem>>, %arg2: memref<16x1024xf32, #tpu.memory_space<vmem>>, %arg3: memref<16x1024xf32, #tpu.memory_space<vmem>>, %arg4: memref<16x1024xf32, #tpu.memory_space<vmem>>, %arg5: memref<16x1024xf32, #tpu.memory_space<vmem>>) attributes {dimension_semantics = [#tpu.dimension_semantics<parallel>], iteration_bounds = array<i64: 1>, scalar_prefetch = 0 : i64, scratch_operands = 0 : i64, tpu.core_type = #tpu.core_type<tc>, window_params = [{transform_indices = @transform_0, window_bounds = array<i64: 16, 1024>}, {transform_indices = @transform_1, window_bounds = array<i64: 16, 1024>}, {transform_indices = @transform_2, window_bounds = array<i64: 16, 1024>}, {transform_indices = @transform_3, window_bounds = array<i64: 16, 1024>}, {transform_indices = @transform_4, window_bounds = array<i64: 16, 1024>}]} {
    %c0 = arith.constant 0 : index
    %c0_0 = arith.constant 0 : index
    %0 = vector.load %arg1[%c0, %c0_0] : memref<16x1024xf32, #tpu.memory_space<vmem>>, vector<16x1024xf32>
    %c0_1 = arith.constant 0 : index
    %c0_2 = arith.constant 0 : index
    %1 = vector.load %arg2[%c0_1, %c0_2] : memref<16x1024xf32, #tpu.memory_space<vmem>>, vector<16x1024xf32>
    %2 = arith.maximumf %0, %1 : vector<16x1024xf32>
    %c0_3 = arith.constant 0 : index
    %c0_4 = arith.constant 0 : index
    %3 = vector.load %arg3[%c0_3, %c0_4] : memref<16x1024xf32, #tpu.memory_space<vmem>>, vector<16x1024xf32>
    %c0_5 = arith.constant 0 : index
    %c0_6 = arith.constant 0 : index
    %4 = vector.load %arg4[%c0_5, %c0_6] : memref<16x1024xf32, #tpu.memory_space<vmem>>, vector<16x1024xf32>
    %5 = arith.maximumf %3, %4 : vector<16x1024xf32>
    %6 = arith.maximumf %2, %5 : vector<16x1024xf32>
    %c0_7 = arith.constant 0 : index
    %c0_8 = arith.constant 0 : index
    %7 = vector.load %arg5[%c0_7, %c0_8] : memref<16x1024xf32, #tpu.memory_space<vmem>>, vector<16x1024xf32>
    tpu.vector_store %arg5[%c0_7, %c0_8], %6 {strides = array<i32>} : memref<16x1024xf32, #tpu.memory_space<vmem>>, vector<16x1024xf32>,
    return
  }
  func.func @transform_0(%arg0: i32) -> (i32, i32) {
    %c0_i32 = arith.constant 0 : i32
    %c0_i32_0 = arith.constant 0 : i32
    return %arg0, %c0_i32 : i32, i32
  }
  func.func @transform_1(%arg0: i32) -> (i32, i32) {
    %c0_i32 = arith.constant 0 : i32
    %c0_i32_0 = arith.constant 0 : i32
    return %arg0, %c0_i32 : i32, i32
  }
  func.func @transform_2(%arg0: i32) -> (i32, i32) {
    %c0_i32 = arith.constant 0 : i32
    %c0_i32_0 = arith.constant 0 : i32
    return %arg0, %c0_i32 : i32, i32
  }
  func.func @transform_3(%arg0: i32) -> (i32, i32) {
    %c0_i32 = arith.constant 0 : i32
    %c0_i32_0 = arith.constant 0 : i32
    return %arg0, %c0_i32 : i32, i32
  }
  func.func @transform_4(%arg0: i32) -> (i32, i32) {
    %c0_i32 = arith.constant 0 : i32
    %c0_i32_0 = arith.constant 0 : i32
    return %arg0, %c0_i32 : i32, i32
  }
}

module attributes {stable_mosaic.version = 11 : i64} {
  func.func @_matmul_bias_acc_kernel(%arg0: i32, %arg1: i32, %arg2: memref<2x2048xbf16, #tpu.memory_space<vmem>>, %arg3: memref<2048x512xbf16, #tpu.memory_space<vmem>>, %arg4: memref<1x512xf32, #tpu.memory_space<vmem>>, %arg5: memref<2x512xf32, #tpu.memory_space<vmem>>, %arg6: memref<2x512xf32, #tpu.memory_space<vmem>>) attributes {dimension_semantics = [#tpu.dimension_semantics<parallel>, #tpu.dimension_semantics<arbitrary>], iteration_bounds = array<i64: 1, 4>, scalar_prefetch = 0 : i64, scratch_operands = 1 : i64, tpu.core_type = #tpu.core_type<tc>, window_params = [{transform_indices = @transform_0, window_bounds = array<i64: 2, 2048>}, {transform_indices = @transform_1, window_bounds = array<i64: 2048, 512>}, {pipeline_mode = #tpu.pipeline_mode<synchronous>, transform_indices = @transform_2, window_bounds = array<i64: 1, 512>}, {transform_indices = @transform_3, window_bounds = array<i64: 2, 512>}]} {
    %c0_i32 = arith.constant 0 : i32
    %0 = arith.cmpi eq, %arg1, %c0_i32 : i32
    %1 = arith.extui %0 : i1 to i32
    %c0_i32_0 = arith.constant 0 : i32
    %2 = arith.cmpi ne, %1, %c0_i32_0 : i32
    scf.if %2 {
      %cst_9 = arith.constant 0.000000e+00 : f32
      %12 = vector.broadcast %cst_9 : f32 to vector<2x512xf32>
      %c0_10 = arith.constant 0 : index
      %c0_11 = arith.constant 0 : index
      %13 = vector.load %arg6[%c0_10, %c0_11] : memref<2x512xf32, #tpu.memory_space<vmem>>, vector<2x512xf32>
      tpu.vector_store %arg6[%c0_10, %c0_11], %12 {strides = array<i32>} : memref<2x512xf32, #tpu.memory_space<vmem>>, vector<2x512xf32>,
    } else {
    }
    %c0 = arith.constant 0 : index
    %c0_1 = arith.constant 0 : index
    %3 = vector.load %arg6[%c0, %c0_1] : memref<2x512xf32, #tpu.memory_space<vmem>>, vector<2x512xf32>
    %c0_2 = arith.constant 0 : index
    %c0_3 = arith.constant 0 : index
    %4 = vector.load %arg2[%c0_2, %c0_3] : memref<2x2048xbf16, #tpu.memory_space<vmem>>, vector<2x2048xbf16>
    %c0_4 = arith.constant 0 : index
    %c0_5 = arith.constant 0 : index
    %5 = vector.load %arg3[%c0_4, %c0_5] : memref<2048x512xbf16, #tpu.memory_space<vmem>>, vector<2048x512xbf16>
    %cst = arith.constant dense<0.000000e+00> : vector<2x512xf32>
    %6 = tpu.matmul %4, %5, %cst {dimension_numbers = #tpu.dot_dimension_numbers<[1], [0], [0], [1], [0, 0, 1, 1], [], []>} : vector<2x2048xbf16>, vector<2048x512xbf16>, vector<2x512xf32> -> vector<2x512xf32>
    %7 = arith.addf %3, %6 : vector<2x512xf32>
    %c0_6 = arith.constant 0 : index
    %c0_7 = arith.constant 0 : index
    %8 = vector.load %arg6[%c0_6, %c0_7] : memref<2x512xf32, #tpu.memory_space<vmem>>, vector<2x512xf32>
    tpu.vector_store %arg6[%c0_6, %c0_7], %7 {strides = array<i32>} : memref<2x512xf32, #tpu.memory_space<vmem>>, vector<2x512xf32>,
    %c3_i32 = arith.constant 3 : i32
    %9 = arith.cmpi eq, %arg1, %c3_i32 : i32
    %10 = arith.extui %9 : i1 to i32
    %c0_i32_8 = arith.constant 0 : i32
    %11 = arith.cmpi ne, %10, %c0_i32_8 : i32
    scf.if %11 {
      %c0_9 = arith.constant 0 : index
      %c0_10 = arith.constant 0 : index
      %12 = vector.load %arg6[%c0_9, %c0_10] : memref<2x512xf32, #tpu.memory_space<vmem>>, vector<2x512xf32>
      %c0_11 = arith.constant 0 : index
      %c0_12 = arith.constant 0 : index
      %13 = vector.load %arg4[%c0_11, %c0_12] : memref<1x512xf32, #tpu.memory_space<vmem>>, vector<1x512xf32>
      %14 = vector.broadcast %13 : vector<1x512xf32> to vector<2x512xf32>
      %15 = arith.addf %12, %14 : vector<2x512xf32>
      %cst_13 = arith.constant 0.000000e+00 : f32
      %16 = vector.broadcast %cst_13 : f32 to vector<2x512xf32>
      %17 = arith.maximumf %15, %16 : vector<2x512xf32>
      %c0_14 = arith.constant 0 : index
      %c0_15 = arith.constant 0 : index
      %18 = vector.load %arg5[%c0_14, %c0_15] : memref<2x512xf32, #tpu.memory_space<vmem>>, vector<2x512xf32>
      tpu.vector_store %arg5[%c0_14, %c0_15], %17 {strides = array<i32>} : memref<2x512xf32, #tpu.memory_space<vmem>>, vector<2x512xf32>,
    } else {
    }
    return
  }
  func.func @transform_0(%arg0: i32, %arg1: i32) -> (i32, i32) {
    %c0_i32 = arith.constant 0 : i32
    return %arg0, %arg1 : i32, i32
  }
  func.func @transform_1(%arg0: i32, %arg1: i32) -> (i32, i32) {
    %c0_i32 = arith.constant 0 : i32
    %c0_i32_0 = arith.constant 0 : i32
    return %arg1, %c0_i32 : i32, i32
  }
  func.func @transform_2(%arg0: i32, %arg1: i32) -> (i32, i32) {
    %c0_i32 = arith.constant 0 : i32
    %c0_i32_0 = arith.constant 0 : i32
    %c0_i32_1 = arith.constant 0 : i32
    return %c0_i32, %c0_i32_0 : i32, i32
  }
  func.func @transform_3(%arg0: i32, %arg1: i32) -> (i32, i32) {
    %c0_i32 = arith.constant 0 : i32
    %c0_i32_0 = arith.constant 0 : i32
    return %arg0, %c0_i32 : i32, i32
  }
}

module attributes {stable_mosaic.version = 11 : i64} {
  func.func @_matmul_bias_single_k_kernel(%arg0: i32, %arg1: memref<2x512xbf16, #tpu.memory_space<vmem>>, %arg2: memref<512x128xbf16, #tpu.memory_space<vmem>>, %arg3: memref<1x128xf32, #tpu.memory_space<vmem>>, %arg4: memref<2x128xf32, #tpu.memory_space<vmem>>) attributes {dimension_semantics = [#tpu.dimension_semantics<parallel>], iteration_bounds = array<i64: 1>, scalar_prefetch = 0 : i64, scratch_operands = 0 : i64, tpu.core_type = #tpu.core_type<tc>, window_params = [{transform_indices = @transform_0, window_bounds = array<i64: 2, 512>}, {pipeline_mode = #tpu.pipeline_mode<synchronous>, transform_indices = @transform_1, window_bounds = array<i64: 512, 128>}, {pipeline_mode = #tpu.pipeline_mode<synchronous>, transform_indices = @transform_2, window_bounds = array<i64: 1, 128>}, {transform_indices = @transform_3, window_bounds = array<i64: 2, 128>}]} {
    %c0 = arith.constant 0 : index
    %c0_0 = arith.constant 0 : index
    %0 = vector.load %arg1[%c0, %c0_0] : memref<2x512xbf16, #tpu.memory_space<vmem>>, vector<2x512xbf16>
    %c0_1 = arith.constant 0 : index
    %c0_2 = arith.constant 0 : index
    %1 = vector.load %arg2[%c0_1, %c0_2] : memref<512x128xbf16, #tpu.memory_space<vmem>>, vector<512x128xbf16>
    %cst = arith.constant dense<0.000000e+00> : vector<2x128xf32>
    %2 = tpu.matmul %0, %1, %cst {dimension_numbers = #tpu.dot_dimension_numbers<[1], [0], [0], [1], [0, 0, 1, 1], [], []>} : vector<2x512xbf16>, vector<512x128xbf16>, vector<2x128xf32> -> vector<2x128xf32>
    %c0_3 = arith.constant 0 : index
    %c0_4 = arith.constant 0 : index
    %3 = vector.load %arg3[%c0_3, %c0_4] : memref<1x128xf32, #tpu.memory_space<vmem>>, vector<1x128xf32>
    %4 = vector.broadcast %3 : vector<1x128xf32> to vector<2x128xf32>
    %5 = arith.addf %2, %4 : vector<2x128xf32>
    %c0_5 = arith.constant 0 : index
    %c0_6 = arith.constant 0 : index
    %6 = vector.load %arg4[%c0_5, %c0_6] : memref<2x128xf32, #tpu.memory_space<vmem>>, vector<2x128xf32>
    tpu.vector_store %arg4[%c0_5, %c0_6], %5 {strides = array<i32>} : memref<2x128xf32, #tpu.memory_space<vmem>>, vector<2x128xf32>,
    return
  }
  func.func @transform_0(%arg0: i32) -> (i32, i32) {
    %c0_i32 = arith.constant 0 : i32
    %c0_i32_0 = arith.constant 0 : i32
    return %arg0, %c0_i32 : i32, i32
  }
  func.func @transform_1(%arg0: i32) -> (i32, i32) {
    %c0_i32 = arith.constant 0 : i32
    %c0_i32_0 = arith.constant 0 : i32
    %c0_i32_1 = arith.constant 0 : i32
    return %c0_i32, %c0_i32_0 : i32, i32
  }
  func.func @transform_2(%arg0: i32) -> (i32, i32) {
    %c0_i32 = arith.constant 0 : i32
    %c0_i32_0 = arith.constant 0 : i32
    %c0_i32_1 = arith.constant 0 : i32
    return %c0_i32, %c0_i32_0 : i32, i32
  }
  func.func @transform_3(%arg0: i32) -> (i32, i32) {
    %c0_i32 = arith.constant 0 : i32
    %c0_i32_0 = arith.constant 0 : i32
    return %arg0, %c0_i32 : i32, i32
  }
}

</mosaic_0001>

<llo_original>
// kernel: cnn_cifar_forward.7
$region0: #{cnn_cifar_forward.7}
  #allocation0 [shape = 'u32[]', space=smem, size = 0x4, offset = 0x4, fixed_abs, tag = 'smem constant byte address 0x4 - core index']
  #allocation1 [shape = 'u32[144,128]{1,0:T(1,128)}', space=vmem, size = 0x12000, scoped, tag = 'internal scratch']
  %s0 = inlined_call_operand.vmem [shape: bf16[2048,27], index: 0, kind: input, shape index: {}]
  %s1 = inlined_call_operand.vmem [shape: bf16[27,128], index: 1, kind: input, shape index: {}]
  %s2 = inlined_call_operand.vmem [shape: f32[1,128], index: 2, kind: input, shape index: {}]
  %s3 = inlined_call_operand.vmem [shape: f32[2048,128], index: 3, kind: output, shape index: {}]
  %s4 = sld [smem:[#allocation0]]
  $region45: #{cnn_cifar_forward.7} parent=0
    _
  %s6 = ssub.s32 1, %s4
  %s7 = scalar_select 0, %s6, %s4
  loop: start=0, step=1, limit=6
  $region2: #{cnn_cifar_forward.7} parent=0 // loop_pre_header
    _
  $region3: #{cnn_cifar_forward.7} parent=0 // loop_header
    %s9 = sphi 0, %s13
    %p10 = scmp.ge.s32.totalorder %s9, 6
    %s19 = sphi 0, %s21
    %s22 = sphi 0, %s19
    %s23 = sphi 0, %s22
    %s39 = sphi 0, %s23
    %s43 = sphi 0, %s43
    %s45 = sphi 0, %s43
    %s46 = sphi 0, %s45
    %s60 = sphi 0, %s46
    %s64 = sphi 0, %s64
    %s66 = sphi 0, %s64
    %s67 = sphi 0, %s66
    %s81 = sphi 0, %s67
    %s87 = sphi 0, %s89
    %s90 = sphi 0, %s87
    %s91 = sphi 0, %s90
    %s107 = sphi 0, %s91
  $region4: #{cnn_cifar_forward.7} parent=0 // loop_header_branch
    %12 = sbr.rel (%p10) target = $region8
  $region5: #{cnn_cifar_forward.7} parent=0 // loop_body
    %s14 = ssub.s32 %s9, 1
    %s15 = ssub.s32 %s9, 2
    %s16 = sadd.s32 %s9, 1
    %s17 = ssub.s32 %s9, %s16
    %p18 = scmp.eq.s32.totalorder %s17, 0
    %s20 = sadd.s32 %s19, 1
    %s21 = scalar_select %p18, %s19, %s20
    %p24 = pneg %p18
    %p25 = scmp.eq.s32.totalorder %s9, 3
    %p26 = por %p24, %p25
    %p27 = scmp.ne.s32.totalorder %s19, %s22
    %p28 = scmp.eq.s32.totalorder %s9, 0
    %p29 = por %p27, %p28
    %p30 = scmp.ne.s32.totalorder %s19, %s22
    %p31 = scmp.eq.s32.totalorder %s14, 3
    %p32 = por %p30, %p31
    %p33 = scmp.ne.s32.totalorder %s22, %s23
    %p34 = scmp.eq.s32.totalorder %s14, 0
    %p35 = por %p33, %p34
    %p36 = scmp.ne.s32.totalorder %s22, %s23
    %p37 = scmp.eq.s32.totalorder %s15, 3
    %p38 = por %p36, %p37
    %p40 = scmp.ne.s32.totalorder %s23, %s39
    %p41 = scmp.eq.s32.totalorder %s15, 0
    %p42 = por %p40, %p41
    %s44 = sadd.s32 %s43, 1
    %p47 = scmp.eq.s32.totalorder %s9, 3
    %p48 = scmp.ne.s32.totalorder %s43, %s45
    %p49 = scmp.eq.s32.totalorder %s9, 0
    %p50 = por %p48, %p49
    %p51 = scmp.ne.s32.totalorder %s43, %s45
    %p52 = scmp.eq.s32.totalorder %s14, 3
    %p53 = por %p51, %p52
    %p54 = scmp.ne.s32.totalorder %s45, %s46
    %p55 = scmp.eq.s32.totalorder %s14, 0
    %p56 = por %p54, %p55
    %p57 = scmp.ne.s32.totalorder %s45, %s46
    %p58 = scmp.eq.s32.totalorder %s15, 3
    %p59 = por %p57, %p58
    %p61 = scmp.ne.s32.totalorder %s46, %s60
    %p62 = scmp.eq.s32.totalorder %s15, 0
    %p63 = por %p61, %p62
    %s65 = sadd.s32 %s64, 1
    %p68 = scmp.eq.s32.totalorder %s9, 3
    %p69 = scmp.ne.s32.totalorder %s64, %s66
    %p70 = scmp.eq.s32.totalorder %s9, 0
    %p71 = por %p69, %p70
    %p72 = scmp.ne.s32.totalorder %s64, %s66
    %p73 = scmp.eq.s32.totalorder %s14, 3
    %p74 = por %p72, %p73
    %p75 = scmp.ne.s32.totalorder %s66, %s67
    %p76 = scmp.eq.s32.totalorder %s14, 0
    %p77 = por %p75, %p76
    %p78 = scmp.ne.s32.totalorder %s66, %s67
    %p79 = scmp.eq.s32.totalorder %s15, 3
    %p80 = por %p78, %p79
    %p82 = scmp.ne.s32.totalorder %s67, %s81
    %p83 = scmp.eq.s32.totalorder %s15, 0
    %p84 = por %p82, %p83
    %s85 = ssub.s32 %s9, %s16
    %p86 = scmp.eq.s32.totalorder %s85, 0
    %s88 = sadd.s32 %s87, 1
    %s89 = scalar_select %p86, %s87, %s88
    %p92 = pneg %p86
    %p93 = scmp.eq.s32.totalorder %s9, 3
    %p94 = por %p92, %p93
    %p95 = scmp.ne.s32.totalorder %s87, %s90
    %p96 = scmp.eq.s32.totalorder %s9, 0
    %p97 = por %p95, %p96
    %p98 = scmp.ne.s32.totalorder %s87, %s90
    %p99 = scmp.eq.s32.totalorder %s14, 3
    %p100 = por %p98, %p99
    %p101 = scmp.ne.s32.totalorder %s90, %s91
    %p102 = scmp.eq.s32.totalorder %s14, 0
    %p103 = por %p101, %p102
    %p104 = scmp.ne.s32.totalorder %s90, %s91
    %p105 = scmp.eq.s32.totalorder %s15, 3
    %p106 = por %p104, %p105
    %p108 = scmp.ne.s32.totalorder %s91, %s107
    %p109 = scmp.eq.s32.totalorder %s15, 0
    %p110 = por %p108, %p109
    %p111 = scmp.le.s32.totalorder 1, %s9
    %p112 = scmp.lt.s32.totalorder %s9, 5
    %p113 = pnand %p111, %p112
    %p114 = pneg %p113
    // Predicated region
    $region9: #{cnn_cifar_forward.7} parent=5 // pred_check
      _
    $region10: #{cnn_cifar_forward.7} parent=5 // pred_check_branch
      %116 = sbr.rel (%p113) target = $region12
    $region11: #{cnn_cifar_forward.7} parent=5 // pred_region
      %s117 = ssub.s32 %s9, 1
      // Predicated region
      $region13: #{cnn_cifar_forward.7} parent=11 // pred_check
        %p118 = pneg %p56
      $region14: #{cnn_cifar_forward.7} parent=11 // pred_check_branch
        %120 = sbr.rel (%p118) target = $region16
      $region15: #{cnn_cifar_forward.7} parent=11 // pred_region
        _
      $region16: #{cnn_cifar_forward.7} parent=11 // pred_fallthru
        _
      // Predicated region
      $region17: #{cnn_cifar_forward.7} parent=11 // pred_check
        %p121 = pneg %p77
      $region18: #{cnn_cifar_forward.7} parent=11 // pred_check_branch
        %123 = sbr.rel (%p121) target = $region20
      $region19: #{cnn_cifar_forward.7} parent=11 // pred_region
        _
      $region20: #{cnn_cifar_forward.7} parent=11 // pred_fallthru
        _
    $region12: #{cnn_cifar_forward.7} parent=5 // pred_fallthru
      _
    %p124 = scmp.lt.s32.totalorder %s9, 4
    // Predicated region
    $region21: #{cnn_cifar_forward.7} parent=5 // pred_check
      %p125 = pneg %p124
    $region22: #{cnn_cifar_forward.7} parent=5 // pred_check_branch
      %127 = sbr.rel (%p125) target = $region24
    $region23: #{cnn_cifar_forward.7} parent=5 // pred_region
      // Predicated region
      $region25: #{cnn_cifar_forward.7} parent=23 // pred_check
        %p128 = pneg %p29
      $region26: #{cnn_cifar_forward.7} parent=23 // pred_check_branch
        %130 = sbr.rel (%p128) target = $region28
      $region27: #{cnn_cifar_forward.7} parent=23 // pred_region
        %s131 = smul.u32 64, %s9
        %p132 = scmp.lt.s32.totalorder %s131, 255
        %s133 = scalar_select %p132, %s131, 255
        %s134 = smul.addr %s133, 4
        %s135 = scalar_lea.vmem %s0, %s134
        %s136 = smul.u32 64, %s9
      $region28: #{cnn_cifar_forward.7} parent=23 // pred_fallthru
        _
    $region24: #{cnn_cifar_forward.7} parent=5 // pred_fallthru
      _
    %p137 = scmp.le.s32.totalorder 1, %s9
    %p138 = scmp.lt.s32.totalorder %s9, 5
    %p139 = pnand %p137, %p138
    %p140 = pneg %p139
    // Predicated region
    $region29: #{cnn_cifar_forward.7} parent=5 // pred_check
      _
    $region30: #{cnn_cifar_forward.7} parent=5 // pred_check_branch
      %142 = sbr.rel (%p139) target = $region32
    $region31: #{cnn_cifar_forward.7} parent=5 // pred_region
      %s143 = ssub.s32 %s9, 1
      %s144 = smul.u32 64, %s14
      %p145 = scmp.lt.s32.totalorder %s144, 255
      %s146 = scalar_select %p145, %s144, 255
      %s147 = smul.addr %s146, 4
      %s148 = scalar_lea.vmem %s0, %s147
      %p149 = pneg %p35
      %p150 = pneg %p32
      %p151 = pneg %p56
      %p152 = pneg %p53
      %p153 = pneg %p77
      %p154 = pneg %p74
      %p155 = pneg %p103
      %p156 = pneg %p100
      %s157 = smul.u32 64, %s14
      %p158 = scmp.lt.s32.totalorder %s157, 255
      %s159 = scalar_select %p158, %s157, 255
      %s160 = smul.addr %s159, 8
      %s161 = scalar_lea.vmem %s3, %s160
      %s162 = smul.u32 64, %s14
      %p163 = scmp.lt.s32.totalorder %s162, 255
      %s164 = scalar_select %p163, %s162, 255
      %s165 = smul.addr %s164, 4
      %s166 = scalar_lea.vmem %s0, %s165
      %s167 = smul.u32 64, %s14
      %s168 = smul.u32 64, %s14
      %p169 = scmp.lt.s32.totalorder %s168, 255
      %s170 = scalar_select %p169, %s168, 255
      %s171 = smul.addr %s170, 8
      %s172 = scalar_lea.vmem %s3, %s171
      %s173 = smul.u32 64, %s14
      %v175 = vld [vmem:[%s166] sm:$0xf]
      %v176 = vld [vmem:[%s166 + $0x4] sm:$0xf]
      %v177 = vld [vmem:[%s166 + $0x8] sm:$0xf]
      %v178 = vld [vmem:[%s166 + $0xc] sm:$0xf]
      %v179 = vld [vmem:[%s166 + $0x10] sm:$0xf]
      %v180 = vld [vmem:[%s166 + $0x14] sm:$0xf]
      %v181 = vld [vmem:[%s166 + $0x18] sm:$0xf]
      %v182 = vld [vmem:[%s166 + $0x1c] sm:$0xf]
      %v183 = vld [vmem:[%s166 + $0x20] sm:$0xf]
      %v184 = vld [vmem:[%s166 + $0x24] sm:$0xf]
      %v185 = vld [vmem:[%s166 + $0x28] sm:$0xf]
      %v186 = vld [vmem:[%s166 + $0x2c] sm:$0xf]
      %v187 = vld [vmem:[%s166 + $0x30] sm:$0xf]
      %v188 = vld [vmem:[%s166 + $0x34] sm:$0xf]
      %v189 = vld [vmem:[%s166 + $0x38] sm:$0xf]
      %v190 = vld [vmem:[%s166 + $0x3c] sm:$0xf]
      %v191 = vld [vmem:[%s166 + $0x40] sm:$0xf]
      %v192 = vld [vmem:[%s166 + $0x44] sm:$0xf]
      %v193 = vld [vmem:[%s166 + $0x48] sm:$0xf]
      %v194 = vld [vmem:[%s166 + $0x4c] sm:$0xf]
      %v195 = vld [vmem:[%s166 + $0x50] sm:$0xf]
      %v196 = vld [vmem:[%s166 + $0x54] sm:$0xf]
      %v197 = vld [vmem:[%s166 + $0x58] sm:$0xf]
      %v198 = vld [vmem:[%s166 + $0x5c] sm:$0xf]
      %v199 = vld [vmem:[%s166 + $0x60] sm:$0xf]
      %v200 = vld [vmem:[%s166 + $0x64] sm:$0xf]
      %v201 = vld [vmem:[%s166 + $0x68] sm:$0xf]
      %v202 = vld [vmem:[%s166 + $0x6c] sm:$0xf]
      %v203 = vld [vmem:[%s166 + $0x70] sm:$0xf]
      %v204 = vld [vmem:[%s166 + $0x74] sm:$0xf]
      %v205 = vld [vmem:[%s166 + $0x78] sm:$0xf]
      %v206 = vld [vmem:[%s166 + $0x7c] sm:$0xf]
      %v207 = vld [vmem:[%s166 + $0x80] sm:$0xf]
      %v208 = vld [vmem:[%s166 + $0x84] sm:$0xf]
      %v209 = vld [vmem:[%s166 + $0x88] sm:$0xf]
      %v210 = vld [vmem:[%s166 + $0x8c] sm:$0xf]
      %v211 = vld [vmem:[%s166 + $0x90] sm:$0xf]
      %v212 = vld [vmem:[%s166 + $0x94] sm:$0xf]
      %v213 = vld [vmem:[%s166 + $0x98] sm:$0xf]
      %v214 = vld [vmem:[%s166 + $0x9c] sm:$0xf]
      %v215 = vld [vmem:[%s166 + $0xa0] sm:$0xf]
      %v216 = vld [vmem:[%s166 + $0xa4] sm:$0xf]
      %v217 = vld [vmem:[%s166 + $0xa8] sm:$0xf]
      %v218 = vld [vmem:[%s166 + $0xac] sm:$0xf]
      %v219 = vld [vmem:[%s166 + $0xb0] sm:$0xf]
      %v220 = vld [vmem:[%s166 + $0xb4] sm:$0xf]
      %v221 = vld [vmem:[%s166 + $0xb8] sm:$0xf]
      %v222 = vld [vmem:[%s166 + $0xbc] sm:$0xf]
      %v223 = vld [vmem:[%s166 + $0xc0] sm:$0xf]
      %v224 = vld [vmem:[%s166 + $0xc4] sm:$0xf]
      %v225 = vld [vmem:[%s166 + $0xc8] sm:$0xf]
      %v226 = vld [vmem:[%s166 + $0xcc] sm:$0xf]
      %v227 = vld [vmem:[%s166 + $0xd0] sm:$0xf]
      %v228 = vld [vmem:[%s166 + $0xd4] sm:$0xf]
      %v229 = vld [vmem:[%s166 + $0xd8] sm:$0xf]
      %v230 = vld [vmem:[%s166 + $0xdc] sm:$0xf]
      %v231 = vld [vmem:[%s166 + $0xe0] sm:$0xf]
      %v232 = vld [vmem:[%s166 + $0xe4] sm:$0xf]
      %v233 = vld [vmem:[%s166 + $0xe8] sm:$0xf]
      %v234 = vld [vmem:[%s166 + $0xec] sm:$0xf]
      %v235 = vld [vmem:[%s166 + $0xf0] sm:$0xf]
      %v236 = vld [vmem:[%s166 + $0xf4] sm:$0xf]
      %v237 = vld [vmem:[%s166 + $0xf8] sm:$0xf]
      %v238 = vld [vmem:[%s166 + $0xfc] sm:$0xf]
      %v239 = vld [vmem:[%s1] sm:$0xf]
      %v240 = vld [vmem:[%s1 + $0x4] sm:$0xf]
      %v241 = vld [vmem:[%s1 + $0x8] sm:$0xf]
      %v242 = vld [vmem:[%s1 + $0xc] sm:$0x3]
      %v243 = vld [vmem:[%s2] sm:$0x1]
      %v245 = vlaneseq
      %v246 = vshrl.u32 %v245, 7
      %v247 = vsub.s32 0, %v246
      %v248 = vrot.slane %v243, %v247
      %v314 = vunpack.c.l.b16 %v175
      %v315 = vunpack.c.l.b16 %v176
      %v316 = vunpack.c.l.b16 %v177
      %v317 = vunpack.c.l.b16 %v178
      %v318 = vunpack.c.l.b16 %v179
      %v319 = vunpack.c.l.b16 %v180
      %v320 = vunpack.c.l.b16 %v181
      %v321 = vunpack.c.l.b16 %v182
      %v322 = vunpack.c.l.b16 %v183
      %v323 = vunpack.c.l.b16 %v184
      %v324 = vunpack.c.l.b16 %v185
      %v325 = vunpack.c.l.b16 %v186
      %v326 = vunpack.c.l.b16 %v187
      %v327 = vunpack.c.l.b16 %v188
      %v328 = vunpack.c.l.b16 %v189
      %v329 = vunpack.c.l.b16 %v190
      %v330 = vunpack.c.l.b16 %v191
      %v331 = vunpack.c.l.b16 %v192
      %v332 = vunpack.c.l.b16 %v193
      %v333 = vunpack.c.l.b16 %v194
      %v334 = vunpack.c.l.b16 %v195
      %v335 = vunpack.c.l.b16 %v196
      %v336 = vunpack.c.l.b16 %v197
      %v337 = vunpack.c.l.b16 %v198
      %v338 = vunpack.c.l.b16 %v199
      %v339 = vunpack.c.l.b16 %v200
      %v340 = vunpack.c.l.b16 %v201
      %v341 = vunpack.c.l.b16 %v202
      %v342 = vunpack.c.l.b16 %v203
      %v343 = vunpack.c.l.b16 %v204
      %v344 = vunpack.c.l.b16 %v205
      %v345 = vunpack.c.l.b16 %v206
      %v346 = vunpack.c.l.b16 %v207
      %v347 = vunpack.c.l.b16 %v208
      %v348 = vunpack.c.l.b16 %v209
      %v349 = vunpack.c.l.b16 %v210
      %v350 = vunpack.c.l.b16 %v211
      %v351 = vunpack.c.l.b16 %v212
      %v352 = vunpack.c.l.b16 %v213
      %v353 = vunpack.c.l.b16 %v214
      %v354 = vunpack.c.l.b16 %v215
      %v355 = vunpack.c.l.b16 %v216
      %v356 = vunpack.c.l.b16 %v217
      %v357 = vunpack.c.l.b16 %v218
      %v358 = vunpack.c.l.b16 %v219
      %v359 = vunpack.c.l.b16 %v220
      %v360 = vunpack.c.l.b16 %v221
      %v361 = vunpack.c.l.b16 %v222
      %v362 = vunpack.c.l.b16 %v223
      %v363 = vunpack.c.l.b16 %v224
      %v364 = vunpack.c.l.b16 %v225
      %v365 = vunpack.c.l.b16 %v226
      %v366 = vunpack.c.l.b16 %v227
      %v367 = vunpack.c.l.b16 %v228
      %v368 = vunpack.c.l.b16 %v229
      %v369 = vunpack.c.l.b16 %v230
      %v370 = vunpack.c.l.b16 %v231
      %v371 = vunpack.c.l.b16 %v232
      %v372 = vunpack.c.l.b16 %v233
      %v373 = vunpack.c.l.b16 %v234
      %v374 = vunpack.c.l.b16 %v235
      %v375 = vunpack.c.l.b16 %v236
      %v376 = vunpack.c.l.b16 %v237
      %v377 = vunpack.c.l.b16 %v238
      %v378 = vpack.c.b16 %v315, %v314
      %v379 = vpack.c.b16 %v317, %v316
      %v380 = vpack.c.b16 %v319, %v318
      %v381 = vpack.c.b16 %v321, %v320
      %v382 = vpack.c.b16 %v323, %v322
      %v383 = vpack.c.b16 %v325, %v324
      %v384 = vpack.c.b16 %v327, %v326
      %v385 = vpack.c.b16 %v329, %v328
      %v386 = vpack.c.b16 %v331, %v330
      %v387 = vpack.c.b16 %v333, %v332
      %v388 = vpack.c.b16 %v335, %v334
      %v389 = vpack.c.b16 %v337, %v336
      %v390 = vpack.c.b16 %v339, %v338
      %v391 = vpack.c.b16 %v341, %v340
      %v392 = vpack.c.b16 %v343, %v342
      %v393 = vpack.c.b16 %v345, %v344
      %v394 = vpack.c.b16 %v347, %v346
      %v395 = vpack.c.b16 %v349, %v348
      %v396 = vpack.c.b16 %v351, %v350
      %v397 = vpack.c.b16 %v353, %v352
      %v398 = vpack.c.b16 %v355, %v354
      %v399 = vpack.c.b16 %v357, %v356
      %v400 = vpack.c.b16 %v359, %v358
      %v401 = vpack.c.b16 %v361, %v360
      %v402 = vpack.c.b16 %v363, %v362
      %v403 = vpack.c.b16 %v365, %v364
      %v404 = vpack.c.b16 %v367, %v366
      %v405 = vpack.c.b16 %v369, %v368
      %v406 = vpack.c.b16 %v371, %v370
      %v407 = vpack.c.b16 %v373, %v372
      %v408 = vpack.c.b16 %v375, %v374
      %v409 = vpack.c.b16 %v377, %v376
      %v414 = vunpack.c.l.b16 %v239
      %v415 = vunpack.c.l.b16 %v240
      %v416 = vunpack.c.l.b16 %v241
      %v417 = vunpack.c.l.b16 %v242
      %v418 = vpack.c.b16 %v415, %v414
      %v419 = vpack.c.b16 %v417, %v416
      %vm421 = vcmask 220160
      %v423 = vsel %vm421, %v378, 0
      %v426 = vsel %vm421, %v379, 0
      %v429 = vsel %vm421, %v380, 0
      %v432 = vsel %vm421, %v381, 0
      %v435 = vsel %vm421, %v382, 0
      %v438 = vsel %vm421, %v383, 0
      %v441 = vsel %vm421, %v384, 0
      %v444 = vsel %vm421, %v385, 0
      %v447 = vsel %vm421, %v386, 0
      %v450 = vsel %vm421, %v387, 0
      %v453 = vsel %vm421, %v388, 0
      %v456 = vsel %vm421, %v389, 0
      %v459 = vsel %vm421, %v390, 0
      %v462 = vsel %vm421, %v391, 0
      %v465 = vsel %vm421, %v392, 0
      %v468 = vsel %vm421, %v393, 0
      %v471 = vsel %vm421, %v394, 0
      %v474 = vsel %vm421, %v395, 0
      %v477 = vsel %vm421, %v396, 0
      %v480 = vsel %vm421, %v397, 0
      %v483 = vsel %vm421, %v398, 0
      %v486 = vsel %vm421, %v399, 0
      %v489 = vsel %vm421, %v400, 0
      %v492 = vsel %vm421, %v401, 0
      %v495 = vsel %vm421, %v402, 0
      %v498 = vsel %vm421, %v403, 0
      %v501 = vsel %vm421, %v404, 0
      %v504 = vsel %vm421, %v405, 0
      %v507 = vsel %vm421, %v406, 0
      %v510 = vsel %vm421, %v407, 0
      %v513 = vsel %vm421, %v408, 0
      %v516 = vsel %vm421, %v409, 0
      %vm518 = vcmask 1044480
      %vm519 = vcmask 1045504
      %v520 = vsel %vm518, 4294967295, 65535
      %v521 = vsel %vm519, %v520, 0
      %v523 = vand.u32 %v419, %v521
      %525 = vmatprep.subr.bf16.mxu0 0
      %526 = vmatpush1.bf16.msra.mxu0 %v418
      %527 = vmatprep.subr.bf16.mxu0 0
      %528 = vmatpush1.bf16.msra.mxu0 %v523
      %529 = vmatprep.subr.bf16.mxu0 0
      %530 = vmatpush1.bf16.msra.mxu0 0
      %531 = vmatprep.subr.bf16.mxu0 0
      %532 = vmatpush1.bf16.msra.mxu0 0
      %533 = vmatprep.subr.bf16.mxu0 0
      %534 = vmatpush1.bf16.msra.mxu0 0
      %535 = vmatprep.subr.bf16.mxu0 0
      %536 = vmatpush1.bf16.msra.mxu0 0
      %537 = vmatprep.subr.bf16.mxu0 0
      %538 = vmatpush1.bf16.msra.mxu0 0
      %539 = vmatprep.subr.bf16.mxu0 0
      %540 = vmatpush1.bf16.msra.mxu0 0
      %541 = vmatprep.subr.bf16.mxu0 0
      %542 = vmatpush1.bf16.msra.mxu0 0
      %543 = vmatprep.subr.bf16.mxu0 0
      %544 = vmatpush1.bf16.msra.mxu0 0
      %545 = vmatprep.subr.bf16.mxu0 0
      %546 = vmatpush1.bf16.msra.mxu0 0
      %547 = vmatprep.subr.bf16.mxu0 0
      %548 = vmatpush1.bf16.msra.mxu0 0
      %549 = vmatprep.subr.bf16.mxu0 0
      %550 = vmatpush1.bf16.msra.mxu0 0
      %551 = vmatprep.subr.bf16.mxu0 0
      %552 = vmatpush1.bf16.msra.mxu0 0
      %553 = vmatprep.subr.bf16.mxu0 0
      %554 = vmatpush1.bf16.msra.mxu0 0
      %555 = vmatprep.subr.bf16.mxu0 0
      %556 = vmatpush1.bf16.msra.mxu0 0
      %557 = vmatprep.mubr.bf16.mxu0 0
      %558 = vmatmul.mubr.bf16.gmra.mrb[0].mxu0 %v423
      %v559 = vpop.f32.mrb[0].mxu0
      %v560 = vadd.f32 %v248, %v559
      %v561 = vpop.f32.mrb[0].mxu0
      %v562 = vpop.f32.mrb[0].mxu0
      %v563 = vadd.f32 %v248, %v562
      %v564 = vpop.f32.mrb[0].mxu0
      %565 = vmatprep.mubr.bf16.mxu0 0
      %566 = vmatmul.mubr.bf16.gmra.mrb[0].mxu0 %v426
      %v567 = vpop.f32.mrb[0].mxu0
      %v568 = vadd.f32 %v248, %v567
      %v569 = vpop.f32.mrb[0].mxu0
      %v570 = vpop.f32.mrb[0].mxu0
      %v571 = vadd.f32 %v248, %v570
      %v572 = vpop.f32.mrb[0].mxu0
      %573 = vmatprep.mubr.bf16.mxu0 0
      %574 = vmatmul.mubr.bf16.gmra.mrb[0].mxu0 %v429
      %v575 = vpop.f32.mrb[0].mxu0
      %v576 = vadd.f32 %v248, %v575
      %v577 = vpop.f32.mrb[0].mxu0
      %v578 = vpop.f32.mrb[0].mxu0
      %v579 = vadd.f32 %v248, %v578
      %v580 = vpop.f32.mrb[0].mxu0
      %581 = vmatprep.mubr.bf16.mxu0 0
      %582 = vmatmul.mubr.bf16.gmra.mrb[0].mxu0 %v432
      %v583 = vpop.f32.mrb[0].mxu0
      %v584 = vadd.f32 %v248, %v583
      %v585 = vpop.f32.mrb[0].mxu0
      %v586 = vpop.f32.mrb[0].mxu0
      %v587 = vadd.f32 %v248, %v586
      %v588 = vpop.f32.mrb[0].mxu0
      %589 = vmatprep.mubr.bf16.mxu0 0
      %590 = vmatmul.mubr.bf16.gmra.mrb[0].mxu0 %v435
      %v591 = vpop.f32.mrb[0].mxu0
      %v592 = vadd.f32 %v248, %v591
      %v593 = vpop.f32.mrb[0].mxu0
      %v594 = vpop.f32.mrb[0].mxu0
      %v595 = vadd.f32 %v248, %v594
      %v596 = vpop.f32.mrb[0].mxu0
      %597 = vmatprep.mubr.bf16.mxu0 0
      %598 = vmatmul.mubr.bf16.gmra.mrb[0].mxu0 %v438
      %v599 = vpop.f32.mrb[0].mxu0
      %v600 = vadd.f32 %v248, %v599
      %v601 = vpop.f32.mrb[0].mxu0
      %v602 = vpop.f32.mrb[0].mxu0
      %v603 = vadd.f32 %v248, %v602
      %v604 = vpop.f32.mrb[0].mxu0
      %605 = vmatprep.mubr.bf16.mxu0 0
      %606 = vmatmul.mubr.bf16.gmra.mrb[0].mxu0 %v441
      %v607 = vpop.f32.mrb[0].mxu0
      %v608 = vadd.f32 %v248, %v607
      %v609 = vpop.f32.mrb[0].mxu0
      %v610 = vpop.f32.mrb[0].mxu0
      %v611 = vadd.f32 %v248, %v610
      %v612 = vpop.f32.mrb[0].mxu0
      %613 = vmatprep.mubr.bf16.mxu0 0
      %614 = vmatmul.mubr.bf16.gmra.mrb[0].mxu0 %v444
      %v615 = vpop.f32.mrb[0].mxu0
      %v616 = vadd.f32 %v248, %v615
      %v617 = vpop.f32.mrb[0].mxu0
      %v618 = vpop.f32.mrb[0].mxu0
      %v619 = vadd.f32 %v248, %v618
      %v620 = vpop.f32.mrb[0].mxu0
      %621 = vmatprep.mubr.bf16.mxu0 0
      %622 = vmatmul.mubr.bf16.gmra.mrb[0].mxu0 %v447
      %v623 = vpop.f32.mrb[0].mxu0
      %v624 = vadd.f32 %v248, %v623
      %v625 = vpop.f32.mrb[0].mxu0
      %v626 = vpop.f32.mrb[0].mxu0
      %v627 = vadd.f32 %v248, %v626
      %v628 = vpop.f32.mrb[0].mxu0
      %629 = vmatprep.mubr.bf16.mxu0 0
      %630 = vmatmul.mubr.bf16.gmra.mrb[0].mxu0 %v450
      %v631 = vpop.f32.mrb[0].mxu0
      %v632 = vadd.f32 %v248, %v631
      %v633 = vpop.f32.mrb[0].mxu0
      %v634 = vpop.f32.mrb[0].mxu0
      %v635 = vadd.f32 %v248, %v634
      %v636 = vpop.f32.mrb[0].mxu0
      %637 = vmatprep.mubr.bf16.mxu0 0
      %638 = vmatmul.mubr.bf16.gmra.mrb[0].mxu0 %v453
      %v639 = vpop.f32.mrb[0].mxu0
      %v640 = vadd.f32 %v248, %v639
      %v641 = vpop.f32.mrb[0].mxu0
      %v642 = vpop.f32.mrb[0].mxu0
      %v643 = vadd.f32 %v248, %v642
      %v644 = vpop.f32.mrb[0].mxu0
      %645 = vmatprep.mubr.bf16.mxu0 0
      %646 = vmatmul.mubr.bf16.gmra.mrb[0].mxu0 %v456
      %v647 = vpop.f32.mrb[0].mxu0
      %v648 = vadd.f32 %v248, %v647
      %v649 = vpop.f32.mrb[0].mxu0
      %v650 = vpop.f32.mrb[0].mxu0
      %v651 = vadd.f32 %v248, %v650
      %v652 = vpop.f32.mrb[0].mxu0
      %653 = vmatprep.mubr.bf16.mxu0 0
      %654 = vmatmul.mubr.bf16.gmra.mrb[0].mxu0 %v459
      %v655 = vpop.f32.mrb[0].mxu0
      %v656 = vadd.f32 %v248, %v655
      %v657 = vpop.f32.mrb[0].mxu0
      %v658 = vpop.f32.mrb[0].mxu0
      %v659 = vadd.f32 %v248, %v658
      %v660 = vpop.f32.mrb[0].mxu0
      %661 = vmatprep.mubr.bf16.mxu0 0
      %662 = vmatmul.mubr.bf16.gmra.mrb[0].mxu0 %v462
      %v663 = vpop.f32.mrb[0].mxu0
      %v664 = vadd.f32 %v248, %v663
      %v665 = vpop.f32.mrb[0].mxu0
      %v666 = vpop.f32.mrb[0].mxu0
      %v667 = vadd.f32 %v248, %v666
      %v668 = vpop.f32.mrb[0].mxu0
      %669 = vmatprep.mubr.bf16.mxu0 0
      %670 = vmatmul.mubr.bf16.gmra.mrb[0].mxu0 %v465
      %v671 = vpop.f32.mrb[0].mxu0
      %v672 = vadd.f32 %v248, %v671
      %v673 = vpop.f32.mrb[0].mxu0
      %v674 = vpop.f32.mrb[0].mxu0
      %v675 = vadd.f32 %v248, %v674
      %v676 = vpop.f32.mrb[0].mxu0
      %677 = vmatprep.mubr.bf16.mxu0 0
      %678 = vmatmul.mubr.bf16.gmra.mrb[0].mxu0 %v468
      %v679 = vpop.f32.mrb[0].mxu0
      %v680 = vadd.f32 %v248, %v679
      %v681 = vpop.f32.mrb[0].mxu0
      %v682 = vpop.f32.mrb[0].mxu0
      %v683 = vadd.f32 %v248, %v682
      %v684 = vpop.f32.mrb[0].mxu0
      %685 = vmatprep.mubr.bf16.mxu0 0
      %686 = vmatmul.mubr.bf16.gmra.mrb[0].mxu0 %v471
      %v687 = vpop.f32.mrb[0].mxu0
      %v688 = vadd.f32 %v248, %v687
      %v689 = vpop.f32.mrb[0].mxu0
      %v690 = vpop.f32.mrb[0].mxu0
      %v691 = vadd.f32 %v248, %v690
      %v692 = vpop.f32.mrb[0].mxu0
      %693 = vmatprep.mubr.bf16.mxu0 0
      %694 = vmatmul.mubr.bf16.gmra.mrb[0].mxu0 %v474
      %v695 = vpop.f32.mrb[0].mxu0
      %v696 = vadd.f32 %v248, %v695
      %v697 = vpop.f32.mrb[0].mxu0
      %v698 = vpop.f32.mrb[0].mxu0
      %v699 = vadd.f32 %v248, %v698
      %v700 = vpop.f32.mrb[0].mxu0
      %701 = vmatprep.mubr.bf16.mxu0 0
      %702 = vmatmul.mubr.bf16.gmra.mrb[0].mxu0 %v477
      %v703 = vpop.f32.mrb[0].mxu0
      %v704 = vadd.f32 %v248, %v703
      %v705 = vpop.f32.mrb[0].mxu0
      %v706 = vpop.f32.mrb[0].mxu0
      %v707 = vadd.f32 %v248, %v706
      %v708 = vpop.f32.mrb[0].mxu0
      %709 = vmatprep.mubr.bf16.mxu0 0
      %710 = vmatmul.mubr.bf16.gmra.mrb[0].mxu0 %v480
      %v711 = vpop.f32.mrb[0].mxu0
      %v712 = vadd.f32 %v248, %v711
      %v713 = vpop.f32.mrb[0].mxu0
      %v714 = vpop.f32.mrb[0].mxu0
      %v715 = vadd.f32 %v248, %v714
      %v716 = vpop.f32.mrb[0].mxu0
      %717 = vmatprep.mubr.bf16.mxu0 0
      %718 = vmatmul.mubr.bf16.gmra.mrb[0].mxu0 %v483
      %v719 = vpop.f32.mrb[0].mxu0
      %v720 = vadd.f32 %v248, %v719
      %v721 = vpop.f32.mrb[0].mxu0
      %v722 = vpop.f32.mrb[0].mxu0
      %v723 = vadd.f32 %v248, %v722
      %v724 = vpop.f32.mrb[0].mxu0
      %725 = vmatprep.mubr.bf16.mxu0 0
      %726 = vmatmul.mubr.bf16.gmra.mrb[0].mxu0 %v486
      %v727 = vpop.f32.mrb[0].mxu0
      %v728 = vadd.f32 %v248, %v727
      %v729 = vpop.f32.mrb[0].mxu0
      %v730 = vpop.f32.mrb[0].mxu0
      %v731 = vadd.f32 %v248, %v730
      %v732 = vpop.f32.mrb[0].mxu0
      %733 = vmatprep.mubr.bf16.mxu0 0
      %734 = vmatmul.mubr.bf16.gmra.mrb[0].mxu0 %v489
      %v735 = vpop.f32.mrb[0].mxu0
      %v736 = vadd.f32 %v248, %v735
      %v737 = vpop.f32.mrb[0].mxu0
      %v738 = vpop.f32.mrb[0].mxu0
      %v739 = vadd.f32 %v248, %v738
      %v740 = vpop.f32.mrb[0].mxu0
      %741 = vmatprep.mubr.bf16.mxu0 0
      %742 = vmatmul.mubr.bf16.gmra.mrb[0].mxu0 %v492
      %v743 = vpop.f32.mrb[0].mxu0
      %v744 = vadd.f32 %v248, %v743
      %v745 = vpop.f32.mrb[0].mxu0
      %v746 = vpop.f32.mrb[0].mxu0
      %v747 = vadd.f32 %v248, %v746
      %v748 = vpop.f32.mrb[0].mxu0
      %749 = vmatprep.mubr.bf16.mxu0 0
      %750 = vmatmul.mubr.bf16.gmra.mrb[0].mxu0 %v495
      %v751 = vpop.f32.mrb[0].mxu0
      %v752 = vadd.f32 %v248, %v751
      %v753 = vpop.f32.mrb[0].mxu0
      %v754 = vpop.f32.mrb[0].mxu0
      %v755 = vadd.f32 %v248, %v754
      %v756 = vpop.f32.mrb[0].mxu0
      %757 = vmatprep.mubr.bf16.mxu0 0
      %758 = vmatmul.mubr.bf16.gmra.mrb[0].mxu0 %v498
      %v759 = vpop.f32.mrb[0].mxu0
      %v760 = vadd.f32 %v248, %v759
      %v761 = vpop.f32.mrb[0].mxu0
      %v762 = vpop.f32.mrb[0].mxu0
      %v763 = vadd.f32 %v248, %v762
      %v764 = vpop.f32.mrb[0].mxu0
      %765 = vmatprep.mubr.bf16.mxu0 0
      %766 = vmatmul.mubr.bf16.gmra.mrb[0].mxu0 %v501
      %v767 = vpop.f32.mrb[0].mxu0
      %v768 = vadd.f32 %v248, %v767
      %v769 = vpop.f32.mrb[0].mxu0
      %v770 = vpop.f32.mrb[0].mxu0
      %v771 = vadd.f32 %v248, %v770
      %v772 = vpop.f32.mrb[0].mxu0
      %773 = vmatprep.mubr.bf16.mxu0 0
      %774 = vmatmul.mubr.bf16.gmra.mrb[0].mxu0 %v504
      %v775 = vpop.f32.mrb[0].mxu0
      %v776 = vadd.f32 %v248, %v775
      %v777 = vpop.f32.mrb[0].mxu0
      %v778 = vpop.f32.mrb[0].mxu0
      %v779 = vadd.f32 %v248, %v778
      %v780 = vpop.f32.mrb[0].mxu0
      %781 = vmatprep.mubr.bf16.mxu0 0
      %782 = vmatmul.mubr.bf16.gmra.mrb[0].mxu0 %v507
      %v783 = vpop.f32.mrb[0].mxu0
      %v784 = vadd.f32 %v248, %v783
      %v785 = vpop.f32.mrb[0].mxu0
      %v786 = vpop.f32.mrb[0].mxu0
      %v787 = vadd.f32 %v248, %v786
      %v788 = vpop.f32.mrb[0].mxu0
      %789 = vmatprep.mubr.bf16.mxu0 0
      %790 = vmatmul.mubr.bf16.gmra.mrb[0].mxu0 %v510
      %v791 = vpop.f32.mrb[0].mxu0
      %v792 = vadd.f32 %v248, %v791
      %v793 = vpop.f32.mrb[0].mxu0
      %v794 = vpop.f32.mrb[0].mxu0
      %v795 = vadd.f32 %v248, %v794
      %v796 = vpop.f32.mrb[0].mxu0
      %797 = vmatprep.mubr.bf16.mxu0 0
      %798 = vmatmul.mubr.bf16.gmra.mrb[0].mxu0 %v513
      %v799 = vpop.f32.mrb[0].mxu0
      %v800 = vadd.f32 %v248, %v799
      %v801 = vpop.f32.mrb[0].mxu0
      %v802 = vpop.f32.mrb[0].mxu0
      %v803 = vadd.f32 %v248, %v802
      %v804 = vpop.f32.mrb[0].mxu0
      %805 = vmatprep.mubr.bf16.mxu0 0
      %806 = vmatmul.mubr.bf16.gmra.mrb[0].mxu0 %v516
      %v807 = vpop.f32.mrb[0].mxu0
      %v808 = vadd.f32 %v248, %v807
      %v809 = vpop.f32.mrb[0].mxu0
      %v810 = vpop.f32.mrb[0].mxu0
      %v811 = vadd.f32 %v248, %v810
      %v812 = vpop.f32.mrb[0].mxu0
      %813 = vdwg.mxu0
      %v814 = vmax.f32 %v560, 0.0
      %v815 = vmax.f32 %v563, 0.0
      %v816 = vmax.f32 %v568, 0.0
      %v817 = vmax.f32 %v571, 0.0
      %v818 = vmax.f32 %v576, 0.0
      %v819 = vmax.f32 %v579, 0.0
      %v820 = vmax.f32 %v584, 0.0
      %v821 = vmax.f32 %v587, 0.0
      %v822 = vmax.f32 %v592, 0.0
      %v823 = vmax.f32 %v595, 0.0
      %v824 = vmax.f32 %v600, 0.0
      %v825 = vmax.f32 %v603, 0.0
      %v826 = vmax.f32 %v608, 0.0
      %v827 = vmax.f32 %v611, 0.0
      %v828 = vmax.f32 %v616, 0.0
      %v829 = vmax.f32 %v619, 0.0
      %v830 = vmax.f32 %v624, 0.0
      %v831 = vmax.f32 %v627, 0.0
      %v832 = vmax.f32 %v632, 0.0
      %v833 = vmax.f32 %v635, 0.0
      %v834 = vmax.f32 %v640, 0.0
      %v835 = vmax.f32 %v643, 0.0
      %v836 = vmax.f32 %v648, 0.0
      %v837 = vmax.f32 %v651, 0.0
      %v838 = vmax.f32 %v656, 0.0
      %v839 = vmax.f32 %v659, 0.0
      %v840 = vmax.f32 %v664, 0.0
      %v841 = vmax.f32 %v667, 0.0
      %v842 = vmax.f32 %v672, 0.0
      %v843 = vmax.f32 %v675, 0.0
      %v844 = vmax.f32 %v680, 0.0
      %v845 = vmax.f32 %v683, 0.0
      %v846 = vmax.f32 %v688, 0.0
      %v847 = vmax.f32 %v691, 0.0
      %v848 = vmax.f32 %v696, 0.0
      %v849 = vmax.f32 %v699, 0.0
      %v850 = vmax.f32 %v704, 0.0
      %v851 = vmax.f32 %v707, 0.0
      %v852 = vmax.f32 %v712, 0.0
      %v853 = vmax.f32 %v715, 0.0
      %v854 = vmax.f32 %v720, 0.0
      %v855 = vmax.f32 %v723, 0.0
      %v856 = vmax.f32 %v728, 0.0
      %v857 = vmax.f32 %v731, 0.0
      %v858 = vmax.f32 %v736, 0.0
      %v859 = vmax.f32 %v739, 0.0
      %v860 = vmax.f32 %v744, 0.0
      %v861 = vmax.f32 %v747, 0.0
      %v862 = vmax.f32 %v752, 0.0
      %v863 = vmax.f32 %v755, 0.0
      %v864 = vmax.f32 %v760, 0.0
      %v865 = vmax.f32 %v763, 0.0
      %v866 = vmax.f32 %v768, 0.0
      %v867 = vmax.f32 %v771, 0.0
      %v868 = vmax.f32 %v776, 0.0
      %v869 = vmax.f32 %v779, 0.0
      %v870 = vmax.f32 %v784, 0.0
      %v871 = vmax.f32 %v787, 0.0
      %v872 = vmax.f32 %v792, 0.0
      %v873 = vmax.f32 %v795, 0.0
      %v874 = vmax.f32 %v800, 0.0
      %v875 = vmax.f32 %v803, 0.0
      %v876 = vmax.f32 %v808, 0.0
      %v877 = vmax.f32 %v811, 0.0
      %878 = vst [vmem:[%s172] sm:$0xff] %v814
      %879 = vst [vmem:[%s172 + $0x8] sm:$0xff] %v815
      %880 = vst [vmem:[%s172 + $0x10] sm:$0xff] %v816
      %881 = vst [vmem:[%s172 + $0x18] sm:$0xff] %v817
      %882 = vst [vmem:[%s172 + $0x20] sm:$0xff] %v818
      %883 = vst [vmem:[%s172 + $0x28] sm:$0xff] %v819
      %884 = vst [vmem:[%s172 + $0x30] sm:$0xff] %v820
      %885 = vst [vmem:[%s172 + $0x38] sm:$0xff] %v821
      %886 = vst [vmem:[%s172 + $0x40] sm:$0xff] %v822
      %887 = vst [vmem:[%s172 + $0x48] sm:$0xff] %v823
      %888 = vst [vmem:[%s172 + $0x50] sm:$0xff] %v824
      %889 = vst [vmem:[%s172 + $0x58] sm:$0xff] %v825
      %890 = vst [vmem:[%s172 + $0x60] sm:$0xff] %v826
      %891 = vst [vmem:[%s172 + $0x68] sm:$0xff] %v827
      %892 = vst [vmem:[%s172 + $0x70] sm:$0xff] %v828
      %893 = vst [vmem:[%s172 + $0x78] sm:$0xff] %v829
      %894 = vst [vmem:[%s172 + $0x80] sm:$0xff] %v830
      %895 = vst [vmem:[%s172 + $0x88] sm:$0xff] %v831
      %896 = vst [vmem:[%s172 + $0x90] sm:$0xff] %v832
      %897 = vst [vmem:[%s172 + $0x98] sm:$0xff] %v833
      %898 = vst [vmem:[%s172 + $0xa0] sm:$0xff] %v834
      %899 = vst [vmem:[%s172 + $0xa8] sm:$0xff] %v835
      %900 = vst [vmem:[%s172 + $0xb0] sm:$0xff] %v836
      %901 = vst [vmem:[%s172 + $0xb8] sm:$0xff] %v837
      %902 = vst [vmem:[%s172 + $0xc0] sm:$0xff] %v838
      %903 = vst [vmem:[%s172 + $0xc8] sm:$0xff] %v839
      %904 = vst [vmem:[%s172 + $0xd0] sm:$0xff] %v840
      %905 = vst [vmem:[%s172 + $0xd8] sm:$0xff] %v841
      %906 = vst [vmem:[%s172 + $0xe0] sm:$0xff] %v842
      %907 = vst [vmem:[%s172 + $0xe8] sm:$0xff] %v843
      %908 = vst [vmem:[%s172 + $0xf0] sm:$0xff] %v844
      %909 = vst [vmem:[%s172 + $0xf8] sm:$0xff] %v845
      %910 = vst [vmem:[%s172 + $0x100] sm:$0xff] %v846
      %911 = vst [vmem:[%s172 + $0x108] sm:$0xff] %v847
      %912 = vst [vmem:[%s172 + $0x110] sm:$0xff] %v848
      %913 = vst [vmem:[%s172 + $0x118] sm:$0xff] %v849
      %914 = vst [vmem:[%s172 + $0x120] sm:$0xff] %v850
      %915 = vst [vmem:[%s172 + $0x128] sm:$0xff] %v851
      %916 = vst [vmem:[%s172 + $0x130] sm:$0xff] %v852
      %917 = vst [vmem:[%s172 + $0x138] sm:$0xff] %v853
      %918 = vst [vmem:[%s172 + $0x140] sm:$0xff] %v854
      %919 = vst [vmem:[%s172 + $0x148] sm:$0xff] %v855
      %920 = vst [vmem:[%s172 + $0x150] sm:$0xff] %v856
      %921 = vst [vmem:[%s172 + $0x158] sm:$0xff] %v857
      %922 = vst [vmem:[%s172 + $0x160] sm:$0xff] %v858
      %923 = vst [vmem:[%s172 + $0x168] sm:$0xff] %v859
      %924 = vst [vmem:[%s172 + $0x170] sm:$0xff] %v860
      %925 = vst [vmem:[%s172 + $0x178] sm:$0xff] %v861
      %926 = vst [vmem:[%s172 + $0x180] sm:$0xff] %v862
      %927 = vst [vmem:[%s172 + $0x188] sm:$0xff] %v863
      %928 = vst [vmem:[%s172 + $0x190] sm:$0xff] %v864
      %929 = vst [vmem:[%s172 + $0x198] sm:$0xff] %v865
      %930 = vst [vmem:[%s172 + $0x1a0] sm:$0xff] %v866
      %931 = vst [vmem:[%s172 + $0x1a8] sm:$0xff] %v867
      %932 = vst [vmem:[%s172 + $0x1b0] sm:$0xff] %v868
      %933 = vst [vmem:[%s172 + $0x1b8] sm:$0xff] %v869
      %934 = vst [vmem:[%s172 + $0x1c0] sm:$0xff] %v870
      %935 = vst [vmem:[%s172 + $0x1c8] sm:$0xff] %v871
      %936 = vst [vmem:[%s172 + $0x1d0] sm:$0xff] %v872
      %937 = vst [vmem:[%s172 + $0x1d8] sm:$0xff] %v873
      %938 = vst [vmem:[%s172 + $0x1e0] sm:$0xff] %v874
      %939 = vst [vmem:[%s172 + $0x1e8] sm:$0xff] %v875
      %940 = vst [vmem:[%s172 + $0x1f0] sm:$0xff] %v876
      %941 = vst [vmem:[%s172 + $0x1f8] sm:$0xff] %v877
      %s942 = smul.u32 64, %s14
      %p943 = scmp.lt.s32.totalorder %s942, 255
      %s944 = scalar_select %p943, %s942, 255
      %s945 = smul.addr %s944, 8
      %s946 = scalar_lea.vmem %s3, %s945
      // Predicated region
      $region33: #{cnn_cifar_forward.7} parent=31 // pred_check
        %p947 = pneg %p100
      $region34: #{cnn_cifar_forward.7} parent=31 // pred_check_branch
        %949 = sbr.rel (%p947) target = $region36
      $region35: #{cnn_cifar_forward.7} parent=31 // pred_region
        %s950 = smul.u32 64, %s14
      $region36: #{cnn_cifar_forward.7} parent=31 // pred_fallthru
        _
    $region32: #{cnn_cifar_forward.7} parent=5 // pred_fallthru
      _
    %p951 = scmp.le.s32.totalorder 2, %s9
    // Predicated region
    $region37: #{cnn_cifar_forward.7} parent=5 // pred_check
      %p952 = pneg %p951
    $region38: #{cnn_cifar_forward.7} parent=5 // pred_check_branch
      %954 = sbr.rel (%p952) target = $region40
    $region39: #{cnn_cifar_forward.7} parent=5 // pred_region
      %s955 = ssub.s32 %s9, 2
      // Predicated region
      $region41: #{cnn_cifar_forward.7} parent=39 // pred_check
        %p956 = pneg %p106
      $region42: #{cnn_cifar_forward.7} parent=39 // pred_check_branch
        %958 = sbr.rel (%p956) target = $region44
      $region43: #{cnn_cifar_forward.7} parent=39 // pred_region
        %s959 = smul.u32 64, %s15
        %p960 = scmp.lt.s32.totalorder %s959, 255
        %s961 = scalar_select %p960, %s959, 255
        %s962 = smul.addr %s961, 8
        %s963 = scalar_lea.vmem %s3, %s962
      $region44: #{cnn_cifar_forward.7} parent=39 // pred_fallthru
        _
    $region40: #{cnn_cifar_forward.7} parent=5 // pred_fallthru
      _
  $region6: #{cnn_cifar_forward.7} parent=0 // loop_footer
    %s13 = sadd.s32 1, %s9
  $region7: #{cnn_cifar_forward.7} parent=0 // loop_footer_branch
    %8 = sbr.rel target = $region3
  $region8: #{cnn_cifar_forward.7} parent=0 // loop_exit
    _

// kernel: cnn_cifar_forward.8
$region0: #{cnn_cifar_forward.8}
  #allocation0 [shape = 'u32[]', space=smem, size = 0x4, offset = 0x4, fixed_abs, tag = 'smem constant byte address 0x4 - core index']
  #allocation1 [shape = 'u32[144,128]{1,0:T(1,128)}', space=vmem, size = 0x12000, scoped, tag = 'internal scratch']
  %s0 = inlined_call_operand.vmem [shape: bf16[2048,288], index: 0, kind: input, shape index: {}]
  %s1 = inlined_call_operand.vmem [shape: bf16[288,128], index: 1, kind: input, shape index: {}]
  %s2 = inlined_call_operand.vmem [shape: f32[1,128], index: 2, kind: input, shape index: {}]
  %s3 = inlined_call_operand.vmem [shape: f32[2048,128], index: 3, kind: output, shape index: {}]
  %s4 = sld [smem:[#allocation0]]
  $region45: #{cnn_cifar_forward.8} parent=0
    _
  %s6 = ssub.s32 1, %s4
  %s7 = scalar_select 0, %s6, %s4
  loop: start=0, step=1, limit=6
  $region2: #{cnn_cifar_forward.8} parent=0 // loop_pre_header
    _
  $region3: #{cnn_cifar_forward.8} parent=0 // loop_header
    %s9 = sphi 0, %s13
    %p10 = scmp.ge.s32.totalorder %s9, 6
    %s19 = sphi 0, %s21
    %s22 = sphi 0, %s19
    %s23 = sphi 0, %s22
    %s39 = sphi 0, %s23
    %s43 = sphi 0, %s43
    %s45 = sphi 0, %s43
    %s46 = sphi 0, %s45
    %s60 = sphi 0, %s46
    %s64 = sphi 0, %s64
    %s66 = sphi 0, %s64
    %s67 = sphi 0, %s66
    %s81 = sphi 0, %s67
    %s87 = sphi 0, %s89
    %s90 = sphi 0, %s87
    %s91 = sphi 0, %s90
    %s107 = sphi 0, %s91
  $region4: #{cnn_cifar_forward.8} parent=0 // loop_header_branch
    %12 = sbr.rel (%p10) target = $region8
  $region5: #{cnn_cifar_forward.8} parent=0 // loop_body
    %s14 = ssub.s32 %s9, 1
    %s15 = ssub.s32 %s9, 2
    %s16 = sadd.s32 %s9, 1
    %s17 = ssub.s32 %s9, %s16
    %p18 = scmp.eq.s32.totalorder %s17, 0
    %s20 = sadd.s32 %s19, 1
    %s21 = scalar_select %p18, %s19, %s20
    %p24 = pneg %p18
    %p25 = scmp.eq.s32.totalorder %s9, 3
    %p26 = por %p24, %p25
    %p27 = scmp.ne.s32.totalorder %s19, %s22
    %p28 = scmp.eq.s32.totalorder %s9, 0
    %p29 = por %p27, %p28
    %p30 = scmp.ne.s32.totalorder %s19, %s22
    %p31 = scmp.eq.s32.totalorder %s14, 3
    %p32 = por %p30, %p31
    %p33 = scmp.ne.s32.totalorder %s22, %s23
    %p34 = scmp.eq.s32.totalorder %s14, 0
    %p35 = por %p33, %p34
    %p36 = scmp.ne.s32.totalorder %s22, %s23
    %p37 = scmp.eq.s32.totalorder %s15, 3
    %p38 = por %p36, %p37
    %p40 = scmp.ne.s32.totalorder %s23, %s39
    %p41 = scmp.eq.s32.totalorder %s15, 0
    %p42 = por %p40, %p41
    %s44 = sadd.s32 %s43, 1
    %p47 = scmp.eq.s32.totalorder %s9, 3
    %p48 = scmp.ne.s32.totalorder %s43, %s45
    %p49 = scmp.eq.s32.totalorder %s9, 0
    %p50 = por %p48, %p49
    %p51 = scmp.ne.s32.totalorder %s43, %s45
    %p52 = scmp.eq.s32.totalorder %s14, 3
    %p53 = por %p51, %p52
    %p54 = scmp.ne.s32.totalorder %s45, %s46
    %p55 = scmp.eq.s32.totalorder %s14, 0
    %p56 = por %p54, %p55
    %p57 = scmp.ne.s32.totalorder %s45, %s46
    %p58 = scmp.eq.s32.totalorder %s15, 3
    %p59 = por %p57, %p58
    %p61 = scmp.ne.s32.totalorder %s46, %s60
    %p62 = scmp.eq.s32.totalorder %s15, 0
    %p63 = por %p61, %p62
    %s65 = sadd.s32 %s64, 1
    %p68 = scmp.eq.s32.totalorder %s9, 3
    %p69 = scmp.ne.s32.totalorder %s64, %s66
    %p70 = scmp.eq.s32.totalorder %s9, 0
    %p71 = por %p69, %p70
    %p72 = scmp.ne.s32.totalorder %s64, %s66
    %p73 = scmp.eq.s32.totalorder %s14, 3
    %p74 = por %p72, %p73
    %p75 = scmp.ne.s32.totalorder %s66, %s67
    %p76 = scmp.eq.s32.totalorder %s14, 0
    %p77 = por %p75, %p76
    %p78 = scmp.ne.s32.totalorder %s66, %s67
    %p79 = scmp.eq.s32.totalorder %s15, 3
    %p80 = por %p78, %p79
    %p82 = scmp.ne.s32.totalorder %s67, %s81
    %p83 = scmp.eq.s32.totalorder %s15, 0
    %p84 = por %p82, %p83
    %s85 = ssub.s32 %s9, %s16
    %p86 = scmp.eq.s32.totalorder %s85, 0
    %s88 = sadd.s32 %s87, 1
    %s89 = scalar_select %p86, %s87, %s88
    %p92 = pneg %p86
    %p93 = scmp.eq.s32.totalorder %s9, 3
    %p94 = por %p92, %p93
    %p95 = scmp.ne.s32.totalorder %s87, %s90
    %p96 = scmp.eq.s32.totalorder %s9, 0
    %p97 = por %p95, %p96
    %p98 = scmp.ne.s32.totalorder %s87, %s90
    %p99 = scmp.eq.s32.totalorder %s14, 3
    %p100 = por %p98, %p99
    %p101 = scmp.ne.s32.totalorder %s90, %s91
    %p102 = scmp.eq.s32.totalorder %s14, 0
    %p103 = por %p101, %p102
    %p104 = scmp.ne.s32.totalorder %s90, %s91
    %p105 = scmp.eq.s32.totalorder %s15, 3
    %p106 = por %p104, %p105
    %p108 = scmp.ne.s32.totalorder %s91, %s107
    %p109 = scmp.eq.s32.totalorder %s15, 0
    %p110 = por %p108, %p109
    %p111 = scmp.le.s32.totalorder 1, %s9
    %p112 = scmp.lt.s32.totalorder %s9, 5
    %p113 = pnand %p111, %p112
    %p114 = pneg %p113
    // Predicated region
    $region9: #{cnn_cifar_forward.8} parent=5 // pred_check
      _
    $region10: #{cnn_cifar_forward.8} parent=5 // pred_check_branch
      %116 = sbr.rel (%p113) target = $region12
    $region11: #{cnn_cifar_forward.8} parent=5 // pred_region
      %s117 = ssub.s32 %s9, 1
      // Predicated region
      $region13: #{cnn_cifar_forward.8} parent=11 // pred_check
        %p118 = pneg %p56
      $region14: #{cnn_cifar_forward.8} parent=11 // pred_check_branch
        %120 = sbr.rel (%p118) target = $region16
      $region15: #{cnn_cifar_forward.8} parent=11 // pred_region
        _
      $region16: #{cnn_cifar_forward.8} parent=11 // pred_fallthru
        _
      // Predicated region
      $region17: #{cnn_cifar_forward.8} parent=11 // pred_check
        %p121 = pneg %p77
      $region18: #{cnn_cifar_forward.8} parent=11 // pred_check_branch
        %123 = sbr.rel (%p121) target = $region20
      $region19: #{cnn_cifar_forward.8} parent=11 // pred_region
        _
      $region20: #{cnn_cifar_forward.8} parent=11 // pred_fallthru
        _
    $region12: #{cnn_cifar_forward.8} parent=5 // pred_fallthru
      _
    %p124 = scmp.lt.s32.totalorder %s9, 4
    // Predicated region
    $region21: #{cnn_cifar_forward.8} parent=5 // pred_check
      %p125 = pneg %p124
    $region22: #{cnn_cifar_forward.8} parent=5 // pred_check_branch
      %127 = sbr.rel (%p125) target = $region24
    $region23: #{cnn_cifar_forward.8} parent=5 // pred_region
      // Predicated region
      $region25: #{cnn_cifar_forward.8} parent=23 // pred_check
        %p128 = pneg %p29
      $region26: #{cnn_cifar_forward.8} parent=23 // pred_check_branch
        %130 = sbr.rel (%p128) target = $region28
      $region27: #{cnn_cifar_forward.8} parent=23 // pred_region
        %s131 = smul.u32 64, %s9
        %p132 = scmp.lt.s32.totalorder %s131, 255
        %s133 = scalar_select %p132, %s131, 255
        %s134 = smul.addr %s133, 3
        %s135 = smul.addr %s134, 4
        %s136 = scalar_lea.vmem %s0, %s135
        %s137 = smul.u32 64, %s9
      $region28: #{cnn_cifar_forward.8} parent=23 // pred_fallthru
        _
    $region24: #{cnn_cifar_forward.8} parent=5 // pred_fallthru
      _
    %p138 = scmp.le.s32.totalorder 1, %s9
    %p139 = scmp.lt.s32.totalorder %s9, 5
    %p140 = pnand %p138, %p139
    %p141 = pneg %p140
    // Predicated region
    $region29: #{cnn_cifar_forward.8} parent=5 // pred_check
      _
    $region30: #{cnn_cifar_forward.8} parent=5 // pred_check_branch
      %143 = sbr.rel (%p140) target = $region32
    $region31: #{cnn_cifar_forward.8} parent=5 // pred_region
      %s144 = ssub.s32 %s9, 1
      %s145 = smul.u32 64, %s14
      %p146 = scmp.lt.s32.totalorder %s145, 255
      %s147 = scalar_select %p146, %s145, 255
      %s148 = smul.addr %s147, 3
      %s149 = smul.addr %s148, 4
      %s150 = scalar_lea.vmem %s0, %s149
      %p151 = pneg %p35
      %p152 = pneg %p32
      %p153 = pneg %p56
      %p154 = pneg %p53
      %p155 = pneg %p77
      %p156 = pneg %p74
      %p157 = pneg %p103
      %p158 = pneg %p100
      %s159 = smul.u32 64, %s14
      %p160 = scmp.lt.s32.totalorder %s159, 255
      %s161 = scalar_select %p160, %s159, 255
      %s162 = smul.addr %s161, 8
      %s163 = scalar_lea.vmem %s3, %s162
      %s164 = smul.u32 64, %s14
      %p165 = scmp.lt.s32.totalorder %s164, 255
      %s166 = scalar_select %p165, %s164, 255
      %s167 = smul.addr %s166, 3
      %s168 = smul.addr %s167, 4
      %s169 = scalar_lea.vmem %s0, %s168
      %s170 = smul.u32 64, %s14
      %s171 = smul.u32 64, %s14
      %p172 = scmp.lt.s32.totalorder %s171, 255
      %s173 = scalar_select %p172, %s171, 255
      %s174 = smul.addr %s173, 8
      %s175 = scalar_lea.vmem %s3, %s174
      %s176 = smul.u32 64, %s14
      %v178 = vld [vmem:[%s169] sm:$0xff]
      %v179 = vld [vmem:[%s169 + $0x8] sm:$0xf]
      %v180 = vld [vmem:[%s169 + $0xc] sm:$0xff]
      %v181 = vld [vmem:[%s169 + $0x14] sm:$0xf]
      %v182 = vld [vmem:[%s169 + $0x18] sm:$0xff]
      %v183 = vld [vmem:[%s169 + $0x20] sm:$0xf]
      %v184 = vld [vmem:[%s169 + $0x24] sm:$0xff]
      %v185 = vld [vmem:[%s169 + $0x2c] sm:$0xf]
      %v186 = vld [vmem:[%s169 + $0x30] sm:$0xff]
      %v187 = vld [vmem:[%s169 + $0x38] sm:$0xf]
      %v188 = vld [vmem:[%s169 + $0x3c] sm:$0xff]
      %v189 = vld [vmem:[%s169 + $0x44] sm:$0xf]
      %v190 = vld [vmem:[%s169 + $0x48] sm:$0xff]
      %v191 = vld [vmem:[%s169 + $0x50] sm:$0xf]
      %v192 = vld [vmem:[%s169 + $0x54] sm:$0xff]
      %v193 = vld [vmem:[%s169 + $0x5c] sm:$0xf]
      %v194 = vld [vmem:[%s169 + $0x60] sm:$0xff]
      %v195 = vld [vmem:[%s169 + $0x68] sm:$0xf]
      %v196 = vld [vmem:[%s169 + $0x6c] sm:$0xff]
      %v197 = vld [vmem:[%s169 + $0x74] sm:$0xf]
      %v198 = vld [vmem:[%s169 + $0x78] sm:$0xff]
      %v199 = vld [vmem:[%s169 + $0x80] sm:$0xf]
      %v200 = vld [vmem:[%s169 + $0x84] sm:$0xff]
      %v201 = vld [vmem:[%s169 + $0x8c] sm:$0xf]
      %v202 = vld [vmem:[%s169 + $0x90] sm:$0xff]
      %v203 = vld [vmem:[%s169 + $0x98] sm:$0xf]
      %v204 = vld [vmem:[%s169 + $0x9c] sm:$0xff]
      %v205 = vld [vmem:[%s169 + $0xa4] sm:$0xf]
      %v206 = vld [vmem:[%s169 + $0xa8] sm:$0xff]
      %v207 = vld [vmem:[%s169 + $0xb0] sm:$0xf]
      %v208 = vld [vmem:[%s169 + $0xb4] sm:$0xff]
      %v209 = vld [vmem:[%s169 + $0xbc] sm:$0xf]
      %v210 = vld [vmem:[%s169 + $0xc0] sm:$0xff]
      %v211 = vld [vmem:[%s169 + $0xc8] sm:$0xf]
      %v212 = vld [vmem:[%s169 + $0xcc] sm:$0xff]
      %v213 = vld [vmem:[%s169 + $0xd4] sm:$0xf]
      %v214 = vld [vmem:[%s169 + $0xd8] sm:$0xff]
      %v215 = vld [vmem:[%s169 + $0xe0] sm:$0xf]
      %v216 = vld [vmem:[%s169 + $0xe4] sm:$0xff]
      %v217 = vld [vmem:[%s169 + $0xec] sm:$0xf]
      %v218 = vld [vmem:[%s169 + $0xf0] sm:$0xff]
      %v219 = vld [vmem:[%s169 + $0xf8] sm:$0xf]
      %v220 = vld [vmem:[%s169 + $0xfc] sm:$0xff]
      %v221 = vld [vmem:[%s169 + $0x104] sm:$0xf]
      %v222 = vld [vmem:[%s169 + $0x108] sm:$0xff]
      %v223 = vld [vmem:[%s169 + $0x110] sm:$0xf]
      %v224 = vld [vmem:[%s169 + $0x114] sm:$0xff]
      %v225 = vld [vmem:[%s169 + $0x11c] sm:$0xf]
      %v226 = vld [vmem:[%s169 + $0x120] sm:$0xff]
      %v227 = vld [vmem:[%s169 + $0x128] sm:$0xf]
      %v228 = vld [vmem:[%s169 + $0x12c] sm:$0xff]
      %v229 = vld [vmem:[%s169 + $0x134] sm:$0xf]
      %v230 = vld [vmem:[%s169 + $0x138] sm:$0xff]
      %v231 = vld [vmem:[%s169 + $0x140] sm:$0xf]
      %v232 = vld [vmem:[%s169 + $0x144] sm:$0xff]
      %v233 = vld [vmem:[%s169 + $0x14c] sm:$0xf]
      %v234 = vld [vmem:[%s169 + $0x150] sm:$0xff]
      %v235 = vld [vmem:[%s169 + $0x158] sm:$0xf]
      %v236 = vld [vmem:[%s169 + $0x15c] sm:$0xff]
      %v237 = vld [vmem:[%s169 + $0x164] sm:$0xf]
      %v238 = vld [vmem:[%s169 + $0x168] sm:$0xff]
      %v239 = vld [vmem:[%s169 + $0x170] sm:$0xf]
      %v240 = vld [vmem:[%s169 + $0x174] sm:$0xff]
      %v241 = vld [vmem:[%s169 + $0x17c] sm:$0xf]
      %v242 = vld [vmem:[%s169 + $0x180] sm:$0xff]
      %v243 = vld [vmem:[%s169 + $0x188] sm:$0xf]
      %v244 = vld [vmem:[%s169 + $0x18c] sm:$0xff]
      %v245 = vld [vmem:[%s169 + $0x194] sm:$0xf]
      %v246 = vld [vmem:[%s169 + $0x198] sm:$0xff]
      %v247 = vld [vmem:[%s169 + $0x1a0] sm:$0xf]
      %v248 = vld [vmem:[%s169 + $0x1a4] sm:$0xff]
      %v249 = vld [vmem:[%s169 + $0x1ac] sm:$0xf]
      %v250 = vld [vmem:[%s169 + $0x1b0] sm:$0xff]
      %v251 = vld [vmem:[%s169 + $0x1b8] sm:$0xf]
      %v252 = vld [vmem:[%s169 + $0x1bc] sm:$0xff]
      %v253 = vld [vmem:[%s169 + $0x1c4] sm:$0xf]
      %v254 = vld [vmem:[%s169 + $0x1c8] sm:$0xff]
      %v255 = vld [vmem:[%s169 + $0x1d0] sm:$0xf]
      %v256 = vld [vmem:[%s169 + $0x1d4] sm:$0xff]
      %v257 = vld [vmem:[%s169 + $0x1dc] sm:$0xf]
      %v258 = vld [vmem:[%s169 + $0x1e0] sm:$0xff]
      %v259 = vld [vmem:[%s169 + $0x1e8] sm:$0xf]
      %v260 = vld [vmem:[%s169 + $0x1ec] sm:$0xff]
      %v261 = vld [vmem:[%s169 + $0x1f4] sm:$0xf]
      %v262 = vld [vmem:[%s169 + $0x1f8] sm:$0xff]
      %v263 = vld [vmem:[%s169 + $0x200] sm:$0xf]
      %v264 = vld [vmem:[%s169 + $0x204] sm:$0xff]
      %v265 = vld [vmem:[%s169 + $0x20c] sm:$0xf]
      %v266 = vld [vmem:[%s169 + $0x210] sm:$0xff]
      %v267 = vld [vmem:[%s169 + $0x218] sm:$0xf]
      %v268 = vld [vmem:[%s169 + $0x21c] sm:$0xff]
      %v269 = vld [vmem:[%s169 + $0x224] sm:$0xf]
      %v270 = vld [vmem:[%s169 + $0x228] sm:$0xff]
      %v271 = vld [vmem:[%s169 + $0x230] sm:$0xf]
      %v272 = vld [vmem:[%s169 + $0x234] sm:$0xff]
      %v273 = vld [vmem:[%s169 + $0x23c] sm:$0xf]
      %v274 = vld [vmem:[%s169 + $0x240] sm:$0xff]
      %v275 = vld [vmem:[%s169 + $0x248] sm:$0xf]
      %v276 = vld [vmem:[%s169 + $0x24c] sm:$0xff]
      %v277 = vld [vmem:[%s169 + $0x254] sm:$0xf]
      %v278 = vld [vmem:[%s169 + $0x258] sm:$0xff]
      %v279 = vld [vmem:[%s169 + $0x260] sm:$0xf]
      %v280 = vld [vmem:[%s169 + $0x264] sm:$0xff]
      %v281 = vld [vmem:[%s169 + $0x26c] sm:$0xf]
      %v282 = vld [vmem:[%s169 + $0x270] sm:$0xff]
      %v283 = vld [vmem:[%s169 + $0x278] sm:$0xf]
      %v284 = vld [vmem:[%s169 + $0x27c] sm:$0xff]
      %v285 = vld [vmem:[%s169 + $0x284] sm:$0xf]
      %v286 = vld [vmem:[%s169 + $0x288] sm:$0xff]
      %v287 = vld [vmem:[%s169 + $0x290] sm:$0xf]
      %v288 = vld [vmem:[%s169 + $0x294] sm:$0xff]
      %v289 = vld [vmem:[%s169 + $0x29c] sm:$0xf]
      %v290 = vld [vmem:[%s169 + $0x2a0] sm:$0xff]
      %v291 = vld [vmem:[%s169 + $0x2a8] sm:$0xf]
      %v292 = vld [vmem:[%s169 + $0x2ac] sm:$0xff]
      %v293 = vld [vmem:[%s169 + $0x2b4] sm:$0xf]
      %v294 = vld [vmem:[%s169 + $0x2b8] sm:$0xff]
      %v295 = vld [vmem:[%s169 + $0x2c0] sm:$0xf]
      %v296 = vld [vmem:[%s169 + $0x2c4] sm:$0xff]
      %v297 = vld [vmem:[%s169 + $0x2cc] sm:$0xf]
      %v298 = vld [vmem:[%s169 + $0x2d0] sm:$0xff]
      %v299 = vld [vmem:[%s169 + $0x2d8] sm:$0xf]
      %v300 = vld [vmem:[%s169 + $0x2dc] sm:$0xff]
      %v301 = vld [vmem:[%s169 + $0x2e4] sm:$0xf]
      %v302 = vld [vmem:[%s169 + $0x2e8] sm:$0xff]
      %v303 = vld [vmem:[%s169 + $0x2f0] sm:$0xf]
      %v304 = vld [vmem:[%s169 + $0x2f4] sm:$0xff]
      %v305 = vld [vmem:[%s169 + $0x2fc] sm:$0xf]
      %v306 = vld [vmem:[%s1] sm:$0xf]
      %v307 = vld [vmem:[%s1 + $0x4] sm:$0xf]
      %v308 = vld [vmem:[%s1 + $0x8] sm:$0xf]
      %v309 = vld [vmem:[%s1 + $0xc] sm:$0xf]
      %v310 = vld [vmem:[%s1 + $0x10] sm:$0xf]
      %v311 = vld [vmem:[%s1 + $0x14] sm:$0xf]
      %v312 = vld [vmem:[%s1 + $0x18] sm:$0xf]
      %v313 = vld [vmem:[%s1 + $0x1c] sm:$0xf]
      %v314 = vld [vmem:[%s1 + $0x20] sm:$0xf]
      %v315 = vld [vmem:[%s1 + $0x24] sm:$0xf]
      %v316 = vld [vmem:[%s1 + $0x28] sm:$0xf]
      %v317 = vld [vmem:[%s1 + $0x2c] sm:$0xf]
      %v318 = vld [vmem:[%s1 + $0x30] sm:$0xf]
      %v319 = vld [vmem:[%s1 + $0x34] sm:$0xf]
      %v320 = vld [vmem:[%s1 + $0x38] sm:$0xf]
      %v321 = vld [vmem:[%s1 + $0x3c] sm:$0xf]
      %v322 = vld [vmem:[%s1 + $0x40] sm:$0xf]
      %v323 = vld [vmem:[%s1 + $0x44] sm:$0xf]
      %v324 = vld [vmem:[%s1 + $0x48] sm:$0xf]
      %v325 = vld [vmem:[%s1 + $0x4c] sm:$0xf]
      %v326 = vld [vmem:[%s1 + $0x50] sm:$0xf]
      %v327 = vld [vmem:[%s1 + $0x54] sm:$0xf]
      %v328 = vld [vmem:[%s1 + $0x58] sm:$0xf]
      %v329 = vld [vmem:[%s1 + $0x5c] sm:$0xf]
      %v330 = vld [vmem:[%s1 + $0x60] sm:$0xf]
      %v331 = vld [vmem:[%s1 + $0x64] sm:$0xf]
      %v332 = vld [vmem:[%s1 + $0x68] sm:$0xf]
      %v333 = vld [vmem:[%s1 + $0x6c] sm:$0xf]
      %v334 = vld [vmem:[%s1 + $0x70] sm:$0xf]
      %v335 = vld [vmem:[%s1 + $0x74] sm:$0xf]
      %v336 = vld [vmem:[%s1 + $0x78] sm:$0xf]
      %v337 = vld [vmem:[%s1 + $0x7c] sm:$0xf]
      %v338 = vld [vmem:[%s1 + $0x80] sm:$0xf]
      %v339 = vld [vmem:[%s1 + $0x84] sm:$0xf]
      %v340 = vld [vmem:[%s1 + $0x88] sm:$0xf]
      %v341 = vld [vmem:[%s1 + $0x8c] sm:$0xf]
      %v342 = vld [vmem:[%s2] sm:$0x1]
      %v344 = vlaneseq
      %v345 = vshrl.u32 %v344, 7
      %v346 = vsub.s32 0, %v345
      %v347 = vrot.slane %v342, %v346
      %v477 = vunpack.c.l.b16 %v178
      %v478 = vunpack.c.h.b16 %v178
      %v479 = vunpack.c.l.b16 %v179
      %v480 = vunpack.c.l.b16 %v180
      %v481 = vunpack.c.h.b16 %v180
      %v482 = vunpack.c.l.b16 %v181
      %v483 = vunpack.c.l.b16 %v182
      %v484 = vunpack.c.h.b16 %v182
      %v485 = vunpack.c.l.b16 %v183
      %v486 = vunpack.c.l.b16 %v184
      %v487 = vunpack.c.h.b16 %v184
      %v488 = vunpack.c.l.b16 %v185
      %v489 = vunpack.c.l.b16 %v186
      %v490 = vunpack.c.h.b16 %v186
      %v491 = vunpack.c.l.b16 %v187
      %v492 = vunpack.c.l.b16 %v188
      %v493 = vunpack.c.h.b16 %v188
      %v494 = vunpack.c.l.b16 %v189
      %v495 = vunpack.c.l.b16 %v190
      %v496 = vunpack.c.h.b16 %v190
      %v497 = vunpack.c.l.b16 %v191
      %v498 = vunpack.c.l.b16 %v192
      %v499 = vunpack.c.h.b16 %v192
      %v500 = vunpack.c.l.b16 %v193
      %v501 = vunpack.c.l.b16 %v194
      %v502 = vunpack.c.h.b16 %v194
      %v503 = vunpack.c.l.b16 %v195
      %v504 = vunpack.c.l.b16 %v196
      %v505 = vunpack.c.h.b16 %v196
      %v506 = vunpack.c.l.b16 %v197
      %v507 = vunpack.c.l.b16 %v198
      %v508 = vunpack.c.h.b16 %v198
      %v509 = vunpack.c.l.b16 %v199
      %v510 = vunpack.c.l.b16 %v200
      %v511 = vunpack.c.h.b16 %v200
      %v512 = vunpack.c.l.b16 %v201
      %v513 = vunpack.c.l.b16 %v202
      %v514 = vunpack.c.h.b16 %v202
      %v515 = vunpack.c.l.b16 %v203
      %v516 = vunpack.c.l.b16 %v204
      %v517 = vunpack.c.h.b16 %v204
      %v518 = vunpack.c.l.b16 %v205
      %v519 = vunpack.c.l.b16 %v206
      %v520 = vunpack.c.h.b16 %v206
      %v521 = vunpack.c.l.b16 %v207
      %v522 = vunpack.c.l.b16 %v208
      %v523 = vunpack.c.h.b16 %v208
      %v524 = vunpack.c.l.b16 %v209
      %v525 = vunpack.c.l.b16 %v210
      %v526 = vunpack.c.h.b16 %v210
      %v527 = vunpack.c.l.b16 %v211
      %v528 = vunpack.c.l.b16 %v212
      %v529 = vunpack.c.h.b16 %v212
      %v530 = vunpack.c.l.b16 %v213
      %v531 = vunpack.c.l.b16 %v214
      %v532 = vunpack.c.h.b16 %v214
      %v533 = vunpack.c.l.b16 %v215
      %v534 = vunpack.c.l.b16 %v216
      %v535 = vunpack.c.h.b16 %v216
      %v536 = vunpack.c.l.b16 %v217
      %v537 = vunpack.c.l.b16 %v218
      %v538 = vunpack.c.h.b16 %v218
      %v539 = vunpack.c.l.b16 %v219
      %v540 = vunpack.c.l.b16 %v220
      %v541 = vunpack.c.h.b16 %v220
      %v542 = vunpack.c.l.b16 %v221
      %v543 = vunpack.c.l.b16 %v222
      %v544 = vunpack.c.h.b16 %v222
      %v545 = vunpack.c.l.b16 %v223
      %v546 = vunpack.c.l.b16 %v224
      %v547 = vunpack.c.h.b16 %v224
      %v548 = vunpack.c.l.b16 %v225
      %v549 = vunpack.c.l.b16 %v226
      %v550 = vunpack.c.h.b16 %v226
      %v551 = vunpack.c.l.b16 %v227
      %v552 = vunpack.c.l.b16 %v228
      %v553 = vunpack.c.h.b16 %v228
      %v554 = vunpack.c.l.b16 %v229
      %v555 = vunpack.c.l.b16 %v230
      %v556 = vunpack.c.h.b16 %v230
      %v557 = vunpack.c.l.b16 %v231
      %v558 = vunpack.c.l.b16 %v232
      %v559 = vunpack.c.h.b16 %v232
      %v560 = vunpack.c.l.b16 %v233
      %v561 = vunpack.c.l.b16 %v234
      %v562 = vunpack.c.h.b16 %v234
      %v563 = vunpack.c.l.b16 %v235
      %v564 = vunpack.c.l.b16 %v236
      %v565 = vunpack.c.h.b16 %v236
      %v566 = vunpack.c.l.b16 %v237
      %v567 = vunpack.c.l.b16 %v238
      %v568 = vunpack.c.h.b16 %v238
      %v569 = vunpack.c.l.b16 %v239
      %v570 = vunpack.c.l.b16 %v240
      %v571 = vunpack.c.h.b16 %v240
      %v572 = vunpack.c.l.b16 %v241
      %v573 = vunpack.c.l.b16 %v242
      %v574 = vunpack.c.h.b16 %v242
      %v575 = vunpack.c.l.b16 %v243
      %v576 = vunpack.c.l.b16 %v244
      %v577 = vunpack.c.h.b16 %v244
      %v578 = vunpack.c.l.b16 %v245
      %v579 = vunpack.c.l.b16 %v246
      %v580 = vunpack.c.h.b16 %v246
      %v581 = vunpack.c.l.b16 %v247
      %v582 = vunpack.c.l.b16 %v248
      %v583 = vunpack.c.h.b16 %v248
      %v584 = vunpack.c.l.b16 %v249
      %v585 = vunpack.c.l.b16 %v250
      %v586 = vunpack.c.h.b16 %v250
      %v587 = vunpack.c.l.b16 %v251
      %v588 = vunpack.c.l.b16 %v252
      %v589 = vunpack.c.h.b16 %v252
      %v590 = vunpack.c.l.b16 %v253
      %v591 = vunpack.c.l.b16 %v254
      %v592 = vunpack.c.h.b16 %v254
      %v593 = vunpack.c.l.b16 %v255
      %v594 = vunpack.c.l.b16 %v256
      %v595 = vunpack.c.h.b16 %v256
      %v596 = vunpack.c.l.b16 %v257
      %v597 = vunpack.c.l.b16 %v258
      %v598 = vunpack.c.h.b16 %v258
      %v599 = vunpack.c.l.b16 %v259
      %v600 = vunpack.c.l.b16 %v260
      %v601 = vunpack.c.h.b16 %v260
      %v602 = vunpack.c.l.b16 %v261
      %v603 = vunpack.c.l.b16 %v262
      %v604 = vunpack.c.h.b16 %v262
      %v605 = vunpack.c.l.b16 %v263
      %v606 = vunpack.c.l.b16 %v264
      %v607 = vunpack.c.h.b16 %v264
      %v608 = vunpack.c.l.b16 %v265
      %v609 = vunpack.c.l.b16 %v266
      %v610 = vunpack.c.h.b16 %v266
      %v611 = vunpack.c.l.b16 %v267
      %v612 = vunpack.c.l.b16 %v268
      %v613 = vunpack.c.h.b16 %v268
      %v614 = vunpack.c.l.b16 %v269
      %v615 = vunpack.c.l.b16 %v270
      %v616 = vunpack.c.h.b16 %v270
      %v617 = vunpack.c.l.b16 %v271
      %v618 = vunpack.c.l.b16 %v272
      %v619 = vunpack.c.h.b16 %v272
      %v620 = vunpack.c.l.b16 %v273
      %v621 = vunpack.c.l.b16 %v274
      %v622 = vunpack.c.h.b16 %v274
      %v623 = vunpack.c.l.b16 %v275
      %v624 = vunpack.c.l.b16 %v276
      %v625 = vunpack.c.h.b16 %v276
      %v626 = vunpack.c.l.b16 %v277
      %v627 = vunpack.c.l.b16 %v278
      %v628 = vunpack.c.h.b16 %v278
      %v629 = vunpack.c.l.b16 %v279
      %v630 = vunpack.c.l.b16 %v280
      %v631 = vunpack.c.h.b16 %v280
      %v632 = vunpack.c.l.b16 %v281
      %v633 = vunpack.c.l.b16 %v282
      %v634 = vunpack.c.h.b16 %v282
      %v635 = vunpack.c.l.b16 %v283
      %v636 = vunpack.c.l.b16 %v284
      %v637 = vunpack.c.h.b16 %v284
      %v638 = vunpack.c.l.b16 %v285
      %v639 = vunpack.c.l.b16 %v286
      %v640 = vunpack.c.h.b16 %v286
      %v641 = vunpack.c.l.b16 %v287
      %v642 = vunpack.c.l.b16 %v288
      %v643 = vunpack.c.h.b16 %v288
      %v644 = vunpack.c.l.b16 %v289
      %v645 = vunpack.c.l.b16 %v290
      %v646 = vunpack.c.h.b16 %v290
      %v647 = vunpack.c.l.b16 %v291
      %v648 = vunpack.c.l.b16 %v292
      %v649 = vunpack.c.h.b16 %v292
      %v650 = vunpack.c.l.b16 %v293
      %v651 = vunpack.c.l.b16 %v294
      %v652 = vunpack.c.h.b16 %v294
      %v653 = vunpack.c.l.b16 %v295
      %v654 = vunpack.c.l.b16 %v296
      %v655 = vunpack.c.h.b16 %v296
      %v656 = vunpack.c.l.b16 %v297
      %v657 = vunpack.c.l.b16 %v298
      %v658 = vunpack.c.h.b16 %v298
      %v659 = vunpack.c.l.b16 %v299
      %v660 = vunpack.c.l.b16 %v300
      %v661 = vunpack.c.h.b16 %v300
      %v662 = vunpack.c.l.b16 %v301
      %v663 = vunpack.c.l.b16 %v302
      %v664 = vunpack.c.h.b16 %v302
      %v665 = vunpack.c.l.b16 %v303
      %v666 = vunpack.c.l.b16 %v304
      %v667 = vunpack.c.h.b16 %v304
      %v668 = vunpack.c.l.b16 %v305
      %v669 = vpack.c.b16 %v480, %v477
      %v670 = vpack.c.b16 %v481, %v478
      %v671 = vpack.c.b16 %v482, %v479
      %v672 = vpack.c.b16 %v486, %v483
      %v673 = vpack.c.b16 %v487, %v484
      %v674 = vpack.c.b16 %v488, %v485
      %v675 = vpack.c.b16 %v492, %v489
      %v676 = vpack.c.b16 %v493, %v490
      %v677 = vpack.c.b16 %v494, %v491
      %v678 = vpack.c.b16 %v498, %v495
      %v679 = vpack.c.b16 %v499, %v496
      %v680 = vpack.c.b16 %v500, %v497
      %v681 = vpack.c.b16 %v504, %v501
      %v682 = vpack.c.b16 %v505, %v502
      %v683 = vpack.c.b16 %v506, %v503
      %v684 = vpack.c.b16 %v510, %v507
      %v685 = vpack.c.b16 %v511, %v508
      %v686 = vpack.c.b16 %v512, %v509
      %v687 = vpack.c.b16 %v516, %v513
      %v688 = vpack.c.b16 %v517, %v514
      %v689 = vpack.c.b16 %v518, %v515
      %v690 = vpack.c.b16 %v522, %v519
      %v691 = vpack.c.b16 %v523, %v520
      %v692 = vpack.c.b16 %v524, %v521
      %v693 = vpack.c.b16 %v528, %v525
      %v694 = vpack.c.b16 %v529, %v526
      %v695 = vpack.c.b16 %v530, %v527
      %v696 = vpack.c.b16 %v534, %v531
      %v697 = vpack.c.b16 %v535, %v532
      %v698 = vpack.c.b16 %v536, %v533
      %v699 = vpack.c.b16 %v540, %v537
      %v700 = vpack.c.b16 %v541, %v538
      %v701 = vpack.c.b16 %v542, %v539
      %v702 = vpack.c.b16 %v546, %v543
      %v703 = vpack.c.b16 %v547, %v544
      %v704 = vpack.c.b16 %v548, %v545
      %v705 = vpack.c.b16 %v552, %v549
      %v706 = vpack.c.b16 %v553, %v550
      %v707 = vpack.c.b16 %v554, %v551
      %v708 = vpack.c.b16 %v558, %v555
      %v709 = vpack.c.b16 %v559, %v556
      %v710 = vpack.c.b16 %v560, %v557
      %v711 = vpack.c.b16 %v564, %v561
      %v712 = vpack.c.b16 %v565, %v562
      %v713 = vpack.c.b16 %v566, %v563
      %v714 = vpack.c.b16 %v570, %v567
      %v715 = vpack.c.b16 %v571, %v568
      %v716 = vpack.c.b16 %v572, %v569
      %v717 = vpack.c.b16 %v576, %v573
      %v718 = vpack.c.b16 %v577, %v574
      %v719 = vpack.c.b16 %v578, %v575
      %v720 = vpack.c.b16 %v582, %v579
      %v721 = vpack.c.b16 %v583, %v580
      %v722 = vpack.c.b16 %v584, %v581
      %v723 = vpack.c.b16 %v588, %v585
      %v724 = vpack.c.b16 %v589, %v586
      %v725 = vpack.c.b16 %v590, %v587
      %v726 = vpack.c.b16 %v594, %v591
      %v727 = vpack.c.b16 %v595, %v592
      %v728 = vpack.c.b16 %v596, %v593
      %v729 = vpack.c.b16 %v600, %v597
      %v730 = vpack.c.b16 %v601, %v598
      %v731 = vpack.c.b16 %v602, %v599
      %v732 = vpack.c.b16 %v606, %v603
      %v733 = vpack.c.b16 %v607, %v604
      %v734 = vpack.c.b16 %v608, %v605
      %v735 = vpack.c.b16 %v612, %v609
      %v736 = vpack.c.b16 %v613, %v610
      %v737 = vpack.c.b16 %v614, %v611
      %v738 = vpack.c.b16 %v618, %v615
      %v739 = vpack.c.b16 %v619, %v616
      %v740 = vpack.c.b16 %v620, %v617
      %v741 = vpack.c.b16 %v624, %v621
      %v742 = vpack.c.b16 %v625, %v622
      %v743 = vpack.c.b16 %v626, %v623
      %v744 = vpack.c.b16 %v630, %v627
      %v745 = vpack.c.b16 %v631, %v628
      %v746 = vpack.c.b16 %v632, %v629
      %v747 = vpack.c.b16 %v636, %v633
      %v748 = vpack.c.b16 %v637, %v634
      %v749 = vpack.c.b16 %v638, %v635
      %v750 = vpack.c.b16 %v642, %v639
      %v751 = vpack.c.b16 %v643, %v640
      %v752 = vpack.c.b16 %v644, %v641
      %v753 = vpack.c.b16 %v648, %v645
      %v754 = vpack.c.b16 %v649, %v646
      %v755 = vpack.c.b16 %v650, %v647
      %v756 = vpack.c.b16 %v654, %v651
      %v757 = vpack.c.b16 %v655, %v652
      %v758 = vpack.c.b16 %v656, %v653
      %v759 = vpack.c.b16 %v660, %v657
      %v760 = vpack.c.b16 %v661, %v658
      %v761 = vpack.c.b16 %v662, %v659
      %v762 = vpack.c.b16 %v666, %v663
      %v763 = vpack.c.b16 %v667, %v664
      %v764 = vpack.c.b16 %v668, %v665
      %v865 = vunpack.c.l.b16 %v306
      %v866 = vunpack.c.l.b16 %v307
      %v867 = vunpack.c.l.b16 %v308
      %v868 = vunpack.c.l.b16 %v309
      %v869 = vunpack.c.l.b16 %v310
      %v870 = vunpack.c.l.b16 %v311
      %v871 = vunpack.c.l.b16 %v312
      %v872 = vunpack.c.l.b16 %v313
      %v873 = vunpack.c.l.b16 %v314
      %v874 = vunpack.c.l.b16 %v315
      %v875 = vunpack.c.l.b16 %v316
      %v876 = vunpack.c.l.b16 %v317
      %v877 = vunpack.c.l.b16 %v318
      %v878 = vunpack.c.l.b16 %v319
      %v879 = vunpack.c.l.b16 %v320
      %v880 = vunpack.c.l.b16 %v321
      %v881 = vunpack.c.l.b16 %v322
      %v882 = vunpack.c.l.b16 %v323
      %v883 = vunpack.c.l.b16 %v324
      %v884 = vunpack.c.l.b16 %v325
      %v885 = vunpack.c.l.b16 %v326
      %v886 = vunpack.c.l.b16 %v327
      %v887 = vunpack.c.l.b16 %v328
      %v888 = vunpack.c.l.b16 %v329
      %v889 = vunpack.c.l.b16 %v330
      %v890 = vunpack.c.l.b16 %v331
      %v891 = vunpack.c.l.b16 %v332
      %v892 = vunpack.c.l.b16 %v333
      %v893 = vunpack.c.l.b16 %v334
      %v894 = vunpack.c.l.b16 %v335
      %v895 = vunpack.c.l.b16 %v336
      %v896 = vunpack.c.l.b16 %v337
      %v897 = vunpack.c.l.b16 %v338
      %v898 = vunpack.c.l.b16 %v339
      %v899 = vunpack.c.l.b16 %v340
      %v900 = vunpack.c.l.b16 %v341
      %v901 = vpack.c.b16 %v866, %v865
      %v902 = vpack.c.b16 %v868, %v867
      %v903 = vpack.c.b16 %v870, %v869
      %v904 = vpack.c.b16 %v872, %v871
      %v905 = vpack.c.b16 %v874, %v873
      %v906 = vpack.c.b16 %v876, %v875
      %v907 = vpack.c.b16 %v878, %v877
      %v908 = vpack.c.b16 %v880, %v879
      %v909 = vpack.c.b16 %v882, %v881
      %v910 = vpack.c.b16 %v884, %v883
      %v911 = vpack.c.b16 %v886, %v885
      %v912 = vpack.c.b16 %v888, %v887
      %v913 = vpack.c.b16 %v890, %v889
      %v914 = vpack.c.b16 %v892, %v891
      %v915 = vpack.c.b16 %v894, %v893
      %v916 = vpack.c.b16 %v896, %v895
      %v917 = vpack.c.b16 %v898, %v897
      %v918 = vpack.c.b16 %v900, %v899
      %vm937 = vcmask 261120
      %v939 = vsel %vm937, %v671, 0
      %v942 = vsel %vm937, %v674, 0
      %v945 = vsel %vm937, %v677, 0
      %v948 = vsel %vm937, %v680, 0
      %v951 = vsel %vm937, %v683, 0
      %v954 = vsel %vm937, %v686, 0
      %v957 = vsel %vm937, %v689, 0
      %v960 = vsel %vm937, %v692, 0
      %v963 = vsel %vm937, %v695, 0
      %v966 = vsel %vm937, %v698, 0
      %v969 = vsel %vm937, %v701, 0
      %v972 = vsel %vm937, %v704, 0
      %v975 = vsel %vm937, %v707, 0
      %v978 = vsel %vm937, %v710, 0
      %v981 = vsel %vm937, %v713, 0
      %v984 = vsel %vm937, %v716, 0
      %v987 = vsel %vm937, %v719, 0
      %v990 = vsel %vm937, %v722, 0
      %v993 = vsel %vm937, %v725, 0
      %v996 = vsel %vm937, %v728, 0
      %v999 = vsel %vm937, %v731, 0
      %v1002 = vsel %vm937, %v734, 0
      %v1005 = vsel %vm937, %v737, 0
      %v1008 = vsel %vm937, %v740, 0
      %v1011 = vsel %vm937, %v743, 0
      %v1014 = vsel %vm937, %v746, 0
      %v1017 = vsel %vm937, %v749, 0
      %v1020 = vsel %vm937, %v752, 0
      %v1023 = vsel %vm937, %v755, 0
      %v1026 = vsel %vm937, %v758, 0
      %v1029 = vsel %vm937, %v761, 0
      %v1032 = vsel %vm937, %v764, 0
      %1034 = vmatprep.subr.bf16.mxu0 0
      %1035 = vmatpush1.bf16.msra.mxu0 %v901
      %1036 = vmatprep.subr.bf16.mxu0 0
      %1037 = vmatpush1.bf16.msra.mxu0 %v902
      %1038 = vmatprep.subr.bf16.mxu0 0
      %1039 = vmatpush1.bf16.msra.mxu0 %v903
      %1040 = vmatprep.subr.bf16.mxu0 0
      %1041 = vmatpush1.bf16.msra.mxu0 %v904
      %1042 = vmatprep.subr.bf16.mxu0 0
      %1043 = vmatpush1.bf16.msra.mxu0 %v905
      %1044 = vmatprep.subr.bf16.mxu0 0
      %1045 = vmatpush1.bf16.msra.mxu0 %v906
      %1046 = vmatprep.subr.bf16.mxu0 0
      %1047 = vmatpush1.bf16.msra.mxu0 %v907
      %1048 = vmatprep.subr.bf16.mxu0 0
      %1049 = vmatpush1.bf16.msra.mxu0 %v908
      %1050 = vmatprep.subr.bf16.mxu0 0
      %1051 = vmatpush1.bf16.msra.mxu0 %v909
      %1052 = vmatprep.subr.bf16.mxu0 0
      %1053 = vmatpush1.bf16.msra.mxu0 %v910
      %1054 = vmatprep.subr.bf16.mxu0 0
      %1055 = vmatpush1.bf16.msra.mxu0 %v911
      %1056 = vmatprep.subr.bf16.mxu0 0
      %1057 = vmatpush1.bf16.msra.mxu0 %v912
      %1058 = vmatprep.subr.bf16.mxu0 0
      %1059 = vmatpush1.bf16.msra.mxu0 %v913
      %1060 = vmatprep.subr.bf16.mxu0 0
      %1061 = vmatpush1.bf16.msra.mxu0 %v914
      %1062 = vmatprep.subr.bf16.mxu0 0
      %1063 = vmatpush1.bf16.msra.mxu0 %v915
      %1064 = vmatprep.subr.bf16.mxu0 0
      %1065 = vmatpush1.bf16.msra.mxu0 %v916
      %1066 = vmatprep.mubr.bf16.mxu0 %v670
      %1067 = vmatmul.mubr.bf16.gmra.mrb[0].mxu0 %v669
      %v1068 = vpop.f32.mrb[0].mxu0
      %v1069 = vadd.f32 %v347, %v1068
      %v1070 = vpop.f32.mrb[0].mxu0
      %v1071 = vpop.f32.mrb[0].mxu0
      %v1072 = vadd.f32 %v347, %v1071
      %v1073 = vpop.f32.mrb[0].mxu0
      %1074 = vmatprep.mubr.bf16.mxu0 %v673
      %1075 = vmatmul.mubr.bf16.gmra.mrb[0].mxu0 %v672
      %v1076 = vpop.f32.mrb[0].mxu0
      %v1077 = vadd.f32 %v347, %v1076
      %v1078 = vpop.f32.mrb[0].mxu0
      %v1079 = vpop.f32.mrb[0].mxu0
      %v1080 = vadd.f32 %v347, %v1079
      %v1081 = vpop.f32.mrb[0].mxu0
      %1082 = vmatprep.mubr.bf16.mxu0 %v676
      %1083 = vmatmul.mubr.bf16.gmra.mrb[0].mxu0 %v675
      %v1084 = vpop.f32.mrb[0].mxu0
      %v1085 = vadd.f32 %v347, %v1084
      %v1086 = vpop.f32.mrb[0].mxu0
      %v1087 = vpop.f32.mrb[0].mxu0
      %v1088 = vadd.f32 %v347, %v1087
      %v1089 = vpop.f32.mrb[0].mxu0
      %1090 = vmatprep.mubr.bf16.mxu0 %v679
      %1091 = vmatmul.mubr.bf16.gmra.mrb[0].mxu0 %v678
      %v1092 = vpop.f32.mrb[0].mxu0
      %v1093 = vadd.f32 %v347, %v1092
      %v1094 = vpop.f32.mrb[0].mxu0
      %v1095 = vpop.f32.mrb[0].mxu0
      %v1096 = vadd.f32 %v347, %v1095
      %v1097 = vpop.f32.mrb[0].mxu0
      %1098 = vmatprep.mubr.bf16.mxu0 %v682
      %1099 = vmatmul.mubr.bf16.gmra.mrb[0].mxu0 %v681
      %v1100 = vpop.f32.mrb[0].mxu0
      %v1101 = vadd.f32 %v347, %v1100
      %v1102 = vpop.f32.mrb[0].mxu0
      %v1103 = vpop.f32.mrb[0].mxu0
      %v1104 = vadd.f32 %v347, %v1103
      %v1105 = vpop.f32.mrb[0].mxu0
      %1106 = vmatprep.mubr.bf16.mxu0 %v685
      %1107 = vmatmul.mubr.bf16.gmra.mrb[0].mxu0 %v684
      %v1108 = vpop.f32.mrb[0].mxu0
      %v1109 = vadd.f32 %v347, %v1108
      %v1110 = vpop.f32.mrb[0].mxu0
      %v1111 = vpop.f32.mrb[0].mxu0
      %v1112 = vadd.f32 %v347, %v1111
      %v1113 = vpop.f32.mrb[0].mxu0
      %1114 = vmatprep.mubr.bf16.mxu0 %v688
      %1115 = vmatmul.mubr.bf16.gmra.mrb[0].mxu0 %v687
      %v1116 = vpop.f32.mrb[0].mxu0
      %v1117 = vadd.f32 %v347, %v1116
      %v1118 = vpop.f32.mrb[0].mxu0
      %v1119 = vpop.f32.mrb[0].mxu0
      %v1120 = vadd.f32 %v347, %v1119
      %v1121 = vpop.f32.mrb[0].mxu0
      %1122 = vmatprep.mubr.bf16.mxu0 %v691
      %1123 = vmatmul.mubr.bf16.gmra.mrb[0].mxu0 %v690
      %v1124 = vpop.f32.mrb[0].mxu0
      %v1125 = vadd.f32 %v347, %v1124
      %v1126 = vpop.f32.mrb[0].mxu0
      %v1127 = vpop.f32.mrb[0].mxu0
      %v1128 = vadd.f32 %v347, %v1127
      %v1129 = vpop.f32.mrb[0].mxu0
      %1130 = vmatprep.mubr.bf16.mxu0 %v694
      %1131 = vmatmul.mubr.bf16.gmra.mrb[0].mxu0 %v693
      %v1132 = vpop.f32.mrb[0].mxu0
      %v1133 = vadd.f32 %v347, %v1132
      %v1134 = vpop.f32.mrb[0].mxu0
      %v1135 = vpop.f32.mrb[0].mxu0
      %v1136 = vadd.f32 %v347, %v1135
      %v1137 = vpop.f32.mrb[0].mxu0
      %1138 = vmatprep.mubr.bf16.mxu0 %v697
      %1139 = vmatmul.mubr.bf16.gmra.mrb[0].mxu0 %v696
      %v1140 = vpop.f32.mrb[0].mxu0
      %v1141 = vadd.f32 %v347, %v1140
      %v1142 = vpop.f32.mrb[0].mxu0
      %v1143 = vpop.f32.mrb[0].mxu0
      %v1144 = vadd.f32 %v347, %v1143
      %v1145 = vpop.f32.mrb[0].mxu0
      %1146 = vmatprep.mubr.bf16.mxu0 %v700
      %1147 = vmatmul.mubr.bf16.gmra.mrb[0].mxu0 %v699
      %v1148 = vpop.f32.mrb[0].mxu0
      %v1149 = vadd.f32 %v347, %v1148
      %v1150 = vpop.f32.mrb[0].mxu0
      %v1151 = vpop.f32.mrb[0].mxu0
      %v1152 = vadd.f32 %v347, %v1151
      %v1153 = vpop.f32.mrb[0].mxu0
      %1154 = vmatprep.mubr.bf16.mxu0 %v703
      %1155 = vmatmul.mubr.bf16.gmra.mrb[0].mxu0 %v702
      %v1156 = vpop.f32.mrb[0].mxu0
      %v1157 = vadd.f32 %v347, %v1156
      %v1158 = vpop.f32.mrb[0].mxu0
      %v1159 = vpop.f32.mrb[0].mxu0
      %v1160 = vadd.f32 %v347, %v1159
      %v1161 = vpop.f32.mrb[0].mxu0
      %1162 = vmatprep.mubr.bf16.mxu0 %v706
      %1163 = vmatmul.mubr.bf16.gmra.mrb[0].mxu0 %v705
      %v1164 = vpop.f32.mrb[0].mxu0
      %v1165 = vadd.f32 %v347, %v1164
      %v1166 = vpop.f32.mrb[0].mxu0
      %v1167 = vpop.f32.mrb[0].mxu0
      %v1168 = vadd.f32 %v347, %v1167
      %v1169 = vpop.f32.mrb[0].mxu0
      %1170 = vmatprep.mubr.bf16.mxu0 %v709
      %1171 = vmatmul.mubr.bf16.gmra.mrb[0].mxu0 %v708
      %v1172 = vpop.f32.mrb[0].mxu0
      %v1173 = vadd.f32 %v347, %v1172
      %v1174 = vpop.f32.mrb[0].mxu0
      %v1175 = vpop.f32.mrb[0].mxu0
      %v1176 = vadd.f32 %v347, %v1175
      %v1177 = vpop.f32.mrb[0].mxu0
      %1178 = vmatprep.mubr.bf16.mxu0 %v712
      %1179 = vmatmul.mubr.bf16.gmra.mrb[0].mxu0 %v711
      %v1180 = vpop.f32.mrb[0].mxu0
      %v1181 = vadd.f32 %v347, %v1180
      %v1182 = vpop.f32.mrb[0].mxu0
      %v1183 = vpop.f32.mrb[0].mxu0
      %v1184 = vadd.f32 %v347, %v1183
      %v1185 = vpop.f32.mrb[0].mxu0
      %1186 = vmatprep.mubr.bf16.mxu0 %v715
      %1187 = vmatmul.mubr.bf16.gmra.mrb[0].mxu0 %v714
      %v1188 = vpop.f32.mrb[0].mxu0
      %v1189 = vadd.f32 %v347, %v1188
      %v1190 = vpop.f32.mrb[0].mxu0
      %v1191 = vpop.f32.mrb[0].mxu0
      %v1192 = vadd.f32 %v347, %v1191
      %v1193 = vpop.f32.mrb[0].mxu0
      %1194 = vmatprep.mubr.bf16.mxu0 %v718
      %1195 = vmatmul.mubr.bf16.gmra.mrb[0].mxu0 %v717
      %v1196 = vpop.f32.mrb[0].mxu0
      %v1197 = vadd.f32 %v347, %v1196
      %v1198 = vpop.f32.mrb[0].mxu0
      %v1199 = vpop.f32.mrb[0].mxu0
      %v1200 = vadd.f32 %v347, %v1199
      %v1201 = vpop.f32.mrb[0].mxu0
      %1202 = vmatprep.mubr.bf16.mxu0 %v721
      %1203 = vmatmul.mubr.bf16.gmra.mrb[0].mxu0 %v720
      %v1204 = vpop.f32.mrb[0].mxu0
      %v1205 = vadd.f32 %v347, %v1204
      %v1206 = vpop.f32.mrb[0].mxu0
      %v1207 = vpop.f32.mrb[0].mxu0
      %v1208 = vadd.f32 %v347, %v1207
      %v1209 = vpop.f32.mrb[0].mxu0
      %1210 = vmatprep.mubr.bf16.mxu0 %v724
      %1211 = vmatmul.mubr.bf16.gmra.mrb[0].mxu0 %v723
      %v1212 = vpop.f32.mrb[0].mxu0
      %v1213 = vadd.f32 %v347, %v1212
      %v1214 = vpop.f32.mrb[0].mxu0
      %v1215 = vpop.f32.mrb[0].mxu0
      %v1216 = vadd.f32 %v347, %v1215
      %v1217 = vpop.f32.mrb[0].mxu0
      %1218 = vmatprep.mubr.bf16.mxu0 %v727
      %1219 = vmatmul.mubr.bf16.gmra.mrb[0].mxu0 %v726
      %v1220 = vpop.f32.mrb[0].mxu0
      %v1221 = vadd.f32 %v347, %v1220
      %v1222 = vpop.f32.mrb[0].mxu0
      %v1223 = vpop.f32.mrb[0].mxu0
      %v1224 = vadd.f32 %v347, %v1223
      %v1225 = vpop.f32.mrb[0].mxu0
      %1226 = vmatprep.mubr.bf16.mxu0 %v730
      %1227 = vmatmul.mubr.bf16.gmra.mrb[0].mxu0 %v729
      %v1228 = vpop.f32.mrb[0].mxu0
      %v1229 = vadd.f32 %v347, %v1228
      %v1230 = vpop.f32.mrb[0].mxu0
      %v1231 = vpop.f32.mrb[0].mxu0
      %v1232 = vadd.f32 %v347, %v1231
      %v1233 = vpop.f32.mrb[0].mxu0
      %1234 = vmatprep.mubr.bf16.mxu0 %v733
      %1235 = vmatmul.mubr.bf16.gmra.mrb[0].mxu0 %v732
      %v1236 = vpop.f32.mrb[0].mxu0
      %v1237 = vadd.f32 %v347, %v1236
      %v1238 = vpop.f32.mrb[0].mxu0
      %v1239 = vpop.f32.mrb[0].mxu0
      %v1240 = vadd.f32 %v347, %v1239
      %v1241 = vpop.f32.mrb[0].mxu0
      %1242 = vmatprep.mubr.bf16.mxu0 %v736
      %1243 = vmatmul.mubr.bf16.gmra.mrb[0].mxu0 %v735
      %v1244 = vpop.f32.mrb[0].mxu0
      %v1245 = vadd.f32 %v347, %v1244
      %v1246 = vpop.f32.mrb[0].mxu0
      %v1247 = vpop.f32.mrb[0].mxu0
      %v1248 = vadd.f32 %v347, %v1247
      %v1249 = vpop.f32.mrb[0].mxu0
      %1250 = vmatprep.mubr.bf16.mxu0 %v739
      %1251 = vmatmul.mubr.bf16.gmra.mrb[0].mxu0 %v738
      %v1252 = vpop.f32.mrb[0].mxu0
      %v1253 = vadd.f32 %v347, %v1252
      %v1254 = vpop.f32.mrb[0].mxu0
      %v1255 = vpop.f32.mrb[0].mxu0
      %v1256 = vadd.f32 %v347, %v1255
      %v1257 = vpop.f32.mrb[0].mxu0
      %1258 = vmatprep.mubr.bf16.mxu0 %v742
      %1259 = vmatmul.mubr.bf16.gmra.mrb[0].mxu0 %v741
      %v1260 = vpop.f32.mrb[0].mxu0
      %v1261 = vadd.f32 %v347, %v1260
      %v1262 = vpop.f32.mrb[0].mxu0
      %v1263 = vpop.f32.mrb[0].mxu0
      %v1264 = vadd.f32 %v347, %v1263
      %v1265 = vpop.f32.mrb[0].mxu0
      %1266 = vmatprep.mubr.bf16.mxu0 %v745
      %1267 = vmatmul.mubr.bf16.gmra.mrb[0].mxu0 %v744
      %v1268 = vpop.f32.mrb[0].mxu0
      %v1269 = vadd.f32 %v347, %v1268
      %v1270 = vpop.f32.mrb[0].mxu0
      %v1271 = vpop.f32.mrb[0].mxu0
      %v1272 = vadd.f32 %v347, %v1271
      %v1273 = vpop.f32.mrb[0].mxu0
      %1274 = vmatprep.mubr.bf16.mxu0 %v748
      %1275 = vmatmul.mubr.bf16.gmra.mrb[0].mxu0 %v747
      %v1276 = vpop.f32.mrb[0].mxu0
      %v1277 = vadd.f32 %v347, %v1276
      %v1278 = vpop.f32.mrb[0].mxu0
      %v1279 = vpop.f32.mrb[0].mxu0
      %v1280 = vadd.f32 %v347, %v1279
      %v1281 = vpop.f32.mrb[0].mxu0
      %1282 = vmatprep.mubr.bf16.mxu0 %v751
      %1283 = vmatmul.mubr.bf16.gmra.mrb[0].mxu0 %v750
      %v1284 = vpop.f32.mrb[0].mxu0
      %v1285 = vadd.f32 %v347, %v1284
      %v1286 = vpop.f32.mrb[0].mxu0
      %v1287 = vpop.f32.mrb[0].mxu0
      %v1288 = vadd.f32 %v347, %v1287
      %v1289 = vpop.f32.mrb[0].mxu0
      %1290 = vmatprep.mubr.bf16.mxu0 %v754
      %1291 = vmatmul.mubr.bf16.gmra.mrb[0].mxu0 %v753
      %v1292 = vpop.f32.mrb[0].mxu0
      %v1293 = vadd.f32 %v347, %v1292
      %v1294 = vpop.f32.mrb[0].mxu0
      %v1295 = vpop.f32.mrb[0].mxu0
      %v1296 = vadd.f32 %v347, %v1295
      %v1297 = vpop.f32.mrb[0].mxu0
      %1298 = vmatprep.mubr.bf16.mxu0 %v757
      %1299 = vmatmul.mubr.bf16.gmra.mrb[0].mxu0 %v756
      %v1300 = vpop.f32.mrb[0].mxu0
      %v1301 = vadd.f32 %v347, %v1300
      %v1302 = vpop.f32.mrb[0].mxu0
      %v1303 = vpop.f32.mrb[0].mxu0
      %v1304 = vadd.f32 %v347, %v1303
      %v1305 = vpop.f32.mrb[0].mxu0
      %1306 = vmatprep.mubr.bf16.mxu0 %v760
      %1307 = vmatmul.mubr.bf16.gmra.mrb[0].mxu0 %v759
      %v1308 = vpop.f32.mrb[0].mxu0
      %v1309 = vadd.f32 %v347, %v1308
      %v1310 = vpop.f32.mrb[0].mxu0
      %v1311 = vpop.f32.mrb[0].mxu0
      %v1312 = vadd.f32 %v347, %v1311
      %v1313 = vpop.f32.mrb[0].mxu0
      %1314 = vmatprep.mubr.bf16.mxu0 %v763
      %1315 = vmatmul.mubr.bf16.gmra.mrb[0].mxu0 %v762
      %v1316 = vpop.f32.mrb[0].mxu0
      %v1317 = vadd.f32 %v347, %v1316
      %v1318 = vpop.f32.mrb[0].mxu0
      %v1319 = vpop.f32.mrb[0].mxu0
      %v1320 = vadd.f32 %v347, %v1319
      %v1321 = vpop.f32.mrb[0].mxu0
      %1322 = vdwg.mxu0
      %1323 = vmatprep.subr.bf16.mxu0 0
      %1324 = vmatpush1.bf16.msra.mxu0 %v917
      %1325 = vmatprep.subr.bf16.mxu0 0
      %1326 = vmatpush1.bf16.msra.mxu0 %v918
      %1327 = vmatprep.subr.bf16.mxu0 0
      %1328 = vmatpush1.bf16.msra.mxu0 0
      %1329 = vmatprep.subr.bf16.mxu0 0
      %1330 = vmatpush1.bf16.msra.mxu0 0
      %1331 = vmatprep.subr.bf16.mxu0 0
      %1332 = vmatpush1.bf16.msra.mxu0 0
      %1333 = vmatprep.subr.bf16.mxu0 0
      %1334 = vmatpush1.bf16.msra.mxu0 0
      %1335 = vmatprep.subr.bf16.mxu0 0
      %1336 = vmatpush1.bf16.msra.mxu0 0
      %1337 = vmatprep.subr.bf16.mxu0 0
      %1338 = vmatpush1.bf16.msra.mxu0 0
      %1339 = vmatprep.subr.bf16.mxu0 0
      %1340 = vmatpush1.bf16.msra.mxu0 0
      %1341 = vmatprep.subr.bf16.mxu0 0
      %1342 = vmatpush1.bf16.msra.mxu0 0
      %1343 = vmatprep.subr.bf16.mxu0 0
      %1344 = vmatpush1.bf16.msra.mxu0 0
      %1345 = vmatprep.subr.bf16.mxu0 0
      %1346 = vmatpush1.bf16.msra.mxu0 0
      %1347 = vmatprep.subr.bf16.mxu0 0
      %1348 = vmatpush1.bf16.msra.mxu0 0
      %1349 = vmatprep.subr.bf16.mxu0 0
      %1350 = vmatpush1.bf16.msra.mxu0 0
      %1351 = vmatprep.subr.bf16.mxu0 0
      %1352 = vmatpush1.bf16.msra.mxu0 0
      %1353 = vmatprep.subr.bf16.mxu0 0
      %1354 = vmatpush1.bf16.msra.mxu0 0
      %1355 = vmatprep.mubr.bf16.mxu0 0
      %1356 = vmatmul.mubr.bf16.gmra.mrb[0].mxu0 %v939
      %v1357 = vpop.f32.mrb[0].mxu0
      %v1358 = vadd.f32 %v1069, %v1357
      %v1359 = vpop.f32.mrb[0].mxu0
      %v1360 = vpop.f32.mrb[0].mxu0
      %v1361 = vadd.f32 %v1072, %v1360
      %v1362 = vpop.f32.mrb[0].mxu0
      %1363 = vmatprep.mubr.bf16.mxu0 0
      %1364 = vmatmul.mubr.bf16.gmra.mrb[0].mxu0 %v942
      %v1365 = vpop.f32.mrb[0].mxu0
      %v1366 = vadd.f32 %v1077, %v1365
      %v1367 = vpop.f32.mrb[0].mxu0
      %v1368 = vpop.f32.mrb[0].mxu0
      %v1369 = vadd.f32 %v1080, %v1368
      %v1370 = vpop.f32.mrb[0].mxu0
      %1371 = vmatprep.mubr.bf16.mxu0 0
      %1372 = vmatmul.mubr.bf16.gmra.mrb[0].mxu0 %v945
      %v1373 = vpop.f32.mrb[0].mxu0
      %v1374 = vadd.f32 %v1085, %v1373
      %v1375 = vpop.f32.mrb[0].mxu0
      %v1376 = vpop.f32.mrb[0].mxu0
      %v1377 = vadd.f32 %v1088, %v1376
      %v1378 = vpop.f32.mrb[0].mxu0
      %1379 = vmatprep.mubr.bf16.mxu0 0
      %1380 = vmatmul.mubr.bf16.gmra.mrb[0].mxu0 %v948
      %v1381 = vpop.f32.mrb[0].mxu0
      %v1382 = vadd.f32 %v1093, %v1381
      %v1383 = vpop.f32.mrb[0].mxu0
      %v1384 = vpop.f32.mrb[0].mxu0
      %v1385 = vadd.f32 %v1096, %v1384
      %v1386 = vpop.f32.mrb[0].mxu0
      %1387 = vmatprep.mubr.bf16.mxu0 0
      %1388 = vmatmul.mubr.bf16.gmra.mrb[0].mxu0 %v951
      %v1389 = vpop.f32.mrb[0].mxu0
      %v1390 = vadd.f32 %v1101, %v1389
      %v1391 = vpop.f32.mrb[0].mxu0
      %v1392 = vpop.f32.mrb[0].mxu0
      %v1393 = vadd.f32 %v1104, %v1392
      %v1394 = vpop.f32.mrb[0].mxu0
      %1395 = vmatprep.mubr.bf16.mxu0 0
      %1396 = vmatmul.mubr.bf16.gmra.mrb[0].mxu0 %v954
      %v1397 = vpop.f32.mrb[0].mxu0
      %v1398 = vadd.f32 %v1109, %v1397
      %v1399 = vpop.f32.mrb[0].mxu0
      %v1400 = vpop.f32.mrb[0].mxu0
      %v1401 = vadd.f32 %v1112, %v1400
      %v1402 = vpop.f32.mrb[0].mxu0
      %1403 = vmatprep.mubr.bf16.mxu0 0
      %1404 = vmatmul.mubr.bf16.gmra.mrb[0].mxu0 %v957
      %v1405 = vpop.f32.mrb[0].mxu0
      %v1406 = vadd.f32 %v1117, %v1405
      %v1407 = vpop.f32.mrb[0].mxu0
      %v1408 = vpop.f32.mrb[0].mxu0
      %v1409 = vadd.f32 %v1120, %v1408
      %v1410 = vpop.f32.mrb[0].mxu0
      %1411 = vmatprep.mubr.bf16.mxu0 0
      %1412 = vmatmul.mubr.bf16.gmra.mrb[0].mxu0 %v960
      %v1413 = vpop.f32.mrb[0].mxu0
      %v1414 = vadd.f32 %v1125, %v1413
      %v1415 = vpop.f32.mrb[0].mxu0
      %v1416 = vpop.f32.mrb[0].mxu0
      %v1417 = vadd.f32 %v1128, %v1416
      %v1418 = vpop.f32.mrb[0].mxu0
      %1419 = vmatprep.mubr.bf16.mxu0 0
      %1420 = vmatmul.mubr.bf16.gmra.mrb[0].mxu0 %v963
      %v1421 = vpop.f32.mrb[0].mxu0
      %v1422 = vadd.f32 %v1133, %v1421
      %v1423 = vpop.f32.mrb[0].mxu0
      %v1424 = vpop.f32.mrb[0].mxu0
      %v1425 = vadd.f32 %v1136, %v1424
      %v1426 = vpop.f32.mrb[0].mxu0
      %1427 = vmatprep.mubr.bf16.mxu0 0
      %1428 = vmatmul.mubr.bf16.gmra.mrb[0].mxu0 %v966
      %v1429 = vpop.f32.mrb[0].mxu0
      %v1430 = vadd.f32 %v1141, %v1429
      %v1431 = vpop.f32.mrb[0].mxu0
      %v1432 = vpop.f32.mrb[0].mxu0
      %v1433 = vadd.f32 %v1144, %v1432
      %v1434 = vpop.f32.mrb[0].mxu0
      %1435 = vmatprep.mubr.bf16.mxu0 0
      %1436 = vmatmul.mubr.bf16.gmra.mrb[0].mxu0 %v969
      %v1437 = vpop.f32.mrb[0].mxu0
      %v1438 = vadd.f32 %v1149, %v1437
      %v1439 = vpop.f32.mrb[0].mxu0
      %v1440 = vpop.f32.mrb[0].mxu0
      %v1441 = vadd.f32 %v1152, %v1440
      %v1442 = vpop.f32.mrb[0].mxu0
      %1443 = vmatprep.mubr.bf16.mxu0 0
      %1444 = vmatmul.mubr.bf16.gmra.mrb[0].mxu0 %v972
      %v1445 = vpop.f32.mrb[0].mxu0
      %v1446 = vadd.f32 %v1157, %v1445
      %v1447 = vpop.f32.mrb[0].mxu0
      %v1448 = vpop.f32.mrb[0].mxu0
      %v1449 = vadd.f32 %v1160, %v1448
      %v1450 = vpop.f32.mrb[0].mxu0
      %1451 = vmatprep.mubr.bf16.mxu0 0
      %1452 = vmatmul.mubr.bf16.gmra.mrb[0].mxu0 %v975
      %v1453 = vpop.f32.mrb[0].mxu0
      %v1454 = vadd.f32 %v1165, %v1453
      %v1455 = vpop.f32.mrb[0].mxu0
      %v1456 = vpop.f32.mrb[0].mxu0
      %v1457 = vadd.f32 %v1168, %v1456
      %v1458 = vpop.f32.mrb[0].mxu0
      %1459 = vmatprep.mubr.bf16.mxu0 0
      %1460 = vmatmul.mubr.bf16.gmra.mrb[0].mxu0 %v978
      %v1461 = vpop.f32.mrb[0].mxu0
      %v1462 = vadd.f32 %v1173, %v1461
      %v1463 = vpop.f32.mrb[0].mxu0
      %v1464 = vpop.f32.mrb[0].mxu0
      %v1465 = vadd.f32 %v1176, %v1464
      %v1466 = vpop.f32.mrb[0].mxu0
      %1467 = vmatprep.mubr.bf16.mxu0 0
      %1468 = vmatmul.mubr.bf16.gmra.mrb[0].mxu0 %v981
      %v1469 = vpop.f32.mrb[0].mxu0
      %v1470 = vadd.f32 %v1181, %v1469
      %v1471 = vpop.f32.mrb[0].mxu0
      %v1472 = vpop.f32.mrb[0].mxu0
      %v1473 = vadd.f32 %v1184, %v1472
      %v1474 = vpop.f32.mrb[0].mxu0
      %1475 = vmatprep.mubr.bf16.mxu0 0
      %1476 = vmatmul.mubr.bf16.gmra.mrb[0].mxu0 %v984
      %v1477 = vpop.f32.mrb[0].mxu0
      %v1478 = vadd.f32 %v1189, %v1477
      %v1479 = vpop.f32.mrb[0].mxu0
      %v1480 = vpop.f32.mrb[0].mxu0
      %v1481 = vadd.f32 %v1192, %v1480
      %v1482 = vpop.f32.mrb[0].mxu0
      %1483 = vmatprep.mubr.bf16.mxu0 0
      %1484 = vmatmul.mubr.bf16.gmra.mrb[0].mxu0 %v987
      %v1485 = vpop.f32.mrb[0].mxu0
      %v1486 = vadd.f32 %v1197, %v1485
      %v1487 = vpop.f32.mrb[0].mxu0
      %v1488 = vpop.f32.mrb[0].mxu0
      %v1489 = vadd.f32 %v1200, %v1488
      %v1490 = vpop.f32.mrb[0].mxu0
      %1491 = vmatprep.mubr.bf16.mxu0 0
      %1492 = vmatmul.mubr.bf16.gmra.mrb[0].mxu0 %v990
      %v1493 = vpop.f32.mrb[0].mxu0
      %v1494 = vadd.f32 %v1205, %v1493
      %v1495 = vpop.f32.mrb[0].mxu0
      %v1496 = vpop.f32.mrb[0].mxu0
      %v1497 = vadd.f32 %v1208, %v1496
      %v1498 = vpop.f32.mrb[0].mxu0
      %1499 = vmatprep.mubr.bf16.mxu0 0
      %1500 = vmatmul.mubr.bf16.gmra.mrb[0].mxu0 %v993
      %v1501 = vpop.f32.mrb[0].mxu0
      %v1502 = vadd.f32 %v1213, %v1501
      %v1503 = vpop.f32.mrb[0].mxu0
      %v1504 = vpop.f32.mrb[0].mxu0
      %v1505 = vadd.f32 %v1216, %v1504
      %v1506 = vpop.f32.mrb[0].mxu0
      %1507 = vmatprep.mubr.bf16.mxu0 0
      %1508 = vmatmul.mubr.bf16.gmra.mrb[0].mxu0 %v996
      %v1509 = vpop.f32.mrb[0].mxu0
      %v1510 = vadd.f32 %v1221, %v1509
      %v1511 = vpop.f32.mrb[0].mxu0
      %v1512 = vpop.f32.mrb[0].mxu0
      %v1513 = vadd.f32 %v1224, %v1512
      %v1514 = vpop.f32.mrb[0].mxu0
      %1515 = vmatprep.mubr.bf16.mxu0 0
      %1516 = vmatmul.mubr.bf16.gmra.mrb[0].mxu0 %v999
      %v1517 = vpop.f32.mrb[0].mxu0
      %v1518 = vadd.f32 %v1229, %v1517
      %v1519 = vpop.f32.mrb[0].mxu0
      %v1520 = vpop.f32.mrb[0].mxu0
      %v1521 = vadd.f32 %v1232, %v1520
      %v1522 = vpop.f32.mrb[0].mxu0
      %1523 = vmatprep.mubr.bf16.mxu0 0
      %1524 = vmatmul.mubr.bf16.gmra.mrb[0].mxu0 %v1002
      %v1525 = vpop.f32.mrb[0].mxu0
      %v1526 = vadd.f32 %v1237, %v1525
      %v1527 = vpop.f32.mrb[0].mxu0
      %v1528 = vpop.f32.mrb[0].mxu0
      %v1529 = vadd.f32 %v1240, %v1528
      %v1530 = vpop.f32.mrb[0].mxu0
      %1531 = vmatprep.mubr.bf16.mxu0 0
      %1532 = vmatmul.mubr.bf16.gmra.mrb[0].mxu0 %v1005
      %v1533 = vpop.f32.mrb[0].mxu0
      %v1534 = vadd.f32 %v1245, %v1533
      %v1535 = vpop.f32.mrb[0].mxu0
      %v1536 = vpop.f32.mrb[0].mxu0
      %v1537 = vadd.f32 %v1248, %v1536
      %v1538 = vpop.f32.mrb[0].mxu0
      %1539 = vmatprep.mubr.bf16.mxu0 0
      %1540 = vmatmul.mubr.bf16.gmra.mrb[0].mxu0 %v1008
      %v1541 = vpop.f32.mrb[0].mxu0
      %v1542 = vadd.f32 %v1253, %v1541
      %v1543 = vpop.f32.mrb[0].mxu0
      %v1544 = vpop.f32.mrb[0].mxu0
      %v1545 = vadd.f32 %v1256, %v1544
      %v1546 = vpop.f32.mrb[0].mxu0
      %1547 = vmatprep.mubr.bf16.mxu0 0
      %1548 = vmatmul.mubr.bf16.gmra.mrb[0].mxu0 %v1011
      %v1549 = vpop.f32.mrb[0].mxu0
      %v1550 = vadd.f32 %v1261, %v1549
      %v1551 = vpop.f32.mrb[0].mxu0
      %v1552 = vpop.f32.mrb[0].mxu0
      %v1553 = vadd.f32 %v1264, %v1552
      %v1554 = vpop.f32.mrb[0].mxu0
      %1555 = vmatprep.mubr.bf16.mxu0 0
      %1556 = vmatmul.mubr.bf16.gmra.mrb[0].mxu0 %v1014
      %v1557 = vpop.f32.mrb[0].mxu0
      %v1558 = vadd.f32 %v1269, %v1557
      %v1559 = vpop.f32.mrb[0].mxu0
      %v1560 = vpop.f32.mrb[0].mxu0
      %v1561 = vadd.f32 %v1272, %v1560
      %v1562 = vpop.f32.mrb[0].mxu0
      %1563 = vmatprep.mubr.bf16.mxu0 0
      %1564 = vmatmul.mubr.bf16.gmra.mrb[0].mxu0 %v1017
      %v1565 = vpop.f32.mrb[0].mxu0
      %v1566 = vadd.f32 %v1277, %v1565
      %v1567 = vpop.f32.mrb[0].mxu0
      %v1568 = vpop.f32.mrb[0].mxu0
      %v1569 = vadd.f32 %v1280, %v1568
      %v1570 = vpop.f32.mrb[0].mxu0
      %1571 = vmatprep.mubr.bf16.mxu0 0
      %1572 = vmatmul.mubr.bf16.gmra.mrb[0].mxu0 %v1020
      %v1573 = vpop.f32.mrb[0].mxu0
      %v1574 = vadd.f32 %v1285, %v1573
      %v1575 = vpop.f32.mrb[0].mxu0
      %v1576 = vpop.f32.mrb[0].mxu0
      %v1577 = vadd.f32 %v1288, %v1576
      %v1578 = vpop.f32.mrb[0].mxu0
      %1579 = vmatprep.mubr.bf16.mxu0 0
      %1580 = vmatmul.mubr.bf16.gmra.mrb[0].mxu0 %v1023
      %v1581 = vpop.f32.mrb[0].mxu0
      %v1582 = vadd.f32 %v1293, %v1581
      %v1583 = vpop.f32.mrb[0].mxu0
      %v1584 = vpop.f32.mrb[0].mxu0
      %v1585 = vadd.f32 %v1296, %v1584
      %v1586 = vpop.f32.mrb[0].mxu0
      %1587 = vmatprep.mubr.bf16.mxu0 0
      %1588 = vmatmul.mubr.bf16.gmra.mrb[0].mxu0 %v1026
      %v1589 = vpop.f32.mrb[0].mxu0
      %v1590 = vadd.f32 %v1301, %v1589
      %v1591 = vpop.f32.mrb[0].mxu0
      %v1592 = vpop.f32.mrb[0].mxu0
      %v1593 = vadd.f32 %v1304, %v1592
      %v1594 = vpop.f32.mrb[0].mxu0
      %1595 = vmatprep.mubr.bf16.mxu0 0
      %1596 = vmatmul.mubr.bf16.gmra.mrb[0].mxu0 %v1029
      %v1597 = vpop.f32.mrb[0].mxu0
      %v1598 = vadd.f32 %v1309, %v1597
      %v1599 = vpop.f32.mrb[0].mxu0
      %v1600 = vpop.f32.mrb[0].mxu0
      %v1601 = vadd.f32 %v1312, %v1600
      %v1602 = vpop.f32.mrb[0].mxu0
      %1603 = vmatprep.mubr.bf16.mxu0 0
      %1604 = vmatmul.mubr.bf16.gmra.mrb[0].mxu0 %v1032
      %v1605 = vpop.f32.mrb[0].mxu0
      %v1606 = vadd.f32 %v1317, %v1605
      %v1607 = vpop.f32.mrb[0].mxu0
      %v1608 = vpop.f32.mrb[0].mxu0
      %v1609 = vadd.f32 %v1320, %v1608
      %v1610 = vpop.f32.mrb[0].mxu0
      %1611 = vdwg.mxu0
      %v1612 = vmax.f32 %v1358, 0.0
      %v1613 = vmax.f32 %v1361, 0.0
      %v1614 = vmax.f32 %v1366, 0.0
      %v1615 = vmax.f32 %v1369, 0.0
      %v1616 = vmax.f32 %v1374, 0.0
      %v1617 = vmax.f32 %v1377, 0.0
      %v1618 = vmax.f32 %v1382, 0.0
      %v1619 = vmax.f32 %v1385, 0.0
      %v1620 = vmax.f32 %v1390, 0.0
      %v1621 = vmax.f32 %v1393, 0.0
      %v1622 = vmax.f32 %v1398, 0.0
      %v1623 = vmax.f32 %v1401, 0.0
      %v1624 = vmax.f32 %v1406, 0.0
      %v1625 = vmax.f32 %v1409, 0.0
      %v1626 = vmax.f32 %v1414, 0.0
      %v1627 = vmax.f32 %v1417, 0.0
      %v1628 = vmax.f32 %v1422, 0.0
      %v1629 = vmax.f32 %v1425, 0.0
      %v1630 = vmax.f32 %v1430, 0.0
      %v1631 = vmax.f32 %v1433, 0.0
      %v1632 = vmax.f32 %v1438, 0.0
      %v1633 = vmax.f32 %v1441, 0.0
      %v1634 = vmax.f32 %v1446, 0.0
      %v1635 = vmax.f32 %v1449, 0.0
      %v1636 = vmax.f32 %v1454, 0.0
      %v1637 = vmax.f32 %v1457, 0.0
      %v1638 = vmax.f32 %v1462, 0.0
      %v1639 = vmax.f32 %v1465, 0.0
      %v1640 = vmax.f32 %v1470, 0.0
      %v1641 = vmax.f32 %v1473, 0.0
      %v1642 = vmax.f32 %v1478, 0.0
      %v1643 = vmax.f32 %v1481, 0.0
      %v1644 = vmax.f32 %v1486, 0.0
      %v1645 = vmax.f32 %v1489, 0.0
      %v1646 = vmax.f32 %v1494, 0.0
      %v1647 = vmax.f32 %v1497, 0.0
      %v1648 = vmax.f32 %v1502, 0.0
      %v1649 = vmax.f32 %v1505, 0.0
      %v1650 = vmax.f32 %v1510, 0.0
      %v1651 = vmax.f32 %v1513, 0.0
      %v1652 = vmax.f32 %v1518, 0.0
      %v1653 = vmax.f32 %v1521, 0.0
      %v1654 = vmax.f32 %v1526, 0.0
      %v1655 = vmax.f32 %v1529, 0.0
      %v1656 = vmax.f32 %v1534, 0.0
      %v1657 = vmax.f32 %v1537, 0.0
      %v1658 = vmax.f32 %v1542, 0.0
      %v1659 = vmax.f32 %v1545, 0.0
      %v1660 = vmax.f32 %v1550, 0.0
      %v1661 = vmax.f32 %v1553, 0.0
      %v1662 = vmax.f32 %v1558, 0.0
      %v1663 = vmax.f32 %v1561, 0.0
      %v1664 = vmax.f32 %v1566, 0.0
      %v1665 = vmax.f32 %v1569, 0.0
      %v1666 = vmax.f32 %v1574, 0.0
      %v1667 = vmax.f32 %v1577, 0.0
      %v1668 = vmax.f32 %v1582, 0.0
      %v1669 = vmax.f32 %v1585, 0.0
      %v1670 = vmax.f32 %v1590, 0.0
      %v1671 = vmax.f32 %v1593, 0.0
      %v1672 = vmax.f32 %v1598, 0.0
      %v1673 = vmax.f32 %v1601, 0.0
      %v1674 = vmax.f32 %v1606, 0.0
      %v1675 = vmax.f32 %v1609, 0.0
      %1676 = vst [vmem:[%s175] sm:$0xff] %v1612
      %1677 = vst [vmem:[%s175 + $0x8] sm:$0xff] %v1613
      %1678 = vst [vmem:[%s175 + $0x10] sm:$0xff] %v1614
      %1679 = vst [vmem:[%s175 + $0x18] sm:$0xff] %v1615
      %1680 = vst [vmem:[%s175 + $0x20] sm:$0xff] %v1616
      %1681 = vst [vmem:[%s175 + $0x28] sm:$0xff] %v1617
      %1682 = vst [vmem:[%s175 + $0x30] sm:$0xff] %v1618
      %1683 = vst [vmem:[%s175 + $0x38] sm:$0xff] %v1619
      %1684 = vst [vmem:[%s175 + $0x40] sm:$0xff] %v1620
      %1685 = vst [vmem:[%s175 + $0x48] sm:$0xff] %v1621
      %1686 = vst [vmem:[%s175 + $0x50] sm:$0xff] %v1622
      %1687 = vst [vmem:[%s175 + $0x58] sm:$0xff] %v1623
      %1688 = vst [vmem:[%s175 + $0x60] sm:$0xff] %v1624
      %1689 = vst [vmem:[%s175 + $0x68] sm:$0xff] %v1625
      %1690 = vst [vmem:[%s175 + $0x70] sm:$0xff] %v1626
      %1691 = vst [vmem:[%s175 + $0x78] sm:$0xff] %v1627
      %1692 = vst [vmem:[%s175 + $0x80] sm:$0xff] %v1628
      %1693 = vst [vmem:[%s175 + $0x88] sm:$0xff] %v1629
      %1694 = vst [vmem:[%s175 + $0x90] sm:$0xff] %v1630
      %1695 = vst [vmem:[%s175 + $0x98] sm:$0xff] %v1631
      %1696 = vst [vmem:[%s175 + $0xa0] sm:$0xff] %v1632
      %1697 = vst [vmem:[%s175 + $0xa8] sm:$0xff] %v1633
      %1698 = vst [vmem:[%s175 + $0xb0] sm:$0xff] %v1634
      %1699 = vst [vmem:[%s175 + $0xb8] sm:$0xff] %v1635
      %1700 = vst [vmem:[%s175 + $0xc0] sm:$0xff] %v1636
      %1701 = vst [vmem:[%s175 + $0xc8] sm:$0xff] %v1637
      %1702 = vst [vmem:[%s175 + $0xd0] sm:$0xff] %v1638
      %1703 = vst [vmem:[%s175 + $0xd8] sm:$0xff] %v1639
      %1704 = vst [vmem:[%s175 + $0xe0] sm:$0xff] %v1640
      %1705 = vst [vmem:[%s175 + $0xe8] sm:$0xff] %v1641
      %1706 = vst [vmem:[%s175 + $0xf0] sm:$0xff] %v1642
      %1707 = vst [vmem:[%s175 + $0xf8] sm:$0xff] %v1643
      %1708 = vst [vmem:[%s175 + $0x100] sm:$0xff] %v1644
      %1709 = vst [vmem:[%s175 + $0x108] sm:$0xff] %v1645
      %1710 = vst [vmem:[%s175 + $0x110] sm:$0xff] %v1646
      %1711 = vst [vmem:[%s175 + $0x118] sm:$0xff] %v1647
      %1712 = vst [vmem:[%s175 + $0x120] sm:$0xff] %v1648
      %1713 = vst [vmem:[%s175 + $0x128] sm:$0xff] %v1649
      %1714 = vst [vmem:[%s175 + $0x130] sm:$0xff] %v1650
      %1715 = vst [vmem:[%s175 + $0x138] sm:$0xff] %v1651
      %1716 = vst [vmem:[%s175 + $0x140] sm:$0xff] %v1652
      %1717 = vst [vmem:[%s175 + $0x148] sm:$0xff] %v1653
      %1718 = vst [vmem:[%s175 + $0x150] sm:$0xff] %v1654
      %1719 = vst [vmem:[%s175 + $0x158] sm:$0xff] %v1655
      %1720 = vst [vmem:[%s175 + $0x160] sm:$0xff] %v1656
      %1721 = vst [vmem:[%s175 + $0x168] sm:$0xff] %v1657
      %1722 = vst [vmem:[%s175 + $0x170] sm:$0xff] %v1658
      %1723 = vst [vmem:[%s175 + $0x178] sm:$0xff] %v1659
      %1724 = vst [vmem:[%s175 + $0x180] sm:$0xff] %v1660
      %1725 = vst [vmem:[%s175 + $0x188] sm:$0xff] %v1661
      %1726 = vst [vmem:[%s175 + $0x190] sm:$0xff] %v1662
      %1727 = vst [vmem:[%s175 + $0x198] sm:$0xff] %v1663
      %1728 = vst [vmem:[%s175 + $0x1a0] sm:$0xff] %v1664
      %1729 = vst [vmem:[%s175 + $0x1a8] sm:$0xff] %v1665
      %1730 = vst [vmem:[%s175 + $0x1b0] sm:$0xff] %v1666
      %1731 = vst [vmem:[%s175 + $0x1b8] sm:$0xff] %v1667
      %1732 = vst [vmem:[%s175 + $0x1c0] sm:$0xff] %v1668
      %1733 = vst [vmem:[%s175 + $0x1c8] sm:$0xff] %v1669
      %1734 = vst [vmem:[%s175 + $0x1d0] sm:$0xff] %v1670
      %1735 = vst [vmem:[%s175 + $0x1d8] sm:$0xff] %v1671
      %1736 = vst [vmem:[%s175 + $0x1e0] sm:$0xff] %v1672
      %1737 = vst [vmem:[%s175 + $0x1e8] sm:$0xff] %v1673
      %1738 = vst [vmem:[%s175 + $0x1f0] sm:$0xff] %v1674
      %1739 = vst [vmem:[%s175 + $0x1f8] sm:$0xff] %v1675
      %s1740 = smul.u32 64, %s14
      %p1741 = scmp.lt.s32.totalorder %s1740, 255
      %s1742 = scalar_select %p1741, %s1740, 255
      %s1743 = smul.addr %s1742, 8
      %s1744 = scalar_lea.vmem %s3, %s1743
      // Predicated region
      $region33: #{cnn_cifar_forward.8} parent=31 // pred_check
        %p1745 = pneg %p100
      $region34: #{cnn_cifar_forward.8} parent=31 // pred_check_branch
        %1747 = sbr.rel (%p1745) target = $region36
      $region35: #{cnn_cifar_forward.8} parent=31 // pred_region
        %s1748 = smul.u32 64, %s14
      $region36: #{cnn_cifar_forward.8} parent=31 // pred_fallthru
        _
    $region32: #{cnn_cifar_forward.8} parent=5 // pred_fallthru
      _
    %p1749 = scmp.le.s32.totalorder 2, %s9
    // Predicated region
    $region37: #{cnn_cifar_forward.8} parent=5 // pred_check
      %p1750 = pneg %p1749
    $region38: #{cnn_cifar_forward.8} parent=5 // pred_check_branch
      %1752 = sbr.rel (%p1750) target = $region40
    $region39: #{cnn_cifar_forward.8} parent=5 // pred_region
      %s1753 = ssub.s32 %s9, 2
      // Predicated region
      $region41: #{cnn_cifar_forward.8} parent=39 // pred_check
        %p1754 = pneg %p106
      $region42: #{cnn_cifar_forward.8} parent=39 // pred_check_branch
        %1756 = sbr.rel (%p1754) target = $region44
      $region43: #{cnn_cifar_forward.8} parent=39 // pred_region
        %s1757 = smul.u32 64, %s15
        %p1758 = scmp.lt.s32.totalorder %s1757, 255
        %s1759 = scalar_select %p1758, %s1757, 255
        %s1760 = smul.addr %s1759, 8
        %s1761 = scalar_lea.vmem %s3, %s1760
      $region44: #{cnn_cifar_forward.8} parent=39 // pred_fallthru
        _
    $region40: #{cnn_cifar_forward.8} parent=5 // pred_fallthru
      _
  $region6: #{cnn_cifar_forward.8} parent=0 // loop_footer
    %s13 = sadd.s32 1, %s9
  $region7: #{cnn_cifar_forward.8} parent=0 // loop_footer_branch
    %8 = sbr.rel target = $region3
  $region8: #{cnn_cifar_forward.8} parent=0 // loop_exit
    _

// kernel: cnn_cifar_forward.9
$region0: #{cnn_cifar_forward.9}
  #allocation0 [shape = 'u32[]', space=smem, size = 0x4, offset = 0x4, fixed_abs, tag = 'smem constant byte address 0x4 - core index']
  #allocation1 [shape = 'u32[144,128]{1,0:T(1,128)}', space=vmem, size = 0x12000, scoped, tag = 'internal scratch']
  %s0 = inlined_call_operand.vmem [shape: f32[32,1024], index: 0, kind: input, shape index: {}]
  %s1 = inlined_call_operand.vmem [shape: f32[32,1024], index: 1, kind: input, shape index: {}]
  %s2 = inlined_call_operand.vmem [shape: f32[32,1024], index: 2, kind: input, shape index: {}]
  %s3 = inlined_call_operand.vmem [shape: f32[32,1024], index: 3, kind: input, shape index: {}]
  %s4 = inlined_call_operand.vmem [shape: f32[32,1024], index: 4, kind: output, shape index: {}]
  %s5 = sld [smem:[#allocation0]]
  $region26: #{cnn_cifar_forward.9} parent=0
    _
  %s7 = ssub.s32 1, %s5
  %s8 = scalar_select 0, %s7, %s5
  // Predicated region
  $region2: #{cnn_cifar_forward.9} parent=0 // pred_check
    _
  $region3: #{cnn_cifar_forward.9} parent=0 // pred_check_branch
    %10 = sbr.rel (0) target = $region5
  $region4: #{cnn_cifar_forward.9} parent=0 // pred_region
    _
  $region5: #{cnn_cifar_forward.9} parent=0 // pred_fallthru
    _
  // Predicated region
  $region6: #{cnn_cifar_forward.9} parent=0 // pred_check
    _
  $region7: #{cnn_cifar_forward.9} parent=0 // pred_check_branch
    %12 = sbr.rel (0) target = $region9
  $region8: #{cnn_cifar_forward.9} parent=0 // pred_region
    _
  $region9: #{cnn_cifar_forward.9} parent=0 // pred_fallthru
    _
  // Predicated region
  $region10: #{cnn_cifar_forward.9} parent=0 // pred_check
    _
  $region11: #{cnn_cifar_forward.9} parent=0 // pred_check_branch
    %14 = sbr.rel (0) target = $region13
  $region12: #{cnn_cifar_forward.9} parent=0 // pred_region
    _
  $region13: #{cnn_cifar_forward.9} parent=0 // pred_fallthru
    _
  // Predicated region
  $region14: #{cnn_cifar_forward.9} parent=0 // pred_check
    _
  $region15: #{cnn_cifar_forward.9} parent=0 // pred_check_branch
    %16 = sbr.rel (0) target = $region17
  $region16: #{cnn_cifar_forward.9} parent=0 // pred_region
    _
  $region17: #{cnn_cifar_forward.9} parent=0 // pred_fallthru
    _
  %v17 = vld [vmem:[%s0] sm:$0xff]
  %v18 = vld [vmem:[%s0 + $0x8] sm:$0xff]
  %v19 = vld [vmem:[%s0 + $0x10] sm:$0xff]
  %v20 = vld [vmem:[%s0 + $0x18] sm:$0xff]
  %v21 = vld [vmem:[%s0 + $0x20] sm:$0xff]
  %v22 = vld [vmem:[%s0 + $0x28] sm:$0xff]
  %v23 = vld [vmem:[%s0 + $0x30] sm:$0xff]
  %v24 = vld [vmem:[%s0 + $0x38] sm:$0xff]
  %v25 = vld [vmem:[%s0 + $0x40] sm:$0xff]
  %v26 = vld [vmem:[%s0 + $0x48] sm:$0xff]
  %v27 = vld [vmem:[%s0 + $0x50] sm:$0xff]
  %v28 = vld [vmem:[%s0 + $0x58] sm:$0xff]
  %v29 = vld [vmem:[%s0 + $0x60] sm:$0xff]
  %v30 = vld [vmem:[%s0 + $0x68] sm:$0xff]
  %v31 = vld [vmem:[%s0 + $0x70] sm:$0xff]
  %v32 = vld [vmem:[%s0 + $0x78] sm:$0xff]
  %v33 = vld [vmem:[%s0 + $0x80] sm:$0xff]
  %v34 = vld [vmem:[%s0 + $0x88] sm:$0xff]
  %v35 = vld [vmem:[%s0 + $0x90] sm:$0xff]
  %v36 = vld [vmem:[%s0 + $0x98] sm:$0xff]
  %v37 = vld [vmem:[%s0 + $0xa0] sm:$0xff]
  %v38 = vld [vmem:[%s0 + $0xa8] sm:$0xff]
  %v39 = vld [vmem:[%s0 + $0xb0] sm:$0xff]
  %v40 = vld [vmem:[%s0 + $0xb8] sm:$0xff]
  %v41 = vld [vmem:[%s0 + $0xc0] sm:$0xff]
  %v42 = vld [vmem:[%s0 + $0xc8] sm:$0xff]
  %v43 = vld [vmem:[%s0 + $0xd0] sm:$0xff]
  %v44 = vld [vmem:[%s0 + $0xd8] sm:$0xff]
  %v45 = vld [vmem:[%s0 + $0xe0] sm:$0xff]
  %v46 = vld [vmem:[%s0 + $0xe8] sm:$0xff]
  %v47 = vld [vmem:[%s0 + $0xf0] sm:$0xff]
  %v48 = vld [vmem:[%s0 + $0xf8] sm:$0xff]
  %v49 = vld [vmem:[%s1] sm:$0xff]
  %v50 = vld [vmem:[%s1 + $0x8] sm:$0xff]
  %v51 = vld [vmem:[%s1 + $0x10] sm:$0xff]
  %v52 = vld [vmem:[%s1 + $0x18] sm:$0xff]
  %v53 = vld [vmem:[%s1 + $0x20] sm:$0xff]
  %v54 = vld [vmem:[%s1 + $0x28] sm:$0xff]
  %v55 = vld [vmem:[%s1 + $0x30] sm:$0xff]
  %v56 = vld [vmem:[%s1 + $0x38] sm:$0xff]
  %v57 = vld [vmem:[%s1 + $0x40] sm:$0xff]
  %v58 = vld [vmem:[%s1 + $0x48] sm:$0xff]
  %v59 = vld [vmem:[%s1 + $0x50] sm:$0xff]
  %v60 = vld [vmem:[%s1 + $0x58] sm:$0xff]
  %v61 = vld [vmem:[%s1 + $0x60] sm:$0xff]
  %v62 = vld [vmem:[%s1 + $0x68] sm:$0xff]
  %v63 = vld [vmem:[%s1 + $0x70] sm:$0xff]
  %v64 = vld [vmem:[%s1 + $0x78] sm:$0xff]
  %v65 = vld [vmem:[%s1 + $0x80] sm:$0xff]
  %v66 = vld [vmem:[%s1 + $0x88] sm:$0xff]
  %v67 = vld [vmem:[%s1 + $0x90] sm:$0xff]
  %v68 = vld [vmem:[%s1 + $0x98] sm:$0xff]
  %v69 = vld [vmem:[%s1 + $0xa0] sm:$0xff]
  %v70 = vld [vmem:[%s1 + $0xa8] sm:$0xff]
  %v71 = vld [vmem:[%s1 + $0xb0] sm:$0xff]
  %v72 = vld [vmem:[%s1 + $0xb8] sm:$0xff]
  %v73 = vld [vmem:[%s1 + $0xc0] sm:$0xff]
  %v74 = vld [vmem:[%s1 + $0xc8] sm:$0xff]
  %v75 = vld [vmem:[%s1 + $0xd0] sm:$0xff]
  %v76 = vld [vmem:[%s1 + $0xd8] sm:$0xff]
  %v77 = vld [vmem:[%s1 + $0xe0] sm:$0xff]
  %v78 = vld [vmem:[%s1 + $0xe8] sm:$0xff]
  %v79 = vld [vmem:[%s1 + $0xf0] sm:$0xff]
  %v80 = vld [vmem:[%s1 + $0xf8] sm:$0xff]
  %v81 = vmax.f32 %v17, %v49
  %v82 = vmax.f32 %v18, %v50
  %v83 = vmax.f32 %v19, %v51
  %v84 = vmax.f32 %v20, %v52
  %v85 = vmax.f32 %v21, %v53
  %v86 = vmax.f32 %v22, %v54
  %v87 = vmax.f32 %v23, %v55
  %v88 = vmax.f32 %v24, %v56
  %v89 = vmax.f32 %v25, %v57
  %v90 = vmax.f32 %v26, %v58
  %v91 = vmax.f32 %v27, %v59
  %v92 = vmax.f32 %v28, %v60
  %v93 = vmax.f32 %v29, %v61
  %v94 = vmax.f32 %v30, %v62
  %v95 = vmax.f32 %v31, %v63
  %v96 = vmax.f32 %v32, %v64
  %v97 = vmax.f32 %v33, %v65
  %v98 = vmax.f32 %v34, %v66
  %v99 = vmax.f32 %v35, %v67
  %v100 = vmax.f32 %v36, %v68
  %v101 = vmax.f32 %v37, %v69
  %v102 = vmax.f32 %v38, %v70
  %v103 = vmax.f32 %v39, %v71
  %v104 = vmax.f32 %v40, %v72
  %v105 = vmax.f32 %v41, %v73
  %v106 = vmax.f32 %v42, %v74
  %v107 = vmax.f32 %v43, %v75
  %v108 = vmax.f32 %v44, %v76
  %v109 = vmax.f32 %v45, %v77
  %v110 = vmax.f32 %v46, %v78
  %v111 = vmax.f32 %v47, %v79
  %v112 = vmax.f32 %v48, %v80
  %v113 = vld [vmem:[%s2] sm:$0xff]
  %v114 = vld [vmem:[%s2 + $0x8] sm:$0xff]
  %v115 = vld [vmem:[%s2 + $0x10] sm:$0xff]
  %v116 = vld [vmem:[%s2 + $0x18] sm:$0xff]
  %v117 = vld [vmem:[%s2 + $0x20] sm:$0xff]
  %v118 = vld [vmem:[%s2 + $0x28] sm:$0xff]
  %v119 = vld [vmem:[%s2 + $0x30] sm:$0xff]
  %v120 = vld [vmem:[%s2 + $0x38] sm:$0xff]
  %v121 = vld [vmem:[%s2 + $0x40] sm:$0xff]
  %v122 = vld [vmem:[%s2 + $0x48] sm:$0xff]
  %v123 = vld [vmem:[%s2 + $0x50] sm:$0xff]
  %v124 = vld [vmem:[%s2 + $0x58] sm:$0xff]
  %v125 = vld [vmem:[%s2 + $0x60] sm:$0xff]
  %v126 = vld [vmem:[%s2 + $0x68] sm:$0xff]
  %v127 = vld [vmem:[%s2 + $0x70] sm:$0xff]
  %v128 = vld [vmem:[%s2 + $0x78] sm:$0xff]
  %v129 = vld [vmem:[%s2 + $0x80] sm:$0xff]
  %v130 = vld [vmem:[%s2 + $0x88] sm:$0xff]
  %v131 = vld [vmem:[%s2 + $0x90] sm:$0xff]
  %v132 = vld [vmem:[%s2 + $0x98] sm:$0xff]
  %v133 = vld [vmem:[%s2 + $0xa0] sm:$0xff]
  %v134 = vld [vmem:[%s2 + $0xa8] sm:$0xff]
  %v135 = vld [vmem:[%s2 + $0xb0] sm:$0xff]
  %v136 = vld [vmem:[%s2 + $0xb8] sm:$0xff]
  %v137 = vld [vmem:[%s2 + $0xc0] sm:$0xff]
  %v138 = vld [vmem:[%s2 + $0xc8] sm:$0xff]
  %v139 = vld [vmem:[%s2 + $0xd0] sm:$0xff]
  %v140 = vld [vmem:[%s2 + $0xd8] sm:$0xff]
  %v141 = vld [vmem:[%s2 + $0xe0] sm:$0xff]
  %v142 = vld [vmem:[%s2 + $0xe8] sm:$0xff]
  %v143 = vld [vmem:[%s2 + $0xf0] sm:$0xff]
  %v144 = vld [vmem:[%s2 + $0xf8] sm:$0xff]
  %v145 = vld [vmem:[%s3] sm:$0xff]
  %v146 = vld [vmem:[%s3 + $0x8] sm:$0xff]
  %v147 = vld [vmem:[%s3 + $0x10] sm:$0xff]
  %v148 = vld [vmem:[%s3 + $0x18] sm:$0xff]
  %v149 = vld [vmem:[%s3 + $0x20] sm:$0xff]
  %v150 = vld [vmem:[%s3 + $0x28] sm:$0xff]
  %v151 = vld [vmem:[%s3 + $0x30] sm:$0xff]
  %v152 = vld [vmem:[%s3 + $0x38] sm:$0xff]
  %v153 = vld [vmem:[%s3 + $0x40] sm:$0xff]
  %v154 = vld [vmem:[%s3 + $0x48] sm:$0xff]
  %v155 = vld [vmem:[%s3 + $0x50] sm:$0xff]
  %v156 = vld [vmem:[%s3 + $0x58] sm:$0xff]
  %v157 = vld [vmem:[%s3 + $0x60] sm:$0xff]
  %v158 = vld [vmem:[%s3 + $0x68] sm:$0xff]
  %v159 = vld [vmem:[%s3 + $0x70] sm:$0xff]
  %v160 = vld [vmem:[%s3 + $0x78] sm:$0xff]
  %v161 = vld [vmem:[%s3 + $0x80] sm:$0xff]
  %v162 = vld [vmem:[%s3 + $0x88] sm:$0xff]
  %v163 = vld [vmem:[%s3 + $0x90] sm:$0xff]
  %v164 = vld [vmem:[%s3 + $0x98] sm:$0xff]
  %v165 = vld [vmem:[%s3 + $0xa0] sm:$0xff]
  %v166 = vld [vmem:[%s3 + $0xa8] sm:$0xff]
  %v167 = vld [vmem:[%s3 + $0xb0] sm:$0xff]
  %v168 = vld [vmem:[%s3 + $0xb8] sm:$0xff]
  %v169 = vld [vmem:[%s3 + $0xc0] sm:$0xff]
  %v170 = vld [vmem:[%s3 + $0xc8] sm:$0xff]
  %v171 = vld [vmem:[%s3 + $0xd0] sm:$0xff]
  %v172 = vld [vmem:[%s3 + $0xd8] sm:$0xff]
  %v173 = vld [vmem:[%s3 + $0xe0] sm:$0xff]
  %v174 = vld [vmem:[%s3 + $0xe8] sm:$0xff]
  %v175 = vld [vmem:[%s3 + $0xf0] sm:$0xff]
  %v176 = vld [vmem:[%s3 + $0xf8] sm:$0xff]
  %v177 = vmax.f32 %v113, %v145
  %v178 = vmax.f32 %v114, %v146
  %v179 = vmax.f32 %v115, %v147
  %v180 = vmax.f32 %v116, %v148
  %v181 = vmax.f32 %v117, %v149
  %v182 = vmax.f32 %v118, %v150
  %v183 = vmax.f32 %v119, %v151
  %v184 = vmax.f32 %v120, %v152
  %v185 = vmax.f32 %v121, %v153
  %v186 = vmax.f32 %v122, %v154
  %v187 = vmax.f32 %v123, %v155
  %v188 = vmax.f32 %v124, %v156
  %v189 = vmax.f32 %v125, %v157
  %v190 = vmax.f32 %v126, %v158
  %v191 = vmax.f32 %v127, %v159
  %v192 = vmax.f32 %v128, %v160
  %v193 = vmax.f32 %v129, %v161
  %v194 = vmax.f32 %v130, %v162
  %v195 = vmax.f32 %v131, %v163
  %v196 = vmax.f32 %v132, %v164
  %v197 = vmax.f32 %v133, %v165
  %v198 = vmax.f32 %v134, %v166
  %v199 = vmax.f32 %v135, %v167
  %v200 = vmax.f32 %v136, %v168
  %v201 = vmax.f32 %v137, %v169
  %v202 = vmax.f32 %v138, %v170
  %v203 = vmax.f32 %v139, %v171
  %v204 = vmax.f32 %v140, %v172
  %v205 = vmax.f32 %v141, %v173
  %v206 = vmax.f32 %v142, %v174
  %v207 = vmax.f32 %v143, %v175
  %v208 = vmax.f32 %v144, %v176
  %v209 = vmax.f32 %v81, %v177
  %v210 = vmax.f32 %v82, %v178
  %v211 = vmax.f32 %v83, %v179
  %v212 = vmax.f32 %v84, %v180
  %v213 = vmax.f32 %v85, %v181
  %v214 = vmax.f32 %v86, %v182
  %v215 = vmax.f32 %v87, %v183
  %v216 = vmax.f32 %v88, %v184
  %v217 = vmax.f32 %v89, %v185
  %v218 = vmax.f32 %v90, %v186
  %v219 = vmax.f32 %v91, %v187
  %v220 = vmax.f32 %v92, %v188
  %v221 = vmax.f32 %v93, %v189
  %v222 = vmax.f32 %v94, %v190
  %v223 = vmax.f32 %v95, %v191
  %v224 = vmax.f32 %v96, %v192
  %v225 = vmax.f32 %v97, %v193
  %v226 = vmax.f32 %v98, %v194
  %v227 = vmax.f32 %v99, %v195
  %v228 = vmax.f32 %v100, %v196
  %v229 = vmax.f32 %v101, %v197
  %v230 = vmax.f32 %v102, %v198
  %v231 = vmax.f32 %v103, %v199
  %v232 = vmax.f32 %v104, %v200
  %v233 = vmax.f32 %v105, %v201
  %v234 = vmax.f32 %v106, %v202
  %v235 = vmax.f32 %v107, %v203
  %v236 = vmax.f32 %v108, %v204
  %v237 = vmax.f32 %v109, %v205
  %v238 = vmax.f32 %v110, %v206
  %v239 = vmax.f32 %v111, %v207
  %v240 = vmax.f32 %v112, %v208
  %241 = vst [vmem:[%s4] sm:$0xff] %v209
  %242 = vst [vmem:[%s4 + $0x8] sm:$0xff] %v210
  %243 = vst [vmem:[%s4 + $0x10] sm:$0xff] %v211
  %244 = vst [vmem:[%s4 + $0x18] sm:$0xff] %v212
  %245 = vst [vmem:[%s4 + $0x20] sm:$0xff] %v213
  %246 = vst [vmem:[%s4 + $0x28] sm:$0xff] %v214
  %247 = vst [vmem:[%s4 + $0x30] sm:$0xff] %v215
  %248 = vst [vmem:[%s4 + $0x38] sm:$0xff] %v216
  %249 = vst [vmem:[%s4 + $0x40] sm:$0xff] %v217
  %250 = vst [vmem:[%s4 + $0x48] sm:$0xff] %v218
  %251 = vst [vmem:[%s4 + $0x50] sm:$0xff] %v219
  %252 = vst [vmem:[%s4 + $0x58] sm:$0xff] %v220
  %253 = vst [vmem:[%s4 + $0x60] sm:$0xff] %v221
  %254 = vst [vmem:[%s4 + $0x68] sm:$0xff] %v222
  %255 = vst [vmem:[%s4 + $0x70] sm:$0xff] %v223
  %256 = vst [vmem:[%s4 + $0x78] sm:$0xff] %v224
  %257 = vst [vmem:[%s4 + $0x80] sm:$0xff] %v225
  %258 = vst [vmem:[%s4 + $0x88] sm:$0xff] %v226
  %259 = vst [vmem:[%s4 + $0x90] sm:$0xff] %v227
  %260 = vst [vmem:[%s4 + $0x98] sm:$0xff] %v228
  %261 = vst [vmem:[%s4 + $0xa0] sm:$0xff] %v229
  %262 = vst [vmem:[%s4 + $0xa8] sm:$0xff] %v230
  %263 = vst [vmem:[%s4 + $0xb0] sm:$0xff] %v231
  %264 = vst [vmem:[%s4 + $0xb8] sm:$0xff] %v232
  %265 = vst [vmem:[%s4 + $0xc0] sm:$0xff] %v233
  %266 = vst [vmem:[%s4 + $0xc8] sm:$0xff] %v234
  %267 = vst [vmem:[%s4 + $0xd0] sm:$0xff] %v235
  %268 = vst [vmem:[%s4 + $0xd8] sm:$0xff] %v236
  %269 = vst [vmem:[%s4 + $0xe0] sm:$0xff] %v237
  %270 = vst [vmem:[%s4 + $0xe8] sm:$0xff] %v238
  %271 = vst [vmem:[%s4 + $0xf0] sm:$0xff] %v239
  %272 = vst [vmem:[%s4 + $0xf8] sm:$0xff] %v240
  // Predicated region
  $region18: #{cnn_cifar_forward.9} parent=0 // pred_check
    _
  $region19: #{cnn_cifar_forward.9} parent=0 // pred_check_branch
    %274 = sbr.rel (0) target = $region21
  $region20: #{cnn_cifar_forward.9} parent=0 // pred_region
    _
  $region21: #{cnn_cifar_forward.9} parent=0 // pred_fallthru
    _
  // Predicated region
  $region22: #{cnn_cifar_forward.9} parent=0 // pred_check
    _
  $region23: #{cnn_cifar_forward.9} parent=0 // pred_check_branch
    %276 = sbr.rel (0) target = $region25
  $region24: #{cnn_cifar_forward.9} parent=0 // pred_region
    _
  $region25: #{cnn_cifar_forward.9} parent=0 // pred_fallthru
    _

// kernel: cnn_cifar_forward.10
$region0: #{cnn_cifar_forward.10}
  #allocation0 [shape = 'u32[]', space=smem, size = 0x4, offset = 0x4, fixed_abs, tag = 'smem constant byte address 0x4 - core index']
  #allocation1 [shape = 'u32[144,128]{1,0:T(1,128)}', space=vmem, size = 0x12000, scoped, tag = 'internal scratch']
  %s0 = inlined_call_operand.vmem [shape: bf16[512,576], index: 0, kind: input, shape index: {}]
  %s1 = inlined_call_operand.vmem [shape: bf16[576,128], index: 1, kind: input, shape index: {}]
  %s2 = inlined_call_operand.vmem [shape: f32[1,128], index: 2, kind: input, shape index: {}]
  %s3 = inlined_call_operand.vmem [shape: f32[512,128], index: 3, kind: output, shape index: {}]
  %s4 = sld [smem:[#allocation0]]
  $region22: #{cnn_cifar_forward.10} parent=0
    _
  %s6 = ssub.s32 1, %s4
  %s7 = scalar_select 0, %s6, %s4
  // Predicated region
  $region2: #{cnn_cifar_forward.10} parent=0 // pred_check
    _
  $region3: #{cnn_cifar_forward.10} parent=0 // pred_check_branch
    %9 = sbr.rel (0) target = $region5
  $region4: #{cnn_cifar_forward.10} parent=0 // pred_region
    _
  $region5: #{cnn_cifar_forward.10} parent=0 // pred_fallthru
    _
  // Predicated region
  $region6: #{cnn_cifar_forward.10} parent=0 // pred_check
    _
  $region7: #{cnn_cifar_forward.10} parent=0 // pred_check_branch
    %11 = sbr.rel (0) target = $region9
  $region8: #{cnn_cifar_forward.10} parent=0 // pred_region
    _
  $region9: #{cnn_cifar_forward.10} parent=0 // pred_fallthru
    _
  // Predicated region
  $region10: #{cnn_cifar_forward.10} parent=0 // pred_check
    _
  $region11: #{cnn_cifar_forward.10} parent=0 // pred_check_branch
    %13 = sbr.rel (0) target = $region13
  $region12: #{cnn_cifar_forward.10} parent=0 // pred_region
    _
  $region13: #{cnn_cifar_forward.10} parent=0 // pred_fallthru
    _
  %v15 = vld [vmem:[%s0] sm:$0xff]
  %v16 = vld [vmem:[%s0 + $0x8] sm:$0xff]
  %v17 = vld [vmem:[%s0 + $0x10] sm:$0xf]
  %v18 = vld [vmem:[%s0 + $0x14] sm:$0xff]
  %v19 = vld [vmem:[%s0 + $0x1c] sm:$0xff]
  %v20 = vld [vmem:[%s0 + $0x24] sm:$0xf]
  %v21 = vld [vmem:[%s0 + $0x28] sm:$0xff]
  %v22 = vld [vmem:[%s0 + $0x30] sm:$0xff]
  %v23 = vld [vmem:[%s0 + $0x38] sm:$0xf]
  %v24 = vld [vmem:[%s0 + $0x3c] sm:$0xff]
  %v25 = vld [vmem:[%s0 + $0x44] sm:$0xff]
  %v26 = vld [vmem:[%s0 + $0x4c] sm:$0xf]
  %v27 = vld [vmem:[%s0 + $0x50] sm:$0xff]
  %v28 = vld [vmem:[%s0 + $0x58] sm:$0xff]
  %v29 = vld [vmem:[%s0 + $0x60] sm:$0xf]
  %v30 = vld [vmem:[%s0 + $0x64] sm:$0xff]
  %v31 = vld [vmem:[%s0 + $0x6c] sm:$0xff]
  %v32 = vld [vmem:[%s0 + $0x74] sm:$0xf]
  %v33 = vld [vmem:[%s0 + $0x78] sm:$0xff]
  %v34 = vld [vmem:[%s0 + $0x80] sm:$0xff]
  %v35 = vld [vmem:[%s0 + $0x88] sm:$0xf]
  %v36 = vld [vmem:[%s0 + $0x8c] sm:$0xff]
  %v37 = vld [vmem:[%s0 + $0x94] sm:$0xff]
  %v38 = vld [vmem:[%s0 + $0x9c] sm:$0xf]
  %v39 = vld [vmem:[%s0 + $0xa0] sm:$0xff]
  %v40 = vld [vmem:[%s0 + $0xa8] sm:$0xff]
  %v41 = vld [vmem:[%s0 + $0xb0] sm:$0xf]
  %v42 = vld [vmem:[%s0 + $0xb4] sm:$0xff]
  %v43 = vld [vmem:[%s0 + $0xbc] sm:$0xff]
  %v44 = vld [vmem:[%s0 + $0xc4] sm:$0xf]
  %v45 = vld [vmem:[%s0 + $0xc8] sm:$0xff]
  %v46 = vld [vmem:[%s0 + $0xd0] sm:$0xff]
  %v47 = vld [vmem:[%s0 + $0xd8] sm:$0xf]
  %v48 = vld [vmem:[%s0 + $0xdc] sm:$0xff]
  %v49 = vld [vmem:[%s0 + $0xe4] sm:$0xff]
  %v50 = vld [vmem:[%s0 + $0xec] sm:$0xf]
  %v51 = vld [vmem:[%s0 + $0xf0] sm:$0xff]
  %v52 = vld [vmem:[%s0 + $0xf8] sm:$0xff]
  %v53 = vld [vmem:[%s0 + $0x100] sm:$0xf]
  %v54 = vld [vmem:[%s0 + $0x104] sm:$0xff]
  %v55 = vld [vmem:[%s0 + $0x10c] sm:$0xff]
  %v56 = vld [vmem:[%s0 + $0x114] sm:$0xf]
  %v57 = vld [vmem:[%s0 + $0x118] sm:$0xff]
  %v58 = vld [vmem:[%s0 + $0x120] sm:$0xff]
  %v59 = vld [vmem:[%s0 + $0x128] sm:$0xf]
  %v60 = vld [vmem:[%s0 + $0x12c] sm:$0xff]
  %v61 = vld [vmem:[%s0 + $0x134] sm:$0xff]
  %v62 = vld [vmem:[%s0 + $0x13c] sm:$0xf]
  %v63 = vld [vmem:[%s0 + $0x140] sm:$0xff]
  %v64 = vld [vmem:[%s0 + $0x148] sm:$0xff]
  %v65 = vld [vmem:[%s0 + $0x150] sm:$0xf]
  %v66 = vld [vmem:[%s0 + $0x154] sm:$0xff]
  %v67 = vld [vmem:[%s0 + $0x15c] sm:$0xff]
  %v68 = vld [vmem:[%s0 + $0x164] sm:$0xf]
  %v69 = vld [vmem:[%s0 + $0x168] sm:$0xff]
  %v70 = vld [vmem:[%s0 + $0x170] sm:$0xff]
  %v71 = vld [vmem:[%s0 + $0x178] sm:$0xf]
  %v72 = vld [vmem:[%s0 + $0x17c] sm:$0xff]
  %v73 = vld [vmem:[%s0 + $0x184] sm:$0xff]
  %v74 = vld [vmem:[%s0 + $0x18c] sm:$0xf]
  %v75 = vld [vmem:[%s0 + $0x190] sm:$0xff]
  %v76 = vld [vmem:[%s0 + $0x198] sm:$0xff]
  %v77 = vld [vmem:[%s0 + $0x1a0] sm:$0xf]
  %v78 = vld [vmem:[%s0 + $0x1a4] sm:$0xff]
  %v79 = vld [vmem:[%s0 + $0x1ac] sm:$0xff]
  %v80 = vld [vmem:[%s0 + $0x1b4] sm:$0xf]
  %v81 = vld [vmem:[%s0 + $0x1b8] sm:$0xff]
  %v82 = vld [vmem:[%s0 + $0x1c0] sm:$0xff]
  %v83 = vld [vmem:[%s0 + $0x1c8] sm:$0xf]
  %v84 = vld [vmem:[%s0 + $0x1cc] sm:$0xff]
  %v85 = vld [vmem:[%s0 + $0x1d4] sm:$0xff]
  %v86 = vld [vmem:[%s0 + $0x1dc] sm:$0xf]
  %v87 = vld [vmem:[%s0 + $0x1e0] sm:$0xff]
  %v88 = vld [vmem:[%s0 + $0x1e8] sm:$0xff]
  %v89 = vld [vmem:[%s0 + $0x1f0] sm:$0xf]
  %v90 = vld [vmem:[%s0 + $0x1f4] sm:$0xff]
  %v91 = vld [vmem:[%s0 + $0x1fc] sm:$0xff]
  %v92 = vld [vmem:[%s0 + $0x204] sm:$0xf]
  %v93 = vld [vmem:[%s0 + $0x208] sm:$0xff]
  %v94 = vld [vmem:[%s0 + $0x210] sm:$0xff]
  %v95 = vld [vmem:[%s0 + $0x218] sm:$0xf]
  %v96 = vld [vmem:[%s0 + $0x21c] sm:$0xff]
  %v97 = vld [vmem:[%s0 + $0x224] sm:$0xff]
  %v98 = vld [vmem:[%s0 + $0x22c] sm:$0xf]
  %v99 = vld [vmem:[%s0 + $0x230] sm:$0xff]
  %v100 = vld [vmem:[%s0 + $0x238] sm:$0xff]
  %v101 = vld [vmem:[%s0 + $0x240] sm:$0xf]
  %v102 = vld [vmem:[%s0 + $0x244] sm:$0xff]
  %v103 = vld [vmem:[%s0 + $0x24c] sm:$0xff]
  %v104 = vld [vmem:[%s0 + $0x254] sm:$0xf]
  %v105 = vld [vmem:[%s0 + $0x258] sm:$0xff]
  %v106 = vld [vmem:[%s0 + $0x260] sm:$0xff]
  %v107 = vld [vmem:[%s0 + $0x268] sm:$0xf]
  %v108 = vld [vmem:[%s0 + $0x26c] sm:$0xff]
  %v109 = vld [vmem:[%s0 + $0x274] sm:$0xff]
  %v110 = vld [vmem:[%s0 + $0x27c] sm:$0xf]
  %v111 = vld [vmem:[%s0 + $0x280] sm:$0xff]
  %v112 = vld [vmem:[%s0 + $0x288] sm:$0xff]
  %v113 = vld [vmem:[%s0 + $0x290] sm:$0xf]
  %v114 = vld [vmem:[%s0 + $0x294] sm:$0xff]
  %v115 = vld [vmem:[%s0 + $0x29c] sm:$0xff]
  %v116 = vld [vmem:[%s0 + $0x2a4] sm:$0xf]
  %v117 = vld [vmem:[%s0 + $0x2a8] sm:$0xff]
  %v118 = vld [vmem:[%s0 + $0x2b0] sm:$0xff]
  %v119 = vld [vmem:[%s0 + $0x2b8] sm:$0xf]
  %v120 = vld [vmem:[%s0 + $0x2bc] sm:$0xff]
  %v121 = vld [vmem:[%s0 + $0x2c4] sm:$0xff]
  %v122 = vld [vmem:[%s0 + $0x2cc] sm:$0xf]
  %v123 = vld [vmem:[%s0 + $0x2d0] sm:$0xff]
  %v124 = vld [vmem:[%s0 + $0x2d8] sm:$0xff]
  %v125 = vld [vmem:[%s0 + $0x2e0] sm:$0xf]
  %v126 = vld [vmem:[%s0 + $0x2e4] sm:$0xff]
  %v127 = vld [vmem:[%s0 + $0x2ec] sm:$0xff]
  %v128 = vld [vmem:[%s0 + $0x2f4] sm:$0xf]
  %v129 = vld [vmem:[%s0 + $0x2f8] sm:$0xff]
  %v130 = vld [vmem:[%s0 + $0x300] sm:$0xff]
  %v131 = vld [vmem:[%s0 + $0x308] sm:$0xf]
  %v132 = vld [vmem:[%s0 + $0x30c] sm:$0xff]
  %v133 = vld [vmem:[%s0 + $0x314] sm:$0xff]
  %v134 = vld [vmem:[%s0 + $0x31c] sm:$0xf]
  %v135 = vld [vmem:[%s0 + $0x320] sm:$0xff]
  %v136 = vld [vmem:[%s0 + $0x328] sm:$0xff]
  %v137 = vld [vmem:[%s0 + $0x330] sm:$0xf]
  %v138 = vld [vmem:[%s0 + $0x334] sm:$0xff]
  %v139 = vld [vmem:[%s0 + $0x33c] sm:$0xff]
  %v140 = vld [vmem:[%s0 + $0x344] sm:$0xf]
  %v141 = vld [vmem:[%s0 + $0x348] sm:$0xff]
  %v142 = vld [vmem:[%s0 + $0x350] sm:$0xff]
  %v143 = vld [vmem:[%s0 + $0x358] sm:$0xf]
  %v144 = vld [vmem:[%s0 + $0x35c] sm:$0xff]
  %v145 = vld [vmem:[%s0 + $0x364] sm:$0xff]
  %v146 = vld [vmem:[%s0 + $0x36c] sm:$0xf]
  %v147 = vld [vmem:[%s0 + $0x370] sm:$0xff]
  %v148 = vld [vmem:[%s0 + $0x378] sm:$0xff]
  %v149 = vld [vmem:[%s0 + $0x380] sm:$0xf]
  %v150 = vld [vmem:[%s0 + $0x384] sm:$0xff]
  %v151 = vld [vmem:[%s0 + $0x38c] sm:$0xff]
  %v152 = vld [vmem:[%s0 + $0x394] sm:$0xf]
  %v153 = vld [vmem:[%s0 + $0x398] sm:$0xff]
  %v154 = vld [vmem:[%s0 + $0x3a0] sm:$0xff]
  %v155 = vld [vmem:[%s0 + $0x3a8] sm:$0xf]
  %v156 = vld [vmem:[%s0 + $0x3ac] sm:$0xff]
  %v157 = vld [vmem:[%s0 + $0x3b4] sm:$0xff]
  %v158 = vld [vmem:[%s0 + $0x3bc] sm:$0xf]
  %v159 = vld [vmem:[%s0 + $0x3c0] sm:$0xff]
  %v160 = vld [vmem:[%s0 + $0x3c8] sm:$0xff]
  %v161 = vld [vmem:[%s0 + $0x3d0] sm:$0xf]
  %v162 = vld [vmem:[%s0 + $0x3d4] sm:$0xff]
  %v163 = vld [vmem:[%s0 + $0x3dc] sm:$0xff]
  %v164 = vld [vmem:[%s0 + $0x3e4] sm:$0xf]
  %v165 = vld [vmem:[%s0 + $0x3e8] sm:$0xff]
  %v166 = vld [vmem:[%s0 + $0x3f0] sm:$0xff]
  %v167 = vld [vmem:[%s0 + $0x3f8] sm:$0xf]
  %v168 = vld [vmem:[%s0 + $0x3fc] sm:$0xff]
  %v169 = vld [vmem:[%s0 + $0x404] sm:$0xff]
  %v170 = vld [vmem:[%s0 + $0x40c] sm:$0xf]
  %v171 = vld [vmem:[%s0 + $0x410] sm:$0xff]
  %v172 = vld [vmem:[%s0 + $0x418] sm:$0xff]
  %v173 = vld [vmem:[%s0 + $0x420] sm:$0xf]
  %v174 = vld [vmem:[%s0 + $0x424] sm:$0xff]
  %v175 = vld [vmem:[%s0 + $0x42c] sm:$0xff]
  %v176 = vld [vmem:[%s0 + $0x434] sm:$0xf]
  %v177 = vld [vmem:[%s0 + $0x438] sm:$0xff]
  %v178 = vld [vmem:[%s0 + $0x440] sm:$0xff]
  %v179 = vld [vmem:[%s0 + $0x448] sm:$0xf]
  %v180 = vld [vmem:[%s0 + $0x44c] sm:$0xff]
  %v181 = vld [vmem:[%s0 + $0x454] sm:$0xff]
  %v182 = vld [vmem:[%s0 + $0x45c] sm:$0xf]
  %v183 = vld [vmem:[%s0 + $0x460] sm:$0xff]
  %v184 = vld [vmem:[%s0 + $0x468] sm:$0xff]
  %v185 = vld [vmem:[%s0 + $0x470] sm:$0xf]
  %v186 = vld [vmem:[%s0 + $0x474] sm:$0xff]
  %v187 = vld [vmem:[%s0 + $0x47c] sm:$0xff]
  %v188 = vld [vmem:[%s0 + $0x484] sm:$0xf]
  %v189 = vld [vmem:[%s0 + $0x488] sm:$0xff]
  %v190 = vld [vmem:[%s0 + $0x490] sm:$0xff]
  %v191 = vld [vmem:[%s0 + $0x498] sm:$0xf]
  %v192 = vld [vmem:[%s0 + $0x49c] sm:$0xff]
  %v193 = vld [vmem:[%s0 + $0x4a4] sm:$0xff]
  %v194 = vld [vmem:[%s0 + $0x4ac] sm:$0xf]
  %v195 = vld [vmem:[%s0 + $0x4b0] sm:$0xff]
  %v196 = vld [vmem:[%s0 + $0x4b8] sm:$0xff]
  %v197 = vld [vmem:[%s0 + $0x4c0] sm:$0xf]
  %v198 = vld [vmem:[%s0 + $0x4c4] sm:$0xff]
  %v199 = vld [vmem:[%s0 + $0x4cc] sm:$0xff]
  %v200 = vld [vmem:[%s0 + $0x4d4] sm:$0xf]
  %v201 = vld [vmem:[%s0 + $0x4d8] sm:$0xff]
  %v202 = vld [vmem:[%s0 + $0x4e0] sm:$0xff]
  %v203 = vld [vmem:[%s0 + $0x4e8] sm:$0xf]
  %v204 = vld [vmem:[%s0 + $0x4ec] sm:$0xff]
  %v205 = vld [vmem:[%s0 + $0x4f4] sm:$0xff]
  %v206 = vld [vmem:[%s0 + $0x4fc] sm:$0xf]
  %v207 = vld [vmem:[%s1] sm:$0xf]
  %v208 = vld [vmem:[%s1 + $0x4] sm:$0xf]
  %v209 = vld [vmem:[%s1 + $0x8] sm:$0xf]
  %v210 = vld [vmem:[%s1 + $0xc] sm:$0xf]
  %v211 = vld [vmem:[%s1 + $0x10] sm:$0xf]
  %v212 = vld [vmem:[%s1 + $0x14] sm:$0xf]
  %v213 = vld [vmem:[%s1 + $0x18] sm:$0xf]
  %v214 = vld [vmem:[%s1 + $0x1c] sm:$0xf]
  %v215 = vld [vmem:[%s1 + $0x20] sm:$0xf]
  %v216 = vld [vmem:[%s1 + $0x24] sm:$0xf]
  %v217 = vld [vmem:[%s1 + $0x28] sm:$0xf]
  %v218 = vld [vmem:[%s1 + $0x2c] sm:$0xf]
  %v219 = vld [vmem:[%s1 + $0x30] sm:$0xf]
  %v220 = vld [vmem:[%s1 + $0x34] sm:$0xf]
  %v221 = vld [vmem:[%s1 + $0x38] sm:$0xf]
  %v222 = vld [vmem:[%s1 + $0x3c] sm:$0xf]
  %v223 = vld [vmem:[%s1 + $0x40] sm:$0xf]
  %v224 = vld [vmem:[%s1 + $0x44] sm:$0xf]
  %v225 = vld [vmem:[%s1 + $0x48] sm:$0xf]
  %v226 = vld [vmem:[%s1 + $0x4c] sm:$0xf]
  %v227 = vld [vmem:[%s1 + $0x50] sm:$0xf]
  %v228 = vld [vmem:[%s1 + $0x54] sm:$0xf]
  %v229 = vld [vmem:[%s1 + $0x58] sm:$0xf]
  %v230 = vld [vmem:[%s1 + $0x5c] sm:$0xf]
  %v231 = vld [vmem:[%s1 + $0x60] sm:$0xf]
  %v232 = vld [vmem:[%s1 + $0x64] sm:$0xf]
  %v233 = vld [vmem:[%s1 + $0x68] sm:$0xf]
  %v234 = vld [vmem:[%s1 + $0x6c] sm:$0xf]
  %v235 = vld [vmem:[%s1 + $0x70] sm:$0xf]
  %v236 = vld [vmem:[%s1 + $0x74] sm:$0xf]
  %v237 = vld [vmem:[%s1 + $0x78] sm:$0xf]
  %v238 = vld [vmem:[%s1 + $0x7c] sm:$0xf]
  %v239 = vld [vmem:[%s1 + $0x80] sm:$0xf]
  %v240 = vld [vmem:[%s1 + $0x84] sm:$0xf]
  %v241 = vld [vmem:[%s1 + $0x88] sm:$0xf]
  %v242 = vld [vmem:[%s1 + $0x8c] sm:$0xf]
  %v243 = vld [vmem:[%s1 + $0x90] sm:$0xf]
  %v244 = vld [vmem:[%s1 + $0x94] sm:$0xf]
  %v245 = vld [vmem:[%s1 + $0x98] sm:$0xf]
  %v246 = vld [vmem:[%s1 + $0x9c] sm:$0xf]
  %v247 = vld [vmem:[%s1 + $0xa0] sm:$0xf]
  %v248 = vld [vmem:[%s1 + $0xa4] sm:$0xf]
  %v249 = vld [vmem:[%s1 + $0xa8] sm:$0xf]
  %v250 = vld [vmem:[%s1 + $0xac] sm:$0xf]
  %v251 = vld [vmem:[%s1 + $0xb0] sm:$0xf]
  %v252 = vld [vmem:[%s1 + $0xb4] sm:$0xf]
  %v253 = vld [vmem:[%s1 + $0xb8] sm:$0xf]
  %v254 = vld [vmem:[%s1 + $0xbc] sm:$0xf]
  %v255 = vld [vmem:[%s1 + $0xc0] sm:$0xf]
  %v256 = vld [vmem:[%s1 + $0xc4] sm:$0xf]
  %v257 = vld [vmem:[%s1 + $0xc8] sm:$0xf]
  %v258 = vld [vmem:[%s1 + $0xcc] sm:$0xf]
  %v259 = vld [vmem:[%s1 + $0xd0] sm:$0xf]
  %v260 = vld [vmem:[%s1 + $0xd4] sm:$0xf]
  %v261 = vld [vmem:[%s1 + $0xd8] sm:$0xf]
  %v262 = vld [vmem:[%s1 + $0xdc] sm:$0xf]
  %v263 = vld [vmem:[%s1 + $0xe0] sm:$0xf]
  %v264 = vld [vmem:[%s1 + $0xe4] sm:$0xf]
  %v265 = vld [vmem:[%s1 + $0xe8] sm:$0xf]
  %v266 = vld [vmem:[%s1 + $0xec] sm:$0xf]
  %v267 = vld [vmem:[%s1 + $0xf0] sm:$0xf]
  %v268 = vld [vmem:[%s1 + $0xf4] sm:$0xf]
  %v269 = vld [vmem:[%s1 + $0xf8] sm:$0xf]
  %v270 = vld [vmem:[%s1 + $0xfc] sm:$0xf]
  %v271 = vld [vmem:[%s1 + $0x100] sm:$0xf]
  %v272 = vld [vmem:[%s1 + $0x104] sm:$0xf]
  %v273 = vld [vmem:[%s1 + $0x108] sm:$0xf]
  %v274 = vld [vmem:[%s1 + $0x10c] sm:$0xf]
  %v275 = vld [vmem:[%s1 + $0x110] sm:$0xf]
  %v276 = vld [vmem:[%s1 + $0x114] sm:$0xf]
  %v277 = vld [vmem:[%s1 + $0x118] sm:$0xf]
  %v278 = vld [vmem:[%s1 + $0x11c] sm:$0xf]
  %v279 = vld [vmem:[%s2] sm:$0x1]
  %v281 = vlaneseq
  %v282 = vshrl.u32 %v281, 7
  %v283 = vsub.s32 0, %v282
  %v284 = vrot.slane %v279, %v283
  %v478 = vunpack.c.l.b16 %v15
  %v479 = vunpack.c.h.b16 %v15
  %v480 = vunpack.c.l.b16 %v16
  %v481 = vunpack.c.h.b16 %v16
  %v482 = vunpack.c.l.b16 %v17
  %v483 = vunpack.c.l.b16 %v18
  %v484 = vunpack.c.h.b16 %v18
  %v485 = vunpack.c.l.b16 %v19
  %v486 = vunpack.c.h.b16 %v19
  %v487 = vunpack.c.l.b16 %v20
  %v488 = vunpack.c.l.b16 %v21
  %v489 = vunpack.c.h.b16 %v21
  %v490 = vunpack.c.l.b16 %v22
  %v491 = vunpack.c.h.b16 %v22
  %v492 = vunpack.c.l.b16 %v23
  %v493 = vunpack.c.l.b16 %v24
  %v494 = vunpack.c.h.b16 %v24
  %v495 = vunpack.c.l.b16 %v25
  %v496 = vunpack.c.h.b16 %v25
  %v497 = vunpack.c.l.b16 %v26
  %v498 = vunpack.c.l.b16 %v27
  %v499 = vunpack.c.h.b16 %v27
  %v500 = vunpack.c.l.b16 %v28
  %v501 = vunpack.c.h.b16 %v28
  %v502 = vunpack.c.l.b16 %v29
  %v503 = vunpack.c.l.b16 %v30
  %v504 = vunpack.c.h.b16 %v30
  %v505 = vunpack.c.l.b16 %v31
  %v506 = vunpack.c.h.b16 %v31
  %v507 = vunpack.c.l.b16 %v32
  %v508 = vunpack.c.l.b16 %v33
  %v509 = vunpack.c.h.b16 %v33
  %v510 = vunpack.c.l.b16 %v34
  %v511 = vunpack.c.h.b16 %v34
  %v512 = vunpack.c.l.b16 %v35
  %v513 = vunpack.c.l.b16 %v36
  %v514 = vunpack.c.h.b16 %v36
  %v515 = vunpack.c.l.b16 %v37
  %v516 = vunpack.c.h.b16 %v37
  %v517 = vunpack.c.l.b16 %v38
  %v518 = vunpack.c.l.b16 %v39
  %v519 = vunpack.c.h.b16 %v39
  %v520 = vunpack.c.l.b16 %v40
  %v521 = vunpack.c.h.b16 %v40
  %v522 = vunpack.c.l.b16 %v41
  %v523 = vunpack.c.l.b16 %v42
  %v524 = vunpack.c.h.b16 %v42
  %v525 = vunpack.c.l.b16 %v43
  %v526 = vunpack.c.h.b16 %v43
  %v527 = vunpack.c.l.b16 %v44
  %v528 = vunpack.c.l.b16 %v45
  %v529 = vunpack.c.h.b16 %v45
  %v530 = vunpack.c.l.b16 %v46
  %v531 = vunpack.c.h.b16 %v46
  %v532 = vunpack.c.l.b16 %v47
  %v533 = vunpack.c.l.b16 %v48
  %v534 = vunpack.c.h.b16 %v48
  %v535 = vunpack.c.l.b16 %v49
  %v536 = vunpack.c.h.b16 %v49
  %v537 = vunpack.c.l.b16 %v50
  %v538 = vunpack.c.l.b16 %v51
  %v539 = vunpack.c.h.b16 %v51
  %v540 = vunpack.c.l.b16 %v52
  %v541 = vunpack.c.h.b16 %v52
  %v542 = vunpack.c.l.b16 %v53
  %v543 = vunpack.c.l.b16 %v54
  %v544 = vunpack.c.h.b16 %v54
  %v545 = vunpack.c.l.b16 %v55
  %v546 = vunpack.c.h.b16 %v55
  %v547 = vunpack.c.l.b16 %v56
  %v548 = vunpack.c.l.b16 %v57
  %v549 = vunpack.c.h.b16 %v57
  %v550 = vunpack.c.l.b16 %v58
  %v551 = vunpack.c.h.b16 %v58
  %v552 = vunpack.c.l.b16 %v59
  %v553 = vunpack.c.l.b16 %v60
  %v554 = vunpack.c.h.b16 %v60
  %v555 = vunpack.c.l.b16 %v61
  %v556 = vunpack.c.h.b16 %v61
  %v557 = vunpack.c.l.b16 %v62
  %v558 = vunpack.c.l.b16 %v63
  %v559 = vunpack.c.h.b16 %v63
  %v560 = vunpack.c.l.b16 %v64
  %v561 = vunpack.c.h.b16 %v64
  %v562 = vunpack.c.l.b16 %v65
  %v563 = vunpack.c.l.b16 %v66
  %v564 = vunpack.c.h.b16 %v66
  %v565 = vunpack.c.l.b16 %v67
  %v566 = vunpack.c.h.b16 %v67
  %v567 = vunpack.c.l.b16 %v68
  %v568 = vunpack.c.l.b16 %v69
  %v569 = vunpack.c.h.b16 %v69
  %v570 = vunpack.c.l.b16 %v70
  %v571 = vunpack.c.h.b16 %v70
  %v572 = vunpack.c.l.b16 %v71
  %v573 = vunpack.c.l.b16 %v72
  %v574 = vunpack.c.h.b16 %v72
  %v575 = vunpack.c.l.b16 %v73
  %v576 = vunpack.c.h.b16 %v73
  %v577 = vunpack.c.l.b16 %v74
  %v578 = vunpack.c.l.b16 %v75
  %v579 = vunpack.c.h.b16 %v75
  %v580 = vunpack.c.l.b16 %v76
  %v581 = vunpack.c.h.b16 %v76
  %v582 = vunpack.c.l.b16 %v77
  %v583 = vunpack.c.l.b16 %v78
  %v584 = vunpack.c.h.b16 %v78
  %v585 = vunpack.c.l.b16 %v79
  %v586 = vunpack.c.h.b16 %v79
  %v587 = vunpack.c.l.b16 %v80
  %v588 = vunpack.c.l.b16 %v81
  %v589 = vunpack.c.h.b16 %v81
  %v590 = vunpack.c.l.b16 %v82
  %v591 = vunpack.c.h.b16 %v82
  %v592 = vunpack.c.l.b16 %v83
  %v593 = vunpack.c.l.b16 %v84
  %v594 = vunpack.c.h.b16 %v84
  %v595 = vunpack.c.l.b16 %v85
  %v596 = vunpack.c.h.b16 %v85
  %v597 = vunpack.c.l.b16 %v86
  %v598 = vunpack.c.l.b16 %v87
  %v599 = vunpack.c.h.b16 %v87
  %v600 = vunpack.c.l.b16 %v88
  %v601 = vunpack.c.h.b16 %v88
  %v602 = vunpack.c.l.b16 %v89
  %v603 = vunpack.c.l.b16 %v90
  %v604 = vunpack.c.h.b16 %v90
  %v605 = vunpack.c.l.b16 %v91
  %v606 = vunpack.c.h.b16 %v91
  %v607 = vunpack.c.l.b16 %v92
  %v608 = vunpack.c.l.b16 %v93
  %v609 = vunpack.c.h.b16 %v93
  %v610 = vunpack.c.l.b16 %v94
  %v611 = vunpack.c.h.b16 %v94
  %v612 = vunpack.c.l.b16 %v95
  %v613 = vunpack.c.l.b16 %v96
  %v614 = vunpack.c.h.b16 %v96
  %v615 = vunpack.c.l.b16 %v97
  %v616 = vunpack.c.h.b16 %v97
  %v617 = vunpack.c.l.b16 %v98
  %v618 = vunpack.c.l.b16 %v99
  %v619 = vunpack.c.h.b16 %v99
  %v620 = vunpack.c.l.b16 %v100
  %v621 = vunpack.c.h.b16 %v100
  %v622 = vunpack.c.l.b16 %v101
  %v623 = vunpack.c.l.b16 %v102
  %v624 = vunpack.c.h.b16 %v102
  %v625 = vunpack.c.l.b16 %v103
  %v626 = vunpack.c.h.b16 %v103
  %v627 = vunpack.c.l.b16 %v104
  %v628 = vunpack.c.l.b16 %v105
  %v629 = vunpack.c.h.b16 %v105
  %v630 = vunpack.c.l.b16 %v106
  %v631 = vunpack.c.h.b16 %v106
  %v632 = vunpack.c.l.b16 %v107
  %v633 = vunpack.c.l.b16 %v108
  %v634 = vunpack.c.h.b16 %v108
  %v635 = vunpack.c.l.b16 %v109
  %v636 = vunpack.c.h.b16 %v109
  %v637 = vunpack.c.l.b16 %v110
  %v638 = vunpack.c.l.b16 %v111
  %v639 = vunpack.c.h.b16 %v111
  %v640 = vunpack.c.l.b16 %v112
  %v641 = vunpack.c.h.b16 %v112
  %v642 = vunpack.c.l.b16 %v113
  %v643 = vunpack.c.l.b16 %v114
  %v644 = vunpack.c.h.b16 %v114
  %v645 = vunpack.c.l.b16 %v115
  %v646 = vunpack.c.h.b16 %v115
  %v647 = vunpack.c.l.b16 %v116
  %v648 = vunpack.c.l.b16 %v117
  %v649 = vunpack.c.h.b16 %v117
  %v650 = vunpack.c.l.b16 %v118
  %v651 = vunpack.c.h.b16 %v118
  %v652 = vunpack.c.l.b16 %v119
  %v653 = vunpack.c.l.b16 %v120
  %v654 = vunpack.c.h.b16 %v120
  %v655 = vunpack.c.l.b16 %v121
  %v656 = vunpack.c.h.b16 %v121
  %v657 = vunpack.c.l.b16 %v122
  %v658 = vunpack.c.l.b16 %v123
  %v659 = vunpack.c.h.b16 %v123
  %v660 = vunpack.c.l.b16 %v124
  %v661 = vunpack.c.h.b16 %v124
  %v662 = vunpack.c.l.b16 %v125
  %v663 = vunpack.c.l.b16 %v126
  %v664 = vunpack.c.h.b16 %v126
  %v665 = vunpack.c.l.b16 %v127
  %v666 = vunpack.c.h.b16 %v127
  %v667 = vunpack.c.l.b16 %v128
  %v668 = vunpack.c.l.b16 %v129
  %v669 = vunpack.c.h.b16 %v129
  %v670 = vunpack.c.l.b16 %v130
  %v671 = vunpack.c.h.b16 %v130
  %v672 = vunpack.c.l.b16 %v131
  %v673 = vunpack.c.l.b16 %v132
  %v674 = vunpack.c.h.b16 %v132
  %v675 = vunpack.c.l.b16 %v133
  %v676 = vunpack.c.h.b16 %v133
  %v677 = vunpack.c.l.b16 %v134
  %v678 = vunpack.c.l.b16 %v135
  %v679 = vunpack.c.h.b16 %v135
  %v680 = vunpack.c.l.b16 %v136
  %v681 = vunpack.c.h.b16 %v136
  %v682 = vunpack.c.l.b16 %v137
  %v683 = vunpack.c.l.b16 %v138
  %v684 = vunpack.c.h.b16 %v138
  %v685 = vunpack.c.l.b16 %v139
  %v686 = vunpack.c.h.b16 %v139
  %v687 = vunpack.c.l.b16 %v140
  %v688 = vunpack.c.l.b16 %v141
  %v689 = vunpack.c.h.b16 %v141
  %v690 = vunpack.c.l.b16 %v142
  %v691 = vunpack.c.h.b16 %v142
  %v692 = vunpack.c.l.b16 %v143
  %v693 = vunpack.c.l.b16 %v144
  %v694 = vunpack.c.h.b16 %v144
  %v695 = vunpack.c.l.b16 %v145
  %v696 = vunpack.c.h.b16 %v145
  %v697 = vunpack.c.l.b16 %v146
  %v698 = vunpack.c.l.b16 %v147
  %v699 = vunpack.c.h.b16 %v147
  %v700 = vunpack.c.l.b16 %v148
  %v701 = vunpack.c.h.b16 %v148
  %v702 = vunpack.c.l.b16 %v149
  %v703 = vunpack.c.l.b16 %v150
  %v704 = vunpack.c.h.b16 %v150
  %v705 = vunpack.c.l.b16 %v151
  %v706 = vunpack.c.h.b16 %v151
  %v707 = vunpack.c.l.b16 %v152
  %v708 = vunpack.c.l.b16 %v153
  %v709 = vunpack.c.h.b16 %v153
  %v710 = vunpack.c.l.b16 %v154
  %v711 = vunpack.c.h.b16 %v154
  %v712 = vunpack.c.l.b16 %v155
  %v713 = vunpack.c.l.b16 %v156
  %v714 = vunpack.c.h.b16 %v156
  %v715 = vunpack.c.l.b16 %v157
  %v716 = vunpack.c.h.b16 %v157
  %v717 = vunpack.c.l.b16 %v158
  %v718 = vunpack.c.l.b16 %v159
  %v719 = vunpack.c.h.b16 %v159
  %v720 = vunpack.c.l.b16 %v160
  %v721 = vunpack.c.h.b16 %v160
  %v722 = vunpack.c.l.b16 %v161
  %v723 = vunpack.c.l.b16 %v162
  %v724 = vunpack.c.h.b16 %v162
  %v725 = vunpack.c.l.b16 %v163
  %v726 = vunpack.c.h.b16 %v163
  %v727 = vunpack.c.l.b16 %v164
  %v728 = vunpack.c.l.b16 %v165
  %v729 = vunpack.c.h.b16 %v165
  %v730 = vunpack.c.l.b16 %v166
  %v731 = vunpack.c.h.b16 %v166
  %v732 = vunpack.c.l.b16 %v167
  %v733 = vunpack.c.l.b16 %v168
  %v734 = vunpack.c.h.b16 %v168
  %v735 = vunpack.c.l.b16 %v169
  %v736 = vunpack.c.h.b16 %v169
  %v737 = vunpack.c.l.b16 %v170
  %v738 = vunpack.c.l.b16 %v171
  %v739 = vunpack.c.h.b16 %v171
  %v740 = vunpack.c.l.b16 %v172
  %v741 = vunpack.c.h.b16 %v172
  %v742 = vunpack.c.l.b16 %v173
  %v743 = vunpack.c.l.b16 %v174
  %v744 = vunpack.c.h.b16 %v174
  %v745 = vunpack.c.l.b16 %v175
  %v746 = vunpack.c.h.b16 %v175
  %v747 = vunpack.c.l.b16 %v176
  %v748 = vunpack.c.l.b16 %v177
  %v749 = vunpack.c.h.b16 %v177
  %v750 = vunpack.c.l.b16 %v178
  %v751 = vunpack.c.h.b16 %v178
  %v752 = vunpack.c.l.b16 %v179
  %v753 = vunpack.c.l.b16 %v180
  %v754 = vunpack.c.h.b16 %v180
  %v755 = vunpack.c.l.b16 %v181
  %v756 = vunpack.c.h.b16 %v181
  %v757 = vunpack.c.l.b16 %v182
  %v758 = vunpack.c.l.b16 %v183
  %v759 = vunpack.c.h.b16 %v183
  %v760 = vunpack.c.l.b16 %v184
  %v761 = vunpack.c.h.b16 %v184
  %v762 = vunpack.c.l.b16 %v185
  %v763 = vunpack.c.l.b16 %v186
  %v764 = vunpack.c.h.b16 %v186
  %v765 = vunpack.c.l.b16 %v187
  %v766 = vunpack.c.h.b16 %v187
  %v767 = vunpack.c.l.b16 %v188
  %v768 = vunpack.c.l.b16 %v189
  %v769 = vunpack.c.h.b16 %v189
  %v770 = vunpack.c.l.b16 %v190
  %v771 = vunpack.c.h.b16 %v190
  %v772 = vunpack.c.l.b16 %v191
  %v773 = vunpack.c.l.b16 %v192
  %v774 = vunpack.c.h.b16 %v192
  %v775 = vunpack.c.l.b16 %v193
  %v776 = vunpack.c.h.b16 %v193
  %v777 = vunpack.c.l.b16 %v194
  %v778 = vunpack.c.l.b16 %v195
  %v779 = vunpack.c.h.b16 %v195
  %v780 = vunpack.c.l.b16 %v196
  %v781 = vunpack.c.h.b16 %v196
  %v782 = vunpack.c.l.b16 %v197
  %v783 = vunpack.c.l.b16 %v198
  %v784 = vunpack.c.h.b16 %v198
  %v785 = vunpack.c.l.b16 %v199
  %v786 = vunpack.c.h.b16 %v199
  %v787 = vunpack.c.l.b16 %v200
  %v788 = vunpack.c.l.b16 %v201
  %v789 = vunpack.c.h.b16 %v201
  %v790 = vunpack.c.l.b16 %v202
  %v791 = vunpack.c.h.b16 %v202
  %v792 = vunpack.c.l.b16 %v203
  %v793 = vunpack.c.l.b16 %v204
  %v794 = vunpack.c.h.b16 %v204
  %v795 = vunpack.c.l.b16 %v205
  %v796 = vunpack.c.h.b16 %v205
  %v797 = vunpack.c.l.b16 %v206
  %v798 = vpack.c.b16 %v483, %v478
  %v799 = vpack.c.b16 %v484, %v479
  %v800 = vpack.c.b16 %v485, %v480
  %v801 = vpack.c.b16 %v486, %v481
  %v802 = vpack.c.b16 %v487, %v482
  %v803 = vpack.c.b16 %v493, %v488
  %v804 = vpack.c.b16 %v494, %v489
  %v805 = vpack.c.b16 %v495, %v490
  %v806 = vpack.c.b16 %v496, %v491
  %v807 = vpack.c.b16 %v497, %v492
  %v808 = vpack.c.b16 %v503, %v498
  %v809 = vpack.c.b16 %v504, %v499
  %v810 = vpack.c.b16 %v505, %v500
  %v811 = vpack.c.b16 %v506, %v501
  %v812 = vpack.c.b16 %v507, %v502
  %v813 = vpack.c.b16 %v513, %v508
  %v814 = vpack.c.b16 %v514, %v509
  %v815 = vpack.c.b16 %v515, %v510
  %v816 = vpack.c.b16 %v516, %v511
  %v817 = vpack.c.b16 %v517, %v512
  %v818 = vpack.c.b16 %v523, %v518
  %v819 = vpack.c.b16 %v524, %v519
  %v820 = vpack.c.b16 %v525, %v520
  %v821 = vpack.c.b16 %v526, %v521
  %v822 = vpack.c.b16 %v527, %v522
  %v823 = vpack.c.b16 %v533, %v528
  %v824 = vpack.c.b16 %v534, %v529
  %v825 = vpack.c.b16 %v535, %v530
  %v826 = vpack.c.b16 %v536, %v531
  %v827 = vpack.c.b16 %v537, %v532
  %v828 = vpack.c.b16 %v543, %v538
  %v829 = vpack.c.b16 %v544, %v539
  %v830 = vpack.c.b16 %v545, %v540
  %v831 = vpack.c.b16 %v546, %v541
  %v832 = vpack.c.b16 %v547, %v542
  %v833 = vpack.c.b16 %v553, %v548
  %v834 = vpack.c.b16 %v554, %v549
  %v835 = vpack.c.b16 %v555, %v550
  %v836 = vpack.c.b16 %v556, %v551
  %v837 = vpack.c.b16 %v557, %v552
  %v838 = vpack.c.b16 %v563, %v558
  %v839 = vpack.c.b16 %v564, %v559
  %v840 = vpack.c.b16 %v565, %v560
  %v841 = vpack.c.b16 %v566, %v561
  %v842 = vpack.c.b16 %v567, %v562
  %v843 = vpack.c.b16 %v573, %v568
  %v844 = vpack.c.b16 %v574, %v569
  %v845 = vpack.c.b16 %v575, %v570
  %v846 = vpack.c.b16 %v576, %v571
  %v847 = vpack.c.b16 %v577, %v572
  %v848 = vpack.c.b16 %v583, %v578
  %v849 = vpack.c.b16 %v584, %v579
  %v850 = vpack.c.b16 %v585, %v580
  %v851 = vpack.c.b16 %v586, %v581
  %v852 = vpack.c.b16 %v587, %v582
  %v853 = vpack.c.b16 %v593, %v588
  %v854 = vpack.c.b16 %v594, %v589
  %v855 = vpack.c.b16 %v595, %v590
  %v856 = vpack.c.b16 %v596, %v591
  %v857 = vpack.c.b16 %v597, %v592
  %v858 = vpack.c.b16 %v603, %v598
  %v859 = vpack.c.b16 %v604, %v599
  %v860 = vpack.c.b16 %v605, %v600
  %v861 = vpack.c.b16 %v606, %v601
  %v862 = vpack.c.b16 %v607, %v602
  %v863 = vpack.c.b16 %v613, %v608
  %v864 = vpack.c.b16 %v614, %v609
  %v865 = vpack.c.b16 %v615, %v610
  %v866 = vpack.c.b16 %v616, %v611
  %v867 = vpack.c.b16 %v617, %v612
  %v868 = vpack.c.b16 %v623, %v618
  %v869 = vpack.c.b16 %v624, %v619
  %v870 = vpack.c.b16 %v625, %v620
  %v871 = vpack.c.b16 %v626, %v621
  %v872 = vpack.c.b16 %v627, %v622
  %v873 = vpack.c.b16 %v633, %v628
  %v874 = vpack.c.b16 %v634, %v629
  %v875 = vpack.c.b16 %v635, %v630
  %v876 = vpack.c.b16 %v636, %v631
  %v877 = vpack.c.b16 %v637, %v632
  %v878 = vpack.c.b16 %v643, %v638
  %v879 = vpack.c.b16 %v644, %v639
  %v880 = vpack.c.b16 %v645, %v640
  %v881 = vpack.c.b16 %v646, %v641
  %v882 = vpack.c.b16 %v647, %v642
  %v883 = vpack.c.b16 %v653, %v648
  %v884 = vpack.c.b16 %v654, %v649
  %v885 = vpack.c.b16 %v655, %v650
  %v886 = vpack.c.b16 %v656, %v651
  %v887 = vpack.c.b16 %v657, %v652
  %v888 = vpack.c.b16 %v663, %v658
  %v889 = vpack.c.b16 %v664, %v659
  %v890 = vpack.c.b16 %v665, %v660
  %v891 = vpack.c.b16 %v666, %v661
  %v892 = vpack.c.b16 %v667, %v662
  %v893 = vpack.c.b16 %v673, %v668
  %v894 = vpack.c.b16 %v674, %v669
  %v895 = vpack.c.b16 %v675, %v670
  %v896 = vpack.c.b16 %v676, %v671
  %v897 = vpack.c.b16 %v677, %v672
  %v898 = vpack.c.b16 %v683, %v678
  %v899 = vpack.c.b16 %v684, %v679
  %v900 = vpack.c.b16 %v685, %v680
  %v901 = vpack.c.b16 %v686, %v681
  %v902 = vpack.c.b16 %v687, %v682
  %v903 = vpack.c.b16 %v693, %v688
  %v904 = vpack.c.b16 %v694, %v689
  %v905 = vpack.c.b16 %v695, %v690
  %v906 = vpack.c.b16 %v696, %v691
  %v907 = vpack.c.b16 %v697, %v692
  %v908 = vpack.c.b16 %v703, %v698
  %v909 = vpack.c.b16 %v704, %v699
  %v910 = vpack.c.b16 %v705, %v700
  %v911 = vpack.c.b16 %v706, %v701
  %v912 = vpack.c.b16 %v707, %v702
  %v913 = vpack.c.b16 %v713, %v708
  %v914 = vpack.c.b16 %v714, %v709
  %v915 = vpack.c.b16 %v715, %v710
  %v916 = vpack.c.b16 %v716, %v711
  %v917 = vpack.c.b16 %v717, %v712
  %v918 = vpack.c.b16 %v723, %v718
  %v919 = vpack.c.b16 %v724, %v719
  %v920 = vpack.c.b16 %v725, %v720
  %v921 = vpack.c.b16 %v726, %v721
  %v922 = vpack.c.b16 %v727, %v722
  %v923 = vpack.c.b16 %v733, %v728
  %v924 = vpack.c.b16 %v734, %v729
  %v925 = vpack.c.b16 %v735, %v730
  %v926 = vpack.c.b16 %v736, %v731
  %v927 = vpack.c.b16 %v737, %v732
  %v928 = vpack.c.b16 %v743, %v738
  %v929 = vpack.c.b16 %v744, %v739
  %v930 = vpack.c.b16 %v745, %v740
  %v931 = vpack.c.b16 %v746, %v741
  %v932 = vpack.c.b16 %v747, %v742
  %v933 = vpack.c.b16 %v753, %v748
  %v934 = vpack.c.b16 %v754, %v749
  %v935 = vpack.c.b16 %v755, %v750
  %v936 = vpack.c.b16 %v756, %v751
  %v937 = vpack.c.b16 %v757, %v752
  %v938 = vpack.c.b16 %v763, %v758
  %v939 = vpack.c.b16 %v764, %v759
  %v940 = vpack.c.b16 %v765, %v760
  %v941 = vpack.c.b16 %v766, %v761
  %v942 = vpack.c.b16 %v767, %v762
  %v943 = vpack.c.b16 %v773, %v768
  %v944 = vpack.c.b16 %v774, %v769
  %v945 = vpack.c.b16 %v775, %v770
  %v946 = vpack.c.b16 %v776, %v771
  %v947 = vpack.c.b16 %v777, %v772
  %v948 = vpack.c.b16 %v783, %v778
  %v949 = vpack.c.b16 %v784, %v779
  %v950 = vpack.c.b16 %v785, %v780
  %v951 = vpack.c.b16 %v786, %v781
  %v952 = vpack.c.b16 %v787, %v782
  %v953 = vpack.c.b16 %v793, %v788
  %v954 = vpack.c.b16 %v794, %v789
  %v955 = vpack.c.b16 %v795, %v790
  %v956 = vpack.c.b16 %v796, %v791
  %v957 = vpack.c.b16 %v797, %v792
  %v1158 = vunpack.c.l.b16 %v207
  %v1159 = vunpack.c.l.b16 %v208
  %v1160 = vunpack.c.l.b16 %v209
  %v1161 = vunpack.c.l.b16 %v210
  %v1162 = vunpack.c.l.b16 %v211
  %v1163 = vunpack.c.l.b16 %v212
  %v1164 = vunpack.c.l.b16 %v213
  %v1165 = vunpack.c.l.b16 %v214
  %v1166 = vunpack.c.l.b16 %v215
  %v1167 = vunpack.c.l.b16 %v216
  %v1168 = vunpack.c.l.b16 %v217
  %v1169 = vunpack.c.l.b16 %v218
  %v1170 = vunpack.c.l.b16 %v219
  %v1171 = vunpack.c.l.b16 %v220
  %v1172 = vunpack.c.l.b16 %v221
  %v1173 = vunpack.c.l.b16 %v222
  %v1174 = vunpack.c.l.b16 %v223
  %v1175 = vunpack.c.l.b16 %v224
  %v1176 = vunpack.c.l.b16 %v225
  %v1177 = vunpack.c.l.b16 %v226
  %v1178 = vunpack.c.l.b16 %v227
  %v1179 = vunpack.c.l.b16 %v228
  %v1180 = vunpack.c.l.b16 %v229
  %v1181 = vunpack.c.l.b16 %v230
  %v1182 = vunpack.c.l.b16 %v231
  %v1183 = vunpack.c.l.b16 %v232
  %v1184 = vunpack.c.l.b16 %v233
  %v1185 = vunpack.c.l.b16 %v234
  %v1186 = vunpack.c.l.b16 %v235
  %v1187 = vunpack.c.l.b16 %v236
  %v1188 = vunpack.c.l.b16 %v237
  %v1189 = vunpack.c.l.b16 %v238
  %v1190 = vunpack.c.l.b16 %v239
  %v1191 = vunpack.c.l.b16 %v240
  %v1192 = vunpack.c.l.b16 %v241
  %v1193 = vunpack.c.l.b16 %v242
  %v1194 = vunpack.c.l.b16 %v243
  %v1195 = vunpack.c.l.b16 %v244
  %v1196 = vunpack.c.l.b16 %v245
  %v1197 = vunpack.c.l.b16 %v246
  %v1198 = vunpack.c.l.b16 %v247
  %v1199 = vunpack.c.l.b16 %v248
  %v1200 = vunpack.c.l.b16 %v249
  %v1201 = vunpack.c.l.b16 %v250
  %v1202 = vunpack.c.l.b16 %v251
  %v1203 = vunpack.c.l.b16 %v252
  %v1204 = vunpack.c.l.b16 %v253
  %v1205 = vunpack.c.l.b16 %v254
  %v1206 = vunpack.c.l.b16 %v255
  %v1207 = vunpack.c.l.b16 %v256
  %v1208 = vunpack.c.l.b16 %v257
  %v1209 = vunpack.c.l.b16 %v258
  %v1210 = vunpack.c.l.b16 %v259
  %v1211 = vunpack.c.l.b16 %v260
  %v1212 = vunpack.c.l.b16 %v261
  %v1213 = vunpack.c.l.b16 %v262
  %v1214 = vunpack.c.l.b16 %v263
  %v1215 = vunpack.c.l.b16 %v264
  %v1216 = vunpack.c.l.b16 %v265
  %v1217 = vunpack.c.l.b16 %v266
  %v1218 = vunpack.c.l.b16 %v267
  %v1219 = vunpack.c.l.b16 %v268
  %v1220 = vunpack.c.l.b16 %v269
  %v1221 = vunpack.c.l.b16 %v270
  %v1222 = vunpack.c.l.b16 %v271
  %v1223 = vunpack.c.l.b16 %v272
  %v1224 = vunpack.c.l.b16 %v273
  %v1225 = vunpack.c.l.b16 %v274
  %v1226 = vunpack.c.l.b16 %v275
  %v1227 = vunpack.c.l.b16 %v276
  %v1228 = vunpack.c.l.b16 %v277
  %v1229 = vunpack.c.l.b16 %v278
  %v1230 = vpack.c.b16 %v1159, %v1158
  %v1231 = vpack.c.b16 %v1161, %v1160
  %v1232 = vpack.c.b16 %v1163, %v1162
  %v1233 = vpack.c.b16 %v1165, %v1164
  %v1234 = vpack.c.b16 %v1167, %v1166
  %v1235 = vpack.c.b16 %v1169, %v1168
  %v1236 = vpack.c.b16 %v1171, %v1170
  %v1237 = vpack.c.b16 %v1173, %v1172
  %v1238 = vpack.c.b16 %v1175, %v1174
  %v1239 = vpack.c.b16 %v1177, %v1176
  %v1240 = vpack.c.b16 %v1179, %v1178
  %v1241 = vpack.c.b16 %v1181, %v1180
  %v1242 = vpack.c.b16 %v1183, %v1182
  %v1243 = vpack.c.b16 %v1185, %v1184
  %v1244 = vpack.c.b16 %v1187, %v1186
  %v1245 = vpack.c.b16 %v1189, %v1188
  %v1246 = vpack.c.b16 %v1191, %v1190
  %v1247 = vpack.c.b16 %v1193, %v1192
  %v1248 = vpack.c.b16 %v1195, %v1194
  %v1249 = vpack.c.b16 %v1197, %v1196
  %v1250 = vpack.c.b16 %v1199, %v1198
  %v1251 = vpack.c.b16 %v1201, %v1200
  %v1252 = vpack.c.b16 %v1203, %v1202
  %v1253 = vpack.c.b16 %v1205, %v1204
  %v1254 = vpack.c.b16 %v1207, %v1206
  %v1255 = vpack.c.b16 %v1209, %v1208
  %v1256 = vpack.c.b16 %v1211, %v1210
  %v1257 = vpack.c.b16 %v1213, %v1212
  %v1258 = vpack.c.b16 %v1215, %v1214
  %v1259 = vpack.c.b16 %v1217, %v1216
  %v1260 = vpack.c.b16 %v1219, %v1218
  %v1261 = vpack.c.b16 %v1221, %v1220
  %v1262 = vpack.c.b16 %v1223, %v1222
  %v1263 = vpack.c.b16 %v1225, %v1224
  %v1264 = vpack.c.b16 %v1227, %v1226
  %v1265 = vpack.c.b16 %v1229, %v1228
  %vm1302 = vcmask 523264
  %v1304 = vsel %vm1302, %v802, 0
  %v1307 = vsel %vm1302, %v807, 0
  %v1310 = vsel %vm1302, %v812, 0
  %v1313 = vsel %vm1302, %v817, 0
  %v1316 = vsel %vm1302, %v822, 0
  %v1319 = vsel %vm1302, %v827, 0
  %v1322 = vsel %vm1302, %v832, 0
  %v1325 = vsel %vm1302, %v837, 0
  %v1328 = vsel %vm1302, %v842, 0
  %v1331 = vsel %vm1302, %v847, 0
  %v1334 = vsel %vm1302, %v852, 0
  %v1337 = vsel %vm1302, %v857, 0
  %v1340 = vsel %vm1302, %v862, 0
  %v1343 = vsel %vm1302, %v867, 0
  %v1346 = vsel %vm1302, %v872, 0
  %v1349 = vsel %vm1302, %v877, 0
  %v1352 = vsel %vm1302, %v882, 0
  %v1355 = vsel %vm1302, %v887, 0
  %v1358 = vsel %vm1302, %v892, 0
  %v1361 = vsel %vm1302, %v897, 0
  %v1364 = vsel %vm1302, %v902, 0
  %v1367 = vsel %vm1302, %v907, 0
  %v1370 = vsel %vm1302, %v912, 0
  %v1373 = vsel %vm1302, %v917, 0
  %v1376 = vsel %vm1302, %v922, 0
  %v1379 = vsel %vm1302, %v927, 0
  %v1382 = vsel %vm1302, %v932, 0
  %v1385 = vsel %vm1302, %v937, 0
  %v1388 = vsel %vm1302, %v942, 0
  %v1391 = vsel %vm1302, %v947, 0
  %v1394 = vsel %vm1302, %v952, 0
  %v1397 = vsel %vm1302, %v957, 0
  %1399 = vmatprep.subr.bf16.mxu0 0
  %1400 = vmatpush1.bf16.msra.mxu0 %v1230
  %1401 = vmatprep.subr.bf16.mxu0 0
  %1402 = vmatpush1.bf16.msra.mxu0 %v1231
  %1403 = vmatprep.subr.bf16.mxu0 0
  %1404 = vmatpush1.bf16.msra.mxu0 %v1232
  %1405 = vmatprep.subr.bf16.mxu0 0
  %1406 = vmatpush1.bf16.msra.mxu0 %v1233
  %1407 = vmatprep.subr.bf16.mxu0 0
  %1408 = vmatpush1.bf16.msra.mxu0 %v1234
  %1409 = vmatprep.subr.bf16.mxu0 0
  %1410 = vmatpush1.bf16.msra.mxu0 %v1235
  %1411 = vmatprep.subr.bf16.mxu0 0
  %1412 = vmatpush1.bf16.msra.mxu0 %v1236
  %1413 = vmatprep.subr.bf16.mxu0 0
  %1414 = vmatpush1.bf16.msra.mxu0 %v1237
  %1415 = vmatprep.subr.bf16.mxu0 0
  %1416 = vmatpush1.bf16.msra.mxu0 %v1238
  %1417 = vmatprep.subr.bf16.mxu0 0
  %1418 = vmatpush1.bf16.msra.mxu0 %v1239
  %1419 = vmatprep.subr.bf16.mxu0 0
  %1420 = vmatpush1.bf16.msra.mxu0 %v1240
  %1421 = vmatprep.subr.bf16.mxu0 0
  %1422 = vmatpush1.bf16.msra.mxu0 %v1241
  %1423 = vmatprep.subr.bf16.mxu0 0
  %1424 = vmatpush1.bf16.msra.mxu0 %v1242
  %1425 = vmatprep.subr.bf16.mxu0 0
  %1426 = vmatpush1.bf16.msra.mxu0 %v1243
  %1427 = vmatprep.subr.bf16.mxu0 0
  %1428 = vmatpush1.bf16.msra.mxu0 %v1244
  %1429 = vmatprep.subr.bf16.mxu0 0
  %1430 = vmatpush1.bf16.msra.mxu0 %v1245
  %1431 = vmatprep.mubr.bf16.mxu0 %v799
  %1432 = vmatmul.mubr.bf16.gmra.mrb[0].mxu0 %v798
  %v1433 = vpop.f32.mrb[0].mxu0
  %v1434 = vadd.f32 %v284, %v1433
  %v1435 = vpop.f32.mrb[0].mxu0
  %v1436 = vpop.f32.mrb[0].mxu0
  %v1437 = vadd.f32 %v284, %v1436
  %v1438 = vpop.f32.mrb[0].mxu0
  %1439 = vmatprep.mubr.bf16.mxu0 %v804
  %1440 = vmatmul.mubr.bf16.gmra.mrb[0].mxu0 %v803
  %v1441 = vpop.f32.mrb[0].mxu0
  %v1442 = vadd.f32 %v284, %v1441
  %v1443 = vpop.f32.mrb[0].mxu0
  %v1444 = vpop.f32.mrb[0].mxu0
  %v1445 = vadd.f32 %v284, %v1444
  %v1446 = vpop.f32.mrb[0].mxu0
  %1447 = vmatprep.mubr.bf16.mxu0 %v809
  %1448 = vmatmul.mubr.bf16.gmra.mrb[0].mxu0 %v808
  %v1449 = vpop.f32.mrb[0].mxu0
  %v1450 = vadd.f32 %v284, %v1449
  %v1451 = vpop.f32.mrb[0].mxu0
  %v1452 = vpop.f32.mrb[0].mxu0
  %v1453 = vadd.f32 %v284, %v1452
  %v1454 = vpop.f32.mrb[0].mxu0
  %1455 = vmatprep.mubr.bf16.mxu0 %v814
  %1456 = vmatmul.mubr.bf16.gmra.mrb[0].mxu0 %v813
  %v1457 = vpop.f32.mrb[0].mxu0
  %v1458 = vadd.f32 %v284, %v1457
  %v1459 = vpop.f32.mrb[0].mxu0
  %v1460 = vpop.f32.mrb[0].mxu0
  %v1461 = vadd.f32 %v284, %v1460
  %v1462 = vpop.f32.mrb[0].mxu0
  %1463 = vmatprep.mubr.bf16.mxu0 %v819
  %1464 = vmatmul.mubr.bf16.gmra.mrb[0].mxu0 %v818
  %v1465 = vpop.f32.mrb[0].mxu0
  %v1466 = vadd.f32 %v284, %v1465
  %v1467 = vpop.f32.mrb[0].mxu0
  %v1468 = vpop.f32.mrb[0].mxu0
  %v1469 = vadd.f32 %v284, %v1468
  %v1470 = vpop.f32.mrb[0].mxu0
  %1471 = vmatprep.mubr.bf16.mxu0 %v824
  %1472 = vmatmul.mubr.bf16.gmra.mrb[0].mxu0 %v823
  %v1473 = vpop.f32.mrb[0].mxu0
  %v1474 = vadd.f32 %v284, %v1473
  %v1475 = vpop.f32.mrb[0].mxu0
  %v1476 = vpop.f32.mrb[0].mxu0
  %v1477 = vadd.f32 %v284, %v1476
  %v1478 = vpop.f32.mrb[0].mxu0
  %1479 = vmatprep.mubr.bf16.mxu0 %v829
  %1480 = vmatmul.mubr.bf16.gmra.mrb[0].mxu0 %v828
  %v1481 = vpop.f32.mrb[0].mxu0
  %v1482 = vadd.f32 %v284, %v1481
  %v1483 = vpop.f32.mrb[0].mxu0
  %v1484 = vpop.f32.mrb[0].mxu0
  %v1485 = vadd.f32 %v284, %v1484
  %v1486 = vpop.f32.mrb[0].mxu0
  %1487 = vmatprep.mubr.bf16.mxu0 %v834
  %1488 = vmatmul.mubr.bf16.gmra.mrb[0].mxu0 %v833
  %v1489 = vpop.f32.mrb[0].mxu0
  %v1490 = vadd.f32 %v284, %v1489
  %v1491 = vpop.f32.mrb[0].mxu0
  %v1492 = vpop.f32.mrb[0].mxu0
  %v1493 = vadd.f32 %v284, %v1492
  %v1494 = vpop.f32.mrb[0].mxu0
  %1495 = vmatprep.mubr.bf16.mxu0 %v839
  %1496 = vmatmul.mubr.bf16.gmra.mrb[0].mxu0 %v838
  %v1497 = vpop.f32.mrb[0].mxu0
  %v1498 = vadd.f32 %v284, %v1497
  %v1499 = vpop.f32.mrb[0].mxu0
  %v1500 = vpop.f32.mrb[0].mxu0
  %v1501 = vadd.f32 %v284, %v1500
  %v1502 = vpop.f32.mrb[0].mxu0
  %1503 = vmatprep.mubr.bf16.mxu0 %v844
  %1504 = vmatmul.mubr.bf16.gmra.mrb[0].mxu0 %v843
  %v1505 = vpop.f32.mrb[0].mxu0
  %v1506 = vadd.f32 %v284, %v1505
  %v1507 = vpop.f32.mrb[0].mxu0
  %v1508 = vpop.f32.mrb[0].mxu0
  %v1509 = vadd.f32 %v284, %v1508
  %v1510 = vpop.f32.mrb[0].mxu0
  %1511 = vmatprep.mubr.bf16.mxu0 %v849
  %1512 = vmatmul.mubr.bf16.gmra.mrb[0].mxu0 %v848
  %v1513 = vpop.f32.mrb[0].mxu0
  %v1514 = vadd.f32 %v284, %v1513
  %v1515 = vpop.f32.mrb[0].mxu0
  %v1516 = vpop.f32.mrb[0].mxu0
  %v1517 = vadd.f32 %v284, %v1516
  %v1518 = vpop.f32.mrb[0].mxu0
  %1519 = vmatprep.mubr.bf16.mxu0 %v854
  %1520 = vmatmul.mubr.bf16.gmra.mrb[0].mxu0 %v853
  %v1521 = vpop.f32.mrb[0].mxu0
  %v1522 = vadd.f32 %v284, %v1521
  %v1523 = vpop.f32.mrb[0].mxu0
  %v1524 = vpop.f32.mrb[0].mxu0
  %v1525 = vadd.f32 %v284, %v1524
  %v1526 = vpop.f32.mrb[0].mxu0
  %1527 = vmatprep.mubr.bf16.mxu0 %v859
  %1528 = vmatmul.mubr.bf16.gmra.mrb[0].mxu0 %v858
  %v1529 = vpop.f32.mrb[0].mxu0
  %v1530 = vadd.f32 %v284, %v1529
  %v1531 = vpop.f32.mrb[0].mxu0
  %v1532 = vpop.f32.mrb[0].mxu0
  %v1533 = vadd.f32 %v284, %v1532
  %v1534 = vpop.f32.mrb[0].mxu0
  %1535 = vmatprep.mubr.bf16.mxu0 %v864
  %1536 = vmatmul.mubr.bf16.gmra.mrb[0].mxu0 %v863
  %v1537 = vpop.f32.mrb[0].mxu0
  %v1538 = vadd.f32 %v284, %v1537
  %v1539 = vpop.f32.mrb[0].mxu0
  %v1540 = vpop.f32.mrb[0].mxu0
  %v1541 = vadd.f32 %v284, %v1540
  %v1542 = vpop.f32.mrb[0].mxu0
  %1543 = vmatprep.mubr.bf16.mxu0 %v869
  %1544 = vmatmul.mubr.bf16.gmra.mrb[0].mxu0 %v868
  %v1545 = vpop.f32.mrb[0].mxu0
  %v1546 = vadd.f32 %v284, %v1545
  %v1547 = vpop.f32.mrb[0].mxu0
  %v1548 = vpop.f32.mrb[0].mxu0
  %v1549 = vadd.f32 %v284, %v1548
  %v1550 = vpop.f32.mrb[0].mxu0
  %1551 = vmatprep.mubr.bf16.mxu0 %v874
  %1552 = vmatmul.mubr.bf16.gmra.mrb[0].mxu0 %v873
  %v1553 = vpop.f32.mrb[0].mxu0
  %v1554 = vadd.f32 %v284, %v1553
  %v1555 = vpop.f32.mrb[0].mxu0
  %v1556 = vpop.f32.mrb[0].mxu0
  %v1557 = vadd.f32 %v284, %v1556
  %v1558 = vpop.f32.mrb[0].mxu0
  %1559 = vmatprep.mubr.bf16.mxu0 %v879
  %1560 = vmatmul.mubr.bf16.gmra.mrb[0].mxu0 %v878
  %v1561 = vpop.f32.mrb[0].mxu0
  %v1562 = vadd.f32 %v284, %v1561
  %v1563 = vpop.f32.mrb[0].mxu0
  %v1564 = vpop.f32.mrb[0].mxu0
  %v1565 = vadd.f32 %v284, %v1564
  %v1566 = vpop.f32.mrb[0].mxu0
  %1567 = vmatprep.mubr.bf16.mxu0 %v884
  %1568 = vmatmul.mubr.bf16.gmra.mrb[0].mxu0 %v883
  %v1569 = vpop.f32.mrb[0].mxu0
  %v1570 = vadd.f32 %v284, %v1569
  %v1571 = vpop.f32.mrb[0].mxu0
  %v1572 = vpop.f32.mrb[0].mxu0
  %v1573 = vadd.f32 %v284, %v1572
  %v1574 = vpop.f32.mrb[0].mxu0
  %1575 = vmatprep.mubr.bf16.mxu0 %v889
  %1576 = vmatmul.mubr.bf16.gmra.mrb[0].mxu0 %v888
  %v1577 = vpop.f32.mrb[0].mxu0
  %v1578 = vadd.f32 %v284, %v1577
  %v1579 = vpop.f32.mrb[0].mxu0
  %v1580 = vpop.f32.mrb[0].mxu0
  %v1581 = vadd.f32 %v284, %v1580
  %v1582 = vpop.f32.mrb[0].mxu0
  %1583 = vmatprep.mubr.bf16.mxu0 %v894
  %1584 = vmatmul.mubr.bf16.gmra.mrb[0].mxu0 %v893
  %v1585 = vpop.f32.mrb[0].mxu0
  %v1586 = vadd.f32 %v284, %v1585
  %v1587 = vpop.f32.mrb[0].mxu0
  %v1588 = vpop.f32.mrb[0].mxu0
  %v1589 = vadd.f32 %v284, %v1588
  %v1590 = vpop.f32.mrb[0].mxu0
  %1591 = vmatprep.mubr.bf16.mxu0 %v899
  %1592 = vmatmul.mubr.bf16.gmra.mrb[0].mxu0 %v898
  %v1593 = vpop.f32.mrb[0].mxu0
  %v1594 = vadd.f32 %v284, %v1593
  %v1595 = vpop.f32.mrb[0].mxu0
  %v1596 = vpop.f32.mrb[0].mxu0
  %v1597 = vadd.f32 %v284, %v1596
  %v1598 = vpop.f32.mrb[0].mxu0
  %1599 = vmatprep.mubr.bf16.mxu0 %v904
  %1600 = vmatmul.mubr.bf16.gmra.mrb[0].mxu0 %v903
  %v1601 = vpop.f32.mrb[0].mxu0
  %v1602 = vadd.f32 %v284, %v1601
  %v1603 = vpop.f32.mrb[0].mxu0
  %v1604 = vpop.f32.mrb[0].mxu0
  %v1605 = vadd.f32 %v284, %v1604
  %v1606 = vpop.f32.mrb[0].mxu0
  %1607 = vmatprep.mubr.bf16.mxu0 %v909
  %1608 = vmatmul.mubr.bf16.gmra.mrb[0].mxu0 %v908
  %v1609 = vpop.f32.mrb[0].mxu0
  %v1610 = vadd.f32 %v284, %v1609
  %v1611 = vpop.f32.mrb[0].mxu0
  %v1612 = vpop.f32.mrb[0].mxu0
  %v1613 = vadd.f32 %v284, %v1612
  %v1614 = vpop.f32.mrb[0].mxu0
  %1615 = vmatprep.mubr.bf16.mxu0 %v914
  %1616 = vmatmul.mubr.bf16.gmra.mrb[0].mxu0 %v913
  %v1617 = vpop.f32.mrb[0].mxu0
  %v1618 = vadd.f32 %v284, %v1617
  %v1619 = vpop.f32.mrb[0].mxu0
  %v1620 = vpop.f32.mrb[0].mxu0
  %v1621 = vadd.f32 %v284, %v1620
  %v1622 = vpop.f32.mrb[0].mxu0
  %1623 = vmatprep.mubr.bf16.mxu0 %v919
  %1624 = vmatmul.mubr.bf16.gmra.mrb[0].mxu0 %v918
  %v1625 = vpop.f32.mrb[0].mxu0
  %v1626 = vadd.f32 %v284, %v1625
  %v1627 = vpop.f32.mrb[0].mxu0
  %v1628 = vpop.f32.mrb[0].mxu0
  %v1629 = vadd.f32 %v284, %v1628
  %v1630 = vpop.f32.mrb[0].mxu0
  %1631 = vmatprep.mubr.bf16.mxu0 %v924
  %1632 = vmatmul.mubr.bf16.gmra.mrb[0].mxu0 %v923
  %v1633 = vpop.f32.mrb[0].mxu0
  %v1634 = vadd.f32 %v284, %v1633
  %v1635 = vpop.f32.mrb[0].mxu0
  %v1636 = vpop.f32.mrb[0].mxu0
  %v1637 = vadd.f32 %v284, %v1636
  %v1638 = vpop.f32.mrb[0].mxu0
  %1639 = vmatprep.mubr.bf16.mxu0 %v929
  %1640 = vmatmul.mubr.bf16.gmra.mrb[0].mxu0 %v928
  %v1641 = vpop.f32.mrb[0].mxu0
  %v1642 = vadd.f32 %v284, %v1641
  %v1643 = vpop.f32.mrb[0].mxu0
  %v1644 = vpop.f32.mrb[0].mxu0
  %v1645 = vadd.f32 %v284, %v1644
  %v1646 = vpop.f32.mrb[0].mxu0
  %1647 = vmatprep.mubr.bf16.mxu0 %v934
  %1648 = vmatmul.mubr.bf16.gmra.mrb[0].mxu0 %v933
  %v1649 = vpop.f32.mrb[0].mxu0
  %v1650 = vadd.f32 %v284, %v1649
  %v1651 = vpop.f32.mrb[0].mxu0
  %v1652 = vpop.f32.mrb[0].mxu0
  %v1653 = vadd.f32 %v284, %v1652
  %v1654 = vpop.f32.mrb[0].mxu0
  %1655 = vmatprep.mubr.bf16.mxu0 %v939
  %1656 = vmatmul.mubr.bf16.gmra.mrb[0].mxu0 %v938
  %v1657 = vpop.f32.mrb[0].mxu0
  %v1658 = vadd.f32 %v284, %v1657
  %v1659 = vpop.f32.mrb[0].mxu0
  %v1660 = vpop.f32.mrb[0].mxu0
  %v1661 = vadd.f32 %v284, %v1660
  %v1662 = vpop.f32.mrb[0].mxu0
  %1663 = vmatprep.mubr.bf16.mxu0 %v944
  %1664 = vmatmul.mubr.bf16.gmra.mrb[0].mxu0 %v943
  %v1665 = vpop.f32.mrb[0].mxu0
  %v1666 = vadd.f32 %v284, %v1665
  %v1667 = vpop.f32.mrb[0].mxu0
  %v1668 = vpop.f32.mrb[0].mxu0
  %v1669 = vadd.f32 %v284, %v1668
  %v1670 = vpop.f32.mrb[0].mxu0
  %1671 = vmatprep.mubr.bf16.mxu0 %v949
  %1672 = vmatmul.mubr.bf16.gmra.mrb[0].mxu0 %v948
  %v1673 = vpop.f32.mrb[0].mxu0
  %v1674 = vadd.f32 %v284, %v1673
  %v1675 = vpop.f32.mrb[0].mxu0
  %v1676 = vpop.f32.mrb[0].mxu0
  %v1677 = vadd.f32 %v284, %v1676
  %v1678 = vpop.f32.mrb[0].mxu0
  %1679 = vmatprep.mubr.bf16.mxu0 %v954
  %1680 = vmatmul.mubr.bf16.gmra.mrb[0].mxu0 %v953
  %v1681 = vpop.f32.mrb[0].mxu0
  %v1682 = vadd.f32 %v284, %v1681
  %v1683 = vpop.f32.mrb[0].mxu0
  %v1684 = vpop.f32.mrb[0].mxu0
  %v1685 = vadd.f32 %v284, %v1684
  %v1686 = vpop.f32.mrb[0].mxu0
  %1687 = vdwg.mxu0
  %1688 = vmatprep.subr.bf16.mxu0 0
  %1689 = vmatpush1.bf16.msra.mxu0 %v1246
  %1690 = vmatprep.subr.bf16.mxu0 0
  %1691 = vmatpush1.bf16.msra.mxu0 %v1247
  %1692 = vmatprep.subr.bf16.mxu0 0
  %1693 = vmatpush1.bf16.msra.mxu0 %v1248
  %1694 = vmatprep.subr.bf16.mxu0 0
  %1695 = vmatpush1.bf16.msra.mxu0 %v1249
  %1696 = vmatprep.subr.bf16.mxu0 0
  %1697 = vmatpush1.bf16.msra.mxu0 %v1250
  %1698 = vmatprep.subr.bf16.mxu0 0
  %1699 = vmatpush1.bf16.msra.mxu0 %v1251
  %1700 = vmatprep.subr.bf16.mxu0 0
  %1701 = vmatpush1.bf16.msra.mxu0 %v1252
  %1702 = vmatprep.subr.bf16.mxu0 0
  %1703 = vmatpush1.bf16.msra.mxu0 %v1253
  %1704 = vmatprep.subr.bf16.mxu0 0
  %1705 = vmatpush1.bf16.msra.mxu0 %v1254
  %1706 = vmatprep.subr.bf16.mxu0 0
  %1707 = vmatpush1.bf16.msra.mxu0 %v1255
  %1708 = vmatprep.subr.bf16.mxu0 0
  %1709 = vmatpush1.bf16.msra.mxu0 %v1256
  %1710 = vmatprep.subr.bf16.mxu0 0
  %1711 = vmatpush1.bf16.msra.mxu0 %v1257
  %1712 = vmatprep.subr.bf16.mxu0 0
  %1713 = vmatpush1.bf16.msra.mxu0 %v1258
  %1714 = vmatprep.subr.bf16.mxu0 0
  %1715 = vmatpush1.bf16.msra.mxu0 %v1259
  %1716 = vmatprep.subr.bf16.mxu0 0
  %1717 = vmatpush1.bf16.msra.mxu0 %v1260
  %1718 = vmatprep.subr.bf16.mxu0 0
  %1719 = vmatpush1.bf16.msra.mxu0 %v1261
  %1720 = vmatprep.mubr.bf16.mxu0 %v801
  %1721 = vmatmul.mubr.bf16.gmra.mrb[0].mxu0 %v800
  %v1722 = vpop.f32.mrb[0].mxu0
  %v1723 = vadd.f32 %v1434, %v1722
  %v1724 = vpop.f32.mrb[0].mxu0
  %v1725 = vpop.f32.mrb[0].mxu0
  %v1726 = vadd.f32 %v1437, %v1725
  %v1727 = vpop.f32.mrb[0].mxu0
  %1728 = vmatprep.mubr.bf16.mxu0 %v806
  %1729 = vmatmul.mubr.bf16.gmra.mrb[0].mxu0 %v805
  %v1730 = vpop.f32.mrb[0].mxu0
  %v1731 = vadd.f32 %v1442, %v1730
  %v1732 = vpop.f32.mrb[0].mxu0
  %v1733 = vpop.f32.mrb[0].mxu0
  %v1734 = vadd.f32 %v1445, %v1733
  %v1735 = vpop.f32.mrb[0].mxu0
  %1736 = vmatprep.mubr.bf16.mxu0 %v811
  %1737 = vmatmul.mubr.bf16.gmra.mrb[0].mxu0 %v810
  %v1738 = vpop.f32.mrb[0].mxu0
  %v1739 = vadd.f32 %v1450, %v1738
  %v1740 = vpop.f32.mrb[0].mxu0
  %v1741 = vpop.f32.mrb[0].mxu0
  %v1742 = vadd.f32 %v1453, %v1741
  %v1743 = vpop.f32.mrb[0].mxu0
  %1744 = vmatprep.mubr.bf16.mxu0 %v816
  %1745 = vmatmul.mubr.bf16.gmra.mrb[0].mxu0 %v815
  %v1746 = vpop.f32.mrb[0].mxu0
  %v1747 = vadd.f32 %v1458, %v1746
  %v1748 = vpop.f32.mrb[0].mxu0
  %v1749 = vpop.f32.mrb[0].mxu0
  %v1750 = vadd.f32 %v1461, %v1749
  %v1751 = vpop.f32.mrb[0].mxu0
  %1752 = vmatprep.mubr.bf16.mxu0 %v821
  %1753 = vmatmul.mubr.bf16.gmra.mrb[0].mxu0 %v820
  %v1754 = vpop.f32.mrb[0].mxu0
  %v1755 = vadd.f32 %v1466, %v1754
  %v1756 = vpop.f32.mrb[0].mxu0
  %v1757 = vpop.f32.mrb[0].mxu0
  %v1758 = vadd.f32 %v1469, %v1757
  %v1759 = vpop.f32.mrb[0].mxu0
  %1760 = vmatprep.mubr.bf16.mxu0 %v826
  %1761 = vmatmul.mubr.bf16.gmra.mrb[0].mxu0 %v825
  %v1762 = vpop.f32.mrb[0].mxu0
  %v1763 = vadd.f32 %v1474, %v1762
  %v1764 = vpop.f32.mrb[0].mxu0
  %v1765 = vpop.f32.mrb[0].mxu0
  %v1766 = vadd.f32 %v1477, %v1765
  %v1767 = vpop.f32.mrb[0].mxu0
  %1768 = vmatprep.mubr.bf16.mxu0 %v831
  %1769 = vmatmul.mubr.bf16.gmra.mrb[0].mxu0 %v830
  %v1770 = vpop.f32.mrb[0].mxu0
  %v1771 = vadd.f32 %v1482, %v1770
  %v1772 = vpop.f32.mrb[0].mxu0
  %v1773 = vpop.f32.mrb[0].mxu0
  %v1774 = vadd.f32 %v1485, %v1773
  %v1775 = vpop.f32.mrb[0].mxu0
  %1776 = vmatprep.mubr.bf16.mxu0 %v836
  %1777 = vmatmul.mubr.bf16.gmra.mrb[0].mxu0 %v835
  %v1778 = vpop.f32.mrb[0].mxu0
  %v1779 = vadd.f32 %v1490, %v1778
  %v1780 = vpop.f32.mrb[0].mxu0
  %v1781 = vpop.f32.mrb[0].mxu0
  %v1782 = vadd.f32 %v1493, %v1781
  %v1783 = vpop.f32.mrb[0].mxu0
  %1784 = vmatprep.mubr.bf16.mxu0 %v841
  %1785 = vmatmul.mubr.bf16.gmra.mrb[0].mxu0 %v840
  %v1786 = vpop.f32.mrb[0].mxu0
  %v1787 = vadd.f32 %v1498, %v1786
  %v1788 = vpop.f32.mrb[0].mxu0
  %v1789 = vpop.f32.mrb[0].mxu0
  %v1790 = vadd.f32 %v1501, %v1789
  %v1791 = vpop.f32.mrb[0].mxu0
  %1792 = vmatprep.mubr.bf16.mxu0 %v846
  %1793 = vmatmul.mubr.bf16.gmra.mrb[0].mxu0 %v845
  %v1794 = vpop.f32.mrb[0].mxu0
  %v1795 = vadd.f32 %v1506, %v1794
  %v1796 = vpop.f32.mrb[0].mxu0
  %v1797 = vpop.f32.mrb[0].mxu0
  %v1798 = vadd.f32 %v1509, %v1797
  %v1799 = vpop.f32.mrb[0].mxu0
  %1800 = vmatprep.mubr.bf16.mxu0 %v851
  %1801 = vmatmul.mubr.bf16.gmra.mrb[0].mxu0 %v850
  %v1802 = vpop.f32.mrb[0].mxu0
  %v1803 = vadd.f32 %v1514, %v1802
  %v1804 = vpop.f32.mrb[0].mxu0
  %v1805 = vpop.f32.mrb[0].mxu0
  %v1806 = vadd.f32 %v1517, %v1805
  %v1807 = vpop.f32.mrb[0].mxu0
  %1808 = vmatprep.mubr.bf16.mxu0 %v856
  %1809 = vmatmul.mubr.bf16.gmra.mrb[0].mxu0 %v855
  %v1810 = vpop.f32.mrb[0].mxu0
  %v1811 = vadd.f32 %v1522, %v1810
  %v1812 = vpop.f32.mrb[0].mxu0
  %v1813 = vpop.f32.mrb[0].mxu0
  %v1814 = vadd.f32 %v1525, %v1813
  %v1815 = vpop.f32.mrb[0].mxu0
  %1816 = vmatprep.mubr.bf16.mxu0 %v861
  %1817 = vmatmul.mubr.bf16.gmra.mrb[0].mxu0 %v860
  %v1818 = vpop.f32.mrb[0].mxu0
  %v1819 = vadd.f32 %v1530, %v1818
  %v1820 = vpop.f32.mrb[0].mxu0
  %v1821 = vpop.f32.mrb[0].mxu0
  %v1822 = vadd.f32 %v1533, %v1821
  %v1823 = vpop.f32.mrb[0].mxu0
  %1824 = vmatprep.mubr.bf16.mxu0 %v866
  %1825 = vmatmul.mubr.bf16.gmra.mrb[0].mxu0 %v865
  %v1826 = vpop.f32.mrb[0].mxu0
  %v1827 = vadd.f32 %v1538, %v1826
  %v1828 = vpop.f32.mrb[0].mxu0
  %v1829 = vpop.f32.mrb[0].mxu0
  %v1830 = vadd.f32 %v1541, %v1829
  %v1831 = vpop.f32.mrb[0].mxu0
  %1832 = vmatprep.mubr.bf16.mxu0 %v871
  %1833 = vmatmul.mubr.bf16.gmra.mrb[0].mxu0 %v870
  %v1834 = vpop.f32.mrb[0].mxu0
  %v1835 = vadd.f32 %v1546, %v1834
  %v1836 = vpop.f32.mrb[0].mxu0
  %v1837 = vpop.f32.mrb[0].mxu0
  %v1838 = vadd.f32 %v1549, %v1837
  %v1839 = vpop.f32.mrb[0].mxu0
  %1840 = vmatprep.mubr.bf16.mxu0 %v876
  %1841 = vmatmul.mubr.bf16.gmra.mrb[0].mxu0 %v875
  %v1842 = vpop.f32.mrb[0].mxu0
  %v1843 = vadd.f32 %v1554, %v1842
  %v1844 = vpop.f32.mrb[0].mxu0
  %v1845 = vpop.f32.mrb[0].mxu0
  %v1846 = vadd.f32 %v1557, %v1845
  %v1847 = vpop.f32.mrb[0].mxu0
  %1848 = vmatprep.mubr.bf16.mxu0 %v881
  %1849 = vmatmul.mubr.bf16.gmra.mrb[0].mxu0 %v880
  %v1850 = vpop.f32.mrb[0].mxu0
  %v1851 = vadd.f32 %v1562, %v1850
  %v1852 = vpop.f32.mrb[0].mxu0
  %v1853 = vpop.f32.mrb[0].mxu0
  %v1854 = vadd.f32 %v1565, %v1853
  %v1855 = vpop.f32.mrb[0].mxu0
  %1856 = vmatprep.mubr.bf16.mxu0 %v886
  %1857 = vmatmul.mubr.bf16.gmra.mrb[0].mxu0 %v885
  %v1858 = vpop.f32.mrb[0].mxu0
  %v1859 = vadd.f32 %v1570, %v1858
  %v1860 = vpop.f32.mrb[0].mxu0
  %v1861 = vpop.f32.mrb[0].mxu0
  %v1862 = vadd.f32 %v1573, %v1861
  %v1863 = vpop.f32.mrb[0].mxu0
  %1864 = vmatprep.mubr.bf16.mxu0 %v891
  %1865 = vmatmul.mubr.bf16.gmra.mrb[0].mxu0 %v890
  %v1866 = vpop.f32.mrb[0].mxu0
  %v1867 = vadd.f32 %v1578, %v1866
  %v1868 = vpop.f32.mrb[0].mxu0
  %v1869 = vpop.f32.mrb[0].mxu0
  %v1870 = vadd.f32 %v1581, %v1869
  %v1871 = vpop.f32.mrb[0].mxu0
  %1872 = vmatprep.mubr.bf16.mxu0 %v896
  %1873 = vmatmul.mubr.bf16.gmra.mrb[0].mxu0 %v895
  %v1874 = vpop.f32.mrb[0].mxu0
  %v1875 = vadd.f32 %v1586, %v1874
  %v1876 = vpop.f32.mrb[0].mxu0
  %v1877 = vpop.f32.mrb[0].mxu0
  %v1878 = vadd.f32 %v1589, %v1877
  %v1879 = vpop.f32.mrb[0].mxu0
  %1880 = vmatprep.mubr.bf16.mxu0 %v901
  %1881 = vmatmul.mubr.bf16.gmra.mrb[0].mxu0 %v900
  %v1882 = vpop.f32.mrb[0].mxu0
  %v1883 = vadd.f32 %v1594, %v1882
  %v1884 = vpop.f32.mrb[0].mxu0
  %v1885 = vpop.f32.mrb[0].mxu0
  %v1886 = vadd.f32 %v1597, %v1885
  %v1887 = vpop.f32.mrb[0].mxu0
  %1888 = vmatprep.mubr.bf16.mxu0 %v906
  %1889 = vmatmul.mubr.bf16.gmra.mrb[0].mxu0 %v905
  %v1890 = vpop.f32.mrb[0].mxu0
  %v1891 = vadd.f32 %v1602, %v1890
  %v1892 = vpop.f32.mrb[0].mxu0
  %v1893 = vpop.f32.mrb[0].mxu0
  %v1894 = vadd.f32 %v1605, %v1893
  %v1895 = vpop.f32.mrb[0].mxu0
  %1896 = vmatprep.mubr.bf16.mxu0 %v911
  %1897 = vmatmul.mubr.bf16.gmra.mrb[0].mxu0 %v910
  %v1898 = vpop.f32.mrb[0].mxu0
  %v1899 = vadd.f32 %v1610, %v1898
  %v1900 = vpop.f32.mrb[0].mxu0
  %v1901 = vpop.f32.mrb[0].mxu0
  %v1902 = vadd.f32 %v1613, %v1901
  %v1903 = vpop.f32.mrb[0].mxu0
  %1904 = vmatprep.mubr.bf16.mxu0 %v916
  %1905 = vmatmul.mubr.bf16.gmra.mrb[0].mxu0 %v915
  %v1906 = vpop.f32.mrb[0].mxu0
  %v1907 = vadd.f32 %v1618, %v1906
  %v1908 = vpop.f32.mrb[0].mxu0
  %v1909 = vpop.f32.mrb[0].mxu0
  %v1910 = vadd.f32 %v1621, %v1909
  %v1911 = vpop.f32.mrb[0].mxu0
  %1912 = vmatprep.mubr.bf16.mxu0 %v921
  %1913 = vmatmul.mubr.bf16.gmra.mrb[0].mxu0 %v920
  %v1914 = vpop.f32.mrb[0].mxu0
  %v1915 = vadd.f32 %v1626, %v1914
  %v1916 = vpop.f32.mrb[0].mxu0
  %v1917 = vpop.f32.mrb[0].mxu0
  %v1918 = vadd.f32 %v1629, %v1917
  %v1919 = vpop.f32.mrb[0].mxu0
  %1920 = vmatprep.mubr.bf16.mxu0 %v926
  %1921 = vmatmul.mubr.bf16.gmra.mrb[0].mxu0 %v925
  %v1922 = vpop.f32.mrb[0].mxu0
  %v1923 = vadd.f32 %v1634, %v1922
  %v1924 = vpop.f32.mrb[0].mxu0
  %v1925 = vpop.f32.mrb[0].mxu0
  %v1926 = vadd.f32 %v1637, %v1925
  %v1927 = vpop.f32.mrb[0].mxu0
  %1928 = vmatprep.mubr.bf16.mxu0 %v931
  %1929 = vmatmul.mubr.bf16.gmra.mrb[0].mxu0 %v930
  %v1930 = vpop.f32.mrb[0].mxu0
  %v1931 = vadd.f32 %v1642, %v1930
  %v1932 = vpop.f32.mrb[0].mxu0
  %v1933 = vpop.f32.mrb[0].mxu0
  %v1934 = vadd.f32 %v1645, %v1933
  %v1935 = vpop.f32.mrb[0].mxu0
  %1936 = vmatprep.mubr.bf16.mxu0 %v936
  %1937 = vmatmul.mubr.bf16.gmra.mrb[0].mxu0 %v935
  %v1938 = vpop.f32.mrb[0].mxu0
  %v1939 = vadd.f32 %v1650, %v1938
  %v1940 = vpop.f32.mrb[0].mxu0
  %v1941 = vpop.f32.mrb[0].mxu0
  %v1942 = vadd.f32 %v1653, %v1941
  %v1943 = vpop.f32.mrb[0].mxu0
  %1944 = vmatprep.mubr.bf16.mxu0 %v941
  %1945 = vmatmul.mubr.bf16.gmra.mrb[0].mxu0 %v940
  %v1946 = vpop.f32.mrb[0].mxu0
  %v1947 = vadd.f32 %v1658, %v1946
  %v1948 = vpop.f32.mrb[0].mxu0
  %v1949 = vpop.f32.mrb[0].mxu0
  %v1950 = vadd.f32 %v1661, %v1949
  %v1951 = vpop.f32.mrb[0].mxu0
  %1952 = vmatprep.mubr.bf16.mxu0 %v946
  %1953 = vmatmul.mubr.bf16.gmra.mrb[0].mxu0 %v945
  %v1954 = vpop.f32.mrb[0].mxu0
  %v1955 = vadd.f32 %v1666, %v1954
  %v1956 = vpop.f32.mrb[0].mxu0
  %v1957 = vpop.f32.mrb[0].mxu0
  %v1958 = vadd.f32 %v1669, %v1957
  %v1959 = vpop.f32.mrb[0].mxu0
  %1960 = vmatprep.mubr.bf16.mxu0 %v951
  %1961 = vmatmul.mubr.bf16.gmra.mrb[0].mxu0 %v950
  %v1962 = vpop.f32.mrb[0].mxu0
  %v1963 = vadd.f32 %v1674, %v1962
  %v1964 = vpop.f32.mrb[0].mxu0
  %v1965 = vpop.f32.mrb[0].mxu0
  %v1966 = vadd.f32 %v1677, %v1965
  %v1967 = vpop.f32.mrb[0].mxu0
  %1968 = vmatprep.mubr.bf16.mxu0 %v956
  %1969 = vmatmul.mubr.bf16.gmra.mrb[0].mxu0 %v955
  %v1970 = vpop.f32.mrb[0].mxu0
  %v1971 = vadd.f32 %v1682, %v1970
  %v1972 = vpop.f32.mrb[0].mxu0
  %v1973 = vpop.f32.mrb[0].mxu0
  %v1974 = vadd.f32 %v1685, %v1973
  %v1975 = vpop.f32.mrb[0].mxu0
  %1976 = vdwg.mxu0
  %1977 = vmatprep.subr.bf16.mxu0 0
  %1978 = vmatpush1.bf16.msra.mxu0 %v1262
  %1979 = vmatprep.subr.bf16.mxu0 0
  %1980 = vmatpush1.bf16.msra.mxu0 %v1263
  %1981 = vmatprep.subr.bf16.mxu0 0
  %1982 = vmatpush1.bf16.msra.mxu0 %v1264
  %1983 = vmatprep.subr.bf16.mxu0 0
  %1984 = vmatpush1.bf16.msra.mxu0 %v1265
  %1985 = vmatprep.subr.bf16.mxu0 0
  %1986 = vmatpush1.bf16.msra.mxu0 0
  %1987 = vmatprep.subr.bf16.mxu0 0
  %1988 = vmatpush1.bf16.msra.mxu0 0
  %1989 = vmatprep.subr.bf16.mxu0 0
  %1990 = vmatpush1.bf16.msra.mxu0 0
  %1991 = vmatprep.subr.bf16.mxu0 0
  %1992 = vmatpush1.bf16.msra.mxu0 0
  %1993 = vmatprep.subr.bf16.mxu0 0
  %1994 = vmatpush1.bf16.msra.mxu0 0
  %1995 = vmatprep.subr.bf16.mxu0 0
  %1996 = vmatpush1.bf16.msra.mxu0 0
  %1997 = vmatprep.subr.bf16.mxu0 0
  %1998 = vmatpush1.bf16.msra.mxu0 0
  %1999 = vmatprep.subr.bf16.mxu0 0
  %2000 = vmatpush1.bf16.msra.mxu0 0
  %2001 = vmatprep.subr.bf16.mxu0 0
  %2002 = vmatpush1.bf16.msra.mxu0 0
  %2003 = vmatprep.subr.bf16.mxu0 0
  %2004 = vmatpush1.bf16.msra.mxu0 0
  %2005 = vmatprep.subr.bf16.mxu0 0
  %2006 = vmatpush1.bf16.msra.mxu0 0
  %2007 = vmatprep.subr.bf16.mxu0 0
  %2008 = vmatpush1.bf16.msra.mxu0 0
  %2009 = vmatprep.mubr.bf16.mxu0 0
  %2010 = vmatmul.mubr.bf16.gmra.mrb[0].mxu0 %v1304
  %v2011 = vpop.f32.mrb[0].mxu0
  %v2012 = vadd.f32 %v1723, %v2011
  %v2013 = vpop.f32.mrb[0].mxu0
  %v2014 = vpop.f32.mrb[0].mxu0
  %v2015 = vadd.f32 %v1726, %v2014
  %v2016 = vpop.f32.mrb[0].mxu0
  %2017 = vmatprep.mubr.bf16.mxu0 0
  %2018 = vmatmul.mubr.bf16.gmra.mrb[0].mxu0 %v1307
  %v2019 = vpop.f32.mrb[0].mxu0
  %v2020 = vadd.f32 %v1731, %v2019
  %v2021 = vpop.f32.mrb[0].mxu0
  %v2022 = vpop.f32.mrb[0].mxu0
  %v2023 = vadd.f32 %v1734, %v2022
  %v2024 = vpop.f32.mrb[0].mxu0
  %2025 = vmatprep.mubr.bf16.mxu0 0
  %2026 = vmatmul.mubr.bf16.gmra.mrb[0].mxu0 %v1310
  %v2027 = vpop.f32.mrb[0].mxu0
  %v2028 = vadd.f32 %v1739, %v2027
  %v2029 = vpop.f32.mrb[0].mxu0
  %v2030 = vpop.f32.mrb[0].mxu0
  %v2031 = vadd.f32 %v1742, %v2030
  %v2032 = vpop.f32.mrb[0].mxu0
  %2033 = vmatprep.mubr.bf16.mxu0 0
  %2034 = vmatmul.mubr.bf16.gmra.mrb[0].mxu0 %v1313
  %v2035 = vpop.f32.mrb[0].mxu0
  %v2036 = vadd.f32 %v1747, %v2035
  %v2037 = vpop.f32.mrb[0].mxu0
  %v2038 = vpop.f32.mrb[0].mxu0
  %v2039 = vadd.f32 %v1750, %v2038
  %v2040 = vpop.f32.mrb[0].mxu0
  %2041 = vmatprep.mubr.bf16.mxu0 0
  %2042 = vmatmul.mubr.bf16.gmra.mrb[0].mxu0 %v1316
  %v2043 = vpop.f32.mrb[0].mxu0
  %v2044 = vadd.f32 %v1755, %v2043
  %v2045 = vpop.f32.mrb[0].mxu0
  %v2046 = vpop.f32.mrb[0].mxu0
  %v2047 = vadd.f32 %v1758, %v2046
  %v2048 = vpop.f32.mrb[0].mxu0
  %2049 = vmatprep.mubr.bf16.mxu0 0
  %2050 = vmatmul.mubr.bf16.gmra.mrb[0].mxu0 %v1319
  %v2051 = vpop.f32.mrb[0].mxu0
  %v2052 = vadd.f32 %v1763, %v2051
  %v2053 = vpop.f32.mrb[0].mxu0
  %v2054 = vpop.f32.mrb[0].mxu0
  %v2055 = vadd.f32 %v1766, %v2054
  %v2056 = vpop.f32.mrb[0].mxu0
  %2057 = vmatprep.mubr.bf16.mxu0 0
  %2058 = vmatmul.mubr.bf16.gmra.mrb[0].mxu0 %v1322
  %v2059 = vpop.f32.mrb[0].mxu0
  %v2060 = vadd.f32 %v1771, %v2059
  %v2061 = vpop.f32.mrb[0].mxu0
  %v2062 = vpop.f32.mrb[0].mxu0
  %v2063 = vadd.f32 %v1774, %v2062
  %v2064 = vpop.f32.mrb[0].mxu0
  %2065 = vmatprep.mubr.bf16.mxu0 0
  %2066 = vmatmul.mubr.bf16.gmra.mrb[0].mxu0 %v1325
  %v2067 = vpop.f32.mrb[0].mxu0
  %v2068 = vadd.f32 %v1779, %v2067
  %v2069 = vpop.f32.mrb[0].mxu0
  %v2070 = vpop.f32.mrb[0].mxu0
  %v2071 = vadd.f32 %v1782, %v2070
  %v2072 = vpop.f32.mrb[0].mxu0
  %2073 = vmatprep.mubr.bf16.mxu0 0
  %2074 = vmatmul.mubr.bf16.gmra.mrb[0].mxu0 %v1328
  %v2075 = vpop.f32.mrb[0].mxu0
  %v2076 = vadd.f32 %v1787, %v2075
  %v2077 = vpop.f32.mrb[0].mxu0
  %v2078 = vpop.f32.mrb[0].mxu0
  %v2079 = vadd.f32 %v1790, %v2078
  %v2080 = vpop.f32.mrb[0].mxu0
  %2081 = vmatprep.mubr.bf16.mxu0 0
  %2082 = vmatmul.mubr.bf16.gmra.mrb[0].mxu0 %v1331
  %v2083 = vpop.f32.mrb[0].mxu0
  %v2084 = vadd.f32 %v1795, %v2083
  %v2085 = vpop.f32.mrb[0].mxu0
  %v2086 = vpop.f32.mrb[0].mxu0
  %v2087 = vadd.f32 %v1798, %v2086
  %v2088 = vpop.f32.mrb[0].mxu0
  %2089 = vmatprep.mubr.bf16.mxu0 0
  %2090 = vmatmul.mubr.bf16.gmra.mrb[0].mxu0 %v1334
  %v2091 = vpop.f32.mrb[0].mxu0
  %v2092 = vadd.f32 %v1803, %v2091
  %v2093 = vpop.f32.mrb[0].mxu0
  %v2094 = vpop.f32.mrb[0].mxu0
  %v2095 = vadd.f32 %v1806, %v2094
  %v2096 = vpop.f32.mrb[0].mxu0
  %2097 = vmatprep.mubr.bf16.mxu0 0
  %2098 = vmatmul.mubr.bf16.gmra.mrb[0].mxu0 %v1337
  %v2099 = vpop.f32.mrb[0].mxu0
  %v2100 = vadd.f32 %v1811, %v2099
  %v2101 = vpop.f32.mrb[0].mxu0
  %v2102 = vpop.f32.mrb[0].mxu0
  %v2103 = vadd.f32 %v1814, %v2102
  %v2104 = vpop.f32.mrb[0].mxu0
  %2105 = vmatprep.mubr.bf16.mxu0 0
  %2106 = vmatmul.mubr.bf16.gmra.mrb[0].mxu0 %v1340
  %v2107 = vpop.f32.mrb[0].mxu0
  %v2108 = vadd.f32 %v1819, %v2107
  %v2109 = vpop.f32.mrb[0].mxu0
  %v2110 = vpop.f32.mrb[0].mxu0
  %v2111 = vadd.f32 %v1822, %v2110
  %v2112 = vpop.f32.mrb[0].mxu0
  %2113 = vmatprep.mubr.bf16.mxu0 0
  %2114 = vmatmul.mubr.bf16.gmra.mrb[0].mxu0 %v1343
  %v2115 = vpop.f32.mrb[0].mxu0
  %v2116 = vadd.f32 %v1827, %v2115
  %v2117 = vpop.f32.mrb[0].mxu0
  %v2118 = vpop.f32.mrb[0].mxu0
  %v2119 = vadd.f32 %v1830, %v2118
  %v2120 = vpop.f32.mrb[0].mxu0
  %2121 = vmatprep.mubr.bf16.mxu0 0
  %2122 = vmatmul.mubr.bf16.gmra.mrb[0].mxu0 %v1346
  %v2123 = vpop.f32.mrb[0].mxu0
  %v2124 = vadd.f32 %v1835, %v2123
  %v2125 = vpop.f32.mrb[0].mxu0
  %v2126 = vpop.f32.mrb[0].mxu0
  %v2127 = vadd.f32 %v1838, %v2126
  %v2128 = vpop.f32.mrb[0].mxu0
  %2129 = vmatprep.mubr.bf16.mxu0 0
  %2130 = vmatmul.mubr.bf16.gmra.mrb[0].mxu0 %v1349
  %v2131 = vpop.f32.mrb[0].mxu0
  %v2132 = vadd.f32 %v1843, %v2131
  %v2133 = vpop.f32.mrb[0].mxu0
  %v2134 = vpop.f32.mrb[0].mxu0
  %v2135 = vadd.f32 %v1846, %v2134
  %v2136 = vpop.f32.mrb[0].mxu0
  %2137 = vmatprep.mubr.bf16.mxu0 0
  %2138 = vmatmul.mubr.bf16.gmra.mrb[0].mxu0 %v1352
  %v2139 = vpop.f32.mrb[0].mxu0
  %v2140 = vadd.f32 %v1851, %v2139
  %v2141 = vpop.f32.mrb[0].mxu0
  %v2142 = vpop.f32.mrb[0].mxu0
  %v2143 = vadd.f32 %v1854, %v2142
  %v2144 = vpop.f32.mrb[0].mxu0
  %2145 = vmatprep.mubr.bf16.mxu0 0
  %2146 = vmatmul.mubr.bf16.gmra.mrb[0].mxu0 %v1355
  %v2147 = vpop.f32.mrb[0].mxu0
  %v2148 = vadd.f32 %v1859, %v2147
  %v2149 = vpop.f32.mrb[0].mxu0
  %v2150 = vpop.f32.mrb[0].mxu0
  %v2151 = vadd.f32 %v1862, %v2150
  %v2152 = vpop.f32.mrb[0].mxu0
  %2153 = vmatprep.mubr.bf16.mxu0 0
  %2154 = vmatmul.mubr.bf16.gmra.mrb[0].mxu0 %v1358
  %v2155 = vpop.f32.mrb[0].mxu0
  %v2156 = vadd.f32 %v1867, %v2155
  %v2157 = vpop.f32.mrb[0].mxu0
  %v2158 = vpop.f32.mrb[0].mxu0
  %v2159 = vadd.f32 %v1870, %v2158
  %v2160 = vpop.f32.mrb[0].mxu0
  %2161 = vmatprep.mubr.bf16.mxu0 0
  %2162 = vmatmul.mubr.bf16.gmra.mrb[0].mxu0 %v1361
  %v2163 = vpop.f32.mrb[0].mxu0
  %v2164 = vadd.f32 %v1875, %v2163
  %v2165 = vpop.f32.mrb[0].mxu0
  %v2166 = vpop.f32.mrb[0].mxu0
  %v2167 = vadd.f32 %v1878, %v2166
  %v2168 = vpop.f32.mrb[0].mxu0
  %2169 = vmatprep.mubr.bf16.mxu0 0
  %2170 = vmatmul.mubr.bf16.gmra.mrb[0].mxu0 %v1364
  %v2171 = vpop.f32.mrb[0].mxu0
  %v2172 = vadd.f32 %v1883, %v2171
  %v2173 = vpop.f32.mrb[0].mxu0
  %v2174 = vpop.f32.mrb[0].mxu0
  %v2175 = vadd.f32 %v1886, %v2174
  %v2176 = vpop.f32.mrb[0].mxu0
  %2177 = vmatprep.mubr.bf16.mxu0 0
  %2178 = vmatmul.mubr.bf16.gmra.mrb[0].mxu0 %v1367
  %v2179 = vpop.f32.mrb[0].mxu0
  %v2180 = vadd.f32 %v1891, %v2179
  %v2181 = vpop.f32.mrb[0].mxu0
  %v2182 = vpop.f32.mrb[0].mxu0
  %v2183 = vadd.f32 %v1894, %v2182
  %v2184 = vpop.f32.mrb[0].mxu0
  %2185 = vmatprep.mubr.bf16.mxu0 0
  %2186 = vmatmul.mubr.bf16.gmra.mrb[0].mxu0 %v1370
  %v2187 = vpop.f32.mrb[0].mxu0
  %v2188 = vadd.f32 %v1899, %v2187
  %v2189 = vpop.f32.mrb[0].mxu0
  %v2190 = vpop.f32.mrb[0].mxu0
  %v2191 = vadd.f32 %v1902, %v2190
  %v2192 = vpop.f32.mrb[0].mxu0
  %2193 = vmatprep.mubr.bf16.mxu0 0
  %2194 = vmatmul.mubr.bf16.gmra.mrb[0].mxu0 %v1373
  %v2195 = vpop.f32.mrb[0].mxu0
  %v2196 = vadd.f32 %v1907, %v2195
  %v2197 = vpop.f32.mrb[0].mxu0
  %v2198 = vpop.f32.mrb[0].mxu0
  %v2199 = vadd.f32 %v1910, %v2198
  %v2200 = vpop.f32.mrb[0].mxu0
  %2201 = vmatprep.mubr.bf16.mxu0 0
  %2202 = vmatmul.mubr.bf16.gmra.mrb[0].mxu0 %v1376
  %v2203 = vpop.f32.mrb[0].mxu0
  %v2204 = vadd.f32 %v1915, %v2203
  %v2205 = vpop.f32.mrb[0].mxu0
  %v2206 = vpop.f32.mrb[0].mxu0
  %v2207 = vadd.f32 %v1918, %v2206
  %v2208 = vpop.f32.mrb[0].mxu0
  %2209 = vmatprep.mubr.bf16.mxu0 0
  %2210 = vmatmul.mubr.bf16.gmra.mrb[0].mxu0 %v1379
  %v2211 = vpop.f32.mrb[0].mxu0
  %v2212 = vadd.f32 %v1923, %v2211
  %v2213 = vpop.f32.mrb[0].mxu0
  %v2214 = vpop.f32.mrb[0].mxu0
  %v2215 = vadd.f32 %v1926, %v2214
  %v2216 = vpop.f32.mrb[0].mxu0
  %2217 = vmatprep.mubr.bf16.mxu0 0
  %2218 = vmatmul.mubr.bf16.gmra.mrb[0].mxu0 %v1382
  %v2219 = vpop.f32.mrb[0].mxu0
  %v2220 = vadd.f32 %v1931, %v2219
  %v2221 = vpop.f32.mrb[0].mxu0
  %v2222 = vpop.f32.mrb[0].mxu0
  %v2223 = vadd.f32 %v1934, %v2222
  %v2224 = vpop.f32.mrb[0].mxu0
  %2225 = vmatprep.mubr.bf16.mxu0 0
  %2226 = vmatmul.mubr.bf16.gmra.mrb[0].mxu0 %v1385
  %v2227 = vpop.f32.mrb[0].mxu0
  %v2228 = vadd.f32 %v1939, %v2227
  %v2229 = vpop.f32.mrb[0].mxu0
  %v2230 = vpop.f32.mrb[0].mxu0
  %v2231 = vadd.f32 %v1942, %v2230
  %v2232 = vpop.f32.mrb[0].mxu0
  %2233 = vmatprep.mubr.bf16.mxu0 0
  %2234 = vmatmul.mubr.bf16.gmra.mrb[0].mxu0 %v1388
  %v2235 = vpop.f32.mrb[0].mxu0
  %v2236 = vadd.f32 %v1947, %v2235
  %v2237 = vpop.f32.mrb[0].mxu0
  %v2238 = vpop.f32.mrb[0].mxu0
  %v2239 = vadd.f32 %v1950, %v2238
  %v2240 = vpop.f32.mrb[0].mxu0
  %2241 = vmatprep.mubr.bf16.mxu0 0
  %2242 = vmatmul.mubr.bf16.gmra.mrb[0].mxu0 %v1391
  %v2243 = vpop.f32.mrb[0].mxu0
  %v2244 = vadd.f32 %v1955, %v2243
  %v2245 = vpop.f32.mrb[0].mxu0
  %v2246 = vpop.f32.mrb[0].mxu0
  %v2247 = vadd.f32 %v1958, %v2246
  %v2248 = vpop.f32.mrb[0].mxu0
  %2249 = vmatprep.mubr.bf16.mxu0 0
  %2250 = vmatmul.mubr.bf16.gmra.mrb[0].mxu0 %v1394
  %v2251 = vpop.f32.mrb[0].mxu0
  %v2252 = vadd.f32 %v1963, %v2251
  %v2253 = vpop.f32.mrb[0].mxu0
  %v2254 = vpop.f32.mrb[0].mxu0
  %v2255 = vadd.f32 %v1966, %v2254
  %v2256 = vpop.f32.mrb[0].mxu0
  %2257 = vmatprep.mubr.bf16.mxu0 0
  %2258 = vmatmul.mubr.bf16.gmra.mrb[0].mxu0 %v1397
  %v2259 = vpop.f32.mrb[0].mxu0
  %v2260 = vadd.f32 %v1971, %v2259
  %v2261 = vpop.f32.mrb[0].mxu0
  %v2262 = vpop.f32.mrb[0].mxu0
  %v2263 = vadd.f32 %v1974, %v2262
  %v2264 = vpop.f32.mrb[0].mxu0
  %2265 = vdwg.mxu0
  %v2266 = vmax.f32 %v2012, 0.0
  %v2267 = vmax.f32 %v2015, 0.0
  %v2268 = vmax.f32 %v2020, 0.0
  %v2269 = vmax.f32 %v2023, 0.0
  %v2270 = vmax.f32 %v2028, 0.0
  %v2271 = vmax.f32 %v2031, 0.0
  %v2272 = vmax.f32 %v2036, 0.0
  %v2273 = vmax.f32 %v2039, 0.0
  %v2274 = vmax.f32 %v2044, 0.0
  %v2275 = vmax.f32 %v2047, 0.0
  %v2276 = vmax.f32 %v2052, 0.0
  %v2277 = vmax.f32 %v2055, 0.0
  %v2278 = vmax.f32 %v2060, 0.0
  %v2279 = vmax.f32 %v2063, 0.0
  %v2280 = vmax.f32 %v2068, 0.0
  %v2281 = vmax.f32 %v2071, 0.0
  %v2282 = vmax.f32 %v2076, 0.0
  %v2283 = vmax.f32 %v2079, 0.0
  %v2284 = vmax.f32 %v2084, 0.0
  %v2285 = vmax.f32 %v2087, 0.0
  %v2286 = vmax.f32 %v2092, 0.0
  %v2287 = vmax.f32 %v2095, 0.0
  %v2288 = vmax.f32 %v2100, 0.0
  %v2289 = vmax.f32 %v2103, 0.0
  %v2290 = vmax.f32 %v2108, 0.0
  %v2291 = vmax.f32 %v2111, 0.0
  %v2292 = vmax.f32 %v2116, 0.0
  %v2293 = vmax.f32 %v2119, 0.0
  %v2294 = vmax.f32 %v2124, 0.0
  %v2295 = vmax.f32 %v2127, 0.0
  %v2296 = vmax.f32 %v2132, 0.0
  %v2297 = vmax.f32 %v2135, 0.0
  %v2298 = vmax.f32 %v2140, 0.0
  %v2299 = vmax.f32 %v2143, 0.0
  %v2300 = vmax.f32 %v2148, 0.0
  %v2301 = vmax.f32 %v2151, 0.0
  %v2302 = vmax.f32 %v2156, 0.0
  %v2303 = vmax.f32 %v2159, 0.0
  %v2304 = vmax.f32 %v2164, 0.0
  %v2305 = vmax.f32 %v2167, 0.0
  %v2306 = vmax.f32 %v2172, 0.0
  %v2307 = vmax.f32 %v2175, 0.0
  %v2308 = vmax.f32 %v2180, 0.0
  %v2309 = vmax.f32 %v2183, 0.0
  %v2310 = vmax.f32 %v2188, 0.0
  %v2311 = vmax.f32 %v2191, 0.0
  %v2312 = vmax.f32 %v2196, 0.0
  %v2313 = vmax.f32 %v2199, 0.0
  %v2314 = vmax.f32 %v2204, 0.0
  %v2315 = vmax.f32 %v2207, 0.0
  %v2316 = vmax.f32 %v2212, 0.0
  %v2317 = vmax.f32 %v2215, 0.0
  %v2318 = vmax.f32 %v2220, 0.0
  %v2319 = vmax.f32 %v2223, 0.0
  %v2320 = vmax.f32 %v2228, 0.0
  %v2321 = vmax.f32 %v2231, 0.0
  %v2322 = vmax.f32 %v2236, 0.0
  %v2323 = vmax.f32 %v2239, 0.0
  %v2324 = vmax.f32 %v2244, 0.0
  %v2325 = vmax.f32 %v2247, 0.0
  %v2326 = vmax.f32 %v2252, 0.0
  %v2327 = vmax.f32 %v2255, 0.0
  %v2328 = vmax.f32 %v2260, 0.0
  %v2329 = vmax.f32 %v2263, 0.0
  %2330 = vst [vmem:[%s3] sm:$0xff] %v2266
  %2331 = vst [vmem:[%s3 + $0x8] sm:$0xff] %v2267
  %2332 = vst [vmem:[%s3 + $0x10] sm:$0xff] %v2268
  %2333 = vst [vmem:[%s3 + $0x18] sm:$0xff] %v2269
  %2334 = vst [vmem:[%s3 + $0x20] sm:$0xff] %v2270
  %2335 = vst [vmem:[%s3 + $0x28] sm:$0xff] %v2271
  %2336 = vst [vmem:[%s3 + $0x30] sm:$0xff] %v2272
  %2337 = vst [vmem:[%s3 + $0x38] sm:$0xff] %v2273
  %2338 = vst [vmem:[%s3 + $0x40] sm:$0xff] %v2274
  %2339 = vst [vmem:[%s3 + $0x48] sm:$0xff] %v2275
  %2340 = vst [vmem:[%s3 + $0x50] sm:$0xff] %v2276
  %2341 = vst [vmem:[%s3 + $0x58] sm:$0xff] %v2277
  %2342 = vst [vmem:[%s3 + $0x60] sm:$0xff] %v2278
  %2343 = vst [vmem:[%s3 + $0x68] sm:$0xff] %v2279
  %2344 = vst [vmem:[%s3 + $0x70] sm:$0xff] %v2280
  %2345 = vst [vmem:[%s3 + $0x78] sm:$0xff] %v2281
  %2346 = vst [vmem:[%s3 + $0x80] sm:$0xff] %v2282
  %2347 = vst [vmem:[%s3 + $0x88] sm:$0xff] %v2283
  %2348 = vst [vmem:[%s3 + $0x90] sm:$0xff] %v2284
  %2349 = vst [vmem:[%s3 + $0x98] sm:$0xff] %v2285
  %2350 = vst [vmem:[%s3 + $0xa0] sm:$0xff] %v2286
  %2351 = vst [vmem:[%s3 + $0xa8] sm:$0xff] %v2287
  %2352 = vst [vmem:[%s3 + $0xb0] sm:$0xff] %v2288
  %2353 = vst [vmem:[%s3 + $0xb8] sm:$0xff] %v2289
  %2354 = vst [vmem:[%s3 + $0xc0] sm:$0xff] %v2290
  %2355 = vst [vmem:[%s3 + $0xc8] sm:$0xff] %v2291
  %2356 = vst [vmem:[%s3 + $0xd0] sm:$0xff] %v2292
  %2357 = vst [vmem:[%s3 + $0xd8] sm:$0xff] %v2293
  %2358 = vst [vmem:[%s3 + $0xe0] sm:$0xff] %v2294
  %2359 = vst [vmem:[%s3 + $0xe8] sm:$0xff] %v2295
  %2360 = vst [vmem:[%s3 + $0xf0] sm:$0xff] %v2296
  %2361 = vst [vmem:[%s3 + $0xf8] sm:$0xff] %v2297
  %2362 = vst [vmem:[%s3 + $0x100] sm:$0xff] %v2298
  %2363 = vst [vmem:[%s3 + $0x108] sm:$0xff] %v2299
  %2364 = vst [vmem:[%s3 + $0x110] sm:$0xff] %v2300
  %2365 = vst [vmem:[%s3 + $0x118] sm:$0xff] %v2301
  %2366 = vst [vmem:[%s3 + $0x120] sm:$0xff] %v2302
  %2367 = vst [vmem:[%s3 + $0x128] sm:$0xff] %v2303
  %2368 = vst [vmem:[%s3 + $0x130] sm:$0xff] %v2304
  %2369 = vst [vmem:[%s3 + $0x138] sm:$0xff] %v2305
  %2370 = vst [vmem:[%s3 + $0x140] sm:$0xff] %v2306
  %2371 = vst [vmem:[%s3 + $0x148] sm:$0xff] %v2307
  %2372 = vst [vmem:[%s3 + $0x150] sm:$0xff] %v2308
  %2373 = vst [vmem:[%s3 + $0x158] sm:$0xff] %v2309
  %2374 = vst [vmem:[%s3 + $0x160] sm:$0xff] %v2310
  %2375 = vst [vmem:[%s3 + $0x168] sm:$0xff] %v2311
  %2376 = vst [vmem:[%s3 + $0x170] sm:$0xff] %v2312
  %2377 = vst [vmem:[%s3 + $0x178] sm:$0xff] %v2313
  %2378 = vst [vmem:[%s3 + $0x180] sm:$0xff] %v2314
  %2379 = vst [vmem:[%s3 + $0x188] sm:$0xff] %v2315
  %2380 = vst [vmem:[%s3 + $0x190] sm:$0xff] %v2316
  %2381 = vst [vmem:[%s3 + $0x198] sm:$0xff] %v2317
  %2382 = vst [vmem:[%s3 + $0x1a0] sm:$0xff] %v2318
  %2383 = vst [vmem:[%s3 + $0x1a8] sm:$0xff] %v2319
  %2384 = vst [vmem:[%s3 + $0x1b0] sm:$0xff] %v2320
  %2385 = vst [vmem:[%s3 + $0x1b8] sm:$0xff] %v2321
  %2386 = vst [vmem:[%s3 + $0x1c0] sm:$0xff] %v2322
  %2387 = vst [vmem:[%s3 + $0x1c8] sm:$0xff] %v2323
  %2388 = vst [vmem:[%s3 + $0x1d0] sm:$0xff] %v2324
  %2389 = vst [vmem:[%s3 + $0x1d8] sm:$0xff] %v2325
  %2390 = vst [vmem:[%s3 + $0x1e0] sm:$0xff] %v2326
  %2391 = vst [vmem:[%s3 + $0x1e8] sm:$0xff] %v2327
  %2392 = vst [vmem:[%s3 + $0x1f0] sm:$0xff] %v2328
  %2393 = vst [vmem:[%s3 + $0x1f8] sm:$0xff] %v2329
  // Predicated region
  $region14: #{cnn_cifar_forward.10} parent=0 // pred_check
    _
  $region15: #{cnn_cifar_forward.10} parent=0 // pred_check_branch
    %2395 = sbr.rel (0) target = $region17
  $region16: #{cnn_cifar_forward.10} parent=0 // pred_region
    _
  $region17: #{cnn_cifar_forward.10} parent=0 // pred_fallthru
    _
  // Predicated region
  $region18: #{cnn_cifar_forward.10} parent=0 // pred_check
    _
  $region19: #{cnn_cifar_forward.10} parent=0 // pred_check_branch
    %2397 = sbr.rel (0) target = $region21
  $region20: #{cnn_cifar_forward.10} parent=0 // pred_region
    _
  $region21: #{cnn_cifar_forward.10} parent=0 // pred_fallthru
    _

// kernel: cnn_cifar_forward.11
$region0: #{cnn_cifar_forward.11}
  #allocation0 [shape = 'u32[]', space=smem, size = 0x4, offset = 0x4, fixed_abs, tag = 'smem constant byte address 0x4 - core index']
  #allocation1 [shape = 'u32[144,128]{1,0:T(1,128)}', space=vmem, size = 0x12000, scoped, tag = 'internal scratch']
  %s0 = inlined_call_operand.vmem [shape: f32[16,1024], index: 0, kind: input, shape index: {}]
  %s1 = inlined_call_operand.vmem [shape: f32[16,1024], index: 1, kind: input, shape index: {}]
  %s2 = inlined_call_operand.vmem [shape: f32[16,1024], index: 2, kind: input, shape index: {}]
  %s3 = inlined_call_operand.vmem [shape: f32[16,1024], index: 3, kind: input, shape index: {}]
  %s4 = inlined_call_operand.vmem [shape: f32[16,1024], index: 4, kind: output, shape index: {}]
  %s5 = sld [smem:[#allocation0]]
  $region26: #{cnn_cifar_forward.11} parent=0
    _
  %s7 = ssub.s32 1, %s5
  %s8 = scalar_select 0, %s7, %s5
  // Predicated region
  $region2: #{cnn_cifar_forward.11} parent=0 // pred_check
    _
  $region3: #{cnn_cifar_forward.11} parent=0 // pred_check_branch
    %10 = sbr.rel (0) target = $region5
  $region4: #{cnn_cifar_forward.11} parent=0 // pred_region
    _
  $region5: #{cnn_cifar_forward.11} parent=0 // pred_fallthru
    _
  // Predicated region
  $region6: #{cnn_cifar_forward.11} parent=0 // pred_check
    _
  $region7: #{cnn_cifar_forward.11} parent=0 // pred_check_branch
    %12 = sbr.rel (0) target = $region9
  $region8: #{cnn_cifar_forward.11} parent=0 // pred_region
    _
  $region9: #{cnn_cifar_forward.11} parent=0 // pred_fallthru
    _
  // Predicated region
  $region10: #{cnn_cifar_forward.11} parent=0 // pred_check
    _
  $region11: #{cnn_cifar_forward.11} parent=0 // pred_check_branch
    %14 = sbr.rel (0) target = $region13
  $region12: #{cnn_cifar_forward.11} parent=0 // pred_region
    _
  $region13: #{cnn_cifar_forward.11} parent=0 // pred_fallthru
    _
  // Predicated region
  $region14: #{cnn_cifar_forward.11} parent=0 // pred_check
    _
  $region15: #{cnn_cifar_forward.11} parent=0 // pred_check_branch
    %16 = sbr.rel (0) target = $region17
  $region16: #{cnn_cifar_forward.11} parent=0 // pred_region
    _
  $region17: #{cnn_cifar_forward.11} parent=0 // pred_fallthru
    _
  %v17 = vld [vmem:[%s0] sm:$0xff]
  %v18 = vld [vmem:[%s0 + $0x8] sm:$0xff]
  %v19 = vld [vmem:[%s0 + $0x10] sm:$0xff]
  %v20 = vld [vmem:[%s0 + $0x18] sm:$0xff]
  %v21 = vld [vmem:[%s0 + $0x20] sm:$0xff]
  %v22 = vld [vmem:[%s0 + $0x28] sm:$0xff]
  %v23 = vld [vmem:[%s0 + $0x30] sm:$0xff]
  %v24 = vld [vmem:[%s0 + $0x38] sm:$0xff]
  %v25 = vld [vmem:[%s0 + $0x40] sm:$0xff]
  %v26 = vld [vmem:[%s0 + $0x48] sm:$0xff]
  %v27 = vld [vmem:[%s0 + $0x50] sm:$0xff]
  %v28 = vld [vmem:[%s0 + $0x58] sm:$0xff]
  %v29 = vld [vmem:[%s0 + $0x60] sm:$0xff]
  %v30 = vld [vmem:[%s0 + $0x68] sm:$0xff]
  %v31 = vld [vmem:[%s0 + $0x70] sm:$0xff]
  %v32 = vld [vmem:[%s0 + $0x78] sm:$0xff]
  %v33 = vld [vmem:[%s1] sm:$0xff]
  %v34 = vld [vmem:[%s1 + $0x8] sm:$0xff]
  %v35 = vld [vmem:[%s1 + $0x10] sm:$0xff]
  %v36 = vld [vmem:[%s1 + $0x18] sm:$0xff]
  %v37 = vld [vmem:[%s1 + $0x20] sm:$0xff]
  %v38 = vld [vmem:[%s1 + $0x28] sm:$0xff]
  %v39 = vld [vmem:[%s1 + $0x30] sm:$0xff]
  %v40 = vld [vmem:[%s1 + $0x38] sm:$0xff]
  %v41 = vld [vmem:[%s1 + $0x40] sm:$0xff]
  %v42 = vld [vmem:[%s1 + $0x48] sm:$0xff]
  %v43 = vld [vmem:[%s1 + $0x50] sm:$0xff]
  %v44 = vld [vmem:[%s1 + $0x58] sm:$0xff]
  %v45 = vld [vmem:[%s1 + $0x60] sm:$0xff]
  %v46 = vld [vmem:[%s1 + $0x68] sm:$0xff]
  %v47 = vld [vmem:[%s1 + $0x70] sm:$0xff]
  %v48 = vld [vmem:[%s1 + $0x78] sm:$0xff]
  %v49 = vmax.f32 %v17, %v33
  %v50 = vmax.f32 %v18, %v34
  %v51 = vmax.f32 %v19, %v35
  %v52 = vmax.f32 %v20, %v36
  %v53 = vmax.f32 %v21, %v37
  %v54 = vmax.f32 %v22, %v38
  %v55 = vmax.f32 %v23, %v39
  %v56 = vmax.f32 %v24, %v40
  %v57 = vmax.f32 %v25, %v41
  %v58 = vmax.f32 %v26, %v42
  %v59 = vmax.f32 %v27, %v43
  %v60 = vmax.f32 %v28, %v44
  %v61 = vmax.f32 %v29, %v45
  %v62 = vmax.f32 %v30, %v46
  %v63 = vmax.f32 %v31, %v47
  %v64 = vmax.f32 %v32, %v48
  %v65 = vld [vmem:[%s2] sm:$0xff]
  %v66 = vld [vmem:[%s2 + $0x8] sm:$0xff]
  %v67 = vld [vmem:[%s2 + $0x10] sm:$0xff]
  %v68 = vld [vmem:[%s2 + $0x18] sm:$0xff]
  %v69 = vld [vmem:[%s2 + $0x20] sm:$0xff]
  %v70 = vld [vmem:[%s2 + $0x28] sm:$0xff]
  %v71 = vld [vmem:[%s2 + $0x30] sm:$0xff]
  %v72 = vld [vmem:[%s2 + $0x38] sm:$0xff]
  %v73 = vld [vmem:[%s2 + $0x40] sm:$0xff]
  %v74 = vld [vmem:[%s2 + $0x48] sm:$0xff]
  %v75 = vld [vmem:[%s2 + $0x50] sm:$0xff]
  %v76 = vld [vmem:[%s2 + $0x58] sm:$0xff]
  %v77 = vld [vmem:[%s2 + $0x60] sm:$0xff]
  %v78 = vld [vmem:[%s2 + $0x68] sm:$0xff]
  %v79 = vld [vmem:[%s2 + $0x70] sm:$0xff]
  %v80 = vld [vmem:[%s2 + $0x78] sm:$0xff]
  %v81 = vld [vmem:[%s3] sm:$0xff]
  %v82 = vld [vmem:[%s3 + $0x8] sm:$0xff]
  %v83 = vld [vmem:[%s3 + $0x10] sm:$0xff]
  %v84 = vld [vmem:[%s3 + $0x18] sm:$0xff]
  %v85 = vld [vmem:[%s3 + $0x20] sm:$0xff]
  %v86 = vld [vmem:[%s3 + $0x28] sm:$0xff]
  %v87 = vld [vmem:[%s3 + $0x30] sm:$0xff]
  %v88 = vld [vmem:[%s3 + $0x38] sm:$0xff]
  %v89 = vld [vmem:[%s3 + $0x40] sm:$0xff]
  %v90 = vld [vmem:[%s3 + $0x48] sm:$0xff]
  %v91 = vld [vmem:[%s3 + $0x50] sm:$0xff]
  %v92 = vld [vmem:[%s3 + $0x58] sm:$0xff]
  %v93 = vld [vmem:[%s3 + $0x60] sm:$0xff]
  %v94 = vld [vmem:[%s3 + $0x68] sm:$0xff]
  %v95 = vld [vmem:[%s3 + $0x70] sm:$0xff]
  %v96 = vld [vmem:[%s3 + $0x78] sm:$0xff]
  %v97 = vmax.f32 %v65, %v81
  %v98 = vmax.f32 %v66, %v82
  %v99 = vmax.f32 %v67, %v83
  %v100 = vmax.f32 %v68, %v84
  %v101 = vmax.f32 %v69, %v85
  %v102 = vmax.f32 %v70, %v86
  %v103 = vmax.f32 %v71, %v87
  %v104 = vmax.f32 %v72, %v88
  %v105 = vmax.f32 %v73, %v89
  %v106 = vmax.f32 %v74, %v90
  %v107 = vmax.f32 %v75, %v91
  %v108 = vmax.f32 %v76, %v92
  %v109 = vmax.f32 %v77, %v93
  %v110 = vmax.f32 %v78, %v94
  %v111 = vmax.f32 %v79, %v95
  %v112 = vmax.f32 %v80, %v96
  %v113 = vmax.f32 %v49, %v97
  %v114 = vmax.f32 %v50, %v98
  %v115 = vmax.f32 %v51, %v99
  %v116 = vmax.f32 %v52, %v100
  %v117 = vmax.f32 %v53, %v101
  %v118 = vmax.f32 %v54, %v102
  %v119 = vmax.f32 %v55, %v103
  %v120 = vmax.f32 %v56, %v104
  %v121 = vmax.f32 %v57, %v105
  %v122 = vmax.f32 %v58, %v106
  %v123 = vmax.f32 %v59, %v107
  %v124 = vmax.f32 %v60, %v108
  %v125 = vmax.f32 %v61, %v109
  %v126 = vmax.f32 %v62, %v110
  %v127 = vmax.f32 %v63, %v111
  %v128 = vmax.f32 %v64, %v112
  %129 = vst [vmem:[%s4] sm:$0xff] %v113
  %130 = vst [vmem:[%s4 + $0x8] sm:$0xff] %v114
  %131 = vst [vmem:[%s4 + $0x10] sm:$0xff] %v115
  %132 = vst [vmem:[%s4 + $0x18] sm:$0xff] %v116
  %133 = vst [vmem:[%s4 + $0x20] sm:$0xff] %v117
  %134 = vst [vmem:[%s4 + $0x28] sm:$0xff] %v118
  %135 = vst [vmem:[%s4 + $0x30] sm:$0xff] %v119
  %136 = vst [vmem:[%s4 + $0x38] sm:$0xff] %v120
  %137 = vst [vmem:[%s4 + $0x40] sm:$0xff] %v121
  %138 = vst [vmem:[%s4 + $0x48] sm:$0xff] %v122
  %139 = vst [vmem:[%s4 + $0x50] sm:$0xff] %v123
  %140 = vst [vmem:[%s4 + $0x58] sm:$0xff] %v124
  %141 = vst [vmem:[%s4 + $0x60] sm:$0xff] %v125
  %142 = vst [vmem:[%s4 + $0x68] sm:$0xff] %v126
  %143 = vst [vmem:[%s4 + $0x70] sm:$0xff] %v127
  %144 = vst [vmem:[%s4 + $0x78] sm:$0xff] %v128
  // Predicated region
  $region18: #{cnn_cifar_forward.11} parent=0 // pred_check
    _
  $region19: #{cnn_cifar_forward.11} parent=0 // pred_check_branch
    %146 = sbr.rel (0) target = $region21
  $region20: #{cnn_cifar_forward.11} parent=0 // pred_region
    _
  $region21: #{cnn_cifar_forward.11} parent=0 // pred_fallthru
    _
  // Predicated region
  $region22: #{cnn_cifar_forward.11} parent=0 // pred_check
    _
  $region23: #{cnn_cifar_forward.11} parent=0 // pred_check_branch
    %148 = sbr.rel (0) target = $region25
  $region24: #{cnn_cifar_forward.11} parent=0 // pred_region
    _
  $region25: #{cnn_cifar_forward.11} parent=0 // pred_fallthru
    _

// kernel: cnn_cifar_forward.12
$region0: #{cnn_cifar_forward.12}
  #allocation0 [shape = 'u32[]', space=smem, size = 0x4, offset = 0x4, fixed_abs, tag = 'smem constant byte address 0x4 - core index']
  #allocation1 [shape = 'u32[144,128]{1,0:T(1,128)}', space=vmem, size = 0x12000, scoped, tag = 'internal scratch']
  #allocation2 [shape = 'f32[2,512]{1,0:T(2,128)}', space=vmem, size = 0x1000, scoped, tag = 'scratch operand']
  %s0 = inlined_call_operand.vmem [shape: bf16[2,8192], index: 0, kind: input, shape index: {}]
  %s1 = inlined_call_operand.vmem [shape: bf16[8192,512], index: 1, kind: input, shape index: {}]
  %s2 = inlined_call_operand.vmem [shape: f32[1,512], index: 2, kind: input, shape index: {}]
  %s3 = inlined_call_operand.vmem [shape: f32[2,512], index: 3, kind: output, shape index: {}]
  %s4 = sld [smem:[#allocation0]]
  $region53: #{cnn_cifar_forward.12} parent=0
    _
  %s6 = ssub.s32 1, %s4
  %s7 = scalar_select 0, %s6, %s4
  loop: start=0, step=1, limit=6
  $region2: #{cnn_cifar_forward.12} parent=0 // loop_pre_header
    _
  $region3: #{cnn_cifar_forward.12} parent=0 // loop_header
    %s9 = sphi 0, %s13
    %p10 = scmp.ge.s32.totalorder %s9, 6
    %s16 = sphi 0, %s28
    %s17 = sphi 0, %s24
    %s18 = sphi 0, %s16
    %s19 = sphi 0, %s17
    %s20 = sphi 0, %s18
    %s21 = sphi 0, %s19
    %s33 = sphi 0, %s35
    %s36 = sphi 0, %s33
    %s37 = sphi 0, %s36
    %s53 = sphi 0, %s37
    %s59 = sphi 0, %s61
    %s62 = sphi 0, %s59
    %s63 = sphi 0, %s62
    %s79 = sphi 0, %s63
    %s83 = sphi 0, %s83
    %s85 = sphi 0, %s83
    %s86 = sphi 0, %s85
    %s100 = sphi 0, %s86
    %s106 = sphi 0, %s108
    %s109 = sphi 0, %s106
    %s110 = sphi 0, %s109
    %s126 = sphi 0, %s110
  $region4: #{cnn_cifar_forward.12} parent=0 // loop_header_branch
    %12 = sbr.rel (%p10) target = $region8
  $region5: #{cnn_cifar_forward.12} parent=0 // loop_body
    %s14 = ssub.s32 %s9, 1
    %s15 = ssub.s32 %s9, 2
    %s22 = sadd.s32 1, %s17
    %p23 = scmp.ge.s32.totalorder %s22, 4
    %s24 = scalar_select %p23, 0, %s22
    %s25 = sadd.s32 1, %s16
    %s26 = scalar_select %p23, %s25, %s16
    %p27 = scmp.ge.s32.totalorder %s26, 1
    %s28 = scalar_select %p27, 0, %s26
    %s29 = ssub.s32 %s16, %s28
    %s30 = ssub.s32 %s17, %s24
    %s31 = sor.u32 %s29, %s30
    %p32 = scmp.eq.s32.totalorder %s31, 0
    %s34 = sadd.s32 %s33, 1
    %s35 = scalar_select %p32, %s33, %s34
    %p38 = pneg %p32
    %p39 = scmp.eq.s32.totalorder %s9, 3
    %p40 = por %p38, %p39
    %p41 = scmp.ne.s32.totalorder %s33, %s36
    %p42 = scmp.eq.s32.totalorder %s9, 0
    %p43 = por %p41, %p42
    %p44 = scmp.ne.s32.totalorder %s33, %s36
    %p45 = scmp.eq.s32.totalorder %s14, 3
    %p46 = por %p44, %p45
    %p47 = scmp.ne.s32.totalorder %s36, %s37
    %p48 = scmp.eq.s32.totalorder %s14, 0
    %p49 = por %p47, %p48
    %p50 = scmp.ne.s32.totalorder %s36, %s37
    %p51 = scmp.eq.s32.totalorder %s15, 3
    %p52 = por %p50, %p51
    %p54 = scmp.ne.s32.totalorder %s37, %s53
    %p55 = scmp.eq.s32.totalorder %s15, 0
    %p56 = por %p54, %p55
    %s57 = ssub.s32 %s17, %s24
    %p58 = scmp.eq.s32.totalorder %s57, 0
    %s60 = sadd.s32 %s59, 1
    %s61 = scalar_select %p58, %s59, %s60
    %p64 = pneg %p58
    %p65 = scmp.eq.s32.totalorder %s9, 3
    %p66 = por %p64, %p65
    %p67 = scmp.ne.s32.totalorder %s59, %s62
    %p68 = scmp.eq.s32.totalorder %s9, 0
    %p69 = por %p67, %p68
    %p70 = scmp.ne.s32.totalorder %s59, %s62
    %p71 = scmp.eq.s32.totalorder %s14, 3
    %p72 = por %p70, %p71
    %p73 = scmp.ne.s32.totalorder %s62, %s63
    %p74 = scmp.eq.s32.totalorder %s14, 0
    %p75 = por %p73, %p74
    %p76 = scmp.ne.s32.totalorder %s62, %s63
    %p77 = scmp.eq.s32.totalorder %s15, 3
    %p78 = por %p76, %p77
    %p80 = scmp.ne.s32.totalorder %s63, %s79
    %p81 = scmp.eq.s32.totalorder %s15, 0
    %p82 = por %p80, %p81
    %s84 = sadd.s32 %s83, 1
    %p87 = scmp.eq.s32.totalorder %s9, 3
    %p88 = scmp.ne.s32.totalorder %s83, %s85
    %p89 = scmp.eq.s32.totalorder %s9, 0
    %p90 = por %p88, %p89
    %p91 = scmp.ne.s32.totalorder %s83, %s85
    %p92 = scmp.eq.s32.totalorder %s14, 3
    %p93 = por %p91, %p92
    %p94 = scmp.ne.s32.totalorder %s85, %s86
    %p95 = scmp.eq.s32.totalorder %s14, 0
    %p96 = por %p94, %p95
    %p97 = scmp.ne.s32.totalorder %s85, %s86
    %p98 = scmp.eq.s32.totalorder %s15, 3
    %p99 = por %p97, %p98
    %p101 = scmp.ne.s32.totalorder %s86, %s100
    %p102 = scmp.eq.s32.totalorder %s15, 0
    %p103 = por %p101, %p102
    %s104 = ssub.s32 %s16, %s28
    %p105 = scmp.eq.s32.totalorder %s104, 0
    %s107 = sadd.s32 %s106, 1
    %s108 = scalar_select %p105, %s106, %s107
    %p111 = pneg %p105
    %p112 = scmp.eq.s32.totalorder %s9, 3
    %p113 = por %p111, %p112
    %p114 = scmp.ne.s32.totalorder %s106, %s109
    %p115 = scmp.eq.s32.totalorder %s9, 0
    %p116 = por %p114, %p115
    %p117 = scmp.ne.s32.totalorder %s106, %s109
    %p118 = scmp.eq.s32.totalorder %s14, 3
    %p119 = por %p117, %p118
    %p120 = scmp.ne.s32.totalorder %s109, %s110
    %p121 = scmp.eq.s32.totalorder %s14, 0
    %p122 = por %p120, %p121
    %p123 = scmp.ne.s32.totalorder %s109, %s110
    %p124 = scmp.eq.s32.totalorder %s15, 3
    %p125 = por %p123, %p124
    %p127 = scmp.ne.s32.totalorder %s110, %s126
    %p128 = scmp.eq.s32.totalorder %s15, 0
    %p129 = por %p127, %p128
    %p130 = scmp.le.s32.totalorder 1, %s9
    %p131 = scmp.lt.s32.totalorder %s9, 5
    %p132 = pnand %p130, %p131
    %p133 = pneg %p132
    // Predicated region
    $region9: #{cnn_cifar_forward.12} parent=5 // pred_check
      _
    $region10: #{cnn_cifar_forward.12} parent=5 // pred_check_branch
      %135 = sbr.rel (%p132) target = $region12
    $region11: #{cnn_cifar_forward.12} parent=5 // pred_region
      %s136 = ssub.s32 %s9, 1
      // Predicated region
      $region13: #{cnn_cifar_forward.12} parent=11 // pred_check
        %p137 = pneg %p96
      $region14: #{cnn_cifar_forward.12} parent=11 // pred_check_branch
        %139 = sbr.rel (%p137) target = $region16
      $region15: #{cnn_cifar_forward.12} parent=11 // pred_region
        _
      $region16: #{cnn_cifar_forward.12} parent=11 // pred_fallthru
        _
    $region12: #{cnn_cifar_forward.12} parent=5 // pred_fallthru
      _
    %p140 = scmp.lt.s32.totalorder %s9, 4
    // Predicated region
    $region17: #{cnn_cifar_forward.12} parent=5 // pred_check
      %p141 = pneg %p140
    $region18: #{cnn_cifar_forward.12} parent=5 // pred_check_branch
      %143 = sbr.rel (%p141) target = $region20
    $region19: #{cnn_cifar_forward.12} parent=5 // pred_region
      // Predicated region
      $region21: #{cnn_cifar_forward.12} parent=19 // pred_check
        %p144 = pneg %p43
      $region22: #{cnn_cifar_forward.12} parent=19 // pred_check_branch
        %146 = sbr.rel (%p144) target = $region24
      $region23: #{cnn_cifar_forward.12} parent=19 // pred_region
        %s147 = smul.u32 16, %s17
        %p148 = scmp.lt.s32.totalorder %s16, 0
        %s149 = scalar_select %p148, %s16, 0
        %p150 = scmp.lt.s32.totalorder %s147, 63
        %s151 = scalar_select %p150, %s147, 63
        %s152 = smul.addr %s149, 64
        %s153 = sadd.s32 %s151, %s152
        %s154 = scalar_lea.vmem %s0, %s153
        %s155 = smul.u32 16, %s17
      $region24: #{cnn_cifar_forward.12} parent=19 // pred_fallthru
        _
      // Predicated region
      $region25: #{cnn_cifar_forward.12} parent=19 // pred_check
        %p156 = pneg %p69
      $region26: #{cnn_cifar_forward.12} parent=19 // pred_check_branch
        %158 = sbr.rel (%p156) target = $region28
      $region27: #{cnn_cifar_forward.12} parent=19 // pred_region
        %s159 = smul.u32 256, %s17
        %p160 = scmp.lt.s32.totalorder %s159, 1023
        %s161 = scalar_select %p160, %s159, 1023
        %s162 = smul.addr %s161, 4
        %s163 = smul.addr %s162, 4
        %s164 = scalar_lea.vmem %s1, %s163
        %s165 = smul.u32 256, %s17
      $region28: #{cnn_cifar_forward.12} parent=19 // pred_fallthru
        _
    $region20: #{cnn_cifar_forward.12} parent=5 // pred_fallthru
      _
    %p166 = scmp.le.s32.totalorder 1, %s9
    %p167 = scmp.lt.s32.totalorder %s9, 5
    %p168 = pnand %p166, %p167
    %p169 = pneg %p168
    // Predicated region
    $region29: #{cnn_cifar_forward.12} parent=5 // pred_check
      _
    $region30: #{cnn_cifar_forward.12} parent=5 // pred_check_branch
      %171 = sbr.rel (%p168) target = $region32
    $region31: #{cnn_cifar_forward.12} parent=5 // pred_region
      %s172 = ssub.s32 %s9, 1
      %s173 = smul.u32 16, %s19
      %p174 = scmp.lt.s32.totalorder %s18, 0
      %s175 = scalar_select %p174, %s18, 0
      %p176 = scmp.lt.s32.totalorder %s173, 63
      %s177 = scalar_select %p176, %s173, 63
      %s178 = smul.addr %s175, 64
      %s179 = sadd.s32 %s177, %s178
      %s180 = scalar_lea.vmem %s0, %s179
      %p181 = pneg %p49
      %p182 = pneg %p46
      %s183 = smul.u32 256, %s19
      %p184 = scmp.lt.s32.totalorder %s183, 1023
      %s185 = scalar_select %p184, %s183, 1023
      %s186 = smul.addr %s185, 4
      %s187 = smul.addr %s186, 4
      %s188 = scalar_lea.vmem %s1, %s187
      %p189 = pneg %p75
      %p190 = pneg %p72
      %p191 = pneg %p96
      %p192 = pneg %p93
      %p193 = pneg %p122
      %p194 = pneg %p119
      %p195 = scmp.lt.s32.totalorder %s18, 0
      %s196 = scalar_select %p195, %s18, 0
      %s197 = smul.addr %s196, 4
      %s198 = smul.addr %s197, 2
      %s199 = scalar_lea.vmem %s3, %s198
      %s200 = smul.u32 16, %s19
      %p201 = scmp.lt.s32.totalorder %s18, 0
      %s202 = scalar_select %p201, %s18, 0
      %p203 = scmp.lt.s32.totalorder %s200, 63
      %s204 = scalar_select %p203, %s200, 63
      %s205 = smul.addr %s202, 64
      %s206 = sadd.s32 %s204, %s205
      %s207 = scalar_lea.vmem %s0, %s206
      %s208 = smul.u32 16, %s19
      %s209 = smul.u32 256, %s19
      %p210 = scmp.lt.s32.totalorder %s209, 1023
      %s211 = scalar_select %p210, %s209, 1023
      %s212 = smul.addr %s211, 4
      %s213 = smul.addr %s212, 4
      %s214 = scalar_lea.vmem %s1, %s213
      %s215 = smul.u32 256, %s19
      %p216 = scmp.lt.s32.totalorder %s18, 0
      %s217 = scalar_select %p216, %s18, 0
      %s218 = smul.addr %s217, 4
      %s219 = smul.addr %s218, 2
      %s220 = scalar_lea.vmem %s3, %s219
      %p221 = scmp.eq.s32.totalorder %s19, 0
      // Predicated region
      $region33: #{cnn_cifar_forward.12} parent=31 // pred_check
        %p222 = pneg %p221
      $region34: #{cnn_cifar_forward.12} parent=31 // pred_check_branch
        %224 = sbr.rel (%p222) target = $region36
      $region35: #{cnn_cifar_forward.12} parent=31 // pred_region
        %225 = vst [vmem:[#allocation2] sm:$0xff] 0.0
      $region36: #{cnn_cifar_forward.12} parent=31 // pred_fallthru
        _
      %v226 = vld [vmem:[#allocation2] sm:$0xff]
      %v227 = vld [vmem:[%s207] sm:$0xff]
      %v228 = vld [vmem:[%s207 + $0x8] sm:$0xff]
      %v229 = vld [vmem:[%s214] sm:$0xff]
      %v230 = vld [vmem:[%s214 + $0x8] sm:$0xff]
      %v231 = vld [vmem:[%s214 + $0x10] sm:$0xff]
      %v232 = vld [vmem:[%s214 + $0x18] sm:$0xff]
      %v233 = vld [vmem:[%s214 + $0x20] sm:$0xff]
      %v234 = vld [vmem:[%s214 + $0x28] sm:$0xff]
      %v235 = vld [vmem:[%s214 + $0x30] sm:$0xff]
      %v236 = vld [vmem:[%s214 + $0x38] sm:$0xff]
      %v237 = vld [vmem:[%s214 + $0x40] sm:$0xff]
      %v238 = vld [vmem:[%s214 + $0x48] sm:$0xff]
      %v239 = vld [vmem:[%s214 + $0x50] sm:$0xff]
      %v240 = vld [vmem:[%s214 + $0x58] sm:$0xff]
      %v241 = vld [vmem:[%s214 + $0x60] sm:$0xff]
      %v242 = vld [vmem:[%s214 + $0x68] sm:$0xff]
      %v243 = vld [vmem:[%s214 + $0x70] sm:$0xff]
      %v244 = vld [vmem:[%s214 + $0x78] sm:$0xff]
      %v245 = vld [vmem:[%s214 + $0x80] sm:$0xff]
      %v246 = vld [vmem:[%s214 + $0x88] sm:$0xff]
      %v247 = vld [vmem:[%s214 + $0x90] sm:$0xff]
      %v248 = vld [vmem:[%s214 + $0x98] sm:$0xff]
      %v249 = vld [vmem:[%s214 + $0xa0] sm:$0xff]
      %v250 = vld [vmem:[%s214 + $0xa8] sm:$0xff]
      %v251 = vld [vmem:[%s214 + $0xb0] sm:$0xff]
      %v252 = vld [vmem:[%s214 + $0xb8] sm:$0xff]
      %v253 = vld [vmem:[%s214 + $0xc0] sm:$0xff]
      %v254 = vld [vmem:[%s214 + $0xc8] sm:$0xff]
      %v255 = vld [vmem:[%s214 + $0xd0] sm:$0xff]
      %v256 = vld [vmem:[%s214 + $0xd8] sm:$0xff]
      %v257 = vld [vmem:[%s214 + $0xe0] sm:$0xff]
      %v258 = vld [vmem:[%s214 + $0xe8] sm:$0xff]
      %v259 = vld [vmem:[%s214 + $0xf0] sm:$0xff]
      %v260 = vld [vmem:[%s214 + $0xf8] sm:$0xff]
      %v261 = vld [vmem:[%s214 + $0x100] sm:$0xff]
      %v262 = vld [vmem:[%s214 + $0x108] sm:$0xff]
      %v263 = vld [vmem:[%s214 + $0x110] sm:$0xff]
      %v264 = vld [vmem:[%s214 + $0x118] sm:$0xff]
      %v265 = vld [vmem:[%s214 + $0x120] sm:$0xff]
      %v266 = vld [vmem:[%s214 + $0x128] sm:$0xff]
      %v267 = vld [vmem:[%s214 + $0x130] sm:$0xff]
      %v268 = vld [vmem:[%s214 + $0x138] sm:$0xff]
      %v269 = vld [vmem:[%s214 + $0x140] sm:$0xff]
      %v270 = vld [vmem:[%s214 + $0x148] sm:$0xff]
      %v271 = vld [vmem:[%s214 + $0x150] sm:$0xff]
      %v272 = vld [vmem:[%s214 + $0x158] sm:$0xff]
      %v273 = vld [vmem:[%s214 + $0x160] sm:$0xff]
      %v274 = vld [vmem:[%s214 + $0x168] sm:$0xff]
      %v275 = vld [vmem:[%s214 + $0x170] sm:$0xff]
      %v276 = vld [vmem:[%s214 + $0x178] sm:$0xff]
      %v277 = vld [vmem:[%s214 + $0x180] sm:$0xff]
      %v278 = vld [vmem:[%s214 + $0x188] sm:$0xff]
      %v279 = vld [vmem:[%s214 + $0x190] sm:$0xff]
      %v280 = vld [vmem:[%s214 + $0x198] sm:$0xff]
      %v281 = vld [vmem:[%s214 + $0x1a0] sm:$0xff]
      %v282 = vld [vmem:[%s214 + $0x1a8] sm:$0xff]
      %v283 = vld [vmem:[%s214 + $0x1b0] sm:$0xff]
      %v284 = vld [vmem:[%s214 + $0x1b8] sm:$0xff]
      %v285 = vld [vmem:[%s214 + $0x1c0] sm:$0xff]
      %v286 = vld [vmem:[%s214 + $0x1c8] sm:$0xff]
      %v287 = vld [vmem:[%s214 + $0x1d0] sm:$0xff]
      %v288 = vld [vmem:[%s214 + $0x1d8] sm:$0xff]
      %v289 = vld [vmem:[%s214 + $0x1e0] sm:$0xff]
      %v290 = vld [vmem:[%s214 + $0x1e8] sm:$0xff]
      %v291 = vld [vmem:[%s214 + $0x1f0] sm:$0xff]
      %v292 = vld [vmem:[%s214 + $0x1f8] sm:$0xff]
      %v293 = vld [vmem:[%s214 + $0x200] sm:$0xff]
      %v294 = vld [vmem:[%s214 + $0x208] sm:$0xff]
      %v295 = vld [vmem:[%s214 + $0x210] sm:$0xff]
      %v296 = vld [vmem:[%s214 + $0x218] sm:$0xff]
      %v297 = vld [vmem:[%s214 + $0x220] sm:$0xff]
      %v298 = vld [vmem:[%s214 + $0x228] sm:$0xff]
      %v299 = vld [vmem:[%s214 + $0x230] sm:$0xff]
      %v300 = vld [vmem:[%s214 + $0x238] sm:$0xff]
      %v301 = vld [vmem:[%s214 + $0x240] sm:$0xff]
      %v302 = vld [vmem:[%s214 + $0x248] sm:$0xff]
      %v303 = vld [vmem:[%s214 + $0x250] sm:$0xff]
      %v304 = vld [vmem:[%s214 + $0x258] sm:$0xff]
      %v305 = vld [vmem:[%s214 + $0x260] sm:$0xff]
      %v306 = vld [vmem:[%s214 + $0x268] sm:$0xff]
      %v307 = vld [vmem:[%s214 + $0x270] sm:$0xff]
      %v308 = vld [vmem:[%s214 + $0x278] sm:$0xff]
      %v309 = vld [vmem:[%s214 + $0x280] sm:$0xff]
      %v310 = vld [vmem:[%s214 + $0x288] sm:$0xff]
      %v311 = vld [vmem:[%s214 + $0x290] sm:$0xff]
      %v312 = vld [vmem:[%s214 + $0x298] sm:$0xff]
      %v313 = vld [vmem:[%s214 + $0x2a0] sm:$0xff]
      %v314 = vld [vmem:[%s214 + $0x2a8] sm:$0xff]
      %v315 = vld [vmem:[%s214 + $0x2b0] sm:$0xff]
      %v316 = vld [vmem:[%s214 + $0x2b8] sm:$0xff]
      %v317 = vld [vmem:[%s214 + $0x2c0] sm:$0xff]
      %v318 = vld [vmem:[%s214 + $0x2c8] sm:$0xff]
      %v319 = vld [vmem:[%s214 + $0x2d0] sm:$0xff]
      %v320 = vld [vmem:[%s214 + $0x2d8] sm:$0xff]
      %v321 = vld [vmem:[%s214 + $0x2e0] sm:$0xff]
      %v322 = vld [vmem:[%s214 + $0x2e8] sm:$0xff]
      %v323 = vld [vmem:[%s214 + $0x2f0] sm:$0xff]
      %v324 = vld [vmem:[%s214 + $0x2f8] sm:$0xff]
      %v325 = vld [vmem:[%s214 + $0x300] sm:$0xff]
      %v326 = vld [vmem:[%s214 + $0x308] sm:$0xff]
      %v327 = vld [vmem:[%s214 + $0x310] sm:$0xff]
      %v328 = vld [vmem:[%s214 + $0x318] sm:$0xff]
      %v329 = vld [vmem:[%s214 + $0x320] sm:$0xff]
      %v330 = vld [vmem:[%s214 + $0x328] sm:$0xff]
      %v331 = vld [vmem:[%s214 + $0x330] sm:$0xff]
      %v332 = vld [vmem:[%s214 + $0x338] sm:$0xff]
      %v333 = vld [vmem:[%s214 + $0x340] sm:$0xff]
      %v334 = vld [vmem:[%s214 + $0x348] sm:$0xff]
      %v335 = vld [vmem:[%s214 + $0x350] sm:$0xff]
      %v336 = vld [vmem:[%s214 + $0x358] sm:$0xff]
      %v337 = vld [vmem:[%s214 + $0x360] sm:$0xff]
      %v338 = vld [vmem:[%s214 + $0x368] sm:$0xff]
      %v339 = vld [vmem:[%s214 + $0x370] sm:$0xff]
      %v340 = vld [vmem:[%s214 + $0x378] sm:$0xff]
      %v341 = vld [vmem:[%s214 + $0x380] sm:$0xff]
      %v342 = vld [vmem:[%s214 + $0x388] sm:$0xff]
      %v343 = vld [vmem:[%s214 + $0x390] sm:$0xff]
      %v344 = vld [vmem:[%s214 + $0x398] sm:$0xff]
      %v345 = vld [vmem:[%s214 + $0x3a0] sm:$0xff]
      %v346 = vld [vmem:[%s214 + $0x3a8] sm:$0xff]
      %v347 = vld [vmem:[%s214 + $0x3b0] sm:$0xff]
      %v348 = vld [vmem:[%s214 + $0x3b8] sm:$0xff]
      %v349 = vld [vmem:[%s214 + $0x3c0] sm:$0xff]
      %v350 = vld [vmem:[%s214 + $0x3c8] sm:$0xff]
      %v351 = vld [vmem:[%s214 + $0x3d0] sm:$0xff]
      %v352 = vld [vmem:[%s214 + $0x3d8] sm:$0xff]
      %v353 = vld [vmem:[%s214 + $0x3e0] sm:$0xff]
      %v354 = vld [vmem:[%s214 + $0x3e8] sm:$0xff]
      %v355 = vld [vmem:[%s214 + $0x3f0] sm:$0xff]
      %v356 = vld [vmem:[%s214 + $0x3f8] sm:$0xff]
      %v357 = vld [vmem:[%s214 + $0x400] sm:$0xff]
      %v358 = vld [vmem:[%s214 + $0x408] sm:$0xff]
      %v359 = vld [vmem:[%s214 + $0x410] sm:$0xff]
      %v360 = vld [vmem:[%s214 + $0x418] sm:$0xff]
      %v361 = vld [vmem:[%s214 + $0x420] sm:$0xff]
      %v362 = vld [vmem:[%s214 + $0x428] sm:$0xff]
      %v363 = vld [vmem:[%s214 + $0x430] sm:$0xff]
      %v364 = vld [vmem:[%s214 + $0x438] sm:$0xff]
      %v365 = vld [vmem:[%s214 + $0x440] sm:$0xff]
      %v366 = vld [vmem:[%s214 + $0x448] sm:$0xff]
      %v367 = vld [vmem:[%s214 + $0x450] sm:$0xff]
      %v368 = vld [vmem:[%s214 + $0x458] sm:$0xff]
      %v369 = vld [vmem:[%s214 + $0x460] sm:$0xff]
      %v370 = vld [vmem:[%s214 + $0x468] sm:$0xff]
      %v371 = vld [vmem:[%s214 + $0x470] sm:$0xff]
      %v372 = vld [vmem:[%s214 + $0x478] sm:$0xff]
      %v373 = vld [vmem:[%s214 + $0x480] sm:$0xff]
      %v374 = vld [vmem:[%s214 + $0x488] sm:$0xff]
      %v375 = vld [vmem:[%s214 + $0x490] sm:$0xff]
      %v376 = vld [vmem:[%s214 + $0x498] sm:$0xff]
      %v377 = vld [vmem:[%s214 + $0x4a0] sm:$0xff]
      %v378 = vld [vmem:[%s214 + $0x4a8] sm:$0xff]
      %v379 = vld [vmem:[%s214 + $0x4b0] sm:$0xff]
      %v380 = vld [vmem:[%s214 + $0x4b8] sm:$0xff]
      %v381 = vld [vmem:[%s214 + $0x4c0] sm:$0xff]
      %v382 = vld [vmem:[%s214 + $0x4c8] sm:$0xff]
      %v383 = vld [vmem:[%s214 + $0x4d0] sm:$0xff]
      %v384 = vld [vmem:[%s214 + $0x4d8] sm:$0xff]
      %v385 = vld [vmem:[%s214 + $0x4e0] sm:$0xff]
      %v386 = vld [vmem:[%s214 + $0x4e8] sm:$0xff]
      %v387 = vld [vmem:[%s214 + $0x4f0] sm:$0xff]
      %v388 = vld [vmem:[%s214 + $0x4f8] sm:$0xff]
      %v389 = vld [vmem:[%s214 + $0x500] sm:$0xff]
      %v390 = vld [vmem:[%s214 + $0x508] sm:$0xff]
      %v391 = vld [vmem:[%s214 + $0x510] sm:$0xff]
      %v392 = vld [vmem:[%s214 + $0x518] sm:$0xff]
      %v393 = vld [vmem:[%s214 + $0x520] sm:$0xff]
      %v394 = vld [vmem:[%s214 + $0x528] sm:$0xff]
      %v395 = vld [vmem:[%s214 + $0x530] sm:$0xff]
      %v396 = vld [vmem:[%s214 + $0x538] sm:$0xff]
      %v397 = vld [vmem:[%s214 + $0x540] sm:$0xff]
      %v398 = vld [vmem:[%s214 + $0x548] sm:$0xff]
      %v399 = vld [vmem:[%s214 + $0x550] sm:$0xff]
      %v400 = vld [vmem:[%s214 + $0x558] sm:$0xff]
      %v401 = vld [vmem:[%s214 + $0x560] sm:$0xff]
      %v402 = vld [vmem:[%s214 + $0x568] sm:$0xff]
      %v403 = vld [vmem:[%s214 + $0x570] sm:$0xff]
      %v404 = vld [vmem:[%s214 + $0x578] sm:$0xff]
      %v405 = vld [vmem:[%s214 + $0x580] sm:$0xff]
      %v406 = vld [vmem:[%s214 + $0x588] sm:$0xff]
      %v407 = vld [vmem:[%s214 + $0x590] sm:$0xff]
      %v408 = vld [vmem:[%s214 + $0x598] sm:$0xff]
      %v409 = vld [vmem:[%s214 + $0x5a0] sm:$0xff]
      %v410 = vld [vmem:[%s214 + $0x5a8] sm:$0xff]
      %v411 = vld [vmem:[%s214 + $0x5b0] sm:$0xff]
      %v412 = vld [vmem:[%s214 + $0x5b8] sm:$0xff]
      %v413 = vld [vmem:[%s214 + $0x5c0] sm:$0xff]
      %v414 = vld [vmem:[%s214 + $0x5c8] sm:$0xff]
      %v415 = vld [vmem:[%s214 + $0x5d0] sm:$0xff]
      %v416 = vld [vmem:[%s214 + $0x5d8] sm:$0xff]
      %v417 = vld [vmem:[%s214 + $0x5e0] sm:$0xff]
      %v418 = vld [vmem:[%s214 + $0x5e8] sm:$0xff]
      %v419 = vld [vmem:[%s214 + $0x5f0] sm:$0xff]
      %v420 = vld [vmem:[%s214 + $0x5f8] sm:$0xff]
      %v421 = vld [vmem:[%s214 + $0x600] sm:$0xff]
      %v422 = vld [vmem:[%s214 + $0x608] sm:$0xff]
      %v423 = vld [vmem:[%s214 + $0x610] sm:$0xff]
      %v424 = vld [vmem:[%s214 + $0x618] sm:$0xff]
      %v425 = vld [vmem:[%s214 + $0x620] sm:$0xff]
      %v426 = vld [vmem:[%s214 + $0x628] sm:$0xff]
      %v427 = vld [vmem:[%s214 + $0x630] sm:$0xff]
      %v428 = vld [vmem:[%s214 + $0x638] sm:$0xff]
      %v429 = vld [vmem:[%s214 + $0x640] sm:$0xff]
      %v430 = vld [vmem:[%s214 + $0x648] sm:$0xff]
      %v431 = vld [vmem:[%s214 + $0x650] sm:$0xff]
      %v432 = vld [vmem:[%s214 + $0x658] sm:$0xff]
      %v433 = vld [vmem:[%s214 + $0x660] sm:$0xff]
      %v434 = vld [vmem:[%s214 + $0x668] sm:$0xff]
      %v435 = vld [vmem:[%s214 + $0x670] sm:$0xff]
      %v436 = vld [vmem:[%s214 + $0x678] sm:$0xff]
      %v437 = vld [vmem:[%s214 + $0x680] sm:$0xff]
      %v438 = vld [vmem:[%s214 + $0x688] sm:$0xff]
      %v439 = vld [vmem:[%s214 + $0x690] sm:$0xff]
      %v440 = vld [vmem:[%s214 + $0x698] sm:$0xff]
      %v441 = vld [vmem:[%s214 + $0x6a0] sm:$0xff]
      %v442 = vld [vmem:[%s214 + $0x6a8] sm:$0xff]
      %v443 = vld [vmem:[%s214 + $0x6b0] sm:$0xff]
      %v444 = vld [vmem:[%s214 + $0x6b8] sm:$0xff]
      %v445 = vld [vmem:[%s214 + $0x6c0] sm:$0xff]
      %v446 = vld [vmem:[%s214 + $0x6c8] sm:$0xff]
      %v447 = vld [vmem:[%s214 + $0x6d0] sm:$0xff]
      %v448 = vld [vmem:[%s214 + $0x6d8] sm:$0xff]
      %v449 = vld [vmem:[%s214 + $0x6e0] sm:$0xff]
      %v450 = vld [vmem:[%s214 + $0x6e8] sm:$0xff]
      %v451 = vld [vmem:[%s214 + $0x6f0] sm:$0xff]
      %v452 = vld [vmem:[%s214 + $0x6f8] sm:$0xff]
      %v453 = vld [vmem:[%s214 + $0x700] sm:$0xff]
      %v454 = vld [vmem:[%s214 + $0x708] sm:$0xff]
      %v455 = vld [vmem:[%s214 + $0x710] sm:$0xff]
      %v456 = vld [vmem:[%s214 + $0x718] sm:$0xff]
      %v457 = vld [vmem:[%s214 + $0x720] sm:$0xff]
      %v458 = vld [vmem:[%s214 + $0x728] sm:$0xff]
      %v459 = vld [vmem:[%s214 + $0x730] sm:$0xff]
      %v460 = vld [vmem:[%s214 + $0x738] sm:$0xff]
      %v461 = vld [vmem:[%s214 + $0x740] sm:$0xff]
      %v462 = vld [vmem:[%s214 + $0x748] sm:$0xff]
      %v463 = vld [vmem:[%s214 + $0x750] sm:$0xff]
      %v464 = vld [vmem:[%s214 + $0x758] sm:$0xff]
      %v465 = vld [vmem:[%s214 + $0x760] sm:$0xff]
      %v466 = vld [vmem:[%s214 + $0x768] sm:$0xff]
      %v467 = vld [vmem:[%s214 + $0x770] sm:$0xff]
      %v468 = vld [vmem:[%s214 + $0x778] sm:$0xff]
      %v469 = vld [vmem:[%s214 + $0x780] sm:$0xff]
      %v470 = vld [vmem:[%s214 + $0x788] sm:$0xff]
      %v471 = vld [vmem:[%s214 + $0x790] sm:$0xff]
      %v472 = vld [vmem:[%s214 + $0x798] sm:$0xff]
      %v473 = vld [vmem:[%s214 + $0x7a0] sm:$0xff]
      %v474 = vld [vmem:[%s214 + $0x7a8] sm:$0xff]
      %v475 = vld [vmem:[%s214 + $0x7b0] sm:$0xff]
      %v476 = vld [vmem:[%s214 + $0x7b8] sm:$0xff]
      %v477 = vld [vmem:[%s214 + $0x7c0] sm:$0xff]
      %v478 = vld [vmem:[%s214 + $0x7c8] sm:$0xff]
      %v479 = vld [vmem:[%s214 + $0x7d0] sm:$0xff]
      %v480 = vld [vmem:[%s214 + $0x7d8] sm:$0xff]
      %v481 = vld [vmem:[%s214 + $0x7e0] sm:$0xff]
      %v482 = vld [vmem:[%s214 + $0x7e8] sm:$0xff]
      %v483 = vld [vmem:[%s214 + $0x7f0] sm:$0xff]
      %v484 = vld [vmem:[%s214 + $0x7f8] sm:$0xff]
      %v485 = vld [vmem:[%s214 + $0x800] sm:$0xff]
      %v486 = vld [vmem:[%s214 + $0x808] sm:$0xff]
      %v487 = vld [vmem:[%s214 + $0x810] sm:$0xff]
      %v488 = vld [vmem:[%s214 + $0x818] sm:$0xff]
      %v489 = vld [vmem:[%s214 + $0x820] sm:$0xff]
      %v490 = vld [vmem:[%s214 + $0x828] sm:$0xff]
      %v491 = vld [vmem:[%s214 + $0x830] sm:$0xff]
      %v492 = vld [vmem:[%s214 + $0x838] sm:$0xff]
      %v493 = vld [vmem:[%s214 + $0x840] sm:$0xff]
      %v494 = vld [vmem:[%s214 + $0x848] sm:$0xff]
      %v495 = vld [vmem:[%s214 + $0x850] sm:$0xff]
      %v496 = vld [vmem:[%s214 + $0x858] sm:$0xff]
      %v497 = vld [vmem:[%s214 + $0x860] sm:$0xff]
      %v498 = vld [vmem:[%s214 + $0x868] sm:$0xff]
      %v499 = vld [vmem:[%s214 + $0x870] sm:$0xff]
      %v500 = vld [vmem:[%s214 + $0x878] sm:$0xff]
      %v501 = vld [vmem:[%s214 + $0x880] sm:$0xff]
      %v502 = vld [vmem:[%s214 + $0x888] sm:$0xff]
      %v503 = vld [vmem:[%s214 + $0x890] sm:$0xff]
      %v504 = vld [vmem:[%s214 + $0x898] sm:$0xff]
      %v505 = vld [vmem:[%s214 + $0x8a0] sm:$0xff]
      %v506 = vld [vmem:[%s214 + $0x8a8] sm:$0xff]
      %v507 = vld [vmem:[%s214 + $0x8b0] sm:$0xff]
      %v508 = vld [vmem:[%s214 + $0x8b8] sm:$0xff]
      %v509 = vld [vmem:[%s214 + $0x8c0] sm:$0xff]
      %v510 = vld [vmem:[%s214 + $0x8c8] sm:$0xff]
      %v511 = vld [vmem:[%s214 + $0x8d0] sm:$0xff]
      %v512 = vld [vmem:[%s214 + $0x8d8] sm:$0xff]
      %v513 = vld [vmem:[%s214 + $0x8e0] sm:$0xff]
      %v514 = vld [vmem:[%s214 + $0x8e8] sm:$0xff]
      %v515 = vld [vmem:[%s214 + $0x8f0] sm:$0xff]
      %v516 = vld [vmem:[%s214 + $0x8f8] sm:$0xff]
      %v517 = vld [vmem:[%s214 + $0x900] sm:$0xff]
      %v518 = vld [vmem:[%s214 + $0x908] sm:$0xff]
      %v519 = vld [vmem:[%s214 + $0x910] sm:$0xff]
      %v520 = vld [vmem:[%s214 + $0x918] sm:$0xff]
      %v521 = vld [vmem:[%s214 + $0x920] sm:$0xff]
      %v522 = vld [vmem:[%s214 + $0x928] sm:$0xff]
      %v523 = vld [vmem:[%s214 + $0x930] sm:$0xff]
      %v524 = vld [vmem:[%s214 + $0x938] sm:$0xff]
      %v525 = vld [vmem:[%s214 + $0x940] sm:$0xff]
      %v526 = vld [vmem:[%s214 + $0x948] sm:$0xff]
      %v527 = vld [vmem:[%s214 + $0x950] sm:$0xff]
      %v528 = vld [vmem:[%s214 + $0x958] sm:$0xff]
      %v529 = vld [vmem:[%s214 + $0x960] sm:$0xff]
      %v530 = vld [vmem:[%s214 + $0x968] sm:$0xff]
      %v531 = vld [vmem:[%s214 + $0x970] sm:$0xff]
      %v532 = vld [vmem:[%s214 + $0x978] sm:$0xff]
      %v533 = vld [vmem:[%s214 + $0x980] sm:$0xff]
      %v534 = vld [vmem:[%s214 + $0x988] sm:$0xff]
      %v535 = vld [vmem:[%s214 + $0x990] sm:$0xff]
      %v536 = vld [vmem:[%s214 + $0x998] sm:$0xff]
      %v537 = vld [vmem:[%s214 + $0x9a0] sm:$0xff]
      %v538 = vld [vmem:[%s214 + $0x9a8] sm:$0xff]
      %v539 = vld [vmem:[%s214 + $0x9b0] sm:$0xff]
      %v540 = vld [vmem:[%s214 + $0x9b8] sm:$0xff]
      %v541 = vld [vmem:[%s214 + $0x9c0] sm:$0xff]
      %v542 = vld [vmem:[%s214 + $0x9c8] sm:$0xff]
      %v543 = vld [vmem:[%s214 + $0x9d0] sm:$0xff]
      %v544 = vld [vmem:[%s214 + $0x9d8] sm:$0xff]
      %v545 = vld [vmem:[%s214 + $0x9e0] sm:$0xff]
      %v546 = vld [vmem:[%s214 + $0x9e8] sm:$0xff]
      %v547 = vld [vmem:[%s214 + $0x9f0] sm:$0xff]
      %v548 = vld [vmem:[%s214 + $0x9f8] sm:$0xff]
      %v549 = vld [vmem:[%s214 + $0xa00] sm:$0xff]
      %v550 = vld [vmem:[%s214 + $0xa08] sm:$0xff]
      %v551 = vld [vmem:[%s214 + $0xa10] sm:$0xff]
      %v552 = vld [vmem:[%s214 + $0xa18] sm:$0xff]
      %v553 = vld [vmem:[%s214 + $0xa20] sm:$0xff]
      %v554 = vld [vmem:[%s214 + $0xa28] sm:$0xff]
      %v555 = vld [vmem:[%s214 + $0xa30] sm:$0xff]
      %v556 = vld [vmem:[%s214 + $0xa38] sm:$0xff]
      %v557 = vld [vmem:[%s214 + $0xa40] sm:$0xff]
      %v558 = vld [vmem:[%s214 + $0xa48] sm:$0xff]
      %v559 = vld [vmem:[%s214 + $0xa50] sm:$0xff]
      %v560 = vld [vmem:[%s214 + $0xa58] sm:$0xff]
      %v561 = vld [vmem:[%s214 + $0xa60] sm:$0xff]
      %v562 = vld [vmem:[%s214 + $0xa68] sm:$0xff]
      %v563 = vld [vmem:[%s214 + $0xa70] sm:$0xff]
      %v564 = vld [vmem:[%s214 + $0xa78] sm:$0xff]
      %v565 = vld [vmem:[%s214 + $0xa80] sm:$0xff]
      %v566 = vld [vmem:[%s214 + $0xa88] sm:$0xff]
      %v567 = vld [vmem:[%s214 + $0xa90] sm:$0xff]
      %v568 = vld [vmem:[%s214 + $0xa98] sm:$0xff]
      %v569 = vld [vmem:[%s214 + $0xaa0] sm:$0xff]
      %v570 = vld [vmem:[%s214 + $0xaa8] sm:$0xff]
      %v571 = vld [vmem:[%s214 + $0xab0] sm:$0xff]
      %v572 = vld [vmem:[%s214 + $0xab8] sm:$0xff]
      %v573 = vld [vmem:[%s214 + $0xac0] sm:$0xff]
      %v574 = vld [vmem:[%s214 + $0xac8] sm:$0xff]
      %v575 = vld [vmem:[%s214 + $0xad0] sm:$0xff]
      %v576 = vld [vmem:[%s214 + $0xad8] sm:$0xff]
      %v577 = vld [vmem:[%s214 + $0xae0] sm:$0xff]
      %v578 = vld [vmem:[%s214 + $0xae8] sm:$0xff]
      %v579 = vld [vmem:[%s214 + $0xaf0] sm:$0xff]
      %v580 = vld [vmem:[%s214 + $0xaf8] sm:$0xff]
      %v581 = vld [vmem:[%s214 + $0xb00] sm:$0xff]
      %v582 = vld [vmem:[%s214 + $0xb08] sm:$0xff]
      %v583 = vld [vmem:[%s214 + $0xb10] sm:$0xff]
      %v584 = vld [vmem:[%s214 + $0xb18] sm:$0xff]
      %v585 = vld [vmem:[%s214 + $0xb20] sm:$0xff]
      %v586 = vld [vmem:[%s214 + $0xb28] sm:$0xff]
      %v587 = vld [vmem:[%s214 + $0xb30] sm:$0xff]
      %v588 = vld [vmem:[%s214 + $0xb38] sm:$0xff]
      %v589 = vld [vmem:[%s214 + $0xb40] sm:$0xff]
      %v590 = vld [vmem:[%s214 + $0xb48] sm:$0xff]
      %v591 = vld [vmem:[%s214 + $0xb50] sm:$0xff]
      %v592 = vld [vmem:[%s214 + $0xb58] sm:$0xff]
      %v593 = vld [vmem:[%s214 + $0xb60] sm:$0xff]
      %v594 = vld [vmem:[%s214 + $0xb68] sm:$0xff]
      %v595 = vld [vmem:[%s214 + $0xb70] sm:$0xff]
      %v596 = vld [vmem:[%s214 + $0xb78] sm:$0xff]
      %v597 = vld [vmem:[%s214 + $0xb80] sm:$0xff]
      %v598 = vld [vmem:[%s214 + $0xb88] sm:$0xff]
      %v599 = vld [vmem:[%s214 + $0xb90] sm:$0xff]
      %v600 = vld [vmem:[%s214 + $0xb98] sm:$0xff]
      %v601 = vld [vmem:[%s214 + $0xba0] sm:$0xff]
      %v602 = vld [vmem:[%s214 + $0xba8] sm:$0xff]
      %v603 = vld [vmem:[%s214 + $0xbb0] sm:$0xff]
      %v604 = vld [vmem:[%s214 + $0xbb8] sm:$0xff]
      %v605 = vld [vmem:[%s214 + $0xbc0] sm:$0xff]
      %v606 = vld [vmem:[%s214 + $0xbc8] sm:$0xff]
      %v607 = vld [vmem:[%s214 + $0xbd0] sm:$0xff]
      %v608 = vld [vmem:[%s214 + $0xbd8] sm:$0xff]
      %v609 = vld [vmem:[%s214 + $0xbe0] sm:$0xff]
      %v610 = vld [vmem:[%s214 + $0xbe8] sm:$0xff]
      %v611 = vld [vmem:[%s214 + $0xbf0] sm:$0xff]
      %v612 = vld [vmem:[%s214 + $0xbf8] sm:$0xff]
      %v613 = vld [vmem:[%s214 + $0xc00] sm:$0xff]
      %v614 = vld [vmem:[%s214 + $0xc08] sm:$0xff]
      %v615 = vld [vmem:[%s214 + $0xc10] sm:$0xff]
      %v616 = vld [vmem:[%s214 + $0xc18] sm:$0xff]
      %v617 = vld [vmem:[%s214 + $0xc20] sm:$0xff]
      %v618 = vld [vmem:[%s214 + $0xc28] sm:$0xff]
      %v619 = vld [vmem:[%s214 + $0xc30] sm:$0xff]
      %v620 = vld [vmem:[%s214 + $0xc38] sm:$0xff]
      %v621 = vld [vmem:[%s214 + $0xc40] sm:$0xff]
      %v622 = vld [vmem:[%s214 + $0xc48] sm:$0xff]
      %v623 = vld [vmem:[%s214 + $0xc50] sm:$0xff]
      %v624 = vld [vmem:[%s214 + $0xc58] sm:$0xff]
      %v625 = vld [vmem:[%s214 + $0xc60] sm:$0xff]
      %v626 = vld [vmem:[%s214 + $0xc68] sm:$0xff]
      %v627 = vld [vmem:[%s214 + $0xc70] sm:$0xff]
      %v628 = vld [vmem:[%s214 + $0xc78] sm:$0xff]
      %v629 = vld [vmem:[%s214 + $0xc80] sm:$0xff]
      %v630 = vld [vmem:[%s214 + $0xc88] sm:$0xff]
      %v631 = vld [vmem:[%s214 + $0xc90] sm:$0xff]
      %v632 = vld [vmem:[%s214 + $0xc98] sm:$0xff]
      %v633 = vld [vmem:[%s214 + $0xca0] sm:$0xff]
      %v634 = vld [vmem:[%s214 + $0xca8] sm:$0xff]
      %v635 = vld [vmem:[%s214 + $0xcb0] sm:$0xff]
      %v636 = vld [vmem:[%s214 + $0xcb8] sm:$0xff]
      %v637 = vld [vmem:[%s214 + $0xcc0] sm:$0xff]
      %v638 = vld [vmem:[%s214 + $0xcc8] sm:$0xff]
      %v639 = vld [vmem:[%s214 + $0xcd0] sm:$0xff]
      %v640 = vld [vmem:[%s214 + $0xcd8] sm:$0xff]
      %v641 = vld [vmem:[%s214 + $0xce0] sm:$0xff]
      %v642 = vld [vmem:[%s214 + $0xce8] sm:$0xff]
      %v643 = vld [vmem:[%s214 + $0xcf0] sm:$0xff]
      %v644 = vld [vmem:[%s214 + $0xcf8] sm:$0xff]
      %v645 = vld [vmem:[%s214 + $0xd00] sm:$0xff]
      %v646 = vld [vmem:[%s214 + $0xd08] sm:$0xff]
      %v647 = vld [vmem:[%s214 + $0xd10] sm:$0xff]
      %v648 = vld [vmem:[%s214 + $0xd18] sm:$0xff]
      %v649 = vld [vmem:[%s214 + $0xd20] sm:$0xff]
      %v650 = vld [vmem:[%s214 + $0xd28] sm:$0xff]
      %v651 = vld [vmem:[%s214 + $0xd30] sm:$0xff]
      %v652 = vld [vmem:[%s214 + $0xd38] sm:$0xff]
      %v653 = vld [vmem:[%s214 + $0xd40] sm:$0xff]
      %v654 = vld [vmem:[%s214 + $0xd48] sm:$0xff]
      %v655 = vld [vmem:[%s214 + $0xd50] sm:$0xff]
      %v656 = vld [vmem:[%s214 + $0xd58] sm:$0xff]
      %v657 = vld [vmem:[%s214 + $0xd60] sm:$0xff]
      %v658 = vld [vmem:[%s214 + $0xd68] sm:$0xff]
      %v659 = vld [vmem:[%s214 + $0xd70] sm:$0xff]
      %v660 = vld [vmem:[%s214 + $0xd78] sm:$0xff]
      %v661 = vld [vmem:[%s214 + $0xd80] sm:$0xff]
      %v662 = vld [vmem:[%s214 + $0xd88] sm:$0xff]
      %v663 = vld [vmem:[%s214 + $0xd90] sm:$0xff]
      %v664 = vld [vmem:[%s214 + $0xd98] sm:$0xff]
      %v665 = vld [vmem:[%s214 + $0xda0] sm:$0xff]
      %v666 = vld [vmem:[%s214 + $0xda8] sm:$0xff]
      %v667 = vld [vmem:[%s214 + $0xdb0] sm:$0xff]
      %v668 = vld [vmem:[%s214 + $0xdb8] sm:$0xff]
      %v669 = vld [vmem:[%s214 + $0xdc0] sm:$0xff]
      %v670 = vld [vmem:[%s214 + $0xdc8] sm:$0xff]
      %v671 = vld [vmem:[%s214 + $0xdd0] sm:$0xff]
      %v672 = vld [vmem:[%s214 + $0xdd8] sm:$0xff]
      %v673 = vld [vmem:[%s214 + $0xde0] sm:$0xff]
      %v674 = vld [vmem:[%s214 + $0xde8] sm:$0xff]
      %v675 = vld [vmem:[%s214 + $0xdf0] sm:$0xff]
      %v676 = vld [vmem:[%s214 + $0xdf8] sm:$0xff]
      %v677 = vld [vmem:[%s214 + $0xe00] sm:$0xff]
      %v678 = vld [vmem:[%s214 + $0xe08] sm:$0xff]
      %v679 = vld [vmem:[%s214 + $0xe10] sm:$0xff]
      %v680 = vld [vmem:[%s214 + $0xe18] sm:$0xff]
      %v681 = vld [vmem:[%s214 + $0xe20] sm:$0xff]
      %v682 = vld [vmem:[%s214 + $0xe28] sm:$0xff]
      %v683 = vld [vmem:[%s214 + $0xe30] sm:$0xff]
      %v684 = vld [vmem:[%s214 + $0xe38] sm:$0xff]
      %v685 = vld [vmem:[%s214 + $0xe40] sm:$0xff]
      %v686 = vld [vmem:[%s214 + $0xe48] sm:$0xff]
      %v687 = vld [vmem:[%s214 + $0xe50] sm:$0xff]
      %v688 = vld [vmem:[%s214 + $0xe58] sm:$0xff]
      %v689 = vld [vmem:[%s214 + $0xe60] sm:$0xff]
      %v690 = vld [vmem:[%s214 + $0xe68] sm:$0xff]
      %v691 = vld [vmem:[%s214 + $0xe70] sm:$0xff]
      %v692 = vld [vmem:[%s214 + $0xe78] sm:$0xff]
      %v693 = vld [vmem:[%s214 + $0xe80] sm:$0xff]
      %v694 = vld [vmem:[%s214 + $0xe88] sm:$0xff]
      %v695 = vld [vmem:[%s214 + $0xe90] sm:$0xff]
      %v696 = vld [vmem:[%s214 + $0xe98] sm:$0xff]
      %v697 = vld [vmem:[%s214 + $0xea0] sm:$0xff]
      %v698 = vld [vmem:[%s214 + $0xea8] sm:$0xff]
      %v699 = vld [vmem:[%s214 + $0xeb0] sm:$0xff]
      %v700 = vld [vmem:[%s214 + $0xeb8] sm:$0xff]
      %v701 = vld [vmem:[%s214 + $0xec0] sm:$0xff]
      %v702 = vld [vmem:[%s214 + $0xec8] sm:$0xff]
      %v703 = vld [vmem:[%s214 + $0xed0] sm:$0xff]
      %v704 = vld [vmem:[%s214 + $0xed8] sm:$0xff]
      %v705 = vld [vmem:[%s214 + $0xee0] sm:$0xff]
      %v706 = vld [vmem:[%s214 + $0xee8] sm:$0xff]
      %v707 = vld [vmem:[%s214 + $0xef0] sm:$0xff]
      %v708 = vld [vmem:[%s214 + $0xef8] sm:$0xff]
      %v709 = vld [vmem:[%s214 + $0xf00] sm:$0xff]
      %v710 = vld [vmem:[%s214 + $0xf08] sm:$0xff]
      %v711 = vld [vmem:[%s214 + $0xf10] sm:$0xff]
      %v712 = vld [vmem:[%s214 + $0xf18] sm:$0xff]
      %v713 = vld [vmem:[%s214 + $0xf20] sm:$0xff]
      %v714 = vld [vmem:[%s214 + $0xf28] sm:$0xff]
      %v715 = vld [vmem:[%s214 + $0xf30] sm:$0xff]
      %v716 = vld [vmem:[%s214 + $0xf38] sm:$0xff]
      %v717 = vld [vmem:[%s214 + $0xf40] sm:$0xff]
      %v718 = vld [vmem:[%s214 + $0xf48] sm:$0xff]
      %v719 = vld [vmem:[%s214 + $0xf50] sm:$0xff]
      %v720 = vld [vmem:[%s214 + $0xf58] sm:$0xff]
      %v721 = vld [vmem:[%s214 + $0xf60] sm:$0xff]
      %v722 = vld [vmem:[%s214 + $0xf68] sm:$0xff]
      %v723 = vld [vmem:[%s214 + $0xf70] sm:$0xff]
      %v724 = vld [vmem:[%s214 + $0xf78] sm:$0xff]
      %v725 = vld [vmem:[%s214 + $0xf80] sm:$0xff]
      %v726 = vld [vmem:[%s214 + $0xf88] sm:$0xff]
      %v727 = vld [vmem:[%s214 + $0xf90] sm:$0xff]
      %v728 = vld [vmem:[%s214 + $0xf98] sm:$0xff]
      %v729 = vld [vmem:[%s214 + $0xfa0] sm:$0xff]
      %v730 = vld [vmem:[%s214 + $0xfa8] sm:$0xff]
      %v731 = vld [vmem:[%s214 + $0xfb0] sm:$0xff]
      %v732 = vld [vmem:[%s214 + $0xfb8] sm:$0xff]
      %v733 = vld [vmem:[%s214 + $0xfc0] sm:$0xff]
      %v734 = vld [vmem:[%s214 + $0xfc8] sm:$0xff]
      %v735 = vld [vmem:[%s214 + $0xfd0] sm:$0xff]
      %v736 = vld [vmem:[%s214 + $0xfd8] sm:$0xff]
      %v737 = vld [vmem:[%s214 + $0xfe0] sm:$0xff]
      %v738 = vld [vmem:[%s214 + $0xfe8] sm:$0xff]
      %v739 = vld [vmem:[%s214 + $0xff0] sm:$0xff]
      %v740 = vld [vmem:[%s214 + $0xff8] sm:$0xff]
      %v743 = vcombine.high %v227, %v227
      %v745 = vunpack.c.l.s4 1966171168
      %v746 = vunpack.c.0.s8 %v745
      %v747 = vlaneseq
      %v748 = vshrl.u32 %v747, 7
      %v749 = vsub.s32 %v746, %v748
      %v750 = vrot.slane %v227, %v749
      %v752 = vunpack.c.l.s4 1966171168
      %v753 = vunpack.c.0.s8 %v752
      %v754 = vlaneseq
      %v755 = vshrl.u32 %v754, 7
      %v756 = vsub.s32 %v753, %v755
      %v757 = vrot.slane %v743, %v756
      %v758 = vcombine.high %v750, %v750
      %v759 = vcombine.high %v757, %v757
      %v761 = vunpack.c.l.s4 1966171168
      %v762 = vunpack.c.0.s8 %v761
      %v763 = vlaneseq
      %v764 = vshrl.u32 %v763, 7
      %v765 = vsub.s32 %v762, %v764
      %v766 = vrot.slane %v750, %v765
      %v768 = vunpack.c.l.s4 1966171168
      %v769 = vunpack.c.0.s8 %v768
      %v770 = vlaneseq
      %v771 = vshrl.u32 %v770, 7
      %v772 = vsub.s32 %v769, %v771
      %v773 = vrot.slane %v757, %v772
      %v775 = vunpack.c.l.s4 1966171168
      %v776 = vunpack.c.0.s8 %v775
      %v777 = vlaneseq
      %v778 = vshrl.u32 %v777, 7
      %v779 = vsub.s32 %v776, %v778
      %v780 = vrot.slane %v758, %v779
      %v782 = vunpack.c.l.s4 1966171168
      %v783 = vunpack.c.0.s8 %v782
      %v784 = vlaneseq
      %v785 = vshrl.u32 %v784, 7
      %v786 = vsub.s32 %v783, %v785
      %v787 = vrot.slane %v759, %v786
      %v788 = vcombine.high %v766, %v766
      %v789 = vcombine.high %v773, %v773
      %v790 = vcombine.high %v780, %v780
      %v791 = vcombine.high %v787, %v787
      %v792 = vcombine.high %v228, %v228
      %v794 = vunpack.c.l.s4 1966171168
      %v795 = vunpack.c.0.s8 %v794
      %v796 = vlaneseq
      %v797 = vshrl.u32 %v796, 7
      %v798 = vsub.s32 %v795, %v797
      %v799 = vrot.slane %v228, %v798
      %v801 = vunpack.c.l.s4 1966171168
      %v802 = vunpack.c.0.s8 %v801
      %v803 = vlaneseq
      %v804 = vshrl.u32 %v803, 7
      %v805 = vsub.s32 %v802, %v804
      %v806 = vrot.slane %v792, %v805
      %v807 = vcombine.high %v799, %v799
      %v808 = vcombine.high %v806, %v806
      %v810 = vunpack.c.l.s4 1966171168
      %v811 = vunpack.c.0.s8 %v810
      %v812 = vlaneseq
      %v813 = vshrl.u32 %v812, 7
      %v814 = vsub.s32 %v811, %v813
      %v815 = vrot.slane %v799, %v814
      %v817 = vunpack.c.l.s4 1966171168
      %v818 = vunpack.c.0.s8 %v817
      %v819 = vlaneseq
      %v820 = vshrl.u32 %v819, 7
      %v821 = vsub.s32 %v818, %v820
      %v822 = vrot.slane %v806, %v821
      %v824 = vunpack.c.l.s4 1966171168
      %v825 = vunpack.c.0.s8 %v824
      %v826 = vlaneseq
      %v827 = vshrl.u32 %v826, 7
      %v828 = vsub.s32 %v825, %v827
      %v829 = vrot.slane %v807, %v828
      %v831 = vunpack.c.l.s4 1966171168
      %v832 = vunpack.c.0.s8 %v831
      %v833 = vlaneseq
      %v834 = vshrl.u32 %v833, 7
      %v835 = vsub.s32 %v832, %v834
      %v836 = vrot.slane %v808, %v835
      %v837 = vcombine.high %v815, %v815
      %v838 = vcombine.high %v822, %v822
      %v839 = vcombine.high %v829, %v829
      %v840 = vcombine.high %v836, %v836
      %v1369 = vunpack.c.l.b16 %v229
      %v1370 = vunpack.c.h.b16 %v229
      %v1371 = vunpack.c.l.b16 %v230
      %v1372 = vunpack.c.h.b16 %v230
      %v1373 = vunpack.c.l.b16 %v231
      %v1374 = vunpack.c.h.b16 %v231
      %v1375 = vunpack.c.l.b16 %v232
      %v1376 = vunpack.c.h.b16 %v232
      %v1377 = vunpack.c.l.b16 %v233
      %v1378 = vunpack.c.h.b16 %v233
      %v1379 = vunpack.c.l.b16 %v234
      %v1380 = vunpack.c.h.b16 %v234
      %v1381 = vunpack.c.l.b16 %v235
      %v1382 = vunpack.c.h.b16 %v235
      %v1383 = vunpack.c.l.b16 %v236
      %v1384 = vunpack.c.h.b16 %v236
      %v1385 = vunpack.c.l.b16 %v237
      %v1386 = vunpack.c.h.b16 %v237
      %v1387 = vunpack.c.l.b16 %v238
      %v1388 = vunpack.c.h.b16 %v238
      %v1389 = vunpack.c.l.b16 %v239
      %v1390 = vunpack.c.h.b16 %v239
      %v1391 = vunpack.c.l.b16 %v240
      %v1392 = vunpack.c.h.b16 %v240
      %v1393 = vunpack.c.l.b16 %v241
      %v1394 = vunpack.c.h.b16 %v241
      %v1395 = vunpack.c.l.b16 %v242
      %v1396 = vunpack.c.h.b16 %v242
      %v1397 = vunpack.c.l.b16 %v243
      %v1398 = vunpack.c.h.b16 %v243
      %v1399 = vunpack.c.l.b16 %v244
      %v1400 = vunpack.c.h.b16 %v244
      %v1401 = vunpack.c.l.b16 %v245
      %v1402 = vunpack.c.h.b16 %v245
      %v1403 = vunpack.c.l.b16 %v246
      %v1404 = vunpack.c.h.b16 %v246
      %v1405 = vunpack.c.l.b16 %v247
      %v1406 = vunpack.c.h.b16 %v247
      %v1407 = vunpack.c.l.b16 %v248
      %v1408 = vunpack.c.h.b16 %v248
      %v1409 = vunpack.c.l.b16 %v249
      %v1410 = vunpack.c.h.b16 %v249
      %v1411 = vunpack.c.l.b16 %v250
      %v1412 = vunpack.c.h.b16 %v250
      %v1413 = vunpack.c.l.b16 %v251
      %v1414 = vunpack.c.h.b16 %v251
      %v1415 = vunpack.c.l.b16 %v252
      %v1416 = vunpack.c.h.b16 %v252
      %v1417 = vunpack.c.l.b16 %v253
      %v1418 = vunpack.c.h.b16 %v253
      %v1419 = vunpack.c.l.b16 %v254
      %v1420 = vunpack.c.h.b16 %v254
      %v1421 = vunpack.c.l.b16 %v255
      %v1422 = vunpack.c.h.b16 %v255
      %v1423 = vunpack.c.l.b16 %v256
      %v1424 = vunpack.c.h.b16 %v256
      %v1425 = vunpack.c.l.b16 %v257
      %v1426 = vunpack.c.h.b16 %v257
      %v1427 = vunpack.c.l.b16 %v258
      %v1428 = vunpack.c.h.b16 %v258
      %v1429 = vunpack.c.l.b16 %v259
      %v1430 = vunpack.c.h.b16 %v259
      %v1431 = vunpack.c.l.b16 %v260
      %v1432 = vunpack.c.h.b16 %v260
      %v1433 = vunpack.c.l.b16 %v261
      %v1434 = vunpack.c.h.b16 %v261
      %v1435 = vunpack.c.l.b16 %v262
      %v1436 = vunpack.c.h.b16 %v262
      %v1437 = vunpack.c.l.b16 %v263
      %v1438 = vunpack.c.h.b16 %v263
      %v1439 = vunpack.c.l.b16 %v264
      %v1440 = vunpack.c.h.b16 %v264
      %v1441 = vunpack.c.l.b16 %v265
      %v1442 = vunpack.c.h.b16 %v265
      %v1443 = vunpack.c.l.b16 %v266
      %v1444 = vunpack.c.h.b16 %v266
      %v1445 = vunpack.c.l.b16 %v267
      %v1446 = vunpack.c.h.b16 %v267
      %v1447 = vunpack.c.l.b16 %v268
      %v1448 = vunpack.c.h.b16 %v268
      %v1449 = vunpack.c.l.b16 %v269
      %v1450 = vunpack.c.h.b16 %v269
      %v1451 = vunpack.c.l.b16 %v270
      %v1452 = vunpack.c.h.b16 %v270
      %v1453 = vunpack.c.l.b16 %v271
      %v1454 = vunpack.c.h.b16 %v271
      %v1455 = vunpack.c.l.b16 %v272
      %v1456 = vunpack.c.h.b16 %v272
      %v1457 = vunpack.c.l.b16 %v273
      %v1458 = vunpack.c.h.b16 %v273
      %v1459 = vunpack.c.l.b16 %v274
      %v1460 = vunpack.c.h.b16 %v274
      %v1461 = vunpack.c.l.b16 %v275
      %v1462 = vunpack.c.h.b16 %v275
      %v1463 = vunpack.c.l.b16 %v276
      %v1464 = vunpack.c.h.b16 %v276
      %v1465 = vunpack.c.l.b16 %v277
      %v1466 = vunpack.c.h.b16 %v277
      %v1467 = vunpack.c.l.b16 %v278
      %v1468 = vunpack.c.h.b16 %v278
      %v1469 = vunpack.c.l.b16 %v279
      %v1470 = vunpack.c.h.b16 %v279
      %v1471 = vunpack.c.l.b16 %v280
      %v1472 = vunpack.c.h.b16 %v280
      %v1473 = vunpack.c.l.b16 %v281
      %v1474 = vunpack.c.h.b16 %v281
      %v1475 = vunpack.c.l.b16 %v282
      %v1476 = vunpack.c.h.b16 %v282
      %v1477 = vunpack.c.l.b16 %v283
      %v1478 = vunpack.c.h.b16 %v283
      %v1479 = vunpack.c.l.b16 %v284
      %v1480 = vunpack.c.h.b16 %v284
      %v1481 = vunpack.c.l.b16 %v285
      %v1482 = vunpack.c.h.b16 %v285
      %v1483 = vunpack.c.l.b16 %v286
      %v1484 = vunpack.c.h.b16 %v286
      %v1485 = vunpack.c.l.b16 %v287
      %v1486 = vunpack.c.h.b16 %v287
      %v1487 = vunpack.c.l.b16 %v288
      %v1488 = vunpack.c.h.b16 %v288
      %v1489 = vunpack.c.l.b16 %v289
      %v1490 = vunpack.c.h.b16 %v289
      %v1491 = vunpack.c.l.b16 %v290
      %v1492 = vunpack.c.h.b16 %v290
      %v1493 = vunpack.c.l.b16 %v291
      %v1494 = vunpack.c.h.b16 %v291
      %v1495 = vunpack.c.l.b16 %v292
      %v1496 = vunpack.c.h.b16 %v292
      %v1497 = vunpack.c.l.b16 %v293
      %v1498 = vunpack.c.h.b16 %v293
      %v1499 = vunpack.c.l.b16 %v294
      %v1500 = vunpack.c.h.b16 %v294
      %v1501 = vunpack.c.l.b16 %v295
      %v1502 = vunpack.c.h.b16 %v295
      %v1503 = vunpack.c.l.b16 %v296
      %v1504 = vunpack.c.h.b16 %v296
      %v1505 = vunpack.c.l.b16 %v297
      %v1506 = vunpack.c.h.b16 %v297
      %v1507 = vunpack.c.l.b16 %v298
      %v1508 = vunpack.c.h.b16 %v298
      %v1509 = vunpack.c.l.b16 %v299
      %v1510 = vunpack.c.h.b16 %v299
      %v1511 = vunpack.c.l.b16 %v300
      %v1512 = vunpack.c.h.b16 %v300
      %v1513 = vunpack.c.l.b16 %v301
      %v1514 = vunpack.c.h.b16 %v301
      %v1515 = vunpack.c.l.b16 %v302
      %v1516 = vunpack.c.h.b16 %v302
      %v1517 = vunpack.c.l.b16 %v303
      %v1518 = vunpack.c.h.b16 %v303
      %v1519 = vunpack.c.l.b16 %v304
      %v1520 = vunpack.c.h.b16 %v304
      %v1521 = vunpack.c.l.b16 %v305
      %v1522 = vunpack.c.h.b16 %v305
      %v1523 = vunpack.c.l.b16 %v306
      %v1524 = vunpack.c.h.b16 %v306
      %v1525 = vunpack.c.l.b16 %v307
      %v1526 = vunpack.c.h.b16 %v307
      %v1527 = vunpack.c.l.b16 %v308
      %v1528 = vunpack.c.h.b16 %v308
      %v1529 = vunpack.c.l.b16 %v309
      %v1530 = vunpack.c.h.b16 %v309
      %v1531 = vunpack.c.l.b16 %v310
      %v1532 = vunpack.c.h.b16 %v310
      %v1533 = vunpack.c.l.b16 %v311
      %v1534 = vunpack.c.h.b16 %v311
      %v1535 = vunpack.c.l.b16 %v312
      %v1536 = vunpack.c.h.b16 %v312
      %v1537 = vunpack.c.l.b16 %v313
      %v1538 = vunpack.c.h.b16 %v313
      %v1539 = vunpack.c.l.b16 %v314
      %v1540 = vunpack.c.h.b16 %v314
      %v1541 = vunpack.c.l.b16 %v315
      %v1542 = vunpack.c.h.b16 %v315
      %v1543 = vunpack.c.l.b16 %v316
      %v1544 = vunpack.c.h.b16 %v316
      %v1545 = vunpack.c.l.b16 %v317
      %v1546 = vunpack.c.h.b16 %v317
      %v1547 = vunpack.c.l.b16 %v318
      %v1548 = vunpack.c.h.b16 %v318
      %v1549 = vunpack.c.l.b16 %v319
      %v1550 = vunpack.c.h.b16 %v319
      %v1551 = vunpack.c.l.b16 %v320
      %v1552 = vunpack.c.h.b16 %v320
      %v1553 = vunpack.c.l.b16 %v321
      %v1554 = vunpack.c.h.b16 %v321
      %v1555 = vunpack.c.l.b16 %v322
      %v1556 = vunpack.c.h.b16 %v322
      %v1557 = vunpack.c.l.b16 %v323
      %v1558 = vunpack.c.h.b16 %v323
      %v1559 = vunpack.c.l.b16 %v324
      %v1560 = vunpack.c.h.b16 %v324
      %v1561 = vunpack.c.l.b16 %v325
      %v1562 = vunpack.c.h.b16 %v325
      %v1563 = vunpack.c.l.b16 %v326
      %v1564 = vunpack.c.h.b16 %v326
      %v1565 = vunpack.c.l.b16 %v327
      %v1566 = vunpack.c.h.b16 %v327
      %v1567 = vunpack.c.l.b16 %v328
      %v1568 = vunpack.c.h.b16 %v328
      %v1569 = vunpack.c.l.b16 %v329
      %v1570 = vunpack.c.h.b16 %v329
      %v1571 = vunpack.c.l.b16 %v330
      %v1572 = vunpack.c.h.b16 %v330
      %v1573 = vunpack.c.l.b16 %v331
      %v1574 = vunpack.c.h.b16 %v331
      %v1575 = vunpack.c.l.b16 %v332
      %v1576 = vunpack.c.h.b16 %v332
      %v1577 = vunpack.c.l.b16 %v333
      %v1578 = vunpack.c.h.b16 %v333
      %v1579 = vunpack.c.l.b16 %v334
      %v1580 = vunpack.c.h.b16 %v334
      %v1581 = vunpack.c.l.b16 %v335
      %v1582 = vunpack.c.h.b16 %v335
      %v1583 = vunpack.c.l.b16 %v336
      %v1584 = vunpack.c.h.b16 %v336
      %v1585 = vunpack.c.l.b16 %v337
      %v1586 = vunpack.c.h.b16 %v337
      %v1587 = vunpack.c.l.b16 %v338
      %v1588 = vunpack.c.h.b16 %v338
      %v1589 = vunpack.c.l.b16 %v339
      %v1590 = vunpack.c.h.b16 %v339
      %v1591 = vunpack.c.l.b16 %v340
      %v1592 = vunpack.c.h.b16 %v340
      %v1593 = vunpack.c.l.b16 %v341
      %v1594 = vunpack.c.h.b16 %v341
      %v1595 = vunpack.c.l.b16 %v342
      %v1596 = vunpack.c.h.b16 %v342
      %v1597 = vunpack.c.l.b16 %v343
      %v1598 = vunpack.c.h.b16 %v343
      %v1599 = vunpack.c.l.b16 %v344
      %v1600 = vunpack.c.h.b16 %v344
      %v1601 = vunpack.c.l.b16 %v345
      %v1602 = vunpack.c.h.b16 %v345
      %v1603 = vunpack.c.l.b16 %v346
      %v1604 = vunpack.c.h.b16 %v346
      %v1605 = vunpack.c.l.b16 %v347
      %v1606 = vunpack.c.h.b16 %v347
      %v1607 = vunpack.c.l.b16 %v348
      %v1608 = vunpack.c.h.b16 %v348
      %v1609 = vunpack.c.l.b16 %v349
      %v1610 = vunpack.c.h.b16 %v349
      %v1611 = vunpack.c.l.b16 %v350
      %v1612 = vunpack.c.h.b16 %v350
      %v1613 = vunpack.c.l.b16 %v351
      %v1614 = vunpack.c.h.b16 %v351
      %v1615 = vunpack.c.l.b16 %v352
      %v1616 = vunpack.c.h.b16 %v352
      %v1617 = vunpack.c.l.b16 %v353
      %v1618 = vunpack.c.h.b16 %v353
      %v1619 = vunpack.c.l.b16 %v354
      %v1620 = vunpack.c.h.b16 %v354
      %v1621 = vunpack.c.l.b16 %v355
      %v1622 = vunpack.c.h.b16 %v355
      %v1623 = vunpack.c.l.b16 %v356
      %v1624 = vunpack.c.h.b16 %v356
      %v1625 = vunpack.c.l.b16 %v357
      %v1626 = vunpack.c.h.b16 %v357
      %v1627 = vunpack.c.l.b16 %v358
      %v1628 = vunpack.c.h.b16 %v358
      %v1629 = vunpack.c.l.b16 %v359
      %v1630 = vunpack.c.h.b16 %v359
      %v1631 = vunpack.c.l.b16 %v360
      %v1632 = vunpack.c.h.b16 %v360
      %v1633 = vunpack.c.l.b16 %v361
      %v1634 = vunpack.c.h.b16 %v361
      %v1635 = vunpack.c.l.b16 %v362
      %v1636 = vunpack.c.h.b16 %v362
      %v1637 = vunpack.c.l.b16 %v363
      %v1638 = vunpack.c.h.b16 %v363
      %v1639 = vunpack.c.l.b16 %v364
      %v1640 = vunpack.c.h.b16 %v364
      %v1641 = vunpack.c.l.b16 %v365
      %v1642 = vunpack.c.h.b16 %v365
      %v1643 = vunpack.c.l.b16 %v366
      %v1644 = vunpack.c.h.b16 %v366
      %v1645 = vunpack.c.l.b16 %v367
      %v1646 = vunpack.c.h.b16 %v367
      %v1647 = vunpack.c.l.b16 %v368
      %v1648 = vunpack.c.h.b16 %v368
      %v1649 = vunpack.c.l.b16 %v369
      %v1650 = vunpack.c.h.b16 %v369
      %v1651 = vunpack.c.l.b16 %v370
      %v1652 = vunpack.c.h.b16 %v370
      %v1653 = vunpack.c.l.b16 %v371
      %v1654 = vunpack.c.h.b16 %v371
      %v1655 = vunpack.c.l.b16 %v372
      %v1656 = vunpack.c.h.b16 %v372
      %v1657 = vunpack.c.l.b16 %v373
      %v1658 = vunpack.c.h.b16 %v373
      %v1659 = vunpack.c.l.b16 %v374
      %v1660 = vunpack.c.h.b16 %v374
      %v1661 = vunpack.c.l.b16 %v375
      %v1662 = vunpack.c.h.b16 %v375
      %v1663 = vunpack.c.l.b16 %v376
      %v1664 = vunpack.c.h.b16 %v376
      %v1665 = vunpack.c.l.b16 %v377
      %v1666 = vunpack.c.h.b16 %v377
      %v1667 = vunpack.c.l.b16 %v378
      %v1668 = vunpack.c.h.b16 %v378
      %v1669 = vunpack.c.l.b16 %v379
      %v1670 = vunpack.c.h.b16 %v379
      %v1671 = vunpack.c.l.b16 %v380
      %v1672 = vunpack.c.h.b16 %v380
      %v1673 = vunpack.c.l.b16 %v381
      %v1674 = vunpack.c.h.b16 %v381
      %v1675 = vunpack.c.l.b16 %v382
      %v1676 = vunpack.c.h.b16 %v382
      %v1677 = vunpack.c.l.b16 %v383
      %v1678 = vunpack.c.h.b16 %v383
      %v1679 = vunpack.c.l.b16 %v384
      %v1680 = vunpack.c.h.b16 %v384
      %v1681 = vunpack.c.l.b16 %v385
      %v1682 = vunpack.c.h.b16 %v385
      %v1683 = vunpack.c.l.b16 %v386
      %v1684 = vunpack.c.h.b16 %v386
      %v1685 = vunpack.c.l.b16 %v387
      %v1686 = vunpack.c.h.b16 %v387
      %v1687 = vunpack.c.l.b16 %v388
      %v1688 = vunpack.c.h.b16 %v388
      %v1689 = vunpack.c.l.b16 %v389
      %v1690 = vunpack.c.h.b16 %v389
      %v1691 = vunpack.c.l.b16 %v390
      %v1692 = vunpack.c.h.b16 %v390
      %v1693 = vunpack.c.l.b16 %v391
      %v1694 = vunpack.c.h.b16 %v391
      %v1695 = vunpack.c.l.b16 %v392
      %v1696 = vunpack.c.h.b16 %v392
      %v1697 = vunpack.c.l.b16 %v393
      %v1698 = vunpack.c.h.b16 %v393
      %v1699 = vunpack.c.l.b16 %v394
      %v1700 = vunpack.c.h.b16 %v394
      %v1701 = vunpack.c.l.b16 %v395
      %v1702 = vunpack.c.h.b16 %v395
      %v1703 = vunpack.c.l.b16 %v396
      %v1704 = vunpack.c.h.b16 %v396
      %v1705 = vunpack.c.l.b16 %v397
      %v1706 = vunpack.c.h.b16 %v397
      %v1707 = vunpack.c.l.b16 %v398
      %v1708 = vunpack.c.h.b16 %v398
      %v1709 = vunpack.c.l.b16 %v399
      %v1710 = vunpack.c.h.b16 %v399
      %v1711 = vunpack.c.l.b16 %v400
      %v1712 = vunpack.c.h.b16 %v400
      %v1713 = vunpack.c.l.b16 %v401
      %v1714 = vunpack.c.h.b16 %v401
      %v1715 = vunpack.c.l.b16 %v402
      %v1716 = vunpack.c.h.b16 %v402
      %v1717 = vunpack.c.l.b16 %v403
      %v1718 = vunpack.c.h.b16 %v403
      %v1719 = vunpack.c.l.b16 %v404
      %v1720 = vunpack.c.h.b16 %v404
      %v1721 = vunpack.c.l.b16 %v405
      %v1722 = vunpack.c.h.b16 %v405
      %v1723 = vunpack.c.l.b16 %v406
      %v1724 = vunpack.c.h.b16 %v406
      %v1725 = vunpack.c.l.b16 %v407
      %v1726 = vunpack.c.h.b16 %v407
      %v1727 = vunpack.c.l.b16 %v408
      %v1728 = vunpack.c.h.b16 %v408
      %v1729 = vunpack.c.l.b16 %v409
      %v1730 = vunpack.c.h.b16 %v409
      %v1731 = vunpack.c.l.b16 %v410
      %v1732 = vunpack.c.h.b16 %v410
      %v1733 = vunpack.c.l.b16 %v411
      %v1734 = vunpack.c.h.b16 %v411
      %v1735 = vunpack.c.l.b16 %v412
      %v1736 = vunpack.c.h.b16 %v412
      %v1737 = vunpack.c.l.b16 %v413
      %v1738 = vunpack.c.h.b16 %v413
      %v1739 = vunpack.c.l.b16 %v414
      %v1740 = vunpack.c.h.b16 %v414
      %v1741 = vunpack.c.l.b16 %v415
      %v1742 = vunpack.c.h.b16 %v415
      %v1743 = vunpack.c.l.b16 %v416
      %v1744 = vunpack.c.h.b16 %v416
      %v1745 = vunpack.c.l.b16 %v417
      %v1746 = vunpack.c.h.b16 %v417
      %v1747 = vunpack.c.l.b16 %v418
      %v1748 = vunpack.c.h.b16 %v418
      %v1749 = vunpack.c.l.b16 %v419
      %v1750 = vunpack.c.h.b16 %v419
      %v1751 = vunpack.c.l.b16 %v420
      %v1752 = vunpack.c.h.b16 %v420
      %v1753 = vunpack.c.l.b16 %v421
      %v1754 = vunpack.c.h.b16 %v421
      %v1755 = vunpack.c.l.b16 %v422
      %v1756 = vunpack.c.h.b16 %v422
      %v1757 = vunpack.c.l.b16 %v423
      %v1758 = vunpack.c.h.b16 %v423
      %v1759 = vunpack.c.l.b16 %v424
      %v1760 = vunpack.c.h.b16 %v424
      %v1761 = vunpack.c.l.b16 %v425
      %v1762 = vunpack.c.h.b16 %v425
      %v1763 = vunpack.c.l.b16 %v426
      %v1764 = vunpack.c.h.b16 %v426
      %v1765 = vunpack.c.l.b16 %v427
      %v1766 = vunpack.c.h.b16 %v427
      %v1767 = vunpack.c.l.b16 %v428
      %v1768 = vunpack.c.h.b16 %v428
      %v1769 = vunpack.c.l.b16 %v429
      %v1770 = vunpack.c.h.b16 %v429
      %v1771 = vunpack.c.l.b16 %v430
      %v1772 = vunpack.c.h.b16 %v430
      %v1773 = vunpack.c.l.b16 %v431
      %v1774 = vunpack.c.h.b16 %v431
      %v1775 = vunpack.c.l.b16 %v432
      %v1776 = vunpack.c.h.b16 %v432
      %v1777 = vunpack.c.l.b16 %v433
      %v1778 = vunpack.c.h.b16 %v433
      %v1779 = vunpack.c.l.b16 %v434
      %v1780 = vunpack.c.h.b16 %v434
      %v1781 = vunpack.c.l.b16 %v435
      %v1782 = vunpack.c.h.b16 %v435
      %v1783 = vunpack.c.l.b16 %v436
      %v1784 = vunpack.c.h.b16 %v436
      %v1785 = vunpack.c.l.b16 %v437
      %v1786 = vunpack.c.h.b16 %v437
      %v1787 = vunpack.c.l.b16 %v438
      %v1788 = vunpack.c.h.b16 %v438
      %v1789 = vunpack.c.l.b16 %v439
      %v1790 = vunpack.c.h.b16 %v439
      %v1791 = vunpack.c.l.b16 %v440
      %v1792 = vunpack.c.h.b16 %v440
      %v1793 = vunpack.c.l.b16 %v441
      %v1794 = vunpack.c.h.b16 %v441
      %v1795 = vunpack.c.l.b16 %v442
      %v1796 = vunpack.c.h.b16 %v442
      %v1797 = vunpack.c.l.b16 %v443
      %v1798 = vunpack.c.h.b16 %v443
      %v1799 = vunpack.c.l.b16 %v444
      %v1800 = vunpack.c.h.b16 %v444
      %v1801 = vunpack.c.l.b16 %v445
      %v1802 = vunpack.c.h.b16 %v445
      %v1803 = vunpack.c.l.b16 %v446
      %v1804 = vunpack.c.h.b16 %v446
      %v1805 = vunpack.c.l.b16 %v447
      %v1806 = vunpack.c.h.b16 %v447
      %v1807 = vunpack.c.l.b16 %v448
      %v1808 = vunpack.c.h.b16 %v448
      %v1809 = vunpack.c.l.b16 %v449
      %v1810 = vunpack.c.h.b16 %v449
      %v1811 = vunpack.c.l.b16 %v450
      %v1812 = vunpack.c.h.b16 %v450
      %v1813 = vunpack.c.l.b16 %v451
      %v1814 = vunpack.c.h.b16 %v451
      %v1815 = vunpack.c.l.b16 %v452
      %v1816 = vunpack.c.h.b16 %v452
      %v1817 = vunpack.c.l.b16 %v453
      %v1818 = vunpack.c.h.b16 %v453
      %v1819 = vunpack.c.l.b16 %v454
      %v1820 = vunpack.c.h.b16 %v454
      %v1821 = vunpack.c.l.b16 %v455
      %v1822 = vunpack.c.h.b16 %v455
      %v1823 = vunpack.c.l.b16 %v456
      %v1824 = vunpack.c.h.b16 %v456
      %v1825 = vunpack.c.l.b16 %v457
      %v1826 = vunpack.c.h.b16 %v457
      %v1827 = vunpack.c.l.b16 %v458
      %v1828 = vunpack.c.h.b16 %v458
      %v1829 = vunpack.c.l.b16 %v459
      %v1830 = vunpack.c.h.b16 %v459
      %v1831 = vunpack.c.l.b16 %v460
      %v1832 = vunpack.c.h.b16 %v460
      %v1833 = vunpack.c.l.b16 %v461
      %v1834 = vunpack.c.h.b16 %v461
      %v1835 = vunpack.c.l.b16 %v462
      %v1836 = vunpack.c.h.b16 %v462
      %v1837 = vunpack.c.l.b16 %v463
      %v1838 = vunpack.c.h.b16 %v463
      %v1839 = vunpack.c.l.b16 %v464
      %v1840 = vunpack.c.h.b16 %v464
      %v1841 = vunpack.c.l.b16 %v465
      %v1842 = vunpack.c.h.b16 %v465
      %v1843 = vunpack.c.l.b16 %v466
      %v1844 = vunpack.c.h.b16 %v466
      %v1845 = vunpack.c.l.b16 %v467
      %v1846 = vunpack.c.h.b16 %v467
      %v1847 = vunpack.c.l.b16 %v468
      %v1848 = vunpack.c.h.b16 %v468
      %v1849 = vunpack.c.l.b16 %v469
      %v1850 = vunpack.c.h.b16 %v469
      %v1851 = vunpack.c.l.b16 %v470
      %v1852 = vunpack.c.h.b16 %v470
      %v1853 = vunpack.c.l.b16 %v471
      %v1854 = vunpack.c.h.b16 %v471
      %v1855 = vunpack.c.l.b16 %v472
      %v1856 = vunpack.c.h.b16 %v472
      %v1857 = vunpack.c.l.b16 %v473
      %v1858 = vunpack.c.h.b16 %v473
      %v1859 = vunpack.c.l.b16 %v474
      %v1860 = vunpack.c.h.b16 %v474
      %v1861 = vunpack.c.l.b16 %v475
      %v1862 = vunpack.c.h.b16 %v475
      %v1863 = vunpack.c.l.b16 %v476
      %v1864 = vunpack.c.h.b16 %v476
      %v1865 = vunpack.c.l.b16 %v477
      %v1866 = vunpack.c.h.b16 %v477
      %v1867 = vunpack.c.l.b16 %v478
      %v1868 = vunpack.c.h.b16 %v478
      %v1869 = vunpack.c.l.b16 %v479
      %v1870 = vunpack.c.h.b16 %v479
      %v1871 = vunpack.c.l.b16 %v480
      %v1872 = vunpack.c.h.b16 %v480
      %v1873 = vunpack.c.l.b16 %v481
      %v1874 = vunpack.c.h.b16 %v481
      %v1875 = vunpack.c.l.b16 %v482
      %v1876 = vunpack.c.h.b16 %v482
      %v1877 = vunpack.c.l.b16 %v483
      %v1878 = vunpack.c.h.b16 %v483
      %v1879 = vunpack.c.l.b16 %v484
      %v1880 = vunpack.c.h.b16 %v484
      %v1881 = vunpack.c.l.b16 %v485
      %v1882 = vunpack.c.h.b16 %v485
      %v1883 = vunpack.c.l.b16 %v486
      %v1884 = vunpack.c.h.b16 %v486
      %v1885 = vunpack.c.l.b16 %v487
      %v1886 = vunpack.c.h.b16 %v487
      %v1887 = vunpack.c.l.b16 %v488
      %v1888 = vunpack.c.h.b16 %v488
      %v1889 = vunpack.c.l.b16 %v489
      %v1890 = vunpack.c.h.b16 %v489
      %v1891 = vunpack.c.l.b16 %v490
      %v1892 = vunpack.c.h.b16 %v490
      %v1893 = vunpack.c.l.b16 %v491
      %v1894 = vunpack.c.h.b16 %v491
      %v1895 = vunpack.c.l.b16 %v492
      %v1896 = vunpack.c.h.b16 %v492
      %v1897 = vunpack.c.l.b16 %v493
      %v1898 = vunpack.c.h.b16 %v493
      %v1899 = vunpack.c.l.b16 %v494
      %v1900 = vunpack.c.h.b16 %v494
      %v1901 = vunpack.c.l.b16 %v495
      %v1902 = vunpack.c.h.b16 %v495
      %v1903 = vunpack.c.l.b16 %v496
      %v1904 = vunpack.c.h.b16 %v496
      %v1905 = vunpack.c.l.b16 %v497
      %v1906 = vunpack.c.h.b16 %v497
      %v1907 = vunpack.c.l.b16 %v498
      %v1908 = vunpack.c.h.b16 %v498
      %v1909 = vunpack.c.l.b16 %v499
      %v1910 = vunpack.c.h.b16 %v499
      %v1911 = vunpack.c.l.b16 %v500
      %v1912 = vunpack.c.h.b16 %v500
      %v1913 = vunpack.c.l.b16 %v501
      %v1914 = vunpack.c.h.b16 %v501
      %v1915 = vunpack.c.l.b16 %v502
      %v1916 = vunpack.c.h.b16 %v502
      %v1917 = vunpack.c.l.b16 %v503
      %v1918 = vunpack.c.h.b16 %v503
      %v1919 = vunpack.c.l.b16 %v504
      %v1920 = vunpack.c.h.b16 %v504
      %v1921 = vunpack.c.l.b16 %v505
      %v1922 = vunpack.c.h.b16 %v505
      %v1923 = vunpack.c.l.b16 %v506
      %v1924 = vunpack.c.h.b16 %v506
      %v1925 = vunpack.c.l.b16 %v507
      %v1926 = vunpack.c.h.b16 %v507
      %v1927 = vunpack.c.l.b16 %v508
      %v1928 = vunpack.c.h.b16 %v508
      %v1929 = vunpack.c.l.b16 %v509
      %v1930 = vunpack.c.h.b16 %v509
      %v1931 = vunpack.c.l.b16 %v510
      %v1932 = vunpack.c.h.b16 %v510
      %v1933 = vunpack.c.l.b16 %v511
      %v1934 = vunpack.c.h.b16 %v511
      %v1935 = vunpack.c.l.b16 %v512
      %v1936 = vunpack.c.h.b16 %v512
      %v1937 = vunpack.c.l.b16 %v513
      %v1938 = vunpack.c.h.b16 %v513
      %v1939 = vunpack.c.l.b16 %v514
      %v1940 = vunpack.c.h.b16 %v514
      %v1941 = vunpack.c.l.b16 %v515
      %v1942 = vunpack.c.h.b16 %v515
      %v1943 = vunpack.c.l.b16 %v516
      %v1944 = vunpack.c.h.b16 %v516
      %v1945 = vunpack.c.l.b16 %v517
      %v1946 = vunpack.c.h.b16 %v517
      %v1947 = vunpack.c.l.b16 %v518
      %v1948 = vunpack.c.h.b16 %v518
      %v1949 = vunpack.c.l.b16 %v519
      %v1950 = vunpack.c.h.b16 %v519
      %v1951 = vunpack.c.l.b16 %v520
      %v1952 = vunpack.c.h.b16 %v520
      %v1953 = vunpack.c.l.b16 %v521
      %v1954 = vunpack.c.h.b16 %v521
      %v1955 = vunpack.c.l.b16 %v522
      %v1956 = vunpack.c.h.b16 %v522
      %v1957 = vunpack.c.l.b16 %v523
      %v1958 = vunpack.c.h.b16 %v523
      %v1959 = vunpack.c.l.b16 %v524
      %v1960 = vunpack.c.h.b16 %v524
      %v1961 = vunpack.c.l.b16 %v525
      %v1962 = vunpack.c.h.b16 %v525
      %v1963 = vunpack.c.l.b16 %v526
      %v1964 = vunpack.c.h.b16 %v526
      %v1965 = vunpack.c.l.b16 %v527
      %v1966 = vunpack.c.h.b16 %v527
      %v1967 = vunpack.c.l.b16 %v528
      %v1968 = vunpack.c.h.b16 %v528
      %v1969 = vunpack.c.l.b16 %v529
      %v1970 = vunpack.c.h.b16 %v529
      %v1971 = vunpack.c.l.b16 %v530
      %v1972 = vunpack.c.h.b16 %v530
      %v1973 = vunpack.c.l.b16 %v531
      %v1974 = vunpack.c.h.b16 %v531
      %v1975 = vunpack.c.l.b16 %v532
      %v1976 = vunpack.c.h.b16 %v532
      %v1977 = vunpack.c.l.b16 %v533
      %v1978 = vunpack.c.h.b16 %v533
      %v1979 = vunpack.c.l.b16 %v534
      %v1980 = vunpack.c.h.b16 %v534
      %v1981 = vunpack.c.l.b16 %v535
      %v1982 = vunpack.c.h.b16 %v535
      %v1983 = vunpack.c.l.b16 %v536
      %v1984 = vunpack.c.h.b16 %v536
      %v1985 = vunpack.c.l.b16 %v537
      %v1986 = vunpack.c.h.b16 %v537
      %v1987 = vunpack.c.l.b16 %v538
      %v1988 = vunpack.c.h.b16 %v538
      %v1989 = vunpack.c.l.b16 %v539
      %v1990 = vunpack.c.h.b16 %v539
      %v1991 = vunpack.c.l.b16 %v540
      %v1992 = vunpack.c.h.b16 %v540
      %v1993 = vunpack.c.l.b16 %v541
      %v1994 = vunpack.c.h.b16 %v541
      %v1995 = vunpack.c.l.b16 %v542
      %v1996 = vunpack.c.h.b16 %v542
      %v1997 = vunpack.c.l.b16 %v543
      %v1998 = vunpack.c.h.b16 %v543
      %v1999 = vunpack.c.l.b16 %v544
      %v2000 = vunpack.c.h.b16 %v544
      %v2001 = vunpack.c.l.b16 %v545
      %v2002 = vunpack.c.h.b16 %v545
      %v2003 = vunpack.c.l.b16 %v546
      %v2004 = vunpack.c.h.b16 %v546
      %v2005 = vunpack.c.l.b16 %v547
      %v2006 = vunpack.c.h.b16 %v547
      %v2007 = vunpack.c.l.b16 %v548
      %v2008 = vunpack.c.h.b16 %v548
      %v2009 = vunpack.c.l.b16 %v549
      %v2010 = vunpack.c.h.b16 %v549
      %v2011 = vunpack.c.l.b16 %v550
      %v2012 = vunpack.c.h.b16 %v550
      %v2013 = vunpack.c.l.b16 %v551
      %v2014 = vunpack.c.h.b16 %v551
      %v2015 = vunpack.c.l.b16 %v552
      %v2016 = vunpack.c.h.b16 %v552
      %v2017 = vunpack.c.l.b16 %v553
      %v2018 = vunpack.c.h.b16 %v553
      %v2019 = vunpack.c.l.b16 %v554
      %v2020 = vunpack.c.h.b16 %v554
      %v2021 = vunpack.c.l.b16 %v555
      %v2022 = vunpack.c.h.b16 %v555
      %v2023 = vunpack.c.l.b16 %v556
      %v2024 = vunpack.c.h.b16 %v556
      %v2025 = vunpack.c.l.b16 %v557
      %v2026 = vunpack.c.h.b16 %v557
      %v2027 = vunpack.c.l.b16 %v558
      %v2028 = vunpack.c.h.b16 %v558
      %v2029 = vunpack.c.l.b16 %v559
      %v2030 = vunpack.c.h.b16 %v559
      %v2031 = vunpack.c.l.b16 %v560
      %v2032 = vunpack.c.h.b16 %v560
      %v2033 = vunpack.c.l.b16 %v561
      %v2034 = vunpack.c.h.b16 %v561
      %v2035 = vunpack.c.l.b16 %v562
      %v2036 = vunpack.c.h.b16 %v562
      %v2037 = vunpack.c.l.b16 %v563
      %v2038 = vunpack.c.h.b16 %v563
      %v2039 = vunpack.c.l.b16 %v564
      %v2040 = vunpack.c.h.b16 %v564
      %v2041 = vunpack.c.l.b16 %v565
      %v2042 = vunpack.c.h.b16 %v565
      %v2043 = vunpack.c.l.b16 %v566
      %v2044 = vunpack.c.h.b16 %v566
      %v2045 = vunpack.c.l.b16 %v567
      %v2046 = vunpack.c.h.b16 %v567
      %v2047 = vunpack.c.l.b16 %v568
      %v2048 = vunpack.c.h.b16 %v568
      %v2049 = vunpack.c.l.b16 %v569
      %v2050 = vunpack.c.h.b16 %v569
      %v2051 = vunpack.c.l.b16 %v570
      %v2052 = vunpack.c.h.b16 %v570
      %v2053 = vunpack.c.l.b16 %v571
      %v2054 = vunpack.c.h.b16 %v571
      %v2055 = vunpack.c.l.b16 %v572
      %v2056 = vunpack.c.h.b16 %v572
      %v2057 = vunpack.c.l.b16 %v573
      %v2058 = vunpack.c.h.b16 %v573
      %v2059 = vunpack.c.l.b16 %v574
      %v2060 = vunpack.c.h.b16 %v574
      %v2061 = vunpack.c.l.b16 %v575
      %v2062 = vunpack.c.h.b16 %v575
      %v2063 = vunpack.c.l.b16 %v576
      %v2064 = vunpack.c.h.b16 %v576
      %v2065 = vunpack.c.l.b16 %v577
      %v2066 = vunpack.c.h.b16 %v577
      %v2067 = vunpack.c.l.b16 %v578
      %v2068 = vunpack.c.h.b16 %v578
      %v2069 = vunpack.c.l.b16 %v579
      %v2070 = vunpack.c.h.b16 %v579
      %v2071 = vunpack.c.l.b16 %v580
      %v2072 = vunpack.c.h.b16 %v580
      %v2073 = vunpack.c.l.b16 %v581
      %v2074 = vunpack.c.h.b16 %v581
      %v2075 = vunpack.c.l.b16 %v582
      %v2076 = vunpack.c.h.b16 %v582
      %v2077 = vunpack.c.l.b16 %v583
      %v2078 = vunpack.c.h.b16 %v583
      %v2079 = vunpack.c.l.b16 %v584
      %v2080 = vunpack.c.h.b16 %v584
      %v2081 = vunpack.c.l.b16 %v585
      %v2082 = vunpack.c.h.b16 %v585
      %v2083 = vunpack.c.l.b16 %v586
      %v2084 = vunpack.c.h.b16 %v586
      %v2085 = vunpack.c.l.b16 %v587
      %v2086 = vunpack.c.h.b16 %v587
      %v2087 = vunpack.c.l.b16 %v588
      %v2088 = vunpack.c.h.b16 %v588
      %v2089 = vunpack.c.l.b16 %v589
      %v2090 = vunpack.c.h.b16 %v589
      %v2091 = vunpack.c.l.b16 %v590
      %v2092 = vunpack.c.h.b16 %v590
      %v2093 = vunpack.c.l.b16 %v591
      %v2094 = vunpack.c.h.b16 %v591
      %v2095 = vunpack.c.l.b16 %v592
      %v2096 = vunpack.c.h.b16 %v592
      %v2097 = vunpack.c.l.b16 %v593
      %v2098 = vunpack.c.h.b16 %v593
      %v2099 = vunpack.c.l.b16 %v594
      %v2100 = vunpack.c.h.b16 %v594
      %v2101 = vunpack.c.l.b16 %v595
      %v2102 = vunpack.c.h.b16 %v595
      %v2103 = vunpack.c.l.b16 %v596
      %v2104 = vunpack.c.h.b16 %v596
      %v2105 = vunpack.c.l.b16 %v597
      %v2106 = vunpack.c.h.b16 %v597
      %v2107 = vunpack.c.l.b16 %v598
      %v2108 = vunpack.c.h.b16 %v598
      %v2109 = vunpack.c.l.b16 %v599
      %v2110 = vunpack.c.h.b16 %v599
      %v2111 = vunpack.c.l.b16 %v600
      %v2112 = vunpack.c.h.b16 %v600
      %v2113 = vunpack.c.l.b16 %v601
      %v2114 = vunpack.c.h.b16 %v601
      %v2115 = vunpack.c.l.b16 %v602
      %v2116 = vunpack.c.h.b16 %v602
      %v2117 = vunpack.c.l.b16 %v603
      %v2118 = vunpack.c.h.b16 %v603
      %v2119 = vunpack.c.l.b16 %v604
      %v2120 = vunpack.c.h.b16 %v604
      %v2121 = vunpack.c.l.b16 %v605
      %v2122 = vunpack.c.h.b16 %v605
      %v2123 = vunpack.c.l.b16 %v606
      %v2124 = vunpack.c.h.b16 %v606
      %v2125 = vunpack.c.l.b16 %v607
      %v2126 = vunpack.c.h.b16 %v607
      %v2127 = vunpack.c.l.b16 %v608
      %v2128 = vunpack.c.h.b16 %v608
      %v2129 = vunpack.c.l.b16 %v609
      %v2130 = vunpack.c.h.b16 %v609
      %v2131 = vunpack.c.l.b16 %v610
      %v2132 = vunpack.c.h.b16 %v610
      %v2133 = vunpack.c.l.b16 %v611
      %v2134 = vunpack.c.h.b16 %v611
      %v2135 = vunpack.c.l.b16 %v612
      %v2136 = vunpack.c.h.b16 %v612
      %v2137 = vunpack.c.l.b16 %v613
      %v2138 = vunpack.c.h.b16 %v613
      %v2139 = vunpack.c.l.b16 %v614
      %v2140 = vunpack.c.h.b16 %v614
      %v2141 = vunpack.c.l.b16 %v615
      %v2142 = vunpack.c.h.b16 %v615
      %v2143 = vunpack.c.l.b16 %v616
      %v2144 = vunpack.c.h.b16 %v616
      %v2145 = vunpack.c.l.b16 %v617
      %v2146 = vunpack.c.h.b16 %v617
      %v2147 = vunpack.c.l.b16 %v618
      %v2148 = vunpack.c.h.b16 %v618
      %v2149 = vunpack.c.l.b16 %v619
      %v2150 = vunpack.c.h.b16 %v619
      %v2151 = vunpack.c.l.b16 %v620
      %v2152 = vunpack.c.h.b16 %v620
      %v2153 = vunpack.c.l.b16 %v621
      %v2154 = vunpack.c.h.b16 %v621
      %v2155 = vunpack.c.l.b16 %v622
      %v2156 = vunpack.c.h.b16 %v622
      %v2157 = vunpack.c.l.b16 %v623
      %v2158 = vunpack.c.h.b16 %v623
      %v2159 = vunpack.c.l.b16 %v624
      %v2160 = vunpack.c.h.b16 %v624
      %v2161 = vunpack.c.l.b16 %v625
      %v2162 = vunpack.c.h.b16 %v625
      %v2163 = vunpack.c.l.b16 %v626
      %v2164 = vunpack.c.h.b16 %v626
      %v2165 = vunpack.c.l.b16 %v627
      %v2166 = vunpack.c.h.b16 %v627
      %v2167 = vunpack.c.l.b16 %v628
      %v2168 = vunpack.c.h.b16 %v628
      %v2169 = vunpack.c.l.b16 %v629
      %v2170 = vunpack.c.h.b16 %v629
      %v2171 = vunpack.c.l.b16 %v630
      %v2172 = vunpack.c.h.b16 %v630
      %v2173 = vunpack.c.l.b16 %v631
      %v2174 = vunpack.c.h.b16 %v631
      %v2175 = vunpack.c.l.b16 %v632
      %v2176 = vunpack.c.h.b16 %v632
      %v2177 = vunpack.c.l.b16 %v633
      %v2178 = vunpack.c.h.b16 %v633
      %v2179 = vunpack.c.l.b16 %v634
      %v2180 = vunpack.c.h.b16 %v634
      %v2181 = vunpack.c.l.b16 %v635
      %v2182 = vunpack.c.h.b16 %v635
      %v2183 = vunpack.c.l.b16 %v636
      %v2184 = vunpack.c.h.b16 %v636
      %v2185 = vunpack.c.l.b16 %v637
      %v2186 = vunpack.c.h.b16 %v637
      %v2187 = vunpack.c.l.b16 %v638
      %v2188 = vunpack.c.h.b16 %v638
      %v2189 = vunpack.c.l.b16 %v639
      %v2190 = vunpack.c.h.b16 %v639
      %v2191 = vunpack.c.l.b16 %v640
      %v2192 = vunpack.c.h.b16 %v640
      %v2193 = vunpack.c.l.b16 %v641
      %v2194 = vunpack.c.h.b16 %v641
      %v2195 = vunpack.c.l.b16 %v642
      %v2196 = vunpack.c.h.b16 %v642
      %v2197 = vunpack.c.l.b16 %v643
      %v2198 = vunpack.c.h.b16 %v643
      %v2199 = vunpack.c.l.b16 %v644
      %v2200 = vunpack.c.h.b16 %v644
      %v2201 = vunpack.c.l.b16 %v645
      %v2202 = vunpack.c.h.b16 %v645
      %v2203 = vunpack.c.l.b16 %v646
      %v2204 = vunpack.c.h.b16 %v646
      %v2205 = vunpack.c.l.b16 %v647
      %v2206 = vunpack.c.h.b16 %v647
      %v2207 = vunpack.c.l.b16 %v648
      %v2208 = vunpack.c.h.b16 %v648
      %v2209 = vunpack.c.l.b16 %v649
      %v2210 = vunpack.c.h.b16 %v649
      %v2211 = vunpack.c.l.b16 %v650
      %v2212 = vunpack.c.h.b16 %v650
      %v2213 = vunpack.c.l.b16 %v651
      %v2214 = vunpack.c.h.b16 %v651
      %v2215 = vunpack.c.l.b16 %v652
      %v2216 = vunpack.c.h.b16 %v652
      %v2217 = vunpack.c.l.b16 %v653
      %v2218 = vunpack.c.h.b16 %v653
      %v2219 = vunpack.c.l.b16 %v654
      %v2220 = vunpack.c.h.b16 %v654
      %v2221 = vunpack.c.l.b16 %v655
      %v2222 = vunpack.c.h.b16 %v655
      %v2223 = vunpack.c.l.b16 %v656
      %v2224 = vunpack.c.h.b16 %v656
      %v2225 = vunpack.c.l.b16 %v657
      %v2226 = vunpack.c.h.b16 %v657
      %v2227 = vunpack.c.l.b16 %v658
      %v2228 = vunpack.c.h.b16 %v658
      %v2229 = vunpack.c.l.b16 %v659
      %v2230 = vunpack.c.h.b16 %v659
      %v2231 = vunpack.c.l.b16 %v660
      %v2232 = vunpack.c.h.b16 %v660
      %v2233 = vunpack.c.l.b16 %v661
      %v2234 = vunpack.c.h.b16 %v661
      %v2235 = vunpack.c.l.b16 %v662
      %v2236 = vunpack.c.h.b16 %v662
      %v2237 = vunpack.c.l.b16 %v663
      %v2238 = vunpack.c.h.b16 %v663
      %v2239 = vunpack.c.l.b16 %v664
      %v2240 = vunpack.c.h.b16 %v664
      %v2241 = vunpack.c.l.b16 %v665
      %v2242 = vunpack.c.h.b16 %v665
      %v2243 = vunpack.c.l.b16 %v666
      %v2244 = vunpack.c.h.b16 %v666
      %v2245 = vunpack.c.l.b16 %v667
      %v2246 = vunpack.c.h.b16 %v667
      %v2247 = vunpack.c.l.b16 %v668
      %v2248 = vunpack.c.h.b16 %v668
      %v2249 = vunpack.c.l.b16 %v669
      %v2250 = vunpack.c.h.b16 %v669
      %v2251 = vunpack.c.l.b16 %v670
      %v2252 = vunpack.c.h.b16 %v670
      %v2253 = vunpack.c.l.b16 %v671
      %v2254 = vunpack.c.h.b16 %v671
      %v2255 = vunpack.c.l.b16 %v672
      %v2256 = vunpack.c.h.b16 %v672
      %v2257 = vunpack.c.l.b16 %v673
      %v2258 = vunpack.c.h.b16 %v673
      %v2259 = vunpack.c.l.b16 %v674
      %v2260 = vunpack.c.h.b16 %v674
      %v2261 = vunpack.c.l.b16 %v675
      %v2262 = vunpack.c.h.b16 %v675
      %v2263 = vunpack.c.l.b16 %v676
      %v2264 = vunpack.c.h.b16 %v676
      %v2265 = vunpack.c.l.b16 %v677
      %v2266 = vunpack.c.h.b16 %v677
      %v2267 = vunpack.c.l.b16 %v678
      %v2268 = vunpack.c.h.b16 %v678
      %v2269 = vunpack.c.l.b16 %v679
      %v2270 = vunpack.c.h.b16 %v679
      %v2271 = vunpack.c.l.b16 %v680
      %v2272 = vunpack.c.h.b16 %v680
      %v2273 = vunpack.c.l.b16 %v681
      %v2274 = vunpack.c.h.b16 %v681
      %v2275 = vunpack.c.l.b16 %v682
      %v2276 = vunpack.c.h.b16 %v682
      %v2277 = vunpack.c.l.b16 %v683
      %v2278 = vunpack.c.h.b16 %v683
      %v2279 = vunpack.c.l.b16 %v684
      %v2280 = vunpack.c.h.b16 %v684
      %v2281 = vunpack.c.l.b16 %v685
      %v2282 = vunpack.c.h.b16 %v685
      %v2283 = vunpack.c.l.b16 %v686
      %v2284 = vunpack.c.h.b16 %v686
      %v2285 = vunpack.c.l.b16 %v687
      %v2286 = vunpack.c.h.b16 %v687
      %v2287 = vunpack.c.l.b16 %v688
      %v2288 = vunpack.c.h.b16 %v688
      %v2289 = vunpack.c.l.b16 %v689
      %v2290 = vunpack.c.h.b16 %v689
      %v2291 = vunpack.c.l.b16 %v690
      %v2292 = vunpack.c.h.b16 %v690
      %v2293 = vunpack.c.l.b16 %v691
      %v2294 = vunpack.c.h.b16 %v691
      %v2295 = vunpack.c.l.b16 %v692
      %v2296 = vunpack.c.h.b16 %v692
      %v2297 = vunpack.c.l.b16 %v693
      %v2298 = vunpack.c.h.b16 %v693
      %v2299 = vunpack.c.l.b16 %v694
      %v2300 = vunpack.c.h.b16 %v694
      %v2301 = vunpack.c.l.b16 %v695
      %v2302 = vunpack.c.h.b16 %v695
      %v2303 = vunpack.c.l.b16 %v696
      %v2304 = vunpack.c.h.b16 %v696
      %v2305 = vunpack.c.l.b16 %v697
      %v2306 = vunpack.c.h.b16 %v697
      %v2307 = vunpack.c.l.b16 %v698
      %v2308 = vunpack.c.h.b16 %v698
      %v2309 = vunpack.c.l.b16 %v699
      %v2310 = vunpack.c.h.b16 %v699
      %v2311 = vunpack.c.l.b16 %v700
      %v2312 = vunpack.c.h.b16 %v700
      %v2313 = vunpack.c.l.b16 %v701
      %v2314 = vunpack.c.h.b16 %v701
      %v2315 = vunpack.c.l.b16 %v702
      %v2316 = vunpack.c.h.b16 %v702
      %v2317 = vunpack.c.l.b16 %v703
      %v2318 = vunpack.c.h.b16 %v703
      %v2319 = vunpack.c.l.b16 %v704
      %v2320 = vunpack.c.h.b16 %v704
      %v2321 = vunpack.c.l.b16 %v705
      %v2322 = vunpack.c.h.b16 %v705
      %v2323 = vunpack.c.l.b16 %v706
      %v2324 = vunpack.c.h.b16 %v706
      %v2325 = vunpack.c.l.b16 %v707
      %v2326 = vunpack.c.h.b16 %v707
      %v2327 = vunpack.c.l.b16 %v708
      %v2328 = vunpack.c.h.b16 %v708
      %v2329 = vunpack.c.l.b16 %v709
      %v2330 = vunpack.c.h.b16 %v709
      %v2331 = vunpack.c.l.b16 %v710
      %v2332 = vunpack.c.h.b16 %v710
      %v2333 = vunpack.c.l.b16 %v711
      %v2334 = vunpack.c.h.b16 %v711
      %v2335 = vunpack.c.l.b16 %v712
      %v2336 = vunpack.c.h.b16 %v712
      %v2337 = vunpack.c.l.b16 %v713
      %v2338 = vunpack.c.h.b16 %v713
      %v2339 = vunpack.c.l.b16 %v714
      %v2340 = vunpack.c.h.b16 %v714
      %v2341 = vunpack.c.l.b16 %v715
      %v2342 = vunpack.c.h.b16 %v715
      %v2343 = vunpack.c.l.b16 %v716
      %v2344 = vunpack.c.h.b16 %v716
      %v2345 = vunpack.c.l.b16 %v717
      %v2346 = vunpack.c.h.b16 %v717
      %v2347 = vunpack.c.l.b16 %v718
      %v2348 = vunpack.c.h.b16 %v718
      %v2349 = vunpack.c.l.b16 %v719
      %v2350 = vunpack.c.h.b16 %v719
      %v2351 = vunpack.c.l.b16 %v720
      %v2352 = vunpack.c.h.b16 %v720
      %v2353 = vunpack.c.l.b16 %v721
      %v2354 = vunpack.c.h.b16 %v721
      %v2355 = vunpack.c.l.b16 %v722
      %v2356 = vunpack.c.h.b16 %v722
      %v2357 = vunpack.c.l.b16 %v723
      %v2358 = vunpack.c.h.b16 %v723
      %v2359 = vunpack.c.l.b16 %v724
      %v2360 = vunpack.c.h.b16 %v724
      %v2361 = vunpack.c.l.b16 %v725
      %v2362 = vunpack.c.h.b16 %v725
      %v2363 = vunpack.c.l.b16 %v726
      %v2364 = vunpack.c.h.b16 %v726
      %v2365 = vunpack.c.l.b16 %v727
      %v2366 = vunpack.c.h.b16 %v727
      %v2367 = vunpack.c.l.b16 %v728
      %v2368 = vunpack.c.h.b16 %v728
      %v2369 = vunpack.c.l.b16 %v729
      %v2370 = vunpack.c.h.b16 %v729
      %v2371 = vunpack.c.l.b16 %v730
      %v2372 = vunpack.c.h.b16 %v730
      %v2373 = vunpack.c.l.b16 %v731
      %v2374 = vunpack.c.h.b16 %v731
      %v2375 = vunpack.c.l.b16 %v732
      %v2376 = vunpack.c.h.b16 %v732
      %v2377 = vunpack.c.l.b16 %v733
      %v2378 = vunpack.c.h.b16 %v733
      %v2379 = vunpack.c.l.b16 %v734
      %v2380 = vunpack.c.h.b16 %v734
      %v2381 = vunpack.c.l.b16 %v735
      %v2382 = vunpack.c.h.b16 %v735
      %v2383 = vunpack.c.l.b16 %v736
      %v2384 = vunpack.c.h.b16 %v736
      %v2385 = vunpack.c.l.b16 %v737
      %v2386 = vunpack.c.h.b16 %v737
      %v2387 = vunpack.c.l.b16 %v738
      %v2388 = vunpack.c.h.b16 %v738
      %v2389 = vunpack.c.l.b16 %v739
      %v2390 = vunpack.c.h.b16 %v739
      %v2391 = vunpack.c.l.b16 %v740
      %v2392 = vunpack.c.h.b16 %v740
      %v2393 = vpack.c.b16 %v1373, %v1369
      %v2394 = vpack.c.b16 %v1374, %v1370
      %v2395 = vpack.c.b16 %v1375, %v1371
      %v2396 = vpack.c.b16 %v1376, %v1372
      %v2397 = vpack.c.b16 %v1381, %v1377
      %v2398 = vpack.c.b16 %v1382, %v1378
      %v2399 = vpack.c.b16 %v1383, %v1379
      %v2400 = vpack.c.b16 %v1384, %v1380
      %v2401 = vpack.c.b16 %v1389, %v1385
      %v2402 = vpack.c.b16 %v1390, %v1386
      %v2403 = vpack.c.b16 %v1391, %v1387
      %v2404 = vpack.c.b16 %v1392, %v1388
      %v2405 = vpack.c.b16 %v1397, %v1393
      %v2406 = vpack.c.b16 %v1398, %v1394
      %v2407 = vpack.c.b16 %v1399, %v1395
      %v2408 = vpack.c.b16 %v1400, %v1396
      %v2409 = vpack.c.b16 %v1405, %v1401
      %v2410 = vpack.c.b16 %v1406, %v1402
      %v2411 = vpack.c.b16 %v1407, %v1403
      %v2412 = vpack.c.b16 %v1408, %v1404
      %v2413 = vpack.c.b16 %v1413, %v1409
      %v2414 = vpack.c.b16 %v1414, %v1410
      %v2415 = vpack.c.b16 %v1415, %v1411
      %v2416 = vpack.c.b16 %v1416, %v1412
      %v2417 = vpack.c.b16 %v1421, %v1417
      %v2418 = vpack.c.b16 %v1422, %v1418
      %v2419 = vpack.c.b16 %v1423, %v1419
      %v2420 = vpack.c.b16 %v1424, %v1420
      %v2421 = vpack.c.b16 %v1429, %v1425
      %v2422 = vpack.c.b16 %v1430, %v1426
      %v2423 = vpack.c.b16 %v1431, %v1427
      %v2424 = vpack.c.b16 %v1432, %v1428
      %v2425 = vpack.c.b16 %v1437, %v1433
      %v2426 = vpack.c.b16 %v1438, %v1434
      %v2427 = vpack.c.b16 %v1439, %v1435
      %v2428 = vpack.c.b16 %v1440, %v1436
      %v2429 = vpack.c.b16 %v1445, %v1441
      %v2430 = vpack.c.b16 %v1446, %v1442
      %v2431 = vpack.c.b16 %v1447, %v1443
      %v2432 = vpack.c.b16 %v1448, %v1444
      %v2433 = vpack.c.b16 %v1453, %v1449
      %v2434 = vpack.c.b16 %v1454, %v1450
      %v2435 = vpack.c.b16 %v1455, %v1451
      %v2436 = vpack.c.b16 %v1456, %v1452
      %v2437 = vpack.c.b16 %v1461, %v1457
      %v2438 = vpack.c.b16 %v1462, %v1458
      %v2439 = vpack.c.b16 %v1463, %v1459
      %v2440 = vpack.c.b16 %v1464, %v1460
      %v2441 = vpack.c.b16 %v1469, %v1465
      %v2442 = vpack.c.b16 %v1470, %v1466
      %v2443 = vpack.c.b16 %v1471, %v1467
      %v2444 = vpack.c.b16 %v1472, %v1468
      %v2445 = vpack.c.b16 %v1477, %v1473
      %v2446 = vpack.c.b16 %v1478, %v1474
      %v2447 = vpack.c.b16 %v1479, %v1475
      %v2448 = vpack.c.b16 %v1480, %v1476
      %v2449 = vpack.c.b16 %v1485, %v1481
      %v2450 = vpack.c.b16 %v1486, %v1482
      %v2451 = vpack.c.b16 %v1487, %v1483
      %v2452 = vpack.c.b16 %v1488, %v1484
      %v2453 = vpack.c.b16 %v1493, %v1489
      %v2454 = vpack.c.b16 %v1494, %v1490
      %v2455 = vpack.c.b16 %v1495, %v1491
      %v2456 = vpack.c.b16 %v1496, %v1492
      %v2457 = vpack.c.b16 %v1501, %v1497
      %v2458 = vpack.c.b16 %v1502, %v1498
      %v2459 = vpack.c.b16 %v1503, %v1499
      %v2460 = vpack.c.b16 %v1504, %v1500
      %v2461 = vpack.c.b16 %v1509, %v1505
      %v2462 = vpack.c.b16 %v1510, %v1506
      %v2463 = vpack.c.b16 %v1511, %v1507
      %v2464 = vpack.c.b16 %v1512, %v1508
      %v2465 = vpack.c.b16 %v1517, %v1513
      %v2466 = vpack.c.b16 %v1518, %v1514
      %v2467 = vpack.c.b16 %v1519, %v1515
      %v2468 = vpack.c.b16 %v1520, %v1516
      %v2469 = vpack.c.b16 %v1525, %v1521
      %v2470 = vpack.c.b16 %v1526, %v1522
      %v2471 = vpack.c.b16 %v1527, %v1523
      %v2472 = vpack.c.b16 %v1528, %v1524
      %v2473 = vpack.c.b16 %v1533, %v1529
      %v2474 = vpack.c.b16 %v1534, %v1530
      %v2475 = vpack.c.b16 %v1535, %v1531
      %v2476 = vpack.c.b16 %v1536, %v1532
      %v2477 = vpack.c.b16 %v1541, %v1537
      %v2478 = vpack.c.b16 %v1542, %v1538
      %v2479 = vpack.c.b16 %v1543, %v1539
      %v2480 = vpack.c.b16 %v1544, %v1540
      %v2481 = vpack.c.b16 %v1549, %v1545
      %v2482 = vpack.c.b16 %v1550, %v1546
      %v2483 = vpack.c.b16 %v1551, %v1547
      %v2484 = vpack.c.b16 %v1552, %v1548
      %v2485 = vpack.c.b16 %v1557, %v1553
      %v2486 = vpack.c.b16 %v1558, %v1554
      %v2487 = vpack.c.b16 %v1559, %v1555
      %v2488 = vpack.c.b16 %v1560, %v1556
      %v2489 = vpack.c.b16 %v1565, %v1561
      %v2490 = vpack.c.b16 %v1566, %v1562
      %v2491 = vpack.c.b16 %v1567, %v1563
      %v2492 = vpack.c.b16 %v1568, %v1564
      %v2493 = vpack.c.b16 %v1573, %v1569
      %v2494 = vpack.c.b16 %v1574, %v1570
      %v2495 = vpack.c.b16 %v1575, %v1571
      %v2496 = vpack.c.b16 %v1576, %v1572
      %v2497 = vpack.c.b16 %v1581, %v1577
      %v2498 = vpack.c.b16 %v1582, %v1578
      %v2499 = vpack.c.b16 %v1583, %v1579
      %v2500 = vpack.c.b16 %v1584, %v1580
      %v2501 = vpack.c.b16 %v1589, %v1585
      %v2502 = vpack.c.b16 %v1590, %v1586
      %v2503 = vpack.c.b16 %v1591, %v1587
      %v2504 = vpack.c.b16 %v1592, %v1588
      %v2505 = vpack.c.b16 %v1597, %v1593
      %v2506 = vpack.c.b16 %v1598, %v1594
      %v2507 = vpack.c.b16 %v1599, %v1595
      %v2508 = vpack.c.b16 %v1600, %v1596
      %v2509 = vpack.c.b16 %v1605, %v1601
      %v2510 = vpack.c.b16 %v1606, %v1602
      %v2511 = vpack.c.b16 %v1607, %v1603
      %v2512 = vpack.c.b16 %v1608, %v1604
      %v2513 = vpack.c.b16 %v1613, %v1609
      %v2514 = vpack.c.b16 %v1614, %v1610
      %v2515 = vpack.c.b16 %v1615, %v1611
      %v2516 = vpack.c.b16 %v1616, %v1612
      %v2517 = vpack.c.b16 %v1621, %v1617
      %v2518 = vpack.c.b16 %v1622, %v1618
      %v2519 = vpack.c.b16 %v1623, %v1619
      %v2520 = vpack.c.b16 %v1624, %v1620
      %v2521 = vpack.c.b16 %v1629, %v1625
      %v2522 = vpack.c.b16 %v1630, %v1626
      %v2523 = vpack.c.b16 %v1631, %v1627
      %v2524 = vpack.c.b16 %v1632, %v1628
      %v2525 = vpack.c.b16 %v1637, %v1633
      %v2526 = vpack.c.b16 %v1638, %v1634
      %v2527 = vpack.c.b16 %v1639, %v1635
      %v2528 = vpack.c.b16 %v1640, %v1636
      %v2529 = vpack.c.b16 %v1645, %v1641
      %v2530 = vpack.c.b16 %v1646, %v1642
      %v2531 = vpack.c.b16 %v1647, %v1643
      %v2532 = vpack.c.b16 %v1648, %v1644
      %v2533 = vpack.c.b16 %v1653, %v1649
      %v2534 = vpack.c.b16 %v1654, %v1650
      %v2535 = vpack.c.b16 %v1655, %v1651
      %v2536 = vpack.c.b16 %v1656, %v1652
      %v2537 = vpack.c.b16 %v1661, %v1657
      %v2538 = vpack.c.b16 %v1662, %v1658
      %v2539 = vpack.c.b16 %v1663, %v1659
      %v2540 = vpack.c.b16 %v1664, %v1660
      %v2541 = vpack.c.b16 %v1669, %v1665
      %v2542 = vpack.c.b16 %v1670, %v1666
      %v2543 = vpack.c.b16 %v1671, %v1667
      %v2544 = vpack.c.b16 %v1672, %v1668
      %v2545 = vpack.c.b16 %v1677, %v1673
      %v2546 = vpack.c.b16 %v1678, %v1674
      %v2547 = vpack.c.b16 %v1679, %v1675
      %v2548 = vpack.c.b16 %v1680, %v1676
      %v2549 = vpack.c.b16 %v1685, %v1681
      %v2550 = vpack.c.b16 %v1686, %v1682
      %v2551 = vpack.c.b16 %v1687, %v1683
      %v2552 = vpack.c.b16 %v1688, %v1684
      %v2553 = vpack.c.b16 %v1693, %v1689
      %v2554 = vpack.c.b16 %v1694, %v1690
      %v2555 = vpack.c.b16 %v1695, %v1691
      %v2556 = vpack.c.b16 %v1696, %v1692
      %v2557 = vpack.c.b16 %v1701, %v1697
      %v2558 = vpack.c.b16 %v1702, %v1698
      %v2559 = vpack.c.b16 %v1703, %v1699
      %v2560 = vpack.c.b16 %v1704, %v1700
      %v2561 = vpack.c.b16 %v1709, %v1705
      %v2562 = vpack.c.b16 %v1710, %v1706
      %v2563 = vpack.c.b16 %v1711, %v1707
      %v2564 = vpack.c.b16 %v1712, %v1708
      %v2565 = vpack.c.b16 %v1717, %v1713
      %v2566 = vpack.c.b16 %v1718, %v1714
      %v2567 = vpack.c.b16 %v1719, %v1715
      %v2568 = vpack.c.b16 %v1720, %v1716
      %v2569 = vpack.c.b16 %v1725, %v1721
      %v2570 = vpack.c.b16 %v1726, %v1722
      %v2571 = vpack.c.b16 %v1727, %v1723
      %v2572 = vpack.c.b16 %v1728, %v1724
      %v2573 = vpack.c.b16 %v1733, %v1729
      %v2574 = vpack.c.b16 %v1734, %v1730
      %v2575 = vpack.c.b16 %v1735, %v1731
      %v2576 = vpack.c.b16 %v1736, %v1732
      %v2577 = vpack.c.b16 %v1741, %v1737
      %v2578 = vpack.c.b16 %v1742, %v1738
      %v2579 = vpack.c.b16 %v1743, %v1739
      %v2580 = vpack.c.b16 %v1744, %v1740
      %v2581 = vpack.c.b16 %v1749, %v1745
      %v2582 = vpack.c.b16 %v1750, %v1746
      %v2583 = vpack.c.b16 %v1751, %v1747
      %v2584 = vpack.c.b16 %v1752, %v1748
      %v2585 = vpack.c.b16 %v1757, %v1753
      %v2586 = vpack.c.b16 %v1758, %v1754
      %v2587 = vpack.c.b16 %v1759, %v1755
      %v2588 = vpack.c.b16 %v1760, %v1756
      %v2589 = vpack.c.b16 %v1765, %v1761
      %v2590 = vpack.c.b16 %v1766, %v1762
      %v2591 = vpack.c.b16 %v1767, %v1763
      %v2592 = vpack.c.b16 %v1768, %v1764
      %v2593 = vpack.c.b16 %v1773, %v1769
      %v2594 = vpack.c.b16 %v1774, %v1770
      %v2595 = vpack.c.b16 %v1775, %v1771
      %v2596 = vpack.c.b16 %v1776, %v1772
      %v2597 = vpack.c.b16 %v1781, %v1777
      %v2598 = vpack.c.b16 %v1782, %v1778
      %v2599 = vpack.c.b16 %v1783, %v1779
      %v2600 = vpack.c.b16 %v1784, %v1780
      %v2601 = vpack.c.b16 %v1789, %v1785
      %v2602 = vpack.c.b16 %v1790, %v1786
      %v2603 = vpack.c.b16 %v1791, %v1787
      %v2604 = vpack.c.b16 %v1792, %v1788
      %v2605 = vpack.c.b16 %v1797, %v1793
      %v2606 = vpack.c.b16 %v1798, %v1794
      %v2607 = vpack.c.b16 %v1799, %v1795
      %v2608 = vpack.c.b16 %v1800, %v1796
      %v2609 = vpack.c.b16 %v1805, %v1801
      %v2610 = vpack.c.b16 %v1806, %v1802
      %v2611 = vpack.c.b16 %v1807, %v1803
      %v2612 = vpack.c.b16 %v1808, %v1804
      %v2613 = vpack.c.b16 %v1813, %v1809
      %v2614 = vpack.c.b16 %v1814, %v1810
      %v2615 = vpack.c.b16 %v1815, %v1811
      %v2616 = vpack.c.b16 %v1816, %v1812
      %v2617 = vpack.c.b16 %v1821, %v1817
      %v2618 = vpack.c.b16 %v1822, %v1818
      %v2619 = vpack.c.b16 %v1823, %v1819
      %v2620 = vpack.c.b16 %v1824, %v1820
      %v2621 = vpack.c.b16 %v1829, %v1825
      %v2622 = vpack.c.b16 %v1830, %v1826
      %v2623 = vpack.c.b16 %v1831, %v1827
      %v2624 = vpack.c.b16 %v1832, %v1828
      %v2625 = vpack.c.b16 %v1837, %v1833
      %v2626 = vpack.c.b16 %v1838, %v1834
      %v2627 = vpack.c.b16 %v1839, %v1835
      %v2628 = vpack.c.b16 %v1840, %v1836
      %v2629 = vpack.c.b16 %v1845, %v1841
      %v2630 = vpack.c.b16 %v1846, %v1842
      %v2631 = vpack.c.b16 %v1847, %v1843
      %v2632 = vpack.c.b16 %v1848, %v1844
      %v2633 = vpack.c.b16 %v1853, %v1849
      %v2634 = vpack.c.b16 %v1854, %v1850
      %v2635 = vpack.c.b16 %v1855, %v1851
      %v2636 = vpack.c.b16 %v1856, %v1852
      %v2637 = vpack.c.b16 %v1861, %v1857
      %v2638 = vpack.c.b16 %v1862, %v1858
      %v2639 = vpack.c.b16 %v1863, %v1859
      %v2640 = vpack.c.b16 %v1864, %v1860
      %v2641 = vpack.c.b16 %v1869, %v1865
      %v2642 = vpack.c.b16 %v1870, %v1866
      %v2643 = vpack.c.b16 %v1871, %v1867
      %v2644 = vpack.c.b16 %v1872, %v1868
      %v2645 = vpack.c.b16 %v1877, %v1873
      %v2646 = vpack.c.b16 %v1878, %v1874
      %v2647 = vpack.c.b16 %v1879, %v1875
      %v2648 = vpack.c.b16 %v1880, %v1876
      %v2649 = vpack.c.b16 %v1885, %v1881
      %v2650 = vpack.c.b16 %v1886, %v1882
      %v2651 = vpack.c.b16 %v1887, %v1883
      %v2652 = vpack.c.b16 %v1888, %v1884
      %v2653 = vpack.c.b16 %v1893, %v1889
      %v2654 = vpack.c.b16 %v1894, %v1890
      %v2655 = vpack.c.b16 %v1895, %v1891
      %v2656 = vpack.c.b16 %v1896, %v1892
      %v2657 = vpack.c.b16 %v1901, %v1897
      %v2658 = vpack.c.b16 %v1902, %v1898
      %v2659 = vpack.c.b16 %v1903, %v1899
      %v2660 = vpack.c.b16 %v1904, %v1900
      %v2661 = vpack.c.b16 %v1909, %v1905
      %v2662 = vpack.c.b16 %v1910, %v1906
      %v2663 = vpack.c.b16 %v1911, %v1907
      %v2664 = vpack.c.b16 %v1912, %v1908
      %v2665 = vpack.c.b16 %v1917, %v1913
      %v2666 = vpack.c.b16 %v1918, %v1914
      %v2667 = vpack.c.b16 %v1919, %v1915
      %v2668 = vpack.c.b16 %v1920, %v1916
      %v2669 = vpack.c.b16 %v1925, %v1921
      %v2670 = vpack.c.b16 %v1926, %v1922
      %v2671 = vpack.c.b16 %v1927, %v1923
      %v2672 = vpack.c.b16 %v1928, %v1924
      %v2673 = vpack.c.b16 %v1933, %v1929
      %v2674 = vpack.c.b16 %v1934, %v1930
      %v2675 = vpack.c.b16 %v1935, %v1931
      %v2676 = vpack.c.b16 %v1936, %v1932
      %v2677 = vpack.c.b16 %v1941, %v1937
      %v2678 = vpack.c.b16 %v1942, %v1938
      %v2679 = vpack.c.b16 %v1943, %v1939
      %v2680 = vpack.c.b16 %v1944, %v1940
      %v2681 = vpack.c.b16 %v1949, %v1945
      %v2682 = vpack.c.b16 %v1950, %v1946
      %v2683 = vpack.c.b16 %v1951, %v1947
      %v2684 = vpack.c.b16 %v1952, %v1948
      %v2685 = vpack.c.b16 %v1957, %v1953
      %v2686 = vpack.c.b16 %v1958, %v1954
      %v2687 = vpack.c.b16 %v1959, %v1955
      %v2688 = vpack.c.b16 %v1960, %v1956
      %v2689 = vpack.c.b16 %v1965, %v1961
      %v2690 = vpack.c.b16 %v1966, %v1962
      %v2691 = vpack.c.b16 %v1967, %v1963
      %v2692 = vpack.c.b16 %v1968, %v1964
      %v2693 = vpack.c.b16 %v1973, %v1969
      %v2694 = vpack.c.b16 %v1974, %v1970
      %v2695 = vpack.c.b16 %v1975, %v1971
      %v2696 = vpack.c.b16 %v1976, %v1972
      %v2697 = vpack.c.b16 %v1981, %v1977
      %v2698 = vpack.c.b16 %v1982, %v1978
      %v2699 = vpack.c.b16 %v1983, %v1979
      %v2700 = vpack.c.b16 %v1984, %v1980
      %v2701 = vpack.c.b16 %v1989, %v1985
      %v2702 = vpack.c.b16 %v1990, %v1986
      %v2703 = vpack.c.b16 %v1991, %v1987
      %v2704 = vpack.c.b16 %v1992, %v1988
      %v2705 = vpack.c.b16 %v1997, %v1993
      %v2706 = vpack.c.b16 %v1998, %v1994
      %v2707 = vpack.c.b16 %v1999, %v1995
      %v2708 = vpack.c.b16 %v2000, %v1996
      %v2709 = vpack.c.b16 %v2005, %v2001
      %v2710 = vpack.c.b16 %v2006, %v2002
      %v2711 = vpack.c.b16 %v2007, %v2003
      %v2712 = vpack.c.b16 %v2008, %v2004
      %v2713 = vpack.c.b16 %v2013, %v2009
      %v2714 = vpack.c.b16 %v2014, %v2010
      %v2715 = vpack.c.b16 %v2015, %v2011
      %v2716 = vpack.c.b16 %v2016, %v2012
      %v2717 = vpack.c.b16 %v2021, %v2017
      %v2718 = vpack.c.b16 %v2022, %v2018
      %v2719 = vpack.c.b16 %v2023, %v2019
      %v2720 = vpack.c.b16 %v2024, %v2020
      %v2721 = vpack.c.b16 %v2029, %v2025
      %v2722 = vpack.c.b16 %v2030, %v2026
      %v2723 = vpack.c.b16 %v2031, %v2027
      %v2724 = vpack.c.b16 %v2032, %v2028
      %v2725 = vpack.c.b16 %v2037, %v2033
      %v2726 = vpack.c.b16 %v2038, %v2034
      %v2727 = vpack.c.b16 %v2039, %v2035
      %v2728 = vpack.c.b16 %v2040, %v2036
      %v2729 = vpack.c.b16 %v2045, %v2041
      %v2730 = vpack.c.b16 %v2046, %v2042
      %v2731 = vpack.c.b16 %v2047, %v2043
      %v2732 = vpack.c.b16 %v2048, %v2044
      %v2733 = vpack.c.b16 %v2053, %v2049
      %v2734 = vpack.c.b16 %v2054, %v2050
      %v2735 = vpack.c.b16 %v2055, %v2051
      %v2736 = vpack.c.b16 %v2056, %v2052
      %v2737 = vpack.c.b16 %v2061, %v2057
      %v2738 = vpack.c.b16 %v2062, %v2058
      %v2739 = vpack.c.b16 %v2063, %v2059
      %v2740 = vpack.c.b16 %v2064, %v2060
      %v2741 = vpack.c.b16 %v2069, %v2065
      %v2742 = vpack.c.b16 %v2070, %v2066
      %v2743 = vpack.c.b16 %v2071, %v2067
      %v2744 = vpack.c.b16 %v2072, %v2068
      %v2745 = vpack.c.b16 %v2077, %v2073
      %v2746 = vpack.c.b16 %v2078, %v2074
      %v2747 = vpack.c.b16 %v2079, %v2075
      %v2748 = vpack.c.b16 %v2080, %v2076
      %v2749 = vpack.c.b16 %v2085, %v2081
      %v2750 = vpack.c.b16 %v2086, %v2082
      %v2751 = vpack.c.b16 %v2087, %v2083
      %v2752 = vpack.c.b16 %v2088, %v2084
      %v2753 = vpack.c.b16 %v2093, %v2089
      %v2754 = vpack.c.b16 %v2094, %v2090
      %v2755 = vpack.c.b16 %v2095, %v2091
      %v2756 = vpack.c.b16 %v2096, %v2092
      %v2757 = vpack.c.b16 %v2101, %v2097
      %v2758 = vpack.c.b16 %v2102, %v2098
      %v2759 = vpack.c.b16 %v2103, %v2099
      %v2760 = vpack.c.b16 %v2104, %v2100
      %v2761 = vpack.c.b16 %v2109, %v2105
      %v2762 = vpack.c.b16 %v2110, %v2106
      %v2763 = vpack.c.b16 %v2111, %v2107
      %v2764 = vpack.c.b16 %v2112, %v2108
      %v2765 = vpack.c.b16 %v2117, %v2113
      %v2766 = vpack.c.b16 %v2118, %v2114
      %v2767 = vpack.c.b16 %v2119, %v2115
      %v2768 = vpack.c.b16 %v2120, %v2116
      %v2769 = vpack.c.b16 %v2125, %v2121
      %v2770 = vpack.c.b16 %v2126, %v2122
      %v2771 = vpack.c.b16 %v2127, %v2123
      %v2772 = vpack.c.b16 %v2128, %v2124
      %v2773 = vpack.c.b16 %v2133, %v2129
      %v2774 = vpack.c.b16 %v2134, %v2130
      %v2775 = vpack.c.b16 %v2135, %v2131
      %v2776 = vpack.c.b16 %v2136, %v2132
      %v2777 = vpack.c.b16 %v2141, %v2137
      %v2778 = vpack.c.b16 %v2142, %v2138
      %v2779 = vpack.c.b16 %v2143, %v2139
      %v2780 = vpack.c.b16 %v2144, %v2140
      %v2781 = vpack.c.b16 %v2149, %v2145
      %v2782 = vpack.c.b16 %v2150, %v2146
      %v2783 = vpack.c.b16 %v2151, %v2147
      %v2784 = vpack.c.b16 %v2152, %v2148
      %v2785 = vpack.c.b16 %v2157, %v2153
      %v2786 = vpack.c.b16 %v2158, %v2154
      %v2787 = vpack.c.b16 %v2159, %v2155
      %v2788 = vpack.c.b16 %v2160, %v2156
      %v2789 = vpack.c.b16 %v2165, %v2161
      %v2790 = vpack.c.b16 %v2166, %v2162
      %v2791 = vpack.c.b16 %v2167, %v2163
      %v2792 = vpack.c.b16 %v2168, %v2164
      %v2793 = vpack.c.b16 %v2173, %v2169
      %v2794 = vpack.c.b16 %v2174, %v2170
      %v2795 = vpack.c.b16 %v2175, %v2171
      %v2796 = vpack.c.b16 %v2176, %v2172
      %v2797 = vpack.c.b16 %v2181, %v2177
      %v2798 = vpack.c.b16 %v2182, %v2178
      %v2799 = vpack.c.b16 %v2183, %v2179
      %v2800 = vpack.c.b16 %v2184, %v2180
      %v2801 = vpack.c.b16 %v2189, %v2185
      %v2802 = vpack.c.b16 %v2190, %v2186
      %v2803 = vpack.c.b16 %v2191, %v2187
      %v2804 = vpack.c.b16 %v2192, %v2188
      %v2805 = vpack.c.b16 %v2197, %v2193
      %v2806 = vpack.c.b16 %v2198, %v2194
      %v2807 = vpack.c.b16 %v2199, %v2195
      %v2808 = vpack.c.b16 %v2200, %v2196
      %v2809 = vpack.c.b16 %v2205, %v2201
      %v2810 = vpack.c.b16 %v2206, %v2202
      %v2811 = vpack.c.b16 %v2207, %v2203
      %v2812 = vpack.c.b16 %v2208, %v2204
      %v2813 = vpack.c.b16 %v2213, %v2209
      %v2814 = vpack.c.b16 %v2214, %v2210
      %v2815 = vpack.c.b16 %v2215, %v2211
      %v2816 = vpack.c.b16 %v2216, %v2212
      %v2817 = vpack.c.b16 %v2221, %v2217
      %v2818 = vpack.c.b16 %v2222, %v2218
      %v2819 = vpack.c.b16 %v2223, %v2219
      %v2820 = vpack.c.b16 %v2224, %v2220
      %v2821 = vpack.c.b16 %v2229, %v2225
      %v2822 = vpack.c.b16 %v2230, %v2226
      %v2823 = vpack.c.b16 %v2231, %v2227
      %v2824 = vpack.c.b16 %v2232, %v2228
      %v2825 = vpack.c.b16 %v2237, %v2233
      %v2826 = vpack.c.b16 %v2238, %v2234
      %v2827 = vpack.c.b16 %v2239, %v2235
      %v2828 = vpack.c.b16 %v2240, %v2236
      %v2829 = vpack.c.b16 %v2245, %v2241
      %v2830 = vpack.c.b16 %v2246, %v2242
      %v2831 = vpack.c.b16 %v2247, %v2243
      %v2832 = vpack.c.b16 %v2248, %v2244
      %v2833 = vpack.c.b16 %v2253, %v2249
      %v2834 = vpack.c.b16 %v2254, %v2250
      %v2835 = vpack.c.b16 %v2255, %v2251
      %v2836 = vpack.c.b16 %v2256, %v2252
      %v2837 = vpack.c.b16 %v2261, %v2257
      %v2838 = vpack.c.b16 %v2262, %v2258
      %v2839 = vpack.c.b16 %v2263, %v2259
      %v2840 = vpack.c.b16 %v2264, %v2260
      %v2841 = vpack.c.b16 %v2269, %v2265
      %v2842 = vpack.c.b16 %v2270, %v2266
      %v2843 = vpack.c.b16 %v2271, %v2267
      %v2844 = vpack.c.b16 %v2272, %v2268
      %v2845 = vpack.c.b16 %v2277, %v2273
      %v2846 = vpack.c.b16 %v2278, %v2274
      %v2847 = vpack.c.b16 %v2279, %v2275
      %v2848 = vpack.c.b16 %v2280, %v2276
      %v2849 = vpack.c.b16 %v2285, %v2281
      %v2850 = vpack.c.b16 %v2286, %v2282
      %v2851 = vpack.c.b16 %v2287, %v2283
      %v2852 = vpack.c.b16 %v2288, %v2284
      %v2853 = vpack.c.b16 %v2293, %v2289
      %v2854 = vpack.c.b16 %v2294, %v2290
      %v2855 = vpack.c.b16 %v2295, %v2291
      %v2856 = vpack.c.b16 %v2296, %v2292
      %v2857 = vpack.c.b16 %v2301, %v2297
      %v2858 = vpack.c.b16 %v2302, %v2298
      %v2859 = vpack.c.b16 %v2303, %v2299
      %v2860 = vpack.c.b16 %v2304, %v2300
      %v2861 = vpack.c.b16 %v2309, %v2305
      %v2862 = vpack.c.b16 %v2310, %v2306
      %v2863 = vpack.c.b16 %v2311, %v2307
      %v2864 = vpack.c.b16 %v2312, %v2308
      %v2865 = vpack.c.b16 %v2317, %v2313
      %v2866 = vpack.c.b16 %v2318, %v2314
      %v2867 = vpack.c.b16 %v2319, %v2315
      %v2868 = vpack.c.b16 %v2320, %v2316
      %v2869 = vpack.c.b16 %v2325, %v2321
      %v2870 = vpack.c.b16 %v2326, %v2322
      %v2871 = vpack.c.b16 %v2327, %v2323
      %v2872 = vpack.c.b16 %v2328, %v2324
      %v2873 = vpack.c.b16 %v2333, %v2329
      %v2874 = vpack.c.b16 %v2334, %v2330
      %v2875 = vpack.c.b16 %v2335, %v2331
      %v2876 = vpack.c.b16 %v2336, %v2332
      %v2877 = vpack.c.b16 %v2341, %v2337
      %v2878 = vpack.c.b16 %v2342, %v2338
      %v2879 = vpack.c.b16 %v2343, %v2339
      %v2880 = vpack.c.b16 %v2344, %v2340
      %v2881 = vpack.c.b16 %v2349, %v2345
      %v2882 = vpack.c.b16 %v2350, %v2346
      %v2883 = vpack.c.b16 %v2351, %v2347
      %v2884 = vpack.c.b16 %v2352, %v2348
      %v2885 = vpack.c.b16 %v2357, %v2353
      %v2886 = vpack.c.b16 %v2358, %v2354
      %v2887 = vpack.c.b16 %v2359, %v2355
      %v2888 = vpack.c.b16 %v2360, %v2356
      %v2889 = vpack.c.b16 %v2365, %v2361
      %v2890 = vpack.c.b16 %v2366, %v2362
      %v2891 = vpack.c.b16 %v2367, %v2363
      %v2892 = vpack.c.b16 %v2368, %v2364
      %v2893 = vpack.c.b16 %v2373, %v2369
      %v2894 = vpack.c.b16 %v2374, %v2370
      %v2895 = vpack.c.b16 %v2375, %v2371
      %v2896 = vpack.c.b16 %v2376, %v2372
      %v2897 = vpack.c.b16 %v2381, %v2377
      %v2898 = vpack.c.b16 %v2382, %v2378
      %v2899 = vpack.c.b16 %v2383, %v2379
      %v2900 = vpack.c.b16 %v2384, %v2380
      %v2901 = vpack.c.b16 %v2389, %v2385
      %v2902 = vpack.c.b16 %v2390, %v2386
      %v2903 = vpack.c.b16 %v2391, %v2387
      %v2904 = vpack.c.b16 %v2392, %v2388
      %3417 = vmatprep.subr.bf16.mxu0 %v2394
      %3418 = vmatpush1.bf16.msra.mxu0 %v2393
      %3419 = vmatprep.subr.bf16.mxu0 %v2398
      %3420 = vmatpush1.bf16.msra.mxu0 %v2397
      %3421 = vmatprep.subr.bf16.mxu0 %v2402
      %3422 = vmatpush1.bf16.msra.mxu0 %v2401
      %3423 = vmatprep.subr.bf16.mxu0 %v2406
      %3424 = vmatpush1.bf16.msra.mxu0 %v2405
      %3425 = vmatprep.subr.bf16.mxu0 %v2410
      %3426 = vmatpush1.bf16.msra.mxu0 %v2409
      %3427 = vmatprep.subr.bf16.mxu0 %v2414
      %3428 = vmatpush1.bf16.msra.mxu0 %v2413
      %3429 = vmatprep.subr.bf16.mxu0 %v2418
      %3430 = vmatpush1.bf16.msra.mxu0 %v2417
      %3431 = vmatprep.subr.bf16.mxu0 %v2422
      %3432 = vmatpush1.bf16.msra.mxu0 %v2421
      %3433 = vmatprep.subr.bf16.mxu0 %v2426
      %3434 = vmatpush1.bf16.msra.mxu0 %v2425
      %3435 = vmatprep.subr.bf16.mxu0 %v2430
      %3436 = vmatpush1.bf16.msra.mxu0 %v2429
      %3437 = vmatprep.subr.bf16.mxu0 %v2434
      %3438 = vmatpush1.bf16.msra.mxu0 %v2433
      %3439 = vmatprep.subr.bf16.mxu0 %v2438
      %3440 = vmatpush1.bf16.msra.mxu0 %v2437
      %3441 = vmatprep.subr.bf16.mxu0 %v2442
      %3442 = vmatpush1.bf16.msra.mxu0 %v2441
      %3443 = vmatprep.subr.bf16.mxu0 %v2446
      %3444 = vmatpush1.bf16.msra.mxu0 %v2445
      %3445 = vmatprep.subr.bf16.mxu0 %v2450
      %3446 = vmatpush1.bf16.msra.mxu0 %v2449
      %3447 = vmatprep.subr.bf16.mxu0 %v2454
      %3448 = vmatpush1.bf16.msra.mxu0 %v2453
      %3449 = vmatprep.mubr.bf16.mxu0 %v780
      %3450 = vmatmul.mubr.bf16.gmra.mrb[0].mxu0 %v766
      %v3451 = vpop.f32.mrb[0].mxu0
      %v3452 = vadd.f32 0.0, %v3451
      %v3453 = vpop.f32.mrb[0].mxu0
      %v3454 = vadd.f32 0.0, %v3453
      %v3455 = vpop.f32.mrb[0].mxu0
      %v3456 = vpop.f32.mrb[0].mxu0
      %3457 = vdwg.mxu0
      %3458 = vmatprep.subr.bf16.mxu0 %v2458
      %3459 = vmatpush1.bf16.msra.mxu0 %v2457
      %3460 = vmatprep.subr.bf16.mxu0 %v2462
      %3461 = vmatpush1.bf16.msra.mxu0 %v2461
      %3462 = vmatprep.subr.bf16.mxu0 %v2466
      %3463 = vmatpush1.bf16.msra.mxu0 %v2465
      %3464 = vmatprep.subr.bf16.mxu0 %v2470
      %3465 = vmatpush1.bf16.msra.mxu0 %v2469
      %3466 = vmatprep.subr.bf16.mxu0 %v2474
      %3467 = vmatpush1.bf16.msra.mxu0 %v2473
      %3468 = vmatprep.subr.bf16.mxu0 %v2478
      %3469 = vmatpush1.bf16.msra.mxu0 %v2477
      %3470 = vmatprep.subr.bf16.mxu0 %v2482
      %3471 = vmatpush1.bf16.msra.mxu0 %v2481
      %3472 = vmatprep.subr.bf16.mxu0 %v2486
      %3473 = vmatpush1.bf16.msra.mxu0 %v2485
      %3474 = vmatprep.subr.bf16.mxu0 %v2490
      %3475 = vmatpush1.bf16.msra.mxu0 %v2489
      %3476 = vmatprep.subr.bf16.mxu0 %v2494
      %3477 = vmatpush1.bf16.msra.mxu0 %v2493
      %3478 = vmatprep.subr.bf16.mxu0 %v2498
      %3479 = vmatpush1.bf16.msra.mxu0 %v2497
      %3480 = vmatprep.subr.bf16.mxu0 %v2502
      %3481 = vmatpush1.bf16.msra.mxu0 %v2501
      %3482 = vmatprep.subr.bf16.mxu0 %v2506
      %3483 = vmatpush1.bf16.msra.mxu0 %v2505
      %3484 = vmatprep.subr.bf16.mxu0 %v2510
      %3485 = vmatpush1.bf16.msra.mxu0 %v2509
      %3486 = vmatprep.subr.bf16.mxu0 %v2514
      %3487 = vmatpush1.bf16.msra.mxu0 %v2513
      %3488 = vmatprep.subr.bf16.mxu0 %v2518
      %3489 = vmatpush1.bf16.msra.mxu0 %v2517
      %3490 = vmatprep.mubr.bf16.mxu0 %v790
      %3491 = vmatmul.mubr.bf16.gmra.mrb[0].mxu0 %v788
      %v3492 = vpop.f32.mrb[0].mxu0
      %v3493 = vadd.f32 %v3452, %v3492
      %v3494 = vpop.f32.mrb[0].mxu0
      %v3495 = vadd.f32 %v3454, %v3494
      %v3496 = vpop.f32.mrb[0].mxu0
      %v3497 = vpop.f32.mrb[0].mxu0
      %3498 = vdwg.mxu0
      %3499 = vmatprep.subr.bf16.mxu0 %v2522
      %3500 = vmatpush1.bf16.msra.mxu0 %v2521
      %3501 = vmatprep.subr.bf16.mxu0 %v2526
      %3502 = vmatpush1.bf16.msra.mxu0 %v2525
      %3503 = vmatprep.subr.bf16.mxu0 %v2530
      %3504 = vmatpush1.bf16.msra.mxu0 %v2529
      %3505 = vmatprep.subr.bf16.mxu0 %v2534
      %3506 = vmatpush1.bf16.msra.mxu0 %v2533
      %3507 = vmatprep.subr.bf16.mxu0 %v2538
      %3508 = vmatpush1.bf16.msra.mxu0 %v2537
      %3509 = vmatprep.subr.bf16.mxu0 %v2542
      %3510 = vmatpush1.bf16.msra.mxu0 %v2541
      %3511 = vmatprep.subr.bf16.mxu0 %v2546
      %3512 = vmatpush1.bf16.msra.mxu0 %v2545
      %3513 = vmatprep.subr.bf16.mxu0 %v2550
      %3514 = vmatpush1.bf16.msra.mxu0 %v2549
      %3515 = vmatprep.subr.bf16.mxu0 %v2554
      %3516 = vmatpush1.bf16.msra.mxu0 %v2553
      %3517 = vmatprep.subr.bf16.mxu0 %v2558
      %3518 = vmatpush1.bf16.msra.mxu0 %v2557
      %3519 = vmatprep.subr.bf16.mxu0 %v2562
      %3520 = vmatpush1.bf16.msra.mxu0 %v2561
      %3521 = vmatprep.subr.bf16.mxu0 %v2566
      %3522 = vmatpush1.bf16.msra.mxu0 %v2565
      %3523 = vmatprep.subr.bf16.mxu0 %v2570
      %3524 = vmatpush1.bf16.msra.mxu0 %v2569
      %3525 = vmatprep.subr.bf16.mxu0 %v2574
      %3526 = vmatpush1.bf16.msra.mxu0 %v2573
      %3527 = vmatprep.subr.bf16.mxu0 %v2578
      %3528 = vmatpush1.bf16.msra.mxu0 %v2577
      %3529 = vmatprep.subr.bf16.mxu0 %v2582
      %3530 = vmatpush1.bf16.msra.mxu0 %v2581
      %3531 = vmatprep.mubr.bf16.mxu0 %v787
      %3532 = vmatmul.mubr.bf16.gmra.mrb[0].mxu0 %v773
      %v3533 = vpop.f32.mrb[0].mxu0
      %v3534 = vadd.f32 %v3493, %v3533
      %v3535 = vpop.f32.mrb[0].mxu0
      %v3536 = vadd.f32 %v3495, %v3535
      %v3537 = vpop.f32.mrb[0].mxu0
      %v3538 = vpop.f32.mrb[0].mxu0
      %3539 = vdwg.mxu0
      %3540 = vmatprep.subr.bf16.mxu0 %v2586
      %3541 = vmatpush1.bf16.msra.mxu0 %v2585
      %3542 = vmatprep.subr.bf16.mxu0 %v2590
      %3543 = vmatpush1.bf16.msra.mxu0 %v2589
      %3544 = vmatprep.subr.bf16.mxu0 %v2594
      %3545 = vmatpush1.bf16.msra.mxu0 %v2593
      %3546 = vmatprep.subr.bf16.mxu0 %v2598
      %3547 = vmatpush1.bf16.msra.mxu0 %v2597
      %3548 = vmatprep.subr.bf16.mxu0 %v2602
      %3549 = vmatpush1.bf16.msra.mxu0 %v2601
      %3550 = vmatprep.subr.bf16.mxu0 %v2606
      %3551 = vmatpush1.bf16.msra.mxu0 %v2605
      %3552 = vmatprep.subr.bf16.mxu0 %v2610
      %3553 = vmatpush1.bf16.msra.mxu0 %v2609
      %3554 = vmatprep.subr.bf16.mxu0 %v2614
      %3555 = vmatpush1.bf16.msra.mxu0 %v2613
      %3556 = vmatprep.subr.bf16.mxu0 %v2618
      %3557 = vmatpush1.bf16.msra.mxu0 %v2617
      %3558 = vmatprep.subr.bf16.mxu0 %v2622
      %3559 = vmatpush1.bf16.msra.mxu0 %v2621
      %3560 = vmatprep.subr.bf16.mxu0 %v2626
      %3561 = vmatpush1.bf16.msra.mxu0 %v2625
      %3562 = vmatprep.subr.bf16.mxu0 %v2630
      %3563 = vmatpush1.bf16.msra.mxu0 %v2629
      %3564 = vmatprep.subr.bf16.mxu0 %v2634
      %3565 = vmatpush1.bf16.msra.mxu0 %v2633
      %3566 = vmatprep.subr.bf16.mxu0 %v2638
      %3567 = vmatpush1.bf16.msra.mxu0 %v2637
      %3568 = vmatprep.subr.bf16.mxu0 %v2642
      %3569 = vmatpush1.bf16.msra.mxu0 %v2641
      %3570 = vmatprep.subr.bf16.mxu0 %v2646
      %3571 = vmatpush1.bf16.msra.mxu0 %v2645
      %3572 = vmatprep.mubr.bf16.mxu0 %v791
      %3573 = vmatmul.mubr.bf16.gmra.mrb[0].mxu0 %v789
      %v3574 = vpop.f32.mrb[0].mxu0
      %v3575 = vadd.f32 %v3534, %v3574
      %v3576 = vpop.f32.mrb[0].mxu0
      %v3577 = vadd.f32 %v3536, %v3576
      %v3578 = vpop.f32.mrb[0].mxu0
      %v3579 = vpop.f32.mrb[0].mxu0
      %3580 = vdwg.mxu0
      %3581 = vmatprep.subr.bf16.mxu0 %v2650
      %3582 = vmatpush1.bf16.msra.mxu0 %v2649
      %3583 = vmatprep.subr.bf16.mxu0 %v2654
      %3584 = vmatpush1.bf16.msra.mxu0 %v2653
      %3585 = vmatprep.subr.bf16.mxu0 %v2658
      %3586 = vmatpush1.bf16.msra.mxu0 %v2657
      %3587 = vmatprep.subr.bf16.mxu0 %v2662
      %3588 = vmatpush1.bf16.msra.mxu0 %v2661
      %3589 = vmatprep.subr.bf16.mxu0 %v2666
      %3590 = vmatpush1.bf16.msra.mxu0 %v2665
      %3591 = vmatprep.subr.bf16.mxu0 %v2670
      %3592 = vmatpush1.bf16.msra.mxu0 %v2669
      %3593 = vmatprep.subr.bf16.mxu0 %v2674
      %3594 = vmatpush1.bf16.msra.mxu0 %v2673
      %3595 = vmatprep.subr.bf16.mxu0 %v2678
      %3596 = vmatpush1.bf16.msra.mxu0 %v2677
      %3597 = vmatprep.subr.bf16.mxu0 %v2682
      %3598 = vmatpush1.bf16.msra.mxu0 %v2681
      %3599 = vmatprep.subr.bf16.mxu0 %v2686
      %3600 = vmatpush1.bf16.msra.mxu0 %v2685
      %3601 = vmatprep.subr.bf16.mxu0 %v2690
      %3602 = vmatpush1.bf16.msra.mxu0 %v2689
      %3603 = vmatprep.subr.bf16.mxu0 %v2694
      %3604 = vmatpush1.bf16.msra.mxu0 %v2693
      %3605 = vmatprep.subr.bf16.mxu0 %v2698
      %3606 = vmatpush1.bf16.msra.mxu0 %v2697
      %3607 = vmatprep.subr.bf16.mxu0 %v2702
      %3608 = vmatpush1.bf16.msra.mxu0 %v2701
      %3609 = vmatprep.subr.bf16.mxu0 %v2706
      %3610 = vmatpush1.bf16.msra.mxu0 %v2705
      %3611 = vmatprep.subr.bf16.mxu0 %v2710
      %3612 = vmatpush1.bf16.msra.mxu0 %v2709
      %3613 = vmatprep.mubr.bf16.mxu0 %v829
      %3614 = vmatmul.mubr.bf16.gmra.mrb[0].mxu0 %v815
      %v3615 = vpop.f32.mrb[0].mxu0
      %v3616 = vadd.f32 %v3575, %v3615
      %v3617 = vpop.f32.mrb[0].mxu0
      %v3618 = vadd.f32 %v3577, %v3617
      %v3619 = vpop.f32.mrb[0].mxu0
      %v3620 = vpop.f32.mrb[0].mxu0
      %3621 = vdwg.mxu0
      %3622 = vmatprep.subr.bf16.mxu0 %v2714
      %3623 = vmatpush1.bf16.msra.mxu0 %v2713
      %3624 = vmatprep.subr.bf16.mxu0 %v2718
      %3625 = vmatpush1.bf16.msra.mxu0 %v2717
      %3626 = vmatprep.subr.bf16.mxu0 %v2722
      %3627 = vmatpush1.bf16.msra.mxu0 %v2721
      %3628 = vmatprep.subr.bf16.mxu0 %v2726
      %3629 = vmatpush1.bf16.msra.mxu0 %v2725
      %3630 = vmatprep.subr.bf16.mxu0 %v2730
      %3631 = vmatpush1.bf16.msra.mxu0 %v2729
      %3632 = vmatprep.subr.bf16.mxu0 %v2734
      %3633 = vmatpush1.bf16.msra.mxu0 %v2733
      %3634 = vmatprep.subr.bf16.mxu0 %v2738
      %3635 = vmatpush1.bf16.msra.mxu0 %v2737
      %3636 = vmatprep.subr.bf16.mxu0 %v2742
      %3637 = vmatpush1.bf16.msra.mxu0 %v2741
      %3638 = vmatprep.subr.bf16.mxu0 %v2746
      %3639 = vmatpush1.bf16.msra.mxu0 %v2745
      %3640 = vmatprep.subr.bf16.mxu0 %v2750
      %3641 = vmatpush1.bf16.msra.mxu0 %v2749
      %3642 = vmatprep.subr.bf16.mxu0 %v2754
      %3643 = vmatpush1.bf16.msra.mxu0 %v2753
      %3644 = vmatprep.subr.bf16.mxu0 %v2758
      %3645 = vmatpush1.bf16.msra.mxu0 %v2757
      %3646 = vmatprep.subr.bf16.mxu0 %v2762
      %3647 = vmatpush1.bf16.msra.mxu0 %v2761
      %3648 = vmatprep.subr.bf16.mxu0 %v2766
      %3649 = vmatpush1.bf16.msra.mxu0 %v2765
      %3650 = vmatprep.subr.bf16.mxu0 %v2770
      %3651 = vmatpush1.bf16.msra.mxu0 %v2769
      %3652 = vmatprep.subr.bf16.mxu0 %v2774
      %3653 = vmatpush1.bf16.msra.mxu0 %v2773
      %3654 = vmatprep.mubr.bf16.mxu0 %v839
      %3655 = vmatmul.mubr.bf16.gmra.mrb[0].mxu0 %v837
      %v3656 = vpop.f32.mrb[0].mxu0
      %v3657 = vadd.f32 %v3616, %v3656
      %v3658 = vpop.f32.mrb[0].mxu0
      %v3659 = vadd.f32 %v3618, %v3658
      %v3660 = vpop.f32.mrb[0].mxu0
      %v3661 = vpop.f32.mrb[0].mxu0
      %3662 = vdwg.mxu0
      %3663 = vmatprep.subr.bf16.mxu0 %v2778
      %3664 = vmatpush1.bf16.msra.mxu0 %v2777
      %3665 = vmatprep.subr.bf16.mxu0 %v2782
      %3666 = vmatpush1.bf16.msra.mxu0 %v2781
      %3667 = vmatprep.subr.bf16.mxu0 %v2786
      %3668 = vmatpush1.bf16.msra.mxu0 %v2785
      %3669 = vmatprep.subr.bf16.mxu0 %v2790
      %3670 = vmatpush1.bf16.msra.mxu0 %v2789
      %3671 = vmatprep.subr.bf16.mxu0 %v2794
      %3672 = vmatpush1.bf16.msra.mxu0 %v2793
      %3673 = vmatprep.subr.bf16.mxu0 %v2798
      %3674 = vmatpush1.bf16.msra.mxu0 %v2797
      %3675 = vmatprep.subr.bf16.mxu0 %v2802
      %3676 = vmatpush1.bf16.msra.mxu0 %v2801
      %3677 = vmatprep.subr.bf16.mxu0 %v2806
      %3678 = vmatpush1.bf16.msra.mxu0 %v2805
      %3679 = vmatprep.subr.bf16.mxu0 %v2810
      %3680 = vmatpush1.bf16.msra.mxu0 %v2809
      %3681 = vmatprep.subr.bf16.mxu0 %v2814
      %3682 = vmatpush1.bf16.msra.mxu0 %v2813
      %3683 = vmatprep.subr.bf16.mxu0 %v2818
      %3684 = vmatpush1.bf16.msra.mxu0 %v2817
      %3685 = vmatprep.subr.bf16.mxu0 %v2822
      %3686 = vmatpush1.bf16.msra.mxu0 %v2821
      %3687 = vmatprep.subr.bf16.mxu0 %v2826
      %3688 = vmatpush1.bf16.msra.mxu0 %v2825
      %3689 = vmatprep.subr.bf16.mxu0 %v2830
      %3690 = vmatpush1.bf16.msra.mxu0 %v2829
      %3691 = vmatprep.subr.bf16.mxu0 %v2834
      %3692 = vmatpush1.bf16.msra.mxu0 %v2833
      %3693 = vmatprep.subr.bf16.mxu0 %v2838
      %3694 = vmatpush1.bf16.msra.mxu0 %v2837
      %3695 = vmatprep.mubr.bf16.mxu0 %v836
      %3696 = vmatmul.mubr.bf16.gmra.mrb[0].mxu0 %v822
      %v3697 = vpop.f32.mrb[0].mxu0
      %v3698 = vadd.f32 %v3657, %v3697
      %v3699 = vpop.f32.mrb[0].mxu0
      %v3700 = vadd.f32 %v3659, %v3699
      %v3701 = vpop.f32.mrb[0].mxu0
      %v3702 = vpop.f32.mrb[0].mxu0
      %3703 = vdwg.mxu0
      %3704 = vmatprep.subr.bf16.mxu0 %v2842
      %3705 = vmatpush1.bf16.msra.mxu0 %v2841
      %3706 = vmatprep.subr.bf16.mxu0 %v2846
      %3707 = vmatpush1.bf16.msra.mxu0 %v2845
      %3708 = vmatprep.subr.bf16.mxu0 %v2850
      %3709 = vmatpush1.bf16.msra.mxu0 %v2849
      %3710 = vmatprep.subr.bf16.mxu0 %v2854
      %3711 = vmatpush1.bf16.msra.mxu0 %v2853
      %3712 = vmatprep.subr.bf16.mxu0 %v2858
      %3713 = vmatpush1.bf16.msra.mxu0 %v2857
      %3714 = vmatprep.subr.bf16.mxu0 %v2862
      %3715 = vmatpush1.bf16.msra.mxu0 %v2861
      %3716 = vmatprep.subr.bf16.mxu0 %v2866
      %3717 = vmatpush1.bf16.msra.mxu0 %v2865
      %3718 = vmatprep.subr.bf16.mxu0 %v2870
      %3719 = vmatpush1.bf16.msra.mxu0 %v2869
      %3720 = vmatprep.subr.bf16.mxu0 %v2874
      %3721 = vmatpush1.bf16.msra.mxu0 %v2873
      %3722 = vmatprep.subr.bf16.mxu0 %v2878
      %3723 = vmatpush1.bf16.msra.mxu0 %v2877
      %3724 = vmatprep.subr.bf16.mxu0 %v2882
      %3725 = vmatpush1.bf16.msra.mxu0 %v2881
      %3726 = vmatprep.subr.bf16.mxu0 %v2886
      %3727 = vmatpush1.bf16.msra.mxu0 %v2885
      %3728 = vmatprep.subr.bf16.mxu0 %v2890
      %3729 = vmatpush1.bf16.msra.mxu0 %v2889
      %3730 = vmatprep.subr.bf16.mxu0 %v2894
      %3731 = vmatpush1.bf16.msra.mxu0 %v2893
      %3732 = vmatprep.subr.bf16.mxu0 %v2898
      %3733 = vmatpush1.bf16.msra.mxu0 %v2897
      %3734 = vmatprep.subr.bf16.mxu0 %v2902
      %3735 = vmatpush1.bf16.msra.mxu0 %v2901
      %3736 = vmatprep.mubr.bf16.mxu0 %v840
      %3737 = vmatmul.mubr.bf16.gmra.mrb[0].mxu0 %v838
      %v3738 = vpop.f32.mrb[0].mxu0
      %v3739 = vadd.f32 %v3698, %v3738
      %v3740 = vpop.f32.mrb[0].mxu0
      %v3741 = vadd.f32 %v3700, %v3740
      %v3742 = vpop.f32.mrb[0].mxu0
      %v3743 = vpop.f32.mrb[0].mxu0
      %3744 = vdwg.mxu0
      %3745 = vmatprep.subr.bf16.mxu0 %v2396
      %3746 = vmatpush1.bf16.msra.mxu0 %v2395
      %3747 = vmatprep.subr.bf16.mxu0 %v2400
      %3748 = vmatpush1.bf16.msra.mxu0 %v2399
      %3749 = vmatprep.subr.bf16.mxu0 %v2404
      %3750 = vmatpush1.bf16.msra.mxu0 %v2403
      %3751 = vmatprep.subr.bf16.mxu0 %v2408
      %3752 = vmatpush1.bf16.msra.mxu0 %v2407
      %3753 = vmatprep.subr.bf16.mxu0 %v2412
      %3754 = vmatpush1.bf16.msra.mxu0 %v2411
      %3755 = vmatprep.subr.bf16.mxu0 %v2416
      %3756 = vmatpush1.bf16.msra.mxu0 %v2415
      %3757 = vmatprep.subr.bf16.mxu0 %v2420
      %3758 = vmatpush1.bf16.msra.mxu0 %v2419
      %3759 = vmatprep.subr.bf16.mxu0 %v2424
      %3760 = vmatpush1.bf16.msra.mxu0 %v2423
      %3761 = vmatprep.subr.bf16.mxu0 %v2428
      %3762 = vmatpush1.bf16.msra.mxu0 %v2427
      %3763 = vmatprep.subr.bf16.mxu0 %v2432
      %3764 = vmatpush1.bf16.msra.mxu0 %v2431
      %3765 = vmatprep.subr.bf16.mxu0 %v2436
      %3766 = vmatpush1.bf16.msra.mxu0 %v2435
      %3767 = vmatprep.subr.bf16.mxu0 %v2440
      %3768 = vmatpush1.bf16.msra.mxu0 %v2439
      %3769 = vmatprep.subr.bf16.mxu0 %v2444
      %3770 = vmatpush1.bf16.msra.mxu0 %v2443
      %3771 = vmatprep.subr.bf16.mxu0 %v2448
      %3772 = vmatpush1.bf16.msra.mxu0 %v2447
      %3773 = vmatprep.subr.bf16.mxu0 %v2452
      %3774 = vmatpush1.bf16.msra.mxu0 %v2451
      %3775 = vmatprep.subr.bf16.mxu0 %v2456
      %3776 = vmatpush1.bf16.msra.mxu0 %v2455
      %3777 = vmatprep.mubr.bf16.mxu0 %v780
      %3778 = vmatmul.mubr.bf16.gmra.mrb[0].mxu0 %v766
      %v3779 = vpop.f32.mrb[0].mxu0
      %v3780 = vadd.f32 0.0, %v3779
      %v3781 = vpop.f32.mrb[0].mxu0
      %v3782 = vadd.f32 0.0, %v3781
      %v3783 = vpop.f32.mrb[0].mxu0
      %v3784 = vpop.f32.mrb[0].mxu0
      %3785 = vdwg.mxu0
      %3786 = vmatprep.subr.bf16.mxu0 %v2460
      %3787 = vmatpush1.bf16.msra.mxu0 %v2459
      %3788 = vmatprep.subr.bf16.mxu0 %v2464
      %3789 = vmatpush1.bf16.msra.mxu0 %v2463
      %3790 = vmatprep.subr.bf16.mxu0 %v2468
      %3791 = vmatpush1.bf16.msra.mxu0 %v2467
      %3792 = vmatprep.subr.bf16.mxu0 %v2472
      %3793 = vmatpush1.bf16.msra.mxu0 %v2471
      %3794 = vmatprep.subr.bf16.mxu0 %v2476
      %3795 = vmatpush1.bf16.msra.mxu0 %v2475
      %3796 = vmatprep.subr.bf16.mxu0 %v2480
      %3797 = vmatpush1.bf16.msra.mxu0 %v2479
      %3798 = vmatprep.subr.bf16.mxu0 %v2484
      %3799 = vmatpush1.bf16.msra.mxu0 %v2483
      %3800 = vmatprep.subr.bf16.mxu0 %v2488
      %3801 = vmatpush1.bf16.msra.mxu0 %v2487
      %3802 = vmatprep.subr.bf16.mxu0 %v2492
      %3803 = vmatpush1.bf16.msra.mxu0 %v2491
      %3804 = vmatprep.subr.bf16.mxu0 %v2496
      %3805 = vmatpush1.bf16.msra.mxu0 %v2495
      %3806 = vmatprep.subr.bf16.mxu0 %v2500
      %3807 = vmatpush1.bf16.msra.mxu0 %v2499
      %3808 = vmatprep.subr.bf16.mxu0 %v2504
      %3809 = vmatpush1.bf16.msra.mxu0 %v2503
      %3810 = vmatprep.subr.bf16.mxu0 %v2508
      %3811 = vmatpush1.bf16.msra.mxu0 %v2507
      %3812 = vmatprep.subr.bf16.mxu0 %v2512
      %3813 = vmatpush1.bf16.msra.mxu0 %v2511
      %3814 = vmatprep.subr.bf16.mxu0 %v2516
      %3815 = vmatpush1.bf16.msra.mxu0 %v2515
      %3816 = vmatprep.subr.bf16.mxu0 %v2520
      %3817 = vmatpush1.bf16.msra.mxu0 %v2519
      %3818 = vmatprep.mubr.bf16.mxu0 %v790
      %3819 = vmatmul.mubr.bf16.gmra.mrb[0].mxu0 %v788
      %v3820 = vpop.f32.mrb[0].mxu0
      %v3821 = vadd.f32 %v3780, %v3820
      %v3822 = vpop.f32.mrb[0].mxu0
      %v3823 = vadd.f32 %v3782, %v3822
      %v3824 = vpop.f32.mrb[0].mxu0
      %v3825 = vpop.f32.mrb[0].mxu0
      %3826 = vdwg.mxu0
      %3827 = vmatprep.subr.bf16.mxu0 %v2524
      %3828 = vmatpush1.bf16.msra.mxu0 %v2523
      %3829 = vmatprep.subr.bf16.mxu0 %v2528
      %3830 = vmatpush1.bf16.msra.mxu0 %v2527
      %3831 = vmatprep.subr.bf16.mxu0 %v2532
      %3832 = vmatpush1.bf16.msra.mxu0 %v2531
      %3833 = vmatprep.subr.bf16.mxu0 %v2536
      %3834 = vmatpush1.bf16.msra.mxu0 %v2535
      %3835 = vmatprep.subr.bf16.mxu0 %v2540
      %3836 = vmatpush1.bf16.msra.mxu0 %v2539
      %3837 = vmatprep.subr.bf16.mxu0 %v2544
      %3838 = vmatpush1.bf16.msra.mxu0 %v2543
      %3839 = vmatprep.subr.bf16.mxu0 %v2548
      %3840 = vmatpush1.bf16.msra.mxu0 %v2547
      %3841 = vmatprep.subr.bf16.mxu0 %v2552
      %3842 = vmatpush1.bf16.msra.mxu0 %v2551
      %3843 = vmatprep.subr.bf16.mxu0 %v2556
      %3844 = vmatpush1.bf16.msra.mxu0 %v2555
      %3845 = vmatprep.subr.bf16.mxu0 %v2560
      %3846 = vmatpush1.bf16.msra.mxu0 %v2559
      %3847 = vmatprep.subr.bf16.mxu0 %v2564
      %3848 = vmatpush1.bf16.msra.mxu0 %v2563
      %3849 = vmatprep.subr.bf16.mxu0 %v2568
      %3850 = vmatpush1.bf16.msra.mxu0 %v2567
      %3851 = vmatprep.subr.bf16.mxu0 %v2572
      %3852 = vmatpush1.bf16.msra.mxu0 %v2571
      %3853 = vmatprep.subr.bf16.mxu0 %v2576
      %3854 = vmatpush1.bf16.msra.mxu0 %v2575
      %3855 = vmatprep.subr.bf16.mxu0 %v2580
      %3856 = vmatpush1.bf16.msra.mxu0 %v2579
      %3857 = vmatprep.subr.bf16.mxu0 %v2584
      %3858 = vmatpush1.bf16.msra.mxu0 %v2583
      %3859 = vmatprep.mubr.bf16.mxu0 %v787
      %3860 = vmatmul.mubr.bf16.gmra.mrb[0].mxu0 %v773
      %v3861 = vpop.f32.mrb[0].mxu0
      %v3862 = vadd.f32 %v3821, %v3861
      %v3863 = vpop.f32.mrb[0].mxu0
      %v3864 = vadd.f32 %v3823, %v3863
      %v3865 = vpop.f32.mrb[0].mxu0
      %v3866 = vpop.f32.mrb[0].mxu0
      %3867 = vdwg.mxu0
      %3868 = vmatprep.subr.bf16.mxu0 %v2588
      %3869 = vmatpush1.bf16.msra.mxu0 %v2587
      %3870 = vmatprep.subr.bf16.mxu0 %v2592
      %3871 = vmatpush1.bf16.msra.mxu0 %v2591
      %3872 = vmatprep.subr.bf16.mxu0 %v2596
      %3873 = vmatpush1.bf16.msra.mxu0 %v2595
      %3874 = vmatprep.subr.bf16.mxu0 %v2600
      %3875 = vmatpush1.bf16.msra.mxu0 %v2599
      %3876 = vmatprep.subr.bf16.mxu0 %v2604
      %3877 = vmatpush1.bf16.msra.mxu0 %v2603
      %3878 = vmatprep.subr.bf16.mxu0 %v2608
      %3879 = vmatpush1.bf16.msra.mxu0 %v2607
      %3880 = vmatprep.subr.bf16.mxu0 %v2612
      %3881 = vmatpush1.bf16.msra.mxu0 %v2611
      %3882 = vmatprep.subr.bf16.mxu0 %v2616
      %3883 = vmatpush1.bf16.msra.mxu0 %v2615
      %3884 = vmatprep.subr.bf16.mxu0 %v2620
      %3885 = vmatpush1.bf16.msra.mxu0 %v2619
      %3886 = vmatprep.subr.bf16.mxu0 %v2624
      %3887 = vmatpush1.bf16.msra.mxu0 %v2623
      %3888 = vmatprep.subr.bf16.mxu0 %v2628
      %3889 = vmatpush1.bf16.msra.mxu0 %v2627
      %3890 = vmatprep.subr.bf16.mxu0 %v2632
      %3891 = vmatpush1.bf16.msra.mxu0 %v2631
      %3892 = vmatprep.subr.bf16.mxu0 %v2636
      %3893 = vmatpush1.bf16.msra.mxu0 %v2635
      %3894 = vmatprep.subr.bf16.mxu0 %v2640
      %3895 = vmatpush1.bf16.msra.mxu0 %v2639
      %3896 = vmatprep.subr.bf16.mxu0 %v2644
      %3897 = vmatpush1.bf16.msra.mxu0 %v2643
      %3898 = vmatprep.subr.bf16.mxu0 %v2648
      %3899 = vmatpush1.bf16.msra.mxu0 %v2647
      %3900 = vmatprep.mubr.bf16.mxu0 %v791
      %3901 = vmatmul.mubr.bf16.gmra.mrb[0].mxu0 %v789
      %v3902 = vpop.f32.mrb[0].mxu0
      %v3903 = vadd.f32 %v3862, %v3902
      %v3904 = vpop.f32.mrb[0].mxu0
      %v3905 = vadd.f32 %v3864, %v3904
      %v3906 = vpop.f32.mrb[0].mxu0
      %v3907 = vpop.f32.mrb[0].mxu0
      %3908 = vdwg.mxu0
      %3909 = vmatprep.subr.bf16.mxu0 %v2652
      %3910 = vmatpush1.bf16.msra.mxu0 %v2651
      %3911 = vmatprep.subr.bf16.mxu0 %v2656
      %3912 = vmatpush1.bf16.msra.mxu0 %v2655
      %3913 = vmatprep.subr.bf16.mxu0 %v2660
      %3914 = vmatpush1.bf16.msra.mxu0 %v2659
      %3915 = vmatprep.subr.bf16.mxu0 %v2664
      %3916 = vmatpush1.bf16.msra.mxu0 %v2663
      %3917 = vmatprep.subr.bf16.mxu0 %v2668
      %3918 = vmatpush1.bf16.msra.mxu0 %v2667
      %3919 = vmatprep.subr.bf16.mxu0 %v2672
      %3920 = vmatpush1.bf16.msra.mxu0 %v2671
      %3921 = vmatprep.subr.bf16.mxu0 %v2676
      %3922 = vmatpush1.bf16.msra.mxu0 %v2675
      %3923 = vmatprep.subr.bf16.mxu0 %v2680
      %3924 = vmatpush1.bf16.msra.mxu0 %v2679
      %3925 = vmatprep.subr.bf16.mxu0 %v2684
      %3926 = vmatpush1.bf16.msra.mxu0 %v2683
      %3927 = vmatprep.subr.bf16.mxu0 %v2688
      %3928 = vmatpush1.bf16.msra.mxu0 %v2687
      %3929 = vmatprep.subr.bf16.mxu0 %v2692
      %3930 = vmatpush1.bf16.msra.mxu0 %v2691
      %3931 = vmatprep.subr.bf16.mxu0 %v2696
      %3932 = vmatpush1.bf16.msra.mxu0 %v2695
      %3933 = vmatprep.subr.bf16.mxu0 %v2700
      %3934 = vmatpush1.bf16.msra.mxu0 %v2699
      %3935 = vmatprep.subr.bf16.mxu0 %v2704
      %3936 = vmatpush1.bf16.msra.mxu0 %v2703
      %3937 = vmatprep.subr.bf16.mxu0 %v2708
      %3938 = vmatpush1.bf16.msra.mxu0 %v2707
      %3939 = vmatprep.subr.bf16.mxu0 %v2712
      %3940 = vmatpush1.bf16.msra.mxu0 %v2711
      %3941 = vmatprep.mubr.bf16.mxu0 %v829
      %3942 = vmatmul.mubr.bf16.gmra.mrb[0].mxu0 %v815
      %v3943 = vpop.f32.mrb[0].mxu0
      %v3944 = vadd.f32 %v3903, %v3943
      %v3945 = vpop.f32.mrb[0].mxu0
      %v3946 = vadd.f32 %v3905, %v3945
      %v3947 = vpop.f32.mrb[0].mxu0
      %v3948 = vpop.f32.mrb[0].mxu0
      %3949 = vdwg.mxu0
      %3950 = vmatprep.subr.bf16.mxu0 %v2716
      %3951 = vmatpush1.bf16.msra.mxu0 %v2715
      %3952 = vmatprep.subr.bf16.mxu0 %v2720
      %3953 = vmatpush1.bf16.msra.mxu0 %v2719
      %3954 = vmatprep.subr.bf16.mxu0 %v2724
      %3955 = vmatpush1.bf16.msra.mxu0 %v2723
      %3956 = vmatprep.subr.bf16.mxu0 %v2728
      %3957 = vmatpush1.bf16.msra.mxu0 %v2727
      %3958 = vmatprep.subr.bf16.mxu0 %v2732
      %3959 = vmatpush1.bf16.msra.mxu0 %v2731
      %3960 = vmatprep.subr.bf16.mxu0 %v2736
      %3961 = vmatpush1.bf16.msra.mxu0 %v2735
      %3962 = vmatprep.subr.bf16.mxu0 %v2740
      %3963 = vmatpush1.bf16.msra.mxu0 %v2739
      %3964 = vmatprep.subr.bf16.mxu0 %v2744
      %3965 = vmatpush1.bf16.msra.mxu0 %v2743
      %3966 = vmatprep.subr.bf16.mxu0 %v2748
      %3967 = vmatpush1.bf16.msra.mxu0 %v2747
      %3968 = vmatprep.subr.bf16.mxu0 %v2752
      %3969 = vmatpush1.bf16.msra.mxu0 %v2751
      %3970 = vmatprep.subr.bf16.mxu0 %v2756
      %3971 = vmatpush1.bf16.msra.mxu0 %v2755
      %3972 = vmatprep.subr.bf16.mxu0 %v2760
      %3973 = vmatpush1.bf16.msra.mxu0 %v2759
      %3974 = vmatprep.subr.bf16.mxu0 %v2764
      %3975 = vmatpush1.bf16.msra.mxu0 %v2763
      %3976 = vmatprep.subr.bf16.mxu0 %v2768
      %3977 = vmatpush1.bf16.msra.mxu0 %v2767
      %3978 = vmatprep.subr.bf16.mxu0 %v2772
      %3979 = vmatpush1.bf16.msra.mxu0 %v2771
      %3980 = vmatprep.subr.bf16.mxu0 %v2776
      %3981 = vmatpush1.bf16.msra.mxu0 %v2775
      %3982 = vmatprep.mubr.bf16.mxu0 %v839
      %3983 = vmatmul.mubr.bf16.gmra.mrb[0].mxu0 %v837
      %v3984 = vpop.f32.mrb[0].mxu0
      %v3985 = vadd.f32 %v3944, %v3984
      %v3986 = vpop.f32.mrb[0].mxu0
      %v3987 = vadd.f32 %v3946, %v3986
      %v3988 = vpop.f32.mrb[0].mxu0
      %v3989 = vpop.f32.mrb[0].mxu0
      %3990 = vdwg.mxu0
      %3991 = vmatprep.subr.bf16.mxu0 %v2780
      %3992 = vmatpush1.bf16.msra.mxu0 %v2779
      %3993 = vmatprep.subr.bf16.mxu0 %v2784
      %3994 = vmatpush1.bf16.msra.mxu0 %v2783
      %3995 = vmatprep.subr.bf16.mxu0 %v2788
      %3996 = vmatpush1.bf16.msra.mxu0 %v2787
      %3997 = vmatprep.subr.bf16.mxu0 %v2792
      %3998 = vmatpush1.bf16.msra.mxu0 %v2791
      %3999 = vmatprep.subr.bf16.mxu0 %v2796
      %4000 = vmatpush1.bf16.msra.mxu0 %v2795
      %4001 = vmatprep.subr.bf16.mxu0 %v2800
      %4002 = vmatpush1.bf16.msra.mxu0 %v2799
      %4003 = vmatprep.subr.bf16.mxu0 %v2804
      %4004 = vmatpush1.bf16.msra.mxu0 %v2803
      %4005 = vmatprep.subr.bf16.mxu0 %v2808
      %4006 = vmatpush1.bf16.msra.mxu0 %v2807
      %4007 = vmatprep.subr.bf16.mxu0 %v2812
      %4008 = vmatpush1.bf16.msra.mxu0 %v2811
      %4009 = vmatprep.subr.bf16.mxu0 %v2816
      %4010 = vmatpush1.bf16.msra.mxu0 %v2815
      %4011 = vmatprep.subr.bf16.mxu0 %v2820
      %4012 = vmatpush1.bf16.msra.mxu0 %v2819
      %4013 = vmatprep.subr.bf16.mxu0 %v2824
      %4014 = vmatpush1.bf16.msra.mxu0 %v2823
      %4015 = vmatprep.subr.bf16.mxu0 %v2828
      %4016 = vmatpush1.bf16.msra.mxu0 %v2827
      %4017 = vmatprep.subr.bf16.mxu0 %v2832
      %4018 = vmatpush1.bf16.msra.mxu0 %v2831
      %4019 = vmatprep.subr.bf16.mxu0 %v2836
      %4020 = vmatpush1.bf16.msra.mxu0 %v2835
      %4021 = vmatprep.subr.bf16.mxu0 %v2840
      %4022 = vmatpush1.bf16.msra.mxu0 %v2839
      %4023 = vmatprep.mubr.bf16.mxu0 %v836
      %4024 = vmatmul.mubr.bf16.gmra.mrb[0].mxu0 %v822
      %v4025 = vpop.f32.mrb[0].mxu0
      %v4026 = vadd.f32 %v3985, %v4025
      %v4027 = vpop.f32.mrb[0].mxu0
      %v4028 = vadd.f32 %v3987, %v4027
      %v4029 = vpop.f32.mrb[0].mxu0
      %v4030 = vpop.f32.mrb[0].mxu0
      %4031 = vdwg.mxu0
      %4032 = vmatprep.subr.bf16.mxu0 %v2844
      %4033 = vmatpush1.bf16.msra.mxu0 %v2843
      %4034 = vmatprep.subr.bf16.mxu0 %v2848
      %4035 = vmatpush1.bf16.msra.mxu0 %v2847
      %4036 = vmatprep.subr.bf16.mxu0 %v2852
      %4037 = vmatpush1.bf16.msra.mxu0 %v2851
      %4038 = vmatprep.subr.bf16.mxu0 %v2856
      %4039 = vmatpush1.bf16.msra.mxu0 %v2855
      %4040 = vmatprep.subr.bf16.mxu0 %v2860
      %4041 = vmatpush1.bf16.msra.mxu0 %v2859
      %4042 = vmatprep.subr.bf16.mxu0 %v2864
      %4043 = vmatpush1.bf16.msra.mxu0 %v2863
      %4044 = vmatprep.subr.bf16.mxu0 %v2868
      %4045 = vmatpush1.bf16.msra.mxu0 %v2867
      %4046 = vmatprep.subr.bf16.mxu0 %v2872
      %4047 = vmatpush1.bf16.msra.mxu0 %v2871
      %4048 = vmatprep.subr.bf16.mxu0 %v2876
      %4049 = vmatpush1.bf16.msra.mxu0 %v2875
      %4050 = vmatprep.subr.bf16.mxu0 %v2880
      %4051 = vmatpush1.bf16.msra.mxu0 %v2879
      %4052 = vmatprep.subr.bf16.mxu0 %v2884
      %4053 = vmatpush1.bf16.msra.mxu0 %v2883
      %4054 = vmatprep.subr.bf16.mxu0 %v2888
      %4055 = vmatpush1.bf16.msra.mxu0 %v2887
      %4056 = vmatprep.subr.bf16.mxu0 %v2892
      %4057 = vmatpush1.bf16.msra.mxu0 %v2891
      %4058 = vmatprep.subr.bf16.mxu0 %v2896
      %4059 = vmatpush1.bf16.msra.mxu0 %v2895
      %4060 = vmatprep.subr.bf16.mxu0 %v2900
      %4061 = vmatpush1.bf16.msra.mxu0 %v2899
      %4062 = vmatprep.subr.bf16.mxu0 %v2904
      %4063 = vmatpush1.bf16.msra.mxu0 %v2903
      %4064 = vmatprep.mubr.bf16.mxu0 %v840
      %4065 = vmatmul.mubr.bf16.gmra.mrb[0].mxu0 %v838
      %v4066 = vpop.f32.mrb[0].mxu0
      %v4067 = vadd.f32 %v4026, %v4066
      %v4068 = vpop.f32.mrb[0].mxu0
      %v4069 = vadd.f32 %v4028, %v4068
      %v4070 = vpop.f32.mrb[0].mxu0
      %v4071 = vpop.f32.mrb[0].mxu0
      %4072 = vdwg.mxu0
      %v4077 = vcombine.low %v3739, %v3741
      %v4078 = vcombine.low %v4067, %v4069
      %v4080 = vunpack.c.l.s4 1983009808
      %v4081 = vunpack.c.0.s8 %v4080
      %v4082 = vlaneseq
      %v4083 = vshrl.u32 %v4082, 7
      %v4084 = vsub.s32 %v4081, %v4083
      %v4085 = vrot.slane %v4077, %v4084
      %v4087 = vunpack.c.l.s4 1983009808
      %v4088 = vunpack.c.0.s8 %v4087
      %v4089 = vlaneseq
      %v4090 = vshrl.u32 %v4089, 7
      %v4091 = vsub.s32 %v4088, %v4090
      %v4092 = vrot.slane %v4078, %v4091
      %v4093 = vcombine.low %v4085, %v4092
      %v4095 = vadd.f32 %v226, %v4093
      %4096 = vst [vmem:[#allocation2] sm:$0xff] %v4095
      %p4097 = scmp.eq.s32.totalorder %s19, 3
      // Predicated region
      $region37: #{cnn_cifar_forward.12} parent=31 // pred_check
        %p4098 = pneg %p4097
      $region38: #{cnn_cifar_forward.12} parent=31 // pred_check_branch
        %4100 = sbr.rel (%p4098) target = $region40
      $region39: #{cnn_cifar_forward.12} parent=31 // pred_region
        %v4101 = vld [vmem:[#allocation2] sm:$0xff]
        %v4102 = vld [vmem:[%s2] sm:$0xf]
        %v4104 = vlaneseq
        %v4105 = vshrl.u32 %v4104, 7
        %v4106 = vsub.s32 0, %v4105
        %v4107 = vrot.slane %v4102, %v4106
        %v4108 = vlaneseq
        %v4109 = vshrl.u32 %v4108, 7
        %v4110 = vsub.s32 1, %v4109
        %v4111 = vrot.slane %v4102, %v4110
        %v4112 = vlaneseq
        %v4113 = vshrl.u32 %v4112, 7
        %v4114 = vsub.s32 2, %v4113
        %v4115 = vrot.slane %v4102, %v4114
        %v4116 = vlaneseq
        %v4117 = vshrl.u32 %v4116, 7
        %v4118 = vsub.s32 3, %v4117
        %v4119 = vrot.slane %v4102, %v4118
        %v4120 = vcombine.low %v4107, %v4111
        %v4121 = vcombine.low %v4115, %v4119
        %v4123 = vunpack.c.l.s4 1983009808
        %v4124 = vunpack.c.0.s8 %v4123
        %v4125 = vlaneseq
        %v4126 = vshrl.u32 %v4125, 7
        %v4127 = vsub.s32 %v4124, %v4126
        %v4128 = vrot.slane %v4120, %v4127
        %v4130 = vunpack.c.l.s4 1983009808
        %v4131 = vunpack.c.0.s8 %v4130
        %v4132 = vlaneseq
        %v4133 = vshrl.u32 %v4132, 7
        %v4134 = vsub.s32 %v4131, %v4133
        %v4135 = vrot.slane %v4121, %v4134
        %v4136 = vcombine.low %v4128, %v4135
        %v4138 = vadd.f32 %v4101, %v4136
        %v4139 = vmax.f32 %v4138, 0.0
        %4140 = vst [vmem:[%s220] sm:$0xff] %v4139
      $region40: #{cnn_cifar_forward.12} parent=31 // pred_fallthru
        _
      %p4141 = scmp.lt.s32.totalorder %s18, 0
      %s4142 = scalar_select %p4141, %s18, 0
      %s4143 = smul.addr %s4142, 4
      %s4144 = smul.addr %s4143, 2
      %s4145 = scalar_lea.vmem %s3, %s4144
      // Predicated region
      $region41: #{cnn_cifar_forward.12} parent=31 // pred_check
        %p4146 = pneg %p119
      $region42: #{cnn_cifar_forward.12} parent=31 // pred_check_branch
        %4148 = sbr.rel (%p4146) target = $region44
      $region43: #{cnn_cifar_forward.12} parent=31 // pred_region
        _
      $region44: #{cnn_cifar_forward.12} parent=31 // pred_fallthru
        _
      // Predicated region
      $region45: #{cnn_cifar_forward.12} parent=31 // pred_check
        %p4149 = pneg %p119
      $region46: #{cnn_cifar_forward.12} parent=31 // pred_check_branch
        %4151 = sbr.rel (%p4149) target = $region48
      $region47: #{cnn_cifar_forward.12} parent=31 // pred_region
        %p4152 = scmp.lt.s32.totalorder %s18, 0
        %s4153 = scalar_select %p4152, %s18, 0
        %s4154 = smul.addr %s4153, 4
        %s4155 = smul.addr %s4154, 2
        %s4156 = scalar_lea.vmem %s3, %s4155
      $region48: #{cnn_cifar_forward.12} parent=31 // pred_fallthru
        _
    $region32: #{cnn_cifar_forward.12} parent=5 // pred_fallthru
      _
    %p4157 = scmp.le.s32.totalorder 2, %s9
    // Predicated region
    $region49: #{cnn_cifar_forward.12} parent=5 // pred_check
      %p4158 = pneg %p4157
    $region50: #{cnn_cifar_forward.12} parent=5 // pred_check_branch
      %4160 = sbr.rel (%p4158) target = $region52
    $region51: #{cnn_cifar_forward.12} parent=5 // pred_region
      %s4161 = ssub.s32 %s9, 2
    $region52: #{cnn_cifar_forward.12} parent=5 // pred_fallthru
      _
  $region6: #{cnn_cifar_forward.12} parent=0 // loop_footer
    %s13 = sadd.s32 1, %s9
  $region7: #{cnn_cifar_forward.12} parent=0 // loop_footer_branch
    %8 = sbr.rel target = $region3
  $region8: #{cnn_cifar_forward.12} parent=0 // loop_exit
    _

// kernel: cnn_cifar_forward.13
$region0: #{cnn_cifar_forward.13}
  #allocation0 [shape = 'u32[]', space=smem, size = 0x4, offset = 0x4, fixed_abs, tag = 'smem constant byte address 0x4 - core index']
  #allocation1 [shape = 'u32[144,128]{1,0:T(1,128)}', space=vmem, size = 0x12000, scoped, tag = 'internal scratch']
  %s0 = inlined_call_operand.vmem [shape: bf16[2,512], index: 0, kind: input, shape index: {}]
  %s1 = inlined_call_operand.vmem [shape: bf16[512,128], index: 1, kind: input, shape index: {}]
  %s2 = inlined_call_operand.vmem [shape: f32[1,128], index: 2, kind: input, shape index: {}]
  %s3 = inlined_call_operand.hbm [shape: f32[2,128], index: 3, kind: output, shape index: {}]
  %s4 = sld [smem:[#allocation0]]
  $region22: #{cnn_cifar_forward.13} parent=0
    _
  %s6 = ssub.s32 1, %s4
  %s7 = scalar_select 0, %s6, %s4
  $region1: #{cnn_cifar_forward.13} parent=0
    #allocation2 [shape = 'u8[1024]{0}', space=vmem, size = 0x400, scoped, tag = 'output window, operand 0, single buffered']
    #allocation3 [shape = 's32[1]{0}', space=sflag, size = 0x4, scoped, tag = 'scoped memory for cnn_cifar_forward.13']
    %8 = vsyncpa [#allocation3], 0
    // Predicated region
    $region2: #{cnn_cifar_forward.13} parent=1 // pred_check
      _
    $region3: #{cnn_cifar_forward.13} parent=1 // pred_check_branch
      %10 = sbr.rel (0) target = $region5
    $region4: #{cnn_cifar_forward.13} parent=1 // pred_region
      _
    $region5: #{cnn_cifar_forward.13} parent=1 // pred_fallthru
      _
    // Predicated region
    $region6: #{cnn_cifar_forward.13} parent=1 // pred_check
      _
    $region7: #{cnn_cifar_forward.13} parent=1 // pred_check_branch
      %12 = sbr.rel (0) target = $region9
    $region8: #{cnn_cifar_forward.13} parent=1 // pred_region
      _
    $region9: #{cnn_cifar_forward.13} parent=1 // pred_fallthru
      _
    // Predicated region
    $region10: #{cnn_cifar_forward.13} parent=1 // pred_check
      _
    $region11: #{cnn_cifar_forward.13} parent=1 // pred_check_branch
      %14 = sbr.rel (0) target = $region13
    $region12: #{cnn_cifar_forward.13} parent=1 // pred_region
      _
    $region13: #{cnn_cifar_forward.13} parent=1 // pred_fallthru
      _
    %v16 = vld [vmem:[%s0] sm:$0xf]
    %v17 = vld [vmem:[%s1] sm:$0xf]
    %v18 = vld [vmem:[%s1 + $0x4] sm:$0xf]
    %v19 = vld [vmem:[%s1 + $0x8] sm:$0xf]
    %v20 = vld [vmem:[%s1 + $0xc] sm:$0xf]
    %v21 = vld [vmem:[%s1 + $0x10] sm:$0xf]
    %v22 = vld [vmem:[%s1 + $0x14] sm:$0xf]
    %v23 = vld [vmem:[%s1 + $0x18] sm:$0xf]
    %v24 = vld [vmem:[%s1 + $0x1c] sm:$0xf]
    %v25 = vld [vmem:[%s1 + $0x20] sm:$0xf]
    %v26 = vld [vmem:[%s1 + $0x24] sm:$0xf]
    %v27 = vld [vmem:[%s1 + $0x28] sm:$0xf]
    %v28 = vld [vmem:[%s1 + $0x2c] sm:$0xf]
    %v29 = vld [vmem:[%s1 + $0x30] sm:$0xf]
    %v30 = vld [vmem:[%s1 + $0x34] sm:$0xf]
    %v31 = vld [vmem:[%s1 + $0x38] sm:$0xf]
    %v32 = vld [vmem:[%s1 + $0x3c] sm:$0xf]
    %v33 = vld [vmem:[%s1 + $0x40] sm:$0xf]
    %v34 = vld [vmem:[%s1 + $0x44] sm:$0xf]
    %v35 = vld [vmem:[%s1 + $0x48] sm:$0xf]
    %v36 = vld [vmem:[%s1 + $0x4c] sm:$0xf]
    %v37 = vld [vmem:[%s1 + $0x50] sm:$0xf]
    %v38 = vld [vmem:[%s1 + $0x54] sm:$0xf]
    %v39 = vld [vmem:[%s1 + $0x58] sm:$0xf]
    %v40 = vld [vmem:[%s1 + $0x5c] sm:$0xf]
    %v41 = vld [vmem:[%s1 + $0x60] sm:$0xf]
    %v42 = vld [vmem:[%s1 + $0x64] sm:$0xf]
    %v43 = vld [vmem:[%s1 + $0x68] sm:$0xf]
    %v44 = vld [vmem:[%s1 + $0x6c] sm:$0xf]
    %v45 = vld [vmem:[%s1 + $0x70] sm:$0xf]
    %v46 = vld [vmem:[%s1 + $0x74] sm:$0xf]
    %v47 = vld [vmem:[%s1 + $0x78] sm:$0xf]
    %v48 = vld [vmem:[%s1 + $0x7c] sm:$0xf]
    %v49 = vld [vmem:[%s1 + $0x80] sm:$0xf]
    %v50 = vld [vmem:[%s1 + $0x84] sm:$0xf]
    %v51 = vld [vmem:[%s1 + $0x88] sm:$0xf]
    %v52 = vld [vmem:[%s1 + $0x8c] sm:$0xf]
    %v53 = vld [vmem:[%s1 + $0x90] sm:$0xf]
    %v54 = vld [vmem:[%s1 + $0x94] sm:$0xf]
    %v55 = vld [vmem:[%s1 + $0x98] sm:$0xf]
    %v56 = vld [vmem:[%s1 + $0x9c] sm:$0xf]
    %v57 = vld [vmem:[%s1 + $0xa0] sm:$0xf]
    %v58 = vld [vmem:[%s1 + $0xa4] sm:$0xf]
    %v59 = vld [vmem:[%s1 + $0xa8] sm:$0xf]
    %v60 = vld [vmem:[%s1 + $0xac] sm:$0xf]
    %v61 = vld [vmem:[%s1 + $0xb0] sm:$0xf]
    %v62 = vld [vmem:[%s1 + $0xb4] sm:$0xf]
    %v63 = vld [vmem:[%s1 + $0xb8] sm:$0xf]
    %v64 = vld [vmem:[%s1 + $0xbc] sm:$0xf]
    %v65 = vld [vmem:[%s1 + $0xc0] sm:$0xf]
    %v66 = vld [vmem:[%s1 + $0xc4] sm:$0xf]
    %v67 = vld [vmem:[%s1 + $0xc8] sm:$0xf]
    %v68 = vld [vmem:[%s1 + $0xcc] sm:$0xf]
    %v69 = vld [vmem:[%s1 + $0xd0] sm:$0xf]
    %v70 = vld [vmem:[%s1 + $0xd4] sm:$0xf]
    %v71 = vld [vmem:[%s1 + $0xd8] sm:$0xf]
    %v72 = vld [vmem:[%s1 + $0xdc] sm:$0xf]
    %v73 = vld [vmem:[%s1 + $0xe0] sm:$0xf]
    %v74 = vld [vmem:[%s1 + $0xe4] sm:$0xf]
    %v75 = vld [vmem:[%s1 + $0xe8] sm:$0xf]
    %v76 = vld [vmem:[%s1 + $0xec] sm:$0xf]
    %v77 = vld [vmem:[%s1 + $0xf0] sm:$0xf]
    %v78 = vld [vmem:[%s1 + $0xf4] sm:$0xf]
    %v79 = vld [vmem:[%s1 + $0xf8] sm:$0xf]
    %v80 = vld [vmem:[%s1 + $0xfc] sm:$0xf]
    %v81 = vld [vmem:[%s2] sm:$0x1]
    %v83 = vlaneseq
    %v84 = vshrl.u32 %v83, 7
    %v85 = vsub.s32 0, %v84
    %v86 = vrot.slane %v81, %v85
    %v90 = vunpack.c.l.s4 1966171168
    %v91 = vunpack.c.0.s8 %v90
    %v92 = vlaneseq
    %v93 = vshrl.u32 %v92, 7
    %v94 = vsub.s32 %v91, %v93
    %v95 = vrot.slane %v16, %v94
    %v96 = vcombine.high %v95, %v95
    %v98 = vunpack.c.l.s4 1966171168
    %v99 = vunpack.c.0.s8 %v98
    %v100 = vlaneseq
    %v101 = vshrl.u32 %v100, 7
    %v102 = vsub.s32 %v99, %v101
    %v103 = vrot.slane %v95, %v102
    %v105 = vunpack.c.l.s4 1966171168
    %v106 = vunpack.c.0.s8 %v105
    %v107 = vlaneseq
    %v108 = vshrl.u32 %v107, 7
    %v109 = vsub.s32 %v106, %v108
    %v110 = vrot.slane %v96, %v109
    %v111 = vcombine.high %v103, %v103
    %v112 = vcombine.high %v110, %v110
    %v181 = vunpack.c.l.b16 %v17
    %v182 = vunpack.c.l.b16 %v18
    %v183 = vunpack.c.l.b16 %v19
    %v184 = vunpack.c.l.b16 %v20
    %v185 = vunpack.c.l.b16 %v21
    %v186 = vunpack.c.l.b16 %v22
    %v187 = vunpack.c.l.b16 %v23
    %v188 = vunpack.c.l.b16 %v24
    %v189 = vunpack.c.l.b16 %v25
    %v190 = vunpack.c.l.b16 %v26
    %v191 = vunpack.c.l.b16 %v27
    %v192 = vunpack.c.l.b16 %v28
    %v193 = vunpack.c.l.b16 %v29
    %v194 = vunpack.c.l.b16 %v30
    %v195 = vunpack.c.l.b16 %v31
    %v196 = vunpack.c.l.b16 %v32
    %v197 = vunpack.c.l.b16 %v33
    %v198 = vunpack.c.l.b16 %v34
    %v199 = vunpack.c.l.b16 %v35
    %v200 = vunpack.c.l.b16 %v36
    %v201 = vunpack.c.l.b16 %v37
    %v202 = vunpack.c.l.b16 %v38
    %v203 = vunpack.c.l.b16 %v39
    %v204 = vunpack.c.l.b16 %v40
    %v205 = vunpack.c.l.b16 %v41
    %v206 = vunpack.c.l.b16 %v42
    %v207 = vunpack.c.l.b16 %v43
    %v208 = vunpack.c.l.b16 %v44
    %v209 = vunpack.c.l.b16 %v45
    %v210 = vunpack.c.l.b16 %v46
    %v211 = vunpack.c.l.b16 %v47
    %v212 = vunpack.c.l.b16 %v48
    %v213 = vunpack.c.l.b16 %v49
    %v214 = vunpack.c.l.b16 %v50
    %v215 = vunpack.c.l.b16 %v51
    %v216 = vunpack.c.l.b16 %v52
    %v217 = vunpack.c.l.b16 %v53
    %v218 = vunpack.c.l.b16 %v54
    %v219 = vunpack.c.l.b16 %v55
    %v220 = vunpack.c.l.b16 %v56
    %v221 = vunpack.c.l.b16 %v57
    %v222 = vunpack.c.l.b16 %v58
    %v223 = vunpack.c.l.b16 %v59
    %v224 = vunpack.c.l.b16 %v60
    %v225 = vunpack.c.l.b16 %v61
    %v226 = vunpack.c.l.b16 %v62
    %v227 = vunpack.c.l.b16 %v63
    %v228 = vunpack.c.l.b16 %v64
    %v229 = vunpack.c.l.b16 %v65
    %v230 = vunpack.c.l.b16 %v66
    %v231 = vunpack.c.l.b16 %v67
    %v232 = vunpack.c.l.b16 %v68
    %v233 = vunpack.c.l.b16 %v69
    %v234 = vunpack.c.l.b16 %v70
    %v235 = vunpack.c.l.b16 %v71
    %v236 = vunpack.c.l.b16 %v72
    %v237 = vunpack.c.l.b16 %v73
    %v238 = vunpack.c.l.b16 %v74
    %v239 = vunpack.c.l.b16 %v75
    %v240 = vunpack.c.l.b16 %v76
    %v241 = vunpack.c.l.b16 %v77
    %v242 = vunpack.c.l.b16 %v78
    %v243 = vunpack.c.l.b16 %v79
    %v244 = vunpack.c.l.b16 %v80
    %v245 = vpack.c.b16 %v182, %v181
    %v246 = vpack.c.b16 %v184, %v183
    %v247 = vpack.c.b16 %v186, %v185
    %v248 = vpack.c.b16 %v188, %v187
    %v249 = vpack.c.b16 %v190, %v189
    %v250 = vpack.c.b16 %v192, %v191
    %v251 = vpack.c.b16 %v194, %v193
    %v252 = vpack.c.b16 %v196, %v195
    %v253 = vpack.c.b16 %v198, %v197
    %v254 = vpack.c.b16 %v200, %v199
    %v255 = vpack.c.b16 %v202, %v201
    %v256 = vpack.c.b16 %v204, %v203
    %v257 = vpack.c.b16 %v206, %v205
    %v258 = vpack.c.b16 %v208, %v207
    %v259 = vpack.c.b16 %v210, %v209
    %v260 = vpack.c.b16 %v212, %v211
    %v261 = vpack.c.b16 %v214, %v213
    %v262 = vpack.c.b16 %v216, %v215
    %v263 = vpack.c.b16 %v218, %v217
    %v264 = vpack.c.b16 %v220, %v219
    %v265 = vpack.c.b16 %v222, %v221
    %v266 = vpack.c.b16 %v224, %v223
    %v267 = vpack.c.b16 %v226, %v225
    %v268 = vpack.c.b16 %v228, %v227
    %v269 = vpack.c.b16 %v230, %v229
    %v270 = vpack.c.b16 %v232, %v231
    %v271 = vpack.c.b16 %v234, %v233
    %v272 = vpack.c.b16 %v236, %v235
    %v273 = vpack.c.b16 %v238, %v237
    %v274 = vpack.c.b16 %v240, %v239
    %v275 = vpack.c.b16 %v242, %v241
    %v276 = vpack.c.b16 %v244, %v243
    %309 = vmatprep.subr.bf16.mxu0 0
    %310 = vmatpush1.bf16.msra.mxu0 %v245
    %311 = vmatprep.subr.bf16.mxu0 0
    %312 = vmatpush1.bf16.msra.mxu0 %v246
    %313 = vmatprep.subr.bf16.mxu0 0
    %314 = vmatpush1.bf16.msra.mxu0 %v247
    %315 = vmatprep.subr.bf16.mxu0 0
    %316 = vmatpush1.bf16.msra.mxu0 %v248
    %317 = vmatprep.subr.bf16.mxu0 0
    %318 = vmatpush1.bf16.msra.mxu0 %v249
    %319 = vmatprep.subr.bf16.mxu0 0
    %320 = vmatpush1.bf16.msra.mxu0 %v250
    %321 = vmatprep.subr.bf16.mxu0 0
    %322 = vmatpush1.bf16.msra.mxu0 %v251
    %323 = vmatprep.subr.bf16.mxu0 0
    %324 = vmatpush1.bf16.msra.mxu0 %v252
    %325 = vmatprep.subr.bf16.mxu0 0
    %326 = vmatpush1.bf16.msra.mxu0 %v253
    %327 = vmatprep.subr.bf16.mxu0 0
    %328 = vmatpush1.bf16.msra.mxu0 %v254
    %329 = vmatprep.subr.bf16.mxu0 0
    %330 = vmatpush1.bf16.msra.mxu0 %v255
    %331 = vmatprep.subr.bf16.mxu0 0
    %332 = vmatpush1.bf16.msra.mxu0 %v256
    %333 = vmatprep.subr.bf16.mxu0 0
    %334 = vmatpush1.bf16.msra.mxu0 %v257
    %335 = vmatprep.subr.bf16.mxu0 0
    %336 = vmatpush1.bf16.msra.mxu0 %v258
    %337 = vmatprep.subr.bf16.mxu0 0
    %338 = vmatpush1.bf16.msra.mxu0 %v259
    %339 = vmatprep.subr.bf16.mxu0 0
    %340 = vmatpush1.bf16.msra.mxu0 %v260
    %341 = vmatprep.mubr.bf16.mxu0 %v110
    %342 = vmatmul.mubr.bf16.gmra.mrb[0].mxu0 %v103
    %v343 = vpop.f32.mrb[0].mxu0
    %v344 = vadd.f32 %v86, %v343
    %v345 = vpop.f32.mrb[0].mxu0
    %v346 = vpop.f32.mrb[0].mxu0
    %v347 = vpop.f32.mrb[0].mxu0
    %348 = vdwg.mxu0
    %349 = vmatprep.subr.bf16.mxu0 0
    %350 = vmatpush1.bf16.msra.mxu0 %v261
    %351 = vmatprep.subr.bf16.mxu0 0
    %352 = vmatpush1.bf16.msra.mxu0 %v262
    %353 = vmatprep.subr.bf16.mxu0 0
    %354 = vmatpush1.bf16.msra.mxu0 %v263
    %355 = vmatprep.subr.bf16.mxu0 0
    %356 = vmatpush1.bf16.msra.mxu0 %v264
    %357 = vmatprep.subr.bf16.mxu0 0
    %358 = vmatpush1.bf16.msra.mxu0 %v265
    %359 = vmatprep.subr.bf16.mxu0 0
    %360 = vmatpush1.bf16.msra.mxu0 %v266
    %361 = vmatprep.subr.bf16.mxu0 0
    %362 = vmatpush1.bf16.msra.mxu0 %v267
    %363 = vmatprep.subr.bf16.mxu0 0
    %364 = vmatpush1.bf16.msra.mxu0 %v268
    %365 = vmatprep.subr.bf16.mxu0 0
    %366 = vmatpush1.bf16.msra.mxu0 %v269
    %367 = vmatprep.subr.bf16.mxu0 0
    %368 = vmatpush1.bf16.msra.mxu0 %v270
    %369 = vmatprep.subr.bf16.mxu0 0
    %370 = vmatpush1.bf16.msra.mxu0 %v271
    %371 = vmatprep.subr.bf16.mxu0 0
    %372 = vmatpush1.bf16.msra.mxu0 %v272
    %373 = vmatprep.subr.bf16.mxu0 0
    %374 = vmatpush1.bf16.msra.mxu0 %v273
    %375 = vmatprep.subr.bf16.mxu0 0
    %376 = vmatpush1.bf16.msra.mxu0 %v274
    %377 = vmatprep.subr.bf16.mxu0 0
    %378 = vmatpush1.bf16.msra.mxu0 %v275
    %379 = vmatprep.subr.bf16.mxu0 0
    %380 = vmatpush1.bf16.msra.mxu0 %v276
    %381 = vmatprep.mubr.bf16.mxu0 %v112
    %382 = vmatmul.mubr.bf16.gmra.mrb[0].mxu0 %v111
    %v383 = vpop.f32.mrb[0].mxu0
    %v384 = vadd.f32 %v344, %v383
    %v385 = vpop.f32.mrb[0].mxu0
    %v386 = vpop.f32.mrb[0].mxu0
    %v387 = vpop.f32.mrb[0].mxu0
    %388 = vdwg.mxu0
    %389 = vst [vmem:[#allocation2] sm:$0x3] %v384
    // Predicated region
    $region14: #{cnn_cifar_forward.13} parent=1 // pred_check
      _
    $region15: #{cnn_cifar_forward.13} parent=1 // pred_check_branch
      %391 = sbr.rel (0) target = $region17
    $region16: #{cnn_cifar_forward.13} parent=1 // pred_region
      %s393 = ssub.s32 32, 32
      %394 = vsyncadd [#allocation3], %s393
      %s396 = sshll.u32 [#allocation2], 4
      %s397 = int_to_ptr.vmem [resolvable:$true] %s396
      %399 = dma.vmem_to_hbm [thread:$0]  %s397, 32, %s3, [#allocation3]
    $region17: #{cnn_cifar_forward.13} parent=1 // pred_fallthru
      _
    // Predicated region
    $region18: #{cnn_cifar_forward.13} parent=1 // pred_check
      _
    $region19: #{cnn_cifar_forward.13} parent=1 // pred_check_branch
      %401 = sbr.rel (0) target = $region21
    $region20: #{cnn_cifar_forward.13} parent=1 // pred_region
      %402 = dma.done [#allocation3], 32
    $region21: #{cnn_cifar_forward.13} parent=1 // pred_fallthru
      _
    %403 = vsyncpa [#allocation3], 1

</llo_original>
